<compile_context>
chip_gen: v5e
topology: v5e:2x2
jax: 0.10.0
libtpu: 0.0.40
codegen_flags: <defaults>
</compile_context>

<pallas_src>
import functools

import jax
import jax.numpy as jnp
from jax.experimental import pallas as pl
from jax.experimental.pallas import tpu as pltpu


K = 4  # conv kernel size (4x4, stride 1, padding 1)


# ----------------------------- Pallas kernels ------------------------------

def _conv_relu_pool_kernel(xe_ref, xo_ref, w_ref, b_ref, o_ref, *,
                           hpool, wpool, cout, use_mxu):
    """Fused Conv2d(4x4, s1, p1) + bias + ReLU + MaxPool(2x2) for one image.

    xe_ref/xo_ref : (1, Hp, ceil(Wp/2), Cin) even/odd column planes of the
                    zero-padded NHWC input (grid axis = batch).
    w_ref         : (16, Cin, Cout), taps flattened as t = ky*4 + kx.
    b_ref         : (1, Cout) float32.
    o_ref         : (1, Hpool, Wpool, Cout) pooled output.
    """
    planes = (xe_ref, xo_ref)
    bias = b_ref[...].astype(jnp.float32)                 # (1, Cout), hoisted

    @pl.loop(0, hpool)
    def _(yp):
        pooled = None
        for dy in range(2):                               # pool-window rows
            for dx in range(2):                           # pool-window cols
                acc = jnp.zeros((wpool, cout), jnp.float32)
                for ky in range(K):
                    row = 2 * yp + dy + ky                # padded input row
                    for kx in range(K):
                        q = dx + kx                       # padded col parity/offset
                        xs = planes[q % 2][0, row, pl.ds(q // 2, wpool), :]
                        wt = w_ref[ky * K + kx]           # (Cin, Cout)
                        if use_mxu:
                            acc = acc + jnp.dot(
                                xs, wt, preferred_element_type=jnp.float32)
                        else:
                            # Cin == 1: broadcast FMA on the VPU, in f32.
                            acc = acc + (xs.astype(jnp.float32)
                                         * wt.astype(jnp.float32))
                v = jnp.maximum(acc + bias, 0.0)          # bias + ReLU (f32)
                pooled = v if pooled is None else jnp.maximum(pooled, v)
        o_ref[0, yp] = pooled.astype(o_ref.dtype)


_VMEM = pl.BlockSpec(memory_space=pltpu.MemorySpace.VMEM)


def _fc_head_kernel(x_ref, l_ref, w1_ref, b1_ref, wh_ref, wl_ref, b2_ref, o_ref):
    """out = relu(x @ w1 + b1) @ wh + l @ wl + b2  (fused fc1 + concat + fc2)."""
    h = jnp.dot(x_ref[...], w1_ref[...], preferred_element_type=jnp.float32)
    h = jnp.maximum(h + b1_ref[...], 0.0)
    out = jnp.dot(h.astype(wh_ref.dtype), wh_ref[...],
                  preferred_element_type=jnp.float32)
    out = out + jnp.dot(l_ref[...], wl_ref[...],
                        preferred_element_type=jnp.float32)
    o_ref[...] = (out + b2_ref[...]).astype(o_ref.dtype)


# ------------------------------ layer wrappers ------------------------------

def conv_relu_pool(x, w, b, *, use_mxu, out_dtype=jnp.bfloat16):
    """x: (N, H, W, Cin) NHWC.  w: (16, Cin, Cout).  b: (1, Cout) f32."""
    N, H, W, Cin = x.shape
    Cout = w.shape[-1]
    Hp, Wp = H + 2, W + 2
    Hpool, Wpool = (H - 1) // 2, (W - 1) // 2            # conv out = H-1, floor pool

    # Wrapper glue: zero-pad (padding=1) and split into even/odd column planes
    # so all in-kernel tap loads are contiguous (Wpool, Cin) slabs.
    xp = jnp.pad(x, ((0, 0), (1, 1), (1, 1), (0, 0)))
    xe = xp[:, :, 0::2, :]
    xo = xp[:, :, 1::2, :]

    kernel = functools.partial(_conv_relu_pool_kernel, hpool=Hpool,
                               wpool=Wpool, cout=Cout, use_mxu=use_mxu)
    return pl.pallas_call(
        kernel,
        out_shape=jax.ShapeDtypeStruct((N, Hpool, Wpool, Cout), out_dtype),
        grid=(N,),
        in_specs=[
            pl.BlockSpec((1, Hp, xe.shape[2], Cin), lambda n: (n, 0, 0, 0)),
            pl.BlockSpec((1, Hp, xo.shape[2], Cin), lambda n: (n, 0, 0, 0)),
            pl.BlockSpec((K * K, Cin, Cout), lambda n: (0, 0, 0)),
            pl.BlockSpec((1, Cout), lambda n: (0, 0)),
        ],
        out_specs=pl.BlockSpec((1, Hpool, Wpool, Cout), lambda n: (n, 0, 0, 0)),
        compiler_params=pltpu.CompilerParams(
            dimension_semantics=("parallel",)),          # use both TCs on v7x
    )(xe, xo, w, b)


def fc_head(x, l, w1, b1, wh, wl, b2):
    N = x.shape[0]
    n_out = b2.shape[-1]
    return pl.pallas_call(
        _fc_head_kernel,
        out_shape=jax.ShapeDtypeStruct((N, n_out), jnp.float32),
        in_specs=[_VMEM] * 7,
        out_specs=_VMEM,
    )(x, l, w1, b1, wh, wl, b2)


def encoder_forward(prep, x_nchw, l):
    """Matches Encoder.forward(x, l).  x_nchw: (N, 1, 28, 28), l: (N, 10)."""
    x = jnp.transpose(x_nchw, (0, 2, 3, 1)).astype(jnp.float32)    # NCHW -> NHWC
    x = conv_relu_pool(x, prep["conv1_w"], prep["conv1_b"], use_mxu=False)  # (N,13,13,64)
    x = conv_relu_pool(x, prep["conv2_w"], prep["conv2_b"], use_mxu=True)   # (N, 6, 6,64)
    x = conv_relu_pool(x, prep["conv3_w"], prep["conv3_b"], use_mxu=True)   # (N, 2, 2,64)
    x = x.reshape(x.shape[0], -1)           # NHWC flatten; fc1_w rows pre-permuted
    return fc_head(x, l.astype(jnp.bfloat16),
                   prep["fc1_w"], prep["fc1_b"],
                   prep["fc2_wh"], prep["fc2_wl"], prep["fc2_b"])


# ------------------------------ parameters ----------------------------------

def init_params(key, num_z, filters=64):
    """f32 master params.  conv weights: (KH, KW, Cin, Cout) == torch
    (Cout,Cin,KH,KW).transpose(2,3,1,0); fc weights: (in, out) == torch.T,
    with fc1's `in` axis in torch's (c, h, w) flatten order."""
    def uniform(k, shape, fan_in):
        bound = 1.0 / jnp.sqrt(float(fan_in))
        return jax.random.uniform(k, shape, jnp.float32, -bound, bound)

    ks = jax.random.split(key, 10)
    return {
        "conv1_w": uniform(ks[0], (4, 4, 1, filters), 1 * 16),
        "conv1_b": uniform(ks[1], (filters,), 1 * 16),
        "conv2_w": uniform(ks[2], (4, 4, filters, filters), filters * 16),
        "conv2_b": uniform(ks[3], (filters,), filters * 16),
        "conv3_w": uniform(ks[4], (4, 4, filters, filters), filters * 16),
        "conv3_b": uniform(ks[5], (filters,), filters * 16),
        "fc1_w": uniform(ks[6], (filters * 4, filters), filters * 4),
        "fc1_b": uniform(ks[7], (filters,), filters * 4),
        "fc2_w": uniform(ks[8], (filters + 10, 2 * num_z), filters + 10),
        "fc2_b": uniform(ks[9], (2 * num_z,), filters + 10),
    }


def prepare_params(params):
    """One-time repack of the f32 master params into kernel-friendly layouts."""
    bf16, f32 = jnp.bfloat16, jnp.float32

    def conv_w(w, dtype):                      # (4,4,Cin,Cout) -> (16,Cin,Cout)
        kh, kw, cin, cout = w.shape
        return w.reshape(kh * kw, cin, cout).astype(dtype)

    # Permute fc1_w rows from torch's (c, h, w) flatten order to the NHWC
    # flatten order (h, w, c) used by the Pallas forward pass.
    fc1_w = params["fc1_w"]
    cout = params["conv3_w"].shape[-1]
    hw = int(round((fc1_w.shape[0] // cout) ** 0.5))
    w1p = (fc1_w.reshape(cout, hw, hw, fc1_w.shape[1])
                .transpose(1, 2, 0, 3)
                .reshape(fc1_w.shape))

    fc2_w = params["fc2_w"]
    n_hidden = fc1_w.shape[1]

    return {
        "conv1_w": conv_w(params["conv1_w"], f32),        # VPU path stays f32
        "conv1_b": params["conv1_b"].reshape(1, -1).astype(f32),
        "conv2_w": conv_w(params["conv2_w"], bf16),
        "conv2_b": params["conv2_b"].reshape(1, -1).astype(f32),
        "conv3_w": conv_w(params["conv3_w"], bf16),
        "conv3_b": params["conv3_b"].reshape(1, -1).astype(f32),
        "fc1_w": w1p.astype(bf16),
        "fc1_b": params["fc1_b"].reshape(1, -1).astype(f32),
        "fc2_wh": fc2_w[:n_hidden].astype(bf16),          # acts on fc1 output
        "fc2_wl": fc2_w[n_hidden:].astype(bf16),          # acts on the label l
        "fc2_b": params["fc2_b"].reshape(1, -1).astype(f32),
    }


# --------------------------- pure-JAX reference ------------------------------

def encoder_reference(params, x_nchw, l):
    """f32 XLA reference mirroring the PyTorch module exactly."""
    def block(x, w, b):
        y = jax.lax.conv_general_dilated(
            x, jnp.transpose(w, (3, 2, 0, 1)), (1, 1), ((1, 1), (1, 1)),
            dimension_numbers=("NCHW", "OIHW", "NCHW"))
        y = jax.nn.relu(y + b[None, :, None, None])
        return jax.lax.reduce_window(y, -jnp.inf, jax.lax.max,
                                     (1, 1, 2, 2), (1, 1, 2, 2), "VALID")

    x = block(x_nchw, params["conv1_w"], params["conv1_b"])
    x = block(x, params["conv2_w"], params["conv2_b"])
    x = block(x, params["conv3_w"], params["conv3_b"])
    x = x.reshape(x.shape[0], -1)                         # NCHW flatten (c,h,w)
    x = jax.nn.relu(x @ params["fc1_w"] + params["fc1_b"])
    x = jnp.concatenate([x, l], axis=-1)
    return x @ params["fc2_w"] + params["fc2_b"]


# ----------------------------------- main -----------------------------------

if __name__ == "__main__":
    num_z = 8
    batch = 2

    key = jax.random.PRNGKey(0)
    k_params, k_x, k_l = jax.random.split(key, 3)

    params = init_params(k_params, num_z)
    prep = prepare_params(params)                          # done once, outside jit

    # fc1 in_features = 64*4 forces a 28x28 input: 28 ->27->13 ->12->6 ->5->2.
    x = jax.random.normal(k_x, (batch, 1, 28, 28), dtype=jnp.float32)
    labels = jax.random.randint(k_l, (batch,), 0, 10)
    l = jax.nn.one_hot(labels, 10, dtype=jnp.float32)

    fwd = jax.jit(functools.partial(encoder_forward, prep))
    out = jax.block_until_ready(fwd(x, l))

    ref = jax.block_until_ready(jax.jit(encoder_reference)(params, x, l))
    rel = float(jnp.linalg.norm(out - ref) / (jnp.linalg.norm(ref) + 1e-6))

    assert out.shape == (batch, 2 * num_z), out.shape
    assert bool(jnp.all(jnp.isfinite(out)))
    assert rel < 5e-2, f"relative L2 error vs reference too large: {rel:.4f}"
    print("KERNEL_OK")
</pallas_src>

<mosaic_0001>
module attributes {stable_mosaic.version = 11 : i64} {
  func.func @_conv_relu_pool_kernel(%arg0: i32, %arg1: memref<1x30x15x1xf32, #tpu.memory_space<vmem>>, %arg2: memref<1x30x15x1xf32, #tpu.memory_space<vmem>>, %arg3: memref<16x1x64xf32, #tpu.memory_space<vmem>>, %arg4: memref<1x64xf32, #tpu.memory_space<vmem>>, %arg5: memref<1x13x13x64xbf16, #tpu.memory_space<vmem>>) attributes {dimension_semantics = [#tpu.dimension_semantics<parallel>], iteration_bounds = array<i64: 2>, scalar_prefetch = 0 : i64, scratch_operands = 0 : i64, tpu.core_type = #tpu.core_type<tc>, window_params = [{transform_indices = @transform_0, window_bounds = array<i64: 1, 30, 15, 1>}, {transform_indices = @transform_1, window_bounds = array<i64: 1, 30, 15, 1>}, {pipeline_mode = #tpu.pipeline_mode<synchronous>, transform_indices = @transform_2, window_bounds = array<i64: 16, 1, 64>}, {pipeline_mode = #tpu.pipeline_mode<synchronous>, transform_indices = @transform_3, window_bounds = array<i64: 1, 64>}, {transform_indices = @transform_4, window_bounds = array<i64: 1, 13, 13, 64>}]} {
    %c0 = arith.constant 0 : index
    %c0_0 = arith.constant 0 : index
    %0 = vector.load %arg4[%c0, %c0_0] : memref<1x64xf32, #tpu.memory_space<vmem>>, vector<1x64xf32>
    %c0_i32 = arith.constant 0 : i32
    %c13_i32 = arith.constant 13 : i32
    %1 = arith.addi %c0_i32, %c13_i32 : i32
    %c1_i32 = arith.constant 1 : i32
    scf.for %arg6 = %c0_i32 to %1 step %c1_i32  : i32 {
      %c1_i32_2 = arith.constant 1 : i32
      %2 = arith.muli %arg6, %c1_i32_2 : i32
      %c0_i32_3 = arith.constant 0 : i32
      %3 = arith.addi %c0_i32_3, %2 : i32
      %cst = arith.constant 0.000000e+00 : f32
      %4 = vector.broadcast %cst : f32 to vector<13x64xf32>
      %c2_i32 = arith.constant 2 : i32
      %5 = arith.muli %c2_i32, %3 : i32
      %c0_i32_4 = arith.constant 0 : i32
      %6 = arith.addi %5, %c0_i32_4 : i32
      %c0_i32_5 = arith.constant 0 : i32
      %7 = arith.addi %6, %c0_i32_5 : i32
      %c0_6 = arith.constant 0 : index
      %8 = arith.index_cast %7 : i32 to index
      %c0_7 = arith.constant 0 : index
      %c0_8 = arith.constant 0 : index
      %9 = vector.load %arg1[%c0_6, %8, %c0_7, %c0_8] : memref<1x30x15x1xf32, #tpu.memory_space<vmem>>, vector<1x1x13x1xf32>
      %10 = vector.shape_cast %9 : vector<1x1x13x1xf32> to vector<13x1xf32>
      %c0_9 = arith.constant 0 : index
      %c0_10 = arith.constant 0 : index
      %c0_11 = arith.constant 0 : index
      %11 = vector.load %arg3[%c0_9, %c0_10, %c0_11] : memref<16x1x64xf32, #tpu.memory_space<vmem>>, vector<1x1x64xf32>
      %12 = vector.shape_cast %11 : vector<1x1x64xf32> to vector<1x64xf32>
      %13 = vector.broadcast %10 : vector<13x1xf32> to vector<13x64xf32>
      %14 = vector.broadcast %12 : vector<1x64xf32> to vector<13x64xf32>
      %15 = arith.mulf %13, %14 : vector<13x64xf32>
      %16 = arith.addf %4, %15 : vector<13x64xf32>
      %c0_12 = arith.constant 0 : index
      %17 = arith.index_cast %7 : i32 to index
      %c0_13 = arith.constant 0 : index
      %c0_14 = arith.constant 0 : index
      %18 = vector.load %arg2[%c0_12, %17, %c0_13, %c0_14] : memref<1x30x15x1xf32, #tpu.memory_space<vmem>>, vector<1x1x13x1xf32>
      %19 = vector.shape_cast %18 : vector<1x1x13x1xf32> to vector<13x1xf32>
      %c1 = arith.constant 1 : index
      %c0_15 = arith.constant 0 : index
      %c0_16 = arith.constant 0 : index
      %20 = vector.load %arg3[%c1, %c0_15, %c0_16] : memref<16x1x64xf32, #tpu.memory_space<vmem>>, vector<1x1x64xf32>
      %21 = vector.shape_cast %20 : vector<1x1x64xf32> to vector<1x64xf32>
      %22 = vector.broadcast %19 : vector<13x1xf32> to vector<13x64xf32>
      %23 = vector.broadcast %21 : vector<1x64xf32> to vector<13x64xf32>
      %24 = arith.mulf %22, %23 : vector<13x64xf32>
      %25 = arith.addf %16, %24 : vector<13x64xf32>
      %c0_17 = arith.constant 0 : index
      %26 = arith.index_cast %7 : i32 to index
      %c1_18 = arith.constant 1 : index
      %c0_19 = arith.constant 0 : index
      %27 = vector.load %arg1[%c0_17, %26, %c1_18, %c0_19] : memref<1x30x15x1xf32, #tpu.memory_space<vmem>>, vector<1x1x13x1xf32>
      %28 = vector.shape_cast %27 : vector<1x1x13x1xf32> to vector<13x1xf32>
      %c2 = arith.constant 2 : index
      %c0_20 = arith.constant 0 : index
      %c0_21 = arith.constant 0 : index
      %29 = vector.load %arg3[%c2, %c0_20, %c0_21] : memref<16x1x64xf32, #tpu.memory_space<vmem>>, vector<1x1x64xf32>
      %30 = vector.shape_cast %29 : vector<1x1x64xf32> to vector<1x64xf32>
      %31 = vector.broadcast %28 : vector<13x1xf32> to vector<13x64xf32>
      %32 = vector.broadcast %30 : vector<1x64xf32> to vector<13x64xf32>
      %33 = arith.mulf %31, %32 : vector<13x64xf32>
      %34 = arith.addf %25, %33 : vector<13x64xf32>
      %c0_22 = arith.constant 0 : index
      %35 = arith.index_cast %7 : i32 to index
      %c1_23 = arith.constant 1 : index
      %c0_24 = arith.constant 0 : index
      %36 = vector.load %arg2[%c0_22, %35, %c1_23, %c0_24] : memref<1x30x15x1xf32, #tpu.memory_space<vmem>>, vector<1x1x13x1xf32>
      %37 = vector.shape_cast %36 : vector<1x1x13x1xf32> to vector<13x1xf32>
      %c3 = arith.constant 3 : index
      %c0_25 = arith.constant 0 : index
      %c0_26 = arith.constant 0 : index
      %38 = vector.load %arg3[%c3, %c0_25, %c0_26] : memref<16x1x64xf32, #tpu.memory_space<vmem>>, vector<1x1x64xf32>
      %39 = vector.shape_cast %38 : vector<1x1x64xf32> to vector<1x64xf32>
      %40 = vector.broadcast %37 : vector<13x1xf32> to vector<13x64xf32>
      %41 = vector.broadcast %39 : vector<1x64xf32> to vector<13x64xf32>
      %42 = arith.mulf %40, %41 : vector<13x64xf32>
      %43 = arith.addf %34, %42 : vector<13x64xf32>
      %c2_i32_27 = arith.constant 2 : i32
      %44 = arith.muli %c2_i32_27, %3 : i32
      %c0_i32_28 = arith.constant 0 : i32
      %45 = arith.addi %44, %c0_i32_28 : i32
      %c1_i32_29 = arith.constant 1 : i32
      %46 = arith.addi %45, %c1_i32_29 : i32
      %c0_30 = arith.constant 0 : index
      %47 = arith.index_cast %46 : i32 to index
      %c0_31 = arith.constant 0 : index
      %c0_32 = arith.constant 0 : index
      %48 = vector.load %arg1[%c0_30, %47, %c0_31, %c0_32] : memref<1x30x15x1xf32, #tpu.memory_space<vmem>>, vector<1x1x13x1xf32>
      %49 = vector.shape_cast %48 : vector<1x1x13x1xf32> to vector<13x1xf32>
      %c4 = arith.constant 4 : index
      %c0_33 = arith.constant 0 : index
      %c0_34 = arith.constant 0 : index
      %50 = vector.load %arg3[%c4, %c0_33, %c0_34] : memref<16x1x64xf32, #tpu.memory_space<vmem>>, vector<1x1x64xf32>
      %51 = vector.shape_cast %50 : vector<1x1x64xf32> to vector<1x64xf32>
      %52 = vector.broadcast %49 : vector<13x1xf32> to vector<13x64xf32>
      %53 = vector.broadcast %51 : vector<1x64xf32> to vector<13x64xf32>
      %54 = arith.mulf %52, %53 : vector<13x64xf32>
      %55 = arith.addf %43, %54 : vector<13x64xf32>
      %c0_35 = arith.constant 0 : index
      %56 = arith.index_cast %46 : i32 to index
      %c0_36 = arith.constant 0 : index
      %c0_37 = arith.constant 0 : index
      %57 = vector.load %arg2[%c0_35, %56, %c0_36, %c0_37] : memref<1x30x15x1xf32, #tpu.memory_space<vmem>>, vector<1x1x13x1xf32>
      %58 = vector.shape_cast %57 : vector<1x1x13x1xf32> to vector<13x1xf32>
      %c5 = arith.constant 5 : index
      %c0_38 = arith.constant 0 : index
      %c0_39 = arith.constant 0 : index
      %59 = vector.load %arg3[%c5, %c0_38, %c0_39] : memref<16x1x64xf32, #tpu.memory_space<vmem>>, vector<1x1x64xf32>
      %60 = vector.shape_cast %59 : vector<1x1x64xf32> to vector<1x64xf32>
      %61 = vector.broadcast %58 : vector<13x1xf32> to vector<13x64xf32>
      %62 = vector.broadcast %60 : vector<1x64xf32> to vector<13x64xf32>
      %63 = arith.mulf %61, %62 : vector<13x64xf32>
      %64 = arith.addf %55, %63 : vector<13x64xf32>
      %c0_40 = arith.constant 0 : index
      %65 = arith.index_cast %46 : i32 to index
      %c1_41 = arith.constant 1 : index
      %c0_42 = arith.constant 0 : index
      %66 = vector.load %arg1[%c0_40, %65, %c1_41, %c0_42] : memref<1x30x15x1xf32, #tpu.memory_space<vmem>>, vector<1x1x13x1xf32>
      %67 = vector.shape_cast %66 : vector<1x1x13x1xf32> to vector<13x1xf32>
      %c6 = arith.constant 6 : index
      %c0_43 = arith.constant 0 : index
      %c0_44 = arith.constant 0 : index
      %68 = vector.load %arg3[%c6, %c0_43, %c0_44] : memref<16x1x64xf32, #tpu.memory_space<vmem>>, vector<1x1x64xf32>
      %69 = vector.shape_cast %68 : vector<1x1x64xf32> to vector<1x64xf32>
      %70 = vector.broadcast %67 : vector<13x1xf32> to vector<13x64xf32>
      %71 = vector.broadcast %69 : vector<1x64xf32> to vector<13x64xf32>
      %72 = arith.mulf %70, %71 : vector<13x64xf32>
      %73 = arith.addf %64, %72 : vector<13x64xf32>
      %c0_45 = arith.constant 0 : index
      %74 = arith.index_cast %46 : i32 to index
      %c1_46 = arith.constant 1 : index
      %c0_47 = arith.constant 0 : index
      %75 = vector.load %arg2[%c0_45, %74, %c1_46, %c0_47] : memref<1x30x15x1xf32, #tpu.memory_space<vmem>>, vector<1x1x13x1xf32>
      %76 = vector.shape_cast %75 : vector<1x1x13x1xf32> to vector<13x1xf32>
      %c7 = arith.constant 7 : index
      %c0_48 = arith.constant 0 : index
      %c0_49 = arith.constant 0 : index
      %77 = vector.load %arg3[%c7, %c0_48, %c0_49] : memref<16x1x64xf32, #tpu.memory_space<vmem>>, vector<1x1x64xf32>
      %78 = vector.shape_cast %77 : vector<1x1x64xf32> to vector<1x64xf32>
      %79 = vector.broadcast %76 : vector<13x1xf32> to vector<13x64xf32>
      %80 = vector.broadcast %78 : vector<1x64xf32> to vector<13x64xf32>
      %81 = arith.mulf %79, %80 : vector<13x64xf32>
      %82 = arith.addf %73, %81 : vector<13x64xf32>
      %c2_i32_50 = arith.constant 2 : i32
      %83 = arith.muli %c2_i32_50, %3 : i32
      %c0_i32_51 = arith.constant 0 : i32
      %84 = arith.addi %83, %c0_i32_51 : i32
      %c2_i32_52 = arith.constant 2 : i32
      %85 = arith.addi %84, %c2_i32_52 : i32
      %c0_53 = arith.constant 0 : index
      %86 = arith.index_cast %85 : i32 to index
      %c0_54 = arith.constant 0 : index
      %c0_55 = arith.constant 0 : index
      %87 = vector.load %arg1[%c0_53, %86, %c0_54, %c0_55] : memref<1x30x15x1xf32, #tpu.memory_space<vmem>>, vector<1x1x13x1xf32>
      %88 = vector.shape_cast %87 : vector<1x1x13x1xf32> to vector<13x1xf32>
      %c8 = arith.constant 8 : index
      %c0_56 = arith.constant 0 : index
      %c0_57 = arith.constant 0 : index
      %89 = vector.load %arg3[%c8, %c0_56, %c0_57] : memref<16x1x64xf32, #tpu.memory_space<vmem>>, vector<1x1x64xf32>
      %90 = vector.shape_cast %89 : vector<1x1x64xf32> to vector<1x64xf32>
      %91 = vector.broadcast %88 : vector<13x1xf32> to vector<13x64xf32>
      %92 = vector.broadcast %90 : vector<1x64xf32> to vector<13x64xf32>
      %93 = arith.mulf %91, %92 : vector<13x64xf32>
      %94 = arith.addf %82, %93 : vector<13x64xf32>
      %c0_58 = arith.constant 0 : index
      %95 = arith.index_cast %85 : i32 to index
      %c0_59 = arith.constant 0 : index
      %c0_60 = arith.constant 0 : index
      %96 = vector.load %arg2[%c0_58, %95, %c0_59, %c0_60] : memref<1x30x15x1xf32, #tpu.memory_space<vmem>>, vector<1x1x13x1xf32>
      %97 = vector.shape_cast %96 : vector<1x1x13x1xf32> to vector<13x1xf32>
      %c9 = arith.constant 9 : index
      %c0_61 = arith.constant 0 : index
      %c0_62 = arith.constant 0 : index
      %98 = vector.load %arg3[%c9, %c0_61, %c0_62] : memref<16x1x64xf32, #tpu.memory_space<vmem>>, vector<1x1x64xf32>
      %99 = vector.shape_cast %98 : vector<1x1x64xf32> to vector<1x64xf32>
      %100 = vector.broadcast %97 : vector<13x1xf32> to vector<13x64xf32>
      %101 = vector.broadcast %99 : vector<1x64xf32> to vector<13x64xf32>
      %102 = arith.mulf %100, %101 : vector<13x64xf32>
      %103 = arith.addf %94, %102 : vector<13x64xf32>
      %c0_63 = arith.constant 0 : index
      %104 = arith.index_cast %85 : i32 to index
      %c1_64 = arith.constant 1 : index
      %c0_65 = arith.constant 0 : index
      %105 = vector.load %arg1[%c0_63, %104, %c1_64, %c0_65] : memref<1x30x15x1xf32, #tpu.memory_space<vmem>>, vector<1x1x13x1xf32>
      %106 = vector.shape_cast %105 : vector<1x1x13x1xf32> to vector<13x1xf32>
      %c10 = arith.constant 10 : index
      %c0_66 = arith.constant 0 : index
      %c0_67 = arith.constant 0 : index
      %107 = vector.load %arg3[%c10, %c0_66, %c0_67] : memref<16x1x64xf32, #tpu.memory_space<vmem>>, vector<1x1x64xf32>
      %108 = vector.shape_cast %107 : vector<1x1x64xf32> to vector<1x64xf32>
      %109 = vector.broadcast %106 : vector<13x1xf32> to vector<13x64xf32>
      %110 = vector.broadcast %108 : vector<1x64xf32> to vector<13x64xf32>
      %111 = arith.mulf %109, %110 : vector<13x64xf32>
      %112 = arith.addf %103, %111 : vector<13x64xf32>
      %c0_68 = arith.constant 0 : index
      %113 = arith.index_cast %85 : i32 to index
      %c1_69 = arith.constant 1 : index
      %c0_70 = arith.constant 0 : index
      %114 = vector.load %arg2[%c0_68, %113, %c1_69, %c0_70] : memref<1x30x15x1xf32, #tpu.memory_space<vmem>>, vector<1x1x13x1xf32>
      %115 = vector.shape_cast %114 : vector<1x1x13x1xf32> to vector<13x1xf32>
      %c11 = arith.constant 11 : index
      %c0_71 = arith.constant 0 : index
      %c0_72 = arith.constant 0 : index
      %116 = vector.load %arg3[%c11, %c0_71, %c0_72] : memref<16x1x64xf32, #tpu.memory_space<vmem>>, vector<1x1x64xf32>
      %117 = vector.shape_cast %116 : vector<1x1x64xf32> to vector<1x64xf32>
      %118 = vector.broadcast %115 : vector<13x1xf32> to vector<13x64xf32>
      %119 = vector.broadcast %117 : vector<1x64xf32> to vector<13x64xf32>
      %120 = arith.mulf %118, %119 : vector<13x64xf32>
      %121 = arith.addf %112, %120 : vector<13x64xf32>
      %c2_i32_73 = arith.constant 2 : i32
      %122 = arith.muli %c2_i32_73, %3 : i32
      %c0_i32_74 = arith.constant 0 : i32
      %123 = arith.addi %122, %c0_i32_74 : i32
      %c3_i32 = arith.constant 3 : i32
      %124 = arith.addi %123, %c3_i32 : i32
      %c0_75 = arith.constant 0 : index
      %125 = arith.index_cast %124 : i32 to index
      %c0_76 = arith.constant 0 : index
      %c0_77 = arith.constant 0 : index
      %126 = vector.load %arg1[%c0_75, %125, %c0_76, %c0_77] : memref<1x30x15x1xf32, #tpu.memory_space<vmem>>, vector<1x1x13x1xf32>
      %127 = vector.shape_cast %126 : vector<1x1x13x1xf32> to vector<13x1xf32>
      %c12 = arith.constant 12 : index
      %c0_78 = arith.constant 0 : index
      %c0_79 = arith.constant 0 : index
      %128 = vector.load %arg3[%c12, %c0_78, %c0_79] : memref<16x1x64xf32, #tpu.memory_space<vmem>>, vector<1x1x64xf32>
      %129 = vector.shape_cast %128 : vector<1x1x64xf32> to vector<1x64xf32>
      %130 = vector.broadcast %127 : vector<13x1xf32> to vector<13x64xf32>
      %131 = vector.broadcast %129 : vector<1x64xf32> to vector<13x64xf32>
      %132 = arith.mulf %130, %131 : vector<13x64xf32>
      %133 = arith.addf %121, %132 : vector<13x64xf32>
      %c0_80 = arith.constant 0 : index
      %134 = arith.index_cast %124 : i32 to index
      %c0_81 = arith.constant 0 : index
      %c0_82 = arith.constant 0 : index
      %135 = vector.load %arg2[%c0_80, %134, %c0_81, %c0_82] : memref<1x30x15x1xf32, #tpu.memory_space<vmem>>, vector<1x1x13x1xf32>
      %136 = vector.shape_cast %135 : vector<1x1x13x1xf32> to vector<13x1xf32>
      %c13 = arith.constant 13 : index
      %c0_83 = arith.constant 0 : index
      %c0_84 = arith.constant 0 : index
      %137 = vector.load %arg3[%c13, %c0_83, %c0_84] : memref<16x1x64xf32, #tpu.memory_space<vmem>>, vector<1x1x64xf32>
      %138 = vector.shape_cast %137 : vector<1x1x64xf32> to vector<1x64xf32>
      %139 = vector.broadcast %136 : vector<13x1xf32> to vector<13x64xf32>
      %140 = vector.broadcast %138 : vector<1x64xf32> to vector<13x64xf32>
      %141 = arith.mulf %139, %140 : vector<13x64xf32>
      %142 = arith.addf %133, %141 : vector<13x64xf32>
      %c0_85 = arith.constant 0 : index
      %143 = arith.index_cast %124 : i32 to index
      %c1_86 = arith.constant 1 : index
      %c0_87 = arith.constant 0 : index
      %144 = vector.load %arg1[%c0_85, %143, %c1_86, %c0_87] : memref<1x30x15x1xf32, #tpu.memory_space<vmem>>, vector<1x1x13x1xf32>
      %145 = vector.shape_cast %144 : vector<1x1x13x1xf32> to vector<13x1xf32>
      %c14 = arith.constant 14 : index
      %c0_88 = arith.constant 0 : index
      %c0_89 = arith.constant 0 : index
      %146 = vector.load %arg3[%c14, %c0_88, %c0_89] : memref<16x1x64xf32, #tpu.memory_space<vmem>>, vector<1x1x64xf32>
      %147 = vector.shape_cast %146 : vector<1x1x64xf32> to vector<1x64xf32>
      %148 = vector.broadcast %145 : vector<13x1xf32> to vector<13x64xf32>
      %149 = vector.broadcast %147 : vector<1x64xf32> to vector<13x64xf32>
      %150 = arith.mulf %148, %149 : vector<13x64xf32>
      %151 = arith.addf %142, %150 : vector<13x64xf32>
      %c0_90 = arith.constant 0 : index
      %152 = arith.index_cast %124 : i32 to index
      %c1_91 = arith.constant 1 : index
      %c0_92 = arith.constant 0 : index
      %153 = vector.load %arg2[%c0_90, %152, %c1_91, %c0_92] : memref<1x30x15x1xf32, #tpu.memory_space<vmem>>, vector<1x1x13x1xf32>
      %154 = vector.shape_cast %153 : vector<1x1x13x1xf32> to vector<13x1xf32>
      %c15 = arith.constant 15 : index
      %c0_93 = arith.constant 0 : index
      %c0_94 = arith.constant 0 : index
      %155 = vector.load %arg3[%c15, %c0_93, %c0_94] : memref<16x1x64xf32, #tpu.memory_space<vmem>>, vector<1x1x64xf32>
      %156 = vector.shape_cast %155 : vector<1x1x64xf32> to vector<1x64xf32>
      %157 = vector.broadcast %154 : vector<13x1xf32> to vector<13x64xf32>
      %158 = vector.broadcast %156 : vector<1x64xf32> to vector<13x64xf32>
      %159 = arith.mulf %157, %158 : vector<13x64xf32>
      %160 = arith.addf %151, %159 : vector<13x64xf32>
      %161 = vector.broadcast %0 : vector<1x64xf32> to vector<13x64xf32>
      %162 = arith.addf %160, %161 : vector<13x64xf32>
      %cst_95 = arith.constant 0.000000e+00 : f32
      %163 = vector.broadcast %cst_95 : f32 to vector<13x64xf32>
      %164 = arith.maximumf %162, %163 : vector<13x64xf32>
      %cst_96 = arith.constant 0.000000e+00 : f32
      %165 = vector.broadcast %cst_96 : f32 to vector<13x64xf32>
      %c2_i32_97 = arith.constant 2 : i32
      %166 = arith.muli %c2_i32_97, %3 : i32
      %c0_i32_98 = arith.constant 0 : i32
      %167 = arith.addi %166, %c0_i32_98 : i32
      %c0_i32_99 = arith.constant 0 : i32
      %168 = arith.addi %167, %c0_i32_99 : i32
      %c0_100 = arith.constant 0 : index
      %169 = arith.index_cast %168 : i32 to index
      %c0_101 = arith.constant 0 : index
      %c0_102 = arith.constant 0 : index
      %170 = vector.load %arg2[%c0_100, %169, %c0_101, %c0_102] : memref<1x30x15x1xf32, #tpu.memory_space<vmem>>, vector<1x1x13x1xf32>
      %171 = vector.shape_cast %170 : vector<1x1x13x1xf32> to vector<13x1xf32>
      %c0_103 = arith.constant 0 : index
      %c0_104 = arith.constant 0 : index
      %c0_105 = arith.constant 0 : index
      %172 = vector.load %arg3[%c0_103, %c0_104, %c0_105] : memref<16x1x64xf32, #tpu.memory_space<vmem>>, vector<1x1x64xf32>
      %173 = vector.shape_cast %172 : vector<1x1x64xf32> to vector<1x64xf32>
      %174 = vector.broadcast %171 : vector<13x1xf32> to vector<13x64xf32>
      %175 = vector.broadcast %173 : vector<1x64xf32> to vector<13x64xf32>
      %176 = arith.mulf %174, %175 : vector<13x64xf32>
      %177 = arith.addf %165, %176 : vector<13x64xf32>
      %c0_106 = arith.constant 0 : index
      %178 = arith.index_cast %168 : i32 to index
      %c1_107 = arith.constant 1 : index
      %c0_108 = arith.constant 0 : index
      %179 = vector.load %arg1[%c0_106, %178, %c1_107, %c0_108] : memref<1x30x15x1xf32, #tpu.memory_space<vmem>>, vector<1x1x13x1xf32>
      %180 = vector.shape_cast %179 : vector<1x1x13x1xf32> to vector<13x1xf32>
      %c1_109 = arith.constant 1 : index
      %c0_110 = arith.constant 0 : index
      %c0_111 = arith.constant 0 : index
      %181 = vector.load %arg3[%c1_109, %c0_110, %c0_111] : memref<16x1x64xf32, #tpu.memory_space<vmem>>, vector<1x1x64xf32>
      %182 = vector.shape_cast %181 : vector<1x1x64xf32> to vector<1x64xf32>
      %183 = vector.broadcast %180 : vector<13x1xf32> to vector<13x64xf32>
      %184 = vector.broadcast %182 : vector<1x64xf32> to vector<13x64xf32>
      %185 = arith.mulf %183, %184 : vector<13x64xf32>
      %186 = arith.addf %177, %185 : vector<13x64xf32>
      %c0_112 = arith.constant 0 : index
      %187 = arith.index_cast %168 : i32 to index
      %c1_113 = arith.constant 1 : index
      %c0_114 = arith.constant 0 : index
      %188 = vector.load %arg2[%c0_112, %187, %c1_113, %c0_114] : memref<1x30x15x1xf32, #tpu.memory_space<vmem>>, vector<1x1x13x1xf32>
      %189 = vector.shape_cast %188 : vector<1x1x13x1xf32> to vector<13x1xf32>
      %c2_115 = arith.constant 2 : index
      %c0_116 = arith.constant 0 : index
      %c0_117 = arith.constant 0 : index
      %190 = vector.load %arg3[%c2_115, %c0_116, %c0_117] : memref<16x1x64xf32, #tpu.memory_space<vmem>>, vector<1x1x64xf32>
      %191 = vector.shape_cast %190 : vector<1x1x64xf32> to vector<1x64xf32>
      %192 = vector.broadcast %189 : vector<13x1xf32> to vector<13x64xf32>
      %193 = vector.broadcast %191 : vector<1x64xf32> to vector<13x64xf32>
      %194 = arith.mulf %192, %193 : vector<13x64xf32>
      %195 = arith.addf %186, %194 : vector<13x64xf32>
      %c0_118 = arith.constant 0 : index
      %196 = arith.index_cast %168 : i32 to index
      %c2_119 = arith.constant 2 : index
      %c0_120 = arith.constant 0 : index
      %197 = vector.load %arg1[%c0_118, %196, %c2_119, %c0_120] : memref<1x30x15x1xf32, #tpu.memory_space<vmem>>, vector<1x1x13x1xf32>
      %198 = vector.shape_cast %197 : vector<1x1x13x1xf32> to vector<13x1xf32>
      %c3_121 = arith.constant 3 : index
      %c0_122 = arith.constant 0 : index
      %c0_123 = arith.constant 0 : index
      %199 = vector.load %arg3[%c3_121, %c0_122, %c0_123] : memref<16x1x64xf32, #tpu.memory_space<vmem>>, vector<1x1x64xf32>
      %200 = vector.shape_cast %199 : vector<1x1x64xf32> to vector<1x64xf32>
      %201 = vector.broadcast %198 : vector<13x1xf32> to vector<13x64xf32>
      %202 = vector.broadcast %200 : vector<1x64xf32> to vector<13x64xf32>
      %203 = arith.mulf %201, %202 : vector<13x64xf32>
      %204 = arith.addf %195, %203 : vector<13x64xf32>
      %c2_i32_124 = arith.constant 2 : i32
      %205 = arith.muli %c2_i32_124, %3 : i32
      %c0_i32_125 = arith.constant 0 : i32
      %206 = arith.addi %205, %c0_i32_125 : i32
      %c1_i32_126 = arith.constant 1 : i32
      %207 = arith.addi %206, %c1_i32_126 : i32
      %c0_127 = arith.constant 0 : index
      %208 = arith.index_cast %207 : i32 to index
      %c0_128 = arith.constant 0 : index
      %c0_129 = arith.constant 0 : index
      %209 = vector.load %arg2[%c0_127, %208, %c0_128, %c0_129] : memref<1x30x15x1xf32, #tpu.memory_space<vmem>>, vector<1x1x13x1xf32>
      %210 = vector.shape_cast %209 : vector<1x1x13x1xf32> to vector<13x1xf32>
      %c4_130 = arith.constant 4 : index
      %c0_131 = arith.constant 0 : index
      %c0_132 = arith.constant 0 : index
      %211 = vector.load %arg3[%c4_130, %c0_131, %c0_132] : memref<16x1x64xf32, #tpu.memory_space<vmem>>, vector<1x1x64xf32>
      %212 = vector.shape_cast %211 : vector<1x1x64xf32> to vector<1x64xf32>
      %213 = vector.broadcast %210 : vector<13x1xf32> to vector<13x64xf32>
      %214 = vector.broadcast %212 : vector<1x64xf32> to vector<13x64xf32>
      %215 = arith.mulf %213, %214 : vector<13x64xf32>
      %216 = arith.addf %204, %215 : vector<13x64xf32>
      %c0_133 = arith.constant 0 : index
      %217 = arith.index_cast %207 : i32 to index
      %c1_134 = arith.constant 1 : index
      %c0_135 = arith.constant 0 : index
      %218 = vector.load %arg1[%c0_133, %217, %c1_134, %c0_135] : memref<1x30x15x1xf32, #tpu.memory_space<vmem>>, vector<1x1x13x1xf32>
      %219 = vector.shape_cast %218 : vector<1x1x13x1xf32> to vector<13x1xf32>
      %c5_136 = arith.constant 5 : index
      %c0_137 = arith.constant 0 : index
      %c0_138 = arith.constant 0 : index
      %220 = vector.load %arg3[%c5_136, %c0_137, %c0_138] : memref<16x1x64xf32, #tpu.memory_space<vmem>>, vector<1x1x64xf32>
      %221 = vector.shape_cast %220 : vector<1x1x64xf32> to vector<1x64xf32>
      %222 = vector.broadcast %219 : vector<13x1xf32> to vector<13x64xf32>
      %223 = vector.broadcast %221 : vector<1x64xf32> to vector<13x64xf32>
      %224 = arith.mulf %222, %223 : vector<13x64xf32>
      %225 = arith.addf %216, %224 : vector<13x64xf32>
      %c0_139 = arith.constant 0 : index
      %226 = arith.index_cast %207 : i32 to index
      %c1_140 = arith.constant 1 : index
      %c0_141 = arith.constant 0 : index
      %227 = vector.load %arg2[%c0_139, %226, %c1_140, %c0_141] : memref<1x30x15x1xf32, #tpu.memory_space<vmem>>, vector<1x1x13x1xf32>
      %228 = vector.shape_cast %227 : vector<1x1x13x1xf32> to vector<13x1xf32>
      %c6_142 = arith.constant 6 : index
      %c0_143 = arith.constant 0 : index
      %c0_144 = arith.constant 0 : index
      %229 = vector.load %arg3[%c6_142, %c0_143, %c0_144] : memref<16x1x64xf32, #tpu.memory_space<vmem>>, vector<1x1x64xf32>
      %230 = vector.shape_cast %229 : vector<1x1x64xf32> to vector<1x64xf32>
      %231 = vector.broadcast %228 : vector<13x1xf32> to vector<13x64xf32>
      %232 = vector.broadcast %230 : vector<1x64xf32> to vector<13x64xf32>
      %233 = arith.mulf %231, %232 : vector<13x64xf32>
      %234 = arith.addf %225, %233 : vector<13x64xf32>
      %c0_145 = arith.constant 0 : index
      %235 = arith.index_cast %207 : i32 to index
      %c2_146 = arith.constant 2 : index
      %c0_147 = arith.constant 0 : index
      %236 = vector.load %arg1[%c0_145, %235, %c2_146, %c0_147] : memref<1x30x15x1xf32, #tpu.memory_space<vmem>>, vector<1x1x13x1xf32>
      %237 = vector.shape_cast %236 : vector<1x1x13x1xf32> to vector<13x1xf32>
      %c7_148 = arith.constant 7 : index
      %c0_149 = arith.constant 0 : index
      %c0_150 = arith.constant 0 : index
      %238 = vector.load %arg3[%c7_148, %c0_149, %c0_150] : memref<16x1x64xf32, #tpu.memory_space<vmem>>, vector<1x1x64xf32>
      %239 = vector.shape_cast %238 : vector<1x1x64xf32> to vector<1x64xf32>
      %240 = vector.broadcast %237 : vector<13x1xf32> to vector<13x64xf32>
      %241 = vector.broadcast %239 : vector<1x64xf32> to vector<13x64xf32>
      %242 = arith.mulf %240, %241 : vector<13x64xf32>
      %243 = arith.addf %234, %242 : vector<13x64xf32>
      %c2_i32_151 = arith.constant 2 : i32
      %244 = arith.muli %c2_i32_151, %3 : i32
      %c0_i32_152 = arith.constant 0 : i32
      %245 = arith.addi %244, %c0_i32_152 : i32
      %c2_i32_153 = arith.constant 2 : i32
      %246 = arith.addi %245, %c2_i32_153 : i32
      %c0_154 = arith.constant 0 : index
      %247 = arith.index_cast %246 : i32 to index
      %c0_155 = arith.constant 0 : index
      %c0_156 = arith.constant 0 : index
      %248 = vector.load %arg2[%c0_154, %247, %c0_155, %c0_156] : memref<1x30x15x1xf32, #tpu.memory_space<vmem>>, vector<1x1x13x1xf32>
      %249 = vector.shape_cast %248 : vector<1x1x13x1xf32> to vector<13x1xf32>
      %c8_157 = arith.constant 8 : index
      %c0_158 = arith.constant 0 : index
      %c0_159 = arith.constant 0 : index
      %250 = vector.load %arg3[%c8_157, %c0_158, %c0_159] : memref<16x1x64xf32, #tpu.memory_space<vmem>>, vector<1x1x64xf32>
      %251 = vector.shape_cast %250 : vector<1x1x64xf32> to vector<1x64xf32>
      %252 = vector.broadcast %249 : vector<13x1xf32> to vector<13x64xf32>
      %253 = vector.broadcast %251 : vector<1x64xf32> to vector<13x64xf32>
      %254 = arith.mulf %252, %253 : vector<13x64xf32>
      %255 = arith.addf %243, %254 : vector<13x64xf32>
      %c0_160 = arith.constant 0 : index
      %256 = arith.index_cast %246 : i32 to index
      %c1_161 = arith.constant 1 : index
      %c0_162 = arith.constant 0 : index
      %257 = vector.load %arg1[%c0_160, %256, %c1_161, %c0_162] : memref<1x30x15x1xf32, #tpu.memory_space<vmem>>, vector<1x1x13x1xf32>
      %258 = vector.shape_cast %257 : vector<1x1x13x1xf32> to vector<13x1xf32>
      %c9_163 = arith.constant 9 : index
      %c0_164 = arith.constant 0 : index
      %c0_165 = arith.constant 0 : index
      %259 = vector.load %arg3[%c9_163, %c0_164, %c0_165] : memref<16x1x64xf32, #tpu.memory_space<vmem>>, vector<1x1x64xf32>
      %260 = vector.shape_cast %259 : vector<1x1x64xf32> to vector<1x64xf32>
      %261 = vector.broadcast %258 : vector<13x1xf32> to vector<13x64xf32>
      %262 = vector.broadcast %260 : vector<1x64xf32> to vector<13x64xf32>
      %263 = arith.mulf %261, %262 : vector<13x64xf32>
      %264 = arith.addf %255, %263 : vector<13x64xf32>
      %c0_166 = arith.constant 0 : index
      %265 = arith.index_cast %246 : i32 to index
      %c1_167 = arith.constant 1 : index
      %c0_168 = arith.constant 0 : index
      %266 = vector.load %arg2[%c0_166, %265, %c1_167, %c0_168] : memref<1x30x15x1xf32, #tpu.memory_space<vmem>>, vector<1x1x13x1xf32>
      %267 = vector.shape_cast %266 : vector<1x1x13x1xf32> to vector<13x1xf32>
      %c10_169 = arith.constant 10 : index
      %c0_170 = arith.constant 0 : index
      %c0_171 = arith.constant 0 : index
      %268 = vector.load %arg3[%c10_169, %c0_170, %c0_171] : memref<16x1x64xf32, #tpu.memory_space<vmem>>, vector<1x1x64xf32>
      %269 = vector.shape_cast %268 : vector<1x1x64xf32> to vector<1x64xf32>
      %270 = vector.broadcast %267 : vector<13x1xf32> to vector<13x64xf32>
      %271 = vector.broadcast %269 : vector<1x64xf32> to vector<13x64xf32>
      %272 = arith.mulf %270, %271 : vector<13x64xf32>
      %273 = arith.addf %264, %272 : vector<13x64xf32>
      %c0_172 = arith.constant 0 : index
      %274 = arith.index_cast %246 : i32 to index
      %c2_173 = arith.constant 2 : index
      %c0_174 = arith.constant 0 : index
      %275 = vector.load %arg1[%c0_172, %274, %c2_173, %c0_174] : memref<1x30x15x1xf32, #tpu.memory_space<vmem>>, vector<1x1x13x1xf32>
      %276 = vector.shape_cast %275 : vector<1x1x13x1xf32> to vector<13x1xf32>
      %c11_175 = arith.constant 11 : index
      %c0_176 = arith.constant 0 : index
      %c0_177 = arith.constant 0 : index
      %277 = vector.load %arg3[%c11_175, %c0_176, %c0_177] : memref<16x1x64xf32, #tpu.memory_space<vmem>>, vector<1x1x64xf32>
      %278 = vector.shape_cast %277 : vector<1x1x64xf32> to vector<1x64xf32>
      %279 = vector.broadcast %276 : vector<13x1xf32> to vector<13x64xf32>
      %280 = vector.broadcast %278 : vector<1x64xf32> to vector<13x64xf32>
      %281 = arith.mulf %279, %280 : vector<13x64xf32>
      %282 = arith.addf %273, %281 : vector<13x64xf32>
      %c2_i32_178 = arith.constant 2 : i32
      %283 = arith.muli %c2_i32_178, %3 : i32
      %c0_i32_179 = arith.constant 0 : i32
      %284 = arith.addi %283, %c0_i32_179 : i32
      %c3_i32_180 = arith.constant 3 : i32
      %285 = arith.addi %284, %c3_i32_180 : i32
      %c0_181 = arith.constant 0 : index
      %286 = arith.index_cast %285 : i32 to index
      %c0_182 = arith.constant 0 : index
      %c0_183 = arith.constant 0 : index
      %287 = vector.load %arg2[%c0_181, %286, %c0_182, %c0_183] : memref<1x30x15x1xf32, #tpu.memory_space<vmem>>, vector<1x1x13x1xf32>
      %288 = vector.shape_cast %287 : vector<1x1x13x1xf32> to vector<13x1xf32>
      %c12_184 = arith.constant 12 : index
      %c0_185 = arith.constant 0 : index
      %c0_186 = arith.constant 0 : index
      %289 = vector.load %arg3[%c12_184, %c0_185, %c0_186] : memref<16x1x64xf32, #tpu.memory_space<vmem>>, vector<1x1x64xf32>
      %290 = vector.shape_cast %289 : vector<1x1x64xf32> to vector<1x64xf32>
      %291 = vector.broadcast %288 : vector<13x1xf32> to vector<13x64xf32>
      %292 = vector.broadcast %290 : vector<1x64xf32> to vector<13x64xf32>
      %293 = arith.mulf %291, %292 : vector<13x64xf32>
      %294 = arith.addf %282, %293 : vector<13x64xf32>
      %c0_187 = arith.constant 0 : index
      %295 = arith.index_cast %285 : i32 to index
      %c1_188 = arith.constant 1 : index
      %c0_189 = arith.constant 0 : index
      %296 = vector.load %arg1[%c0_187, %295, %c1_188, %c0_189] : memref<1x30x15x1xf32, #tpu.memory_space<vmem>>, vector<1x1x13x1xf32>
      %297 = vector.shape_cast %296 : vector<1x1x13x1xf32> to vector<13x1xf32>
      %c13_190 = arith.constant 13 : index
      %c0_191 = arith.constant 0 : index
      %c0_192 = arith.constant 0 : index
      %298 = vector.load %arg3[%c13_190, %c0_191, %c0_192] : memref<16x1x64xf32, #tpu.memory_space<vmem>>, vector<1x1x64xf32>
      %299 = vector.shape_cast %298 : vector<1x1x64xf32> to vector<1x64xf32>
      %300 = vector.broadcast %297 : vector<13x1xf32> to vector<13x64xf32>
      %301 = vector.broadcast %299 : vector<1x64xf32> to vector<13x64xf32>
      %302 = arith.mulf %300, %301 : vector<13x64xf32>
      %303 = arith.addf %294, %302 : vector<13x64xf32>
      %c0_193 = arith.constant 0 : index
      %304 = arith.index_cast %285 : i32 to index
      %c1_194 = arith.constant 1 : index
      %c0_195 = arith.constant 0 : index
      %305 = vector.load %arg2[%c0_193, %304, %c1_194, %c0_195] : memref<1x30x15x1xf32, #tpu.memory_space<vmem>>, vector<1x1x13x1xf32>
      %306 = vector.shape_cast %305 : vector<1x1x13x1xf32> to vector<13x1xf32>
      %c14_196 = arith.constant 14 : index
      %c0_197 = arith.constant 0 : index
      %c0_198 = arith.constant 0 : index
      %307 = vector.load %arg3[%c14_196, %c0_197, %c0_198] : memref<16x1x64xf32, #tpu.memory_space<vmem>>, vector<1x1x64xf32>
      %308 = vector.shape_cast %307 : vector<1x1x64xf32> to vector<1x64xf32>
      %309 = vector.broadcast %306 : vector<13x1xf32> to vector<13x64xf32>
      %310 = vector.broadcast %308 : vector<1x64xf32> to vector<13x64xf32>
      %311 = arith.mulf %309, %310 : vector<13x64xf32>
      %312 = arith.addf %303, %311 : vector<13x64xf32>
      %c0_199 = arith.constant 0 : index
      %313 = arith.index_cast %285 : i32 to index
      %c2_200 = arith.constant 2 : index
      %c0_201 = arith.constant 0 : index
      %314 = vector.load %arg1[%c0_199, %313, %c2_200, %c0_201] : memref<1x30x15x1xf32, #tpu.memory_space<vmem>>, vector<1x1x13x1xf32>
      %315 = vector.shape_cast %314 : vector<1x1x13x1xf32> to vector<13x1xf32>
      %c15_202 = arith.constant 15 : index
      %c0_203 = arith.constant 0 : index
      %c0_204 = arith.constant 0 : index
      %316 = vector.load %arg3[%c15_202, %c0_203, %c0_204] : memref<16x1x64xf32, #tpu.memory_space<vmem>>, vector<1x1x64xf32>
      %317 = vector.shape_cast %316 : vector<1x1x64xf32> to vector<1x64xf32>
      %318 = vector.broadcast %315 : vector<13x1xf32> to vector<13x64xf32>
      %319 = vector.broadcast %317 : vector<1x64xf32> to vector<13x64xf32>
      %320 = arith.mulf %318, %319 : vector<13x64xf32>
      %321 = arith.addf %312, %320 : vector<13x64xf32>
      %322 = vector.broadcast %0 : vector<1x64xf32> to vector<13x64xf32>
      %323 = arith.addf %321, %322 : vector<13x64xf32>
      %cst_205 = arith.constant 0.000000e+00 : f32
      %324 = vector.broadcast %cst_205 : f32 to vector<13x64xf32>
      %325 = arith.maximumf %323, %324 : vector<13x64xf32>
      %326 = arith.maximumf %164, %325 : vector<13x64xf32>
      %cst_206 = arith.constant 0.000000e+00 : f32
      %327 = vector.broadcast %cst_206 : f32 to vector<13x64xf32>
      %c2_i32_207 = arith.constant 2 : i32
      %328 = arith.muli %c2_i32_207, %3 : i32
      %c1_i32_208 = arith.constant 1 : i32
      %329 = arith.addi %328, %c1_i32_208 : i32
      %c0_i32_209 = arith.constant 0 : i32
      %330 = arith.addi %329, %c0_i32_209 : i32
      %c0_210 = arith.constant 0 : index
      %331 = arith.index_cast %330 : i32 to index
      %c0_211 = arith.constant 0 : index
      %c0_212 = arith.constant 0 : index
      %332 = vector.load %arg1[%c0_210, %331, %c0_211, %c0_212] : memref<1x30x15x1xf32, #tpu.memory_space<vmem>>, vector<1x1x13x1xf32>
      %333 = vector.shape_cast %332 : vector<1x1x13x1xf32> to vector<13x1xf32>
      %c0_213 = arith.constant 0 : index
      %c0_214 = arith.constant 0 : index
      %c0_215 = arith.constant 0 : index
      %334 = vector.load %arg3[%c0_213, %c0_214, %c0_215] : memref<16x1x64xf32, #tpu.memory_space<vmem>>, vector<1x1x64xf32>
      %335 = vector.shape_cast %334 : vector<1x1x64xf32> to vector<1x64xf32>
      %336 = vector.broadcast %333 : vector<13x1xf32> to vector<13x64xf32>
      %337 = vector.broadcast %335 : vector<1x64xf32> to vector<13x64xf32>
      %338 = arith.mulf %336, %337 : vector<13x64xf32>
      %339 = arith.addf %327, %338 : vector<13x64xf32>
      %c0_216 = arith.constant 0 : index
      %340 = arith.index_cast %330 : i32 to index
      %c0_217 = arith.constant 0 : index
      %c0_218 = arith.constant 0 : index
      %341 = vector.load %arg2[%c0_216, %340, %c0_217, %c0_218] : memref<1x30x15x1xf32, #tpu.memory_space<vmem>>, vector<1x1x13x1xf32>
      %342 = vector.shape_cast %341 : vector<1x1x13x1xf32> to vector<13x1xf32>
      %c1_219 = arith.constant 1 : index
      %c0_220 = arith.constant 0 : index
      %c0_221 = arith.constant 0 : index
      %343 = vector.load %arg3[%c1_219, %c0_220, %c0_221] : memref<16x1x64xf32, #tpu.memory_space<vmem>>, vector<1x1x64xf32>
      %344 = vector.shape_cast %343 : vector<1x1x64xf32> to vector<1x64xf32>
      %345 = vector.broadcast %342 : vector<13x1xf32> to vector<13x64xf32>
      %346 = vector.broadcast %344 : vector<1x64xf32> to vector<13x64xf32>
      %347 = arith.mulf %345, %346 : vector<13x64xf32>
      %348 = arith.addf %339, %347 : vector<13x64xf32>
      %c0_222 = arith.constant 0 : index
      %349 = arith.index_cast %330 : i32 to index
      %c1_223 = arith.constant 1 : index
      %c0_224 = arith.constant 0 : index
      %350 = vector.load %arg1[%c0_222, %349, %c1_223, %c0_224] : memref<1x30x15x1xf32, #tpu.memory_space<vmem>>, vector<1x1x13x1xf32>
      %351 = vector.shape_cast %350 : vector<1x1x13x1xf32> to vector<13x1xf32>
      %c2_225 = arith.constant 2 : index
      %c0_226 = arith.constant 0 : index
      %c0_227 = arith.constant 0 : index
      %352 = vector.load %arg3[%c2_225, %c0_226, %c0_227] : memref<16x1x64xf32, #tpu.memory_space<vmem>>, vector<1x1x64xf32>
      %353 = vector.shape_cast %352 : vector<1x1x64xf32> to vector<1x64xf32>
      %354 = vector.broadcast %351 : vector<13x1xf32> to vector<13x64xf32>
      %355 = vector.broadcast %353 : vector<1x64xf32> to vector<13x64xf32>
      %356 = arith.mulf %354, %355 : vector<13x64xf32>
      %357 = arith.addf %348, %356 : vector<13x64xf32>
      %c0_228 = arith.constant 0 : index
      %358 = arith.index_cast %330 : i32 to index
      %c1_229 = arith.constant 1 : index
      %c0_230 = arith.constant 0 : index
      %359 = vector.load %arg2[%c0_228, %358, %c1_229, %c0_230] : memref<1x30x15x1xf32, #tpu.memory_space<vmem>>, vector<1x1x13x1xf32>
      %360 = vector.shape_cast %359 : vector<1x1x13x1xf32> to vector<13x1xf32>
      %c3_231 = arith.constant 3 : index
      %c0_232 = arith.constant 0 : index
      %c0_233 = arith.constant 0 : index
      %361 = vector.load %arg3[%c3_231, %c0_232, %c0_233] : memref<16x1x64xf32, #tpu.memory_space<vmem>>, vector<1x1x64xf32>
      %362 = vector.shape_cast %361 : vector<1x1x64xf32> to vector<1x64xf32>
      %363 = vector.broadcast %360 : vector<13x1xf32> to vector<13x64xf32>
      %364 = vector.broadcast %362 : vector<1x64xf32> to vector<13x64xf32>
      %365 = arith.mulf %363, %364 : vector<13x64xf32>
      %366 = arith.addf %357, %365 : vector<13x64xf32>
      %c2_i32_234 = arith.constant 2 : i32
      %367 = arith.muli %c2_i32_234, %3 : i32
      %c1_i32_235 = arith.constant 1 : i32
      %368 = arith.addi %367, %c1_i32_235 : i32
      %c1_i32_236 = arith.constant 1 : i32
      %369 = arith.addi %368, %c1_i32_236 : i32
      %c0_237 = arith.constant 0 : index
      %370 = arith.index_cast %369 : i32 to index
      %c0_238 = arith.constant 0 : index
      %c0_239 = arith.constant 0 : index
      %371 = vector.load %arg1[%c0_237, %370, %c0_238, %c0_239] : memref<1x30x15x1xf32, #tpu.memory_space<vmem>>, vector<1x1x13x1xf32>
      %372 = vector.shape_cast %371 : vector<1x1x13x1xf32> to vector<13x1xf32>
      %c4_240 = arith.constant 4 : index
      %c0_241 = arith.constant 0 : index
      %c0_242 = arith.constant 0 : index
      %373 = vector.load %arg3[%c4_240, %c0_241, %c0_242] : memref<16x1x64xf32, #tpu.memory_space<vmem>>, vector<1x1x64xf32>
      %374 = vector.shape_cast %373 : vector<1x1x64xf32> to vector<1x64xf32>
      %375 = vector.broadcast %372 : vector<13x1xf32> to vector<13x64xf32>
      %376 = vector.broadcast %374 : vector<1x64xf32> to vector<13x64xf32>
      %377 = arith.mulf %375, %376 : vector<13x64xf32>
      %378 = arith.addf %366, %377 : vector<13x64xf32>
      %c0_243 = arith.constant 0 : index
      %379 = arith.index_cast %369 : i32 to index
      %c0_244 = arith.constant 0 : index
      %c0_245 = arith.constant 0 : index
      %380 = vector.load %arg2[%c0_243, %379, %c0_244, %c0_245] : memref<1x30x15x1xf32, #tpu.memory_space<vmem>>, vector<1x1x13x1xf32>
      %381 = vector.shape_cast %380 : vector<1x1x13x1xf32> to vector<13x1xf32>
      %c5_246 = arith.constant 5 : index
      %c0_247 = arith.constant 0 : index
      %c0_248 = arith.constant 0 : index
      %382 = vector.load %arg3[%c5_246, %c0_247, %c0_248] : memref<16x1x64xf32, #tpu.memory_space<vmem>>, vector<1x1x64xf32>
      %383 = vector.shape_cast %382 : vector<1x1x64xf32> to vector<1x64xf32>
      %384 = vector.broadcast %381 : vector<13x1xf32> to vector<13x64xf32>
      %385 = vector.broadcast %383 : vector<1x64xf32> to vector<13x64xf32>
      %386 = arith.mulf %384, %385 : vector<13x64xf32>
      %387 = arith.addf %378, %386 : vector<13x64xf32>
      %c0_249 = arith.constant 0 : index
      %388 = arith.index_cast %369 : i32 to index
      %c1_250 = arith.constant 1 : index
      %c0_251 = arith.constant 0 : index
      %389 = vector.load %arg1[%c0_249, %388, %c1_250, %c0_251] : memref<1x30x15x1xf32, #tpu.memory_space<vmem>>, vector<1x1x13x1xf32>
      %390 = vector.shape_cast %389 : vector<1x1x13x1xf32> to vector<13x1xf32>
      %c6_252 = arith.constant 6 : index
      %c0_253 = arith.constant 0 : index
      %c0_254 = arith.constant 0 : index
      %391 = vector.load %arg3[%c6_252, %c0_253, %c0_254] : memref<16x1x64xf32, #tpu.memory_space<vmem>>, vector<1x1x64xf32>
      %392 = vector.shape_cast %391 : vector<1x1x64xf32> to vector<1x64xf32>
      %393 = vector.broadcast %390 : vector<13x1xf32> to vector<13x64xf32>
      %394 = vector.broadcast %392 : vector<1x64xf32> to vector<13x64xf32>
      %395 = arith.mulf %393, %394 : vector<13x64xf32>
      %396 = arith.addf %387, %395 : vector<13x64xf32>
      %c0_255 = arith.constant 0 : index
      %397 = arith.index_cast %369 : i32 to index
      %c1_256 = arith.constant 1 : index
      %c0_257 = arith.constant 0 : index
      %398 = vector.load %arg2[%c0_255, %397, %c1_256, %c0_257] : memref<1x30x15x1xf32, #tpu.memory_space<vmem>>, vector<1x1x13x1xf32>
      %399 = vector.shape_cast %398 : vector<1x1x13x1xf32> to vector<13x1xf32>
      %c7_258 = arith.constant 7 : index
      %c0_259 = arith.constant 0 : index
      %c0_260 = arith.constant 0 : index
      %400 = vector.load %arg3[%c7_258, %c0_259, %c0_260] : memref<16x1x64xf32, #tpu.memory_space<vmem>>, vector<1x1x64xf32>
      %401 = vector.shape_cast %400 : vector<1x1x64xf32> to vector<1x64xf32>
      %402 = vector.broadcast %399 : vector<13x1xf32> to vector<13x64xf32>
      %403 = vector.broadcast %401 : vector<1x64xf32> to vector<13x64xf32>
      %404 = arith.mulf %402, %403 : vector<13x64xf32>
      %405 = arith.addf %396, %404 : vector<13x64xf32>
      %c2_i32_261 = arith.constant 2 : i32
      %406 = arith.muli %c2_i32_261, %3 : i32
      %c1_i32_262 = arith.constant 1 : i32
      %407 = arith.addi %406, %c1_i32_262 : i32
      %c2_i32_263 = arith.constant 2 : i32
      %408 = arith.addi %407, %c2_i32_263 : i32
      %c0_264 = arith.constant 0 : index
      %409 = arith.index_cast %408 : i32 to index
      %c0_265 = arith.constant 0 : index
      %c0_266 = arith.constant 0 : index
      %410 = vector.load %arg1[%c0_264, %409, %c0_265, %c0_266] : memref<1x30x15x1xf32, #tpu.memory_space<vmem>>, vector<1x1x13x1xf32>
      %411 = vector.shape_cast %410 : vector<1x1x13x1xf32> to vector<13x1xf32>
      %c8_267 = arith.constant 8 : index
      %c0_268 = arith.constant 0 : index
      %c0_269 = arith.constant 0 : index
      %412 = vector.load %arg3[%c8_267, %c0_268, %c0_269] : memref<16x1x64xf32, #tpu.memory_space<vmem>>, vector<1x1x64xf32>
      %413 = vector.shape_cast %412 : vector<1x1x64xf32> to vector<1x64xf32>
      %414 = vector.broadcast %411 : vector<13x1xf32> to vector<13x64xf32>
      %415 = vector.broadcast %413 : vector<1x64xf32> to vector<13x64xf32>
      %416 = arith.mulf %414, %415 : vector<13x64xf32>
      %417 = arith.addf %405, %416 : vector<13x64xf32>
      %c0_270 = arith.constant 0 : index
      %418 = arith.index_cast %408 : i32 to index
      %c0_271 = arith.constant 0 : index
      %c0_272 = arith.constant 0 : index
      %419 = vector.load %arg2[%c0_270, %418, %c0_271, %c0_272] : memref<1x30x15x1xf32, #tpu.memory_space<vmem>>, vector<1x1x13x1xf32>
      %420 = vector.shape_cast %419 : vector<1x1x13x1xf32> to vector<13x1xf32>
      %c9_273 = arith.constant 9 : index
      %c0_274 = arith.constant 0 : index
      %c0_275 = arith.constant 0 : index
      %421 = vector.load %arg3[%c9_273, %c0_274, %c0_275] : memref<16x1x64xf32, #tpu.memory_space<vmem>>, vector<1x1x64xf32>
      %422 = vector.shape_cast %421 : vector<1x1x64xf32> to vector<1x64xf32>
      %423 = vector.broadcast %420 : vector<13x1xf32> to vector<13x64xf32>
      %424 = vector.broadcast %422 : vector<1x64xf32> to vector<13x64xf32>
      %425 = arith.mulf %423, %424 : vector<13x64xf32>
      %426 = arith.addf %417, %425 : vector<13x64xf32>
      %c0_276 = arith.constant 0 : index
      %427 = arith.index_cast %408 : i32 to index
      %c1_277 = arith.constant 1 : index
      %c0_278 = arith.constant 0 : index
      %428 = vector.load %arg1[%c0_276, %427, %c1_277, %c0_278] : memref<1x30x15x1xf32, #tpu.memory_space<vmem>>, vector<1x1x13x1xf32>
      %429 = vector.shape_cast %428 : vector<1x1x13x1xf32> to vector<13x1xf32>
      %c10_279 = arith.constant 10 : index
      %c0_280 = arith.constant 0 : index
      %c0_281 = arith.constant 0 : index
      %430 = vector.load %arg3[%c10_279, %c0_280, %c0_281] : memref<16x1x64xf32, #tpu.memory_space<vmem>>, vector<1x1x64xf32>
      %431 = vector.shape_cast %430 : vector<1x1x64xf32> to vector<1x64xf32>
      %432 = vector.broadcast %429 : vector<13x1xf32> to vector<13x64xf32>
      %433 = vector.broadcast %431 : vector<1x64xf32> to vector<13x64xf32>
      %434 = arith.mulf %432, %433 : vector<13x64xf32>
      %435 = arith.addf %426, %434 : vector<13x64xf32>
      %c0_282 = arith.constant 0 : index
      %436 = arith.index_cast %408 : i32 to index
      %c1_283 = arith.constant 1 : index
      %c0_284 = arith.constant 0 : index
      %437 = vector.load %arg2[%c0_282, %436, %c1_283, %c0_284] : memref<1x30x15x1xf32, #tpu.memory_space<vmem>>, vector<1x1x13x1xf32>
      %438 = vector.shape_cast %437 : vector<1x1x13x1xf32> to vector<13x1xf32>
      %c11_285 = arith.constant 11 : index
      %c0_286 = arith.constant 0 : index
      %c0_287 = arith.constant 0 : index
      %439 = vector.load %arg3[%c11_285, %c0_286, %c0_287] : memref<16x1x64xf32, #tpu.memory_space<vmem>>, vector<1x1x64xf32>
      %440 = vector.shape_cast %439 : vector<1x1x64xf32> to vector<1x64xf32>
      %441 = vector.broadcast %438 : vector<13x1xf32> to vector<13x64xf32>
      %442 = vector.broadcast %440 : vector<1x64xf32> to vector<13x64xf32>
      %443 = arith.mulf %441, %442 : vector<13x64xf32>
      %444 = arith.addf %435, %443 : vector<13x64xf32>
      %c2_i32_288 = arith.constant 2 : i32
      %445 = arith.muli %c2_i32_288, %3 : i32
      %c1_i32_289 = arith.constant 1 : i32
      %446 = arith.addi %445, %c1_i32_289 : i32
      %c3_i32_290 = arith.constant 3 : i32
      %447 = arith.addi %446, %c3_i32_290 : i32
      %c0_291 = arith.constant 0 : index
      %448 = arith.index_cast %447 : i32 to index
      %c0_292 = arith.constant 0 : index
      %c0_293 = arith.constant 0 : index
      %449 = vector.load %arg1[%c0_291, %448, %c0_292, %c0_293] : memref<1x30x15x1xf32, #tpu.memory_space<vmem>>, vector<1x1x13x1xf32>
      %450 = vector.shape_cast %449 : vector<1x1x13x1xf32> to vector<13x1xf32>
      %c12_294 = arith.constant 12 : index
      %c0_295 = arith.constant 0 : index
      %c0_296 = arith.constant 0 : index
      %451 = vector.load %arg3[%c12_294, %c0_295, %c0_296] : memref<16x1x64xf32, #tpu.memory_space<vmem>>, vector<1x1x64xf32>
      %452 = vector.shape_cast %451 : vector<1x1x64xf32> to vector<1x64xf32>
      %453 = vector.broadcast %450 : vector<13x1xf32> to vector<13x64xf32>
      %454 = vector.broadcast %452 : vector<1x64xf32> to vector<13x64xf32>
      %455 = arith.mulf %453, %454 : vector<13x64xf32>
      %456 = arith.addf %444, %455 : vector<13x64xf32>
      %c0_297 = arith.constant 0 : index
      %457 = arith.index_cast %447 : i32 to index
      %c0_298 = arith.constant 0 : index
      %c0_299 = arith.constant 0 : index
      %458 = vector.load %arg2[%c0_297, %457, %c0_298, %c0_299] : memref<1x30x15x1xf32, #tpu.memory_space<vmem>>, vector<1x1x13x1xf32>
      %459 = vector.shape_cast %458 : vector<1x1x13x1xf32> to vector<13x1xf32>
      %c13_300 = arith.constant 13 : index
      %c0_301 = arith.constant 0 : index
      %c0_302 = arith.constant 0 : index
      %460 = vector.load %arg3[%c13_300, %c0_301, %c0_302] : memref<16x1x64xf32, #tpu.memory_space<vmem>>, vector<1x1x64xf32>
      %461 = vector.shape_cast %460 : vector<1x1x64xf32> to vector<1x64xf32>
      %462 = vector.broadcast %459 : vector<13x1xf32> to vector<13x64xf32>
      %463 = vector.broadcast %461 : vector<1x64xf32> to vector<13x64xf32>
      %464 = arith.mulf %462, %463 : vector<13x64xf32>
      %465 = arith.addf %456, %464 : vector<13x64xf32>
      %c0_303 = arith.constant 0 : index
      %466 = arith.index_cast %447 : i32 to index
      %c1_304 = arith.constant 1 : index
      %c0_305 = arith.constant 0 : index
      %467 = vector.load %arg1[%c0_303, %466, %c1_304, %c0_305] : memref<1x30x15x1xf32, #tpu.memory_space<vmem>>, vector<1x1x13x1xf32>
      %468 = vector.shape_cast %467 : vector<1x1x13x1xf32> to vector<13x1xf32>
      %c14_306 = arith.constant 14 : index
      %c0_307 = arith.constant 0 : index
      %c0_308 = arith.constant 0 : index
      %469 = vector.load %arg3[%c14_306, %c0_307, %c0_308] : memref<16x1x64xf32, #tpu.memory_space<vmem>>, vector<1x1x64xf32>
      %470 = vector.shape_cast %469 : vector<1x1x64xf32> to vector<1x64xf32>
      %471 = vector.broadcast %468 : vector<13x1xf32> to vector<13x64xf32>
      %472 = vector.broadcast %470 : vector<1x64xf32> to vector<13x64xf32>
      %473 = arith.mulf %471, %472 : vector<13x64xf32>
      %474 = arith.addf %465, %473 : vector<13x64xf32>
      %c0_309 = arith.constant 0 : index
      %475 = arith.index_cast %447 : i32 to index
      %c1_310 = arith.constant 1 : index
      %c0_311 = arith.constant 0 : index
      %476 = vector.load %arg2[%c0_309, %475, %c1_310, %c0_311] : memref<1x30x15x1xf32, #tpu.memory_space<vmem>>, vector<1x1x13x1xf32>
      %477 = vector.shape_cast %476 : vector<1x1x13x1xf32> to vector<13x1xf32>
      %c15_312 = arith.constant 15 : index
      %c0_313 = arith.constant 0 : index
      %c0_314 = arith.constant 0 : index
      %478 = vector.load %arg3[%c15_312, %c0_313, %c0_314] : memref<16x1x64xf32, #tpu.memory_space<vmem>>, vector<1x1x64xf32>
      %479 = vector.shape_cast %478 : vector<1x1x64xf32> to vector<1x64xf32>
      %480 = vector.broadcast %477 : vector<13x1xf32> to vector<13x64xf32>
      %481 = vector.broadcast %479 : vector<1x64xf32> to vector<13x64xf32>
      %482 = arith.mulf %480, %481 : vector<13x64xf32>
      %483 = arith.addf %474, %482 : vector<13x64xf32>
      %484 = vector.broadcast %0 : vector<1x64xf32> to vector<13x64xf32>
      %485 = arith.addf %483, %484 : vector<13x64xf32>
      %cst_315 = arith.constant 0.000000e+00 : f32
      %486 = vector.broadcast %cst_315 : f32 to vector<13x64xf32>
      %487 = arith.maximumf %485, %486 : vector<13x64xf32>
      %488 = arith.maximumf %326, %487 : vector<13x64xf32>
      %cst_316 = arith.constant 0.000000e+00 : f32
      %489 = vector.broadcast %cst_316 : f32 to vector<13x64xf32>
      %c2_i32_317 = arith.constant 2 : i32
      %490 = arith.muli %c2_i32_317, %3 : i32
      %c1_i32_318 = arith.constant 1 : i32
      %491 = arith.addi %490, %c1_i32_318 : i32
      %c0_i32_319 = arith.constant 0 : i32
      %492 = arith.addi %491, %c0_i32_319 : i32
      %c0_320 = arith.constant 0 : index
      %493 = arith.index_cast %492 : i32 to index
      %c0_321 = arith.constant 0 : index
      %c0_322 = arith.constant 0 : index
      %494 = vector.load %arg2[%c0_320, %493, %c0_321, %c0_322] : memref<1x30x15x1xf32, #tpu.memory_space<vmem>>, vector<1x1x13x1xf32>
      %495 = vector.shape_cast %494 : vector<1x1x13x1xf32> to vector<13x1xf32>
      %c0_323 = arith.constant 0 : index
      %c0_324 = arith.constant 0 : index
      %c0_325 = arith.constant 0 : index
      %496 = vector.load %arg3[%c0_323, %c0_324, %c0_325] : memref<16x1x64xf32, #tpu.memory_space<vmem>>, vector<1x1x64xf32>
      %497 = vector.shape_cast %496 : vector<1x1x64xf32> to vector<1x64xf32>
      %498 = vector.broadcast %495 : vector<13x1xf32> to vector<13x64xf32>
      %499 = vector.broadcast %497 : vector<1x64xf32> to vector<13x64xf32>
      %500 = arith.mulf %498, %499 : vector<13x64xf32>
      %501 = arith.addf %489, %500 : vector<13x64xf32>
      %c0_326 = arith.constant 0 : index
      %502 = arith.index_cast %492 : i32 to index
      %c1_327 = arith.constant 1 : index
      %c0_328 = arith.constant 0 : index
      %503 = vector.load %arg1[%c0_326, %502, %c1_327, %c0_328] : memref<1x30x15x1xf32, #tpu.memory_space<vmem>>, vector<1x1x13x1xf32>
      %504 = vector.shape_cast %503 : vector<1x1x13x1xf32> to vector<13x1xf32>
      %c1_329 = arith.constant 1 : index
      %c0_330 = arith.constant 0 : index
      %c0_331 = arith.constant 0 : index
      %505 = vector.load %arg3[%c1_329, %c0_330, %c0_331] : memref<16x1x64xf32, #tpu.memory_space<vmem>>, vector<1x1x64xf32>
      %506 = vector.shape_cast %505 : vector<1x1x64xf32> to vector<1x64xf32>
      %507 = vector.broadcast %504 : vector<13x1xf32> to vector<13x64xf32>
      %508 = vector.broadcast %506 : vector<1x64xf32> to vector<13x64xf32>
      %509 = arith.mulf %507, %508 : vector<13x64xf32>
      %510 = arith.addf %501, %509 : vector<13x64xf32>
      %c0_332 = arith.constant 0 : index
      %511 = arith.index_cast %492 : i32 to index
      %c1_333 = arith.constant 1 : index
      %c0_334 = arith.constant 0 : index
      %512 = vector.load %arg2[%c0_332, %511, %c1_333, %c0_334] : memref<1x30x15x1xf32, #tpu.memory_space<vmem>>, vector<1x1x13x1xf32>
      %513 = vector.shape_cast %512 : vector<1x1x13x1xf32> to vector<13x1xf32>
      %c2_335 = arith.constant 2 : index
      %c0_336 = arith.constant 0 : index
      %c0_337 = arith.constant 0 : index
      %514 = vector.load %arg3[%c2_335, %c0_336, %c0_337] : memref<16x1x64xf32, #tpu.memory_space<vmem>>, vector<1x1x64xf32>
      %515 = vector.shape_cast %514 : vector<1x1x64xf32> to vector<1x64xf32>
      %516 = vector.broadcast %513 : vector<13x1xf32> to vector<13x64xf32>
      %517 = vector.broadcast %515 : vector<1x64xf32> to vector<13x64xf32>
      %518 = arith.mulf %516, %517 : vector<13x64xf32>
      %519 = arith.addf %510, %518 : vector<13x64xf32>
      %c0_338 = arith.constant 0 : index
      %520 = arith.index_cast %492 : i32 to index
      %c2_339 = arith.constant 2 : index
      %c0_340 = arith.constant 0 : index
      %521 = vector.load %arg1[%c0_338, %520, %c2_339, %c0_340] : memref<1x30x15x1xf32, #tpu.memory_space<vmem>>, vector<1x1x13x1xf32>
      %522 = vector.shape_cast %521 : vector<1x1x13x1xf32> to vector<13x1xf32>
      %c3_341 = arith.constant 3 : index
      %c0_342 = arith.constant 0 : index
      %c0_343 = arith.constant 0 : index
      %523 = vector.load %arg3[%c3_341, %c0_342, %c0_343] : memref<16x1x64xf32, #tpu.memory_space<vmem>>, vector<1x1x64xf32>
      %524 = vector.shape_cast %523 : vector<1x1x64xf32> to vector<1x64xf32>
      %525 = vector.broadcast %522 : vector<13x1xf32> to vector<13x64xf32>
      %526 = vector.broadcast %524 : vector<1x64xf32> to vector<13x64xf32>
      %527 = arith.mulf %525, %526 : vector<13x64xf32>
      %528 = arith.addf %519, %527 : vector<13x64xf32>
      %c2_i32_344 = arith.constant 2 : i32
      %529 = arith.muli %c2_i32_344, %3 : i32
      %c1_i32_345 = arith.constant 1 : i32
      %530 = arith.addi %529, %c1_i32_345 : i32
      %c1_i32_346 = arith.constant 1 : i32
      %531 = arith.addi %530, %c1_i32_346 : i32
      %c0_347 = arith.constant 0 : index
      %532 = arith.index_cast %531 : i32 to index
      %c0_348 = arith.constant 0 : index
      %c0_349 = arith.constant 0 : index
      %533 = vector.load %arg2[%c0_347, %532, %c0_348, %c0_349] : memref<1x30x15x1xf32, #tpu.memory_space<vmem>>, vector<1x1x13x1xf32>
      %534 = vector.shape_cast %533 : vector<1x1x13x1xf32> to vector<13x1xf32>
      %c4_350 = arith.constant 4 : index
      %c0_351 = arith.constant 0 : index
      %c0_352 = arith.constant 0 : index
      %535 = vector.load %arg3[%c4_350, %c0_351, %c0_352] : memref<16x1x64xf32, #tpu.memory_space<vmem>>, vector<1x1x64xf32>
      %536 = vector.shape_cast %535 : vector<1x1x64xf32> to vector<1x64xf32>
      %537 = vector.broadcast %534 : vector<13x1xf32> to vector<13x64xf32>
      %538 = vector.broadcast %536 : vector<1x64xf32> to vector<13x64xf32>
      %539 = arith.mulf %537, %538 : vector<13x64xf32>
      %540 = arith.addf %528, %539 : vector<13x64xf32>
      %c0_353 = arith.constant 0 : index
      %541 = arith.index_cast %531 : i32 to index
      %c1_354 = arith.constant 1 : index
      %c0_355 = arith.constant 0 : index
      %542 = vector.load %arg1[%c0_353, %541, %c1_354, %c0_355] : memref<1x30x15x1xf32, #tpu.memory_space<vmem>>, vector<1x1x13x1xf32>
      %543 = vector.shape_cast %542 : vector<1x1x13x1xf32> to vector<13x1xf32>
      %c5_356 = arith.constant 5 : index
      %c0_357 = arith.constant 0 : index
      %c0_358 = arith.constant 0 : index
      %544 = vector.load %arg3[%c5_356, %c0_357, %c0_358] : memref<16x1x64xf32, #tpu.memory_space<vmem>>, vector<1x1x64xf32>
      %545 = vector.shape_cast %544 : vector<1x1x64xf32> to vector<1x64xf32>
      %546 = vector.broadcast %543 : vector<13x1xf32> to vector<13x64xf32>
      %547 = vector.broadcast %545 : vector<1x64xf32> to vector<13x64xf32>
      %548 = arith.mulf %546, %547 : vector<13x64xf32>
      %549 = arith.addf %540, %548 : vector<13x64xf32>
      %c0_359 = arith.constant 0 : index
      %550 = arith.index_cast %531 : i32 to index
      %c1_360 = arith.constant 1 : index
      %c0_361 = arith.constant 0 : index
      %551 = vector.load %arg2[%c0_359, %550, %c1_360, %c0_361] : memref<1x30x15x1xf32, #tpu.memory_space<vmem>>, vector<1x1x13x1xf32>
      %552 = vector.shape_cast %551 : vector<1x1x13x1xf32> to vector<13x1xf32>
      %c6_362 = arith.constant 6 : index
      %c0_363 = arith.constant 0 : index
      %c0_364 = arith.constant 0 : index
      %553 = vector.load %arg3[%c6_362, %c0_363, %c0_364] : memref<16x1x64xf32, #tpu.memory_space<vmem>>, vector<1x1x64xf32>
      %554 = vector.shape_cast %553 : vector<1x1x64xf32> to vector<1x64xf32>
      %555 = vector.broadcast %552 : vector<13x1xf32> to vector<13x64xf32>
      %556 = vector.broadcast %554 : vector<1x64xf32> to vector<13x64xf32>
      %557 = arith.mulf %555, %556 : vector<13x64xf32>
      %558 = arith.addf %549, %557 : vector<13x64xf32>
      %c0_365 = arith.constant 0 : index
      %559 = arith.index_cast %531 : i32 to index
      %c2_366 = arith.constant 2 : index
      %c0_367 = arith.constant 0 : index
      %560 = vector.load %arg1[%c0_365, %559, %c2_366, %c0_367] : memref<1x30x15x1xf32, #tpu.memory_space<vmem>>, vector<1x1x13x1xf32>
      %561 = vector.shape_cast %560 : vector<1x1x13x1xf32> to vector<13x1xf32>
      %c7_368 = arith.constant 7 : index
      %c0_369 = arith.constant 0 : index
      %c0_370 = arith.constant 0 : index
      %562 = vector.load %arg3[%c7_368, %c0_369, %c0_370] : memref<16x1x64xf32, #tpu.memory_space<vmem>>, vector<1x1x64xf32>
      %563 = vector.shape_cast %562 : vector<1x1x64xf32> to vector<1x64xf32>
      %564 = vector.broadcast %561 : vector<13x1xf32> to vector<13x64xf32>
      %565 = vector.broadcast %563 : vector<1x64xf32> to vector<13x64xf32>
      %566 = arith.mulf %564, %565 : vector<13x64xf32>
      %567 = arith.addf %558, %566 : vector<13x64xf32>
      %c2_i32_371 = arith.constant 2 : i32
      %568 = arith.muli %c2_i32_371, %3 : i32
      %c1_i32_372 = arith.constant 1 : i32
      %569 = arith.addi %568, %c1_i32_372 : i32
      %c2_i32_373 = arith.constant 2 : i32
      %570 = arith.addi %569, %c2_i32_373 : i32
      %c0_374 = arith.constant 0 : index
      %571 = arith.index_cast %570 : i32 to index
      %c0_375 = arith.constant 0 : index
      %c0_376 = arith.constant 0 : index
      %572 = vector.load %arg2[%c0_374, %571, %c0_375, %c0_376] : memref<1x30x15x1xf32, #tpu.memory_space<vmem>>, vector<1x1x13x1xf32>
      %573 = vector.shape_cast %572 : vector<1x1x13x1xf32> to vector<13x1xf32>
      %c8_377 = arith.constant 8 : index
      %c0_378 = arith.constant 0 : index
      %c0_379 = arith.constant 0 : index
      %574 = vector.load %arg3[%c8_377, %c0_378, %c0_379] : memref<16x1x64xf32, #tpu.memory_space<vmem>>, vector<1x1x64xf32>
      %575 = vector.shape_cast %574 : vector<1x1x64xf32> to vector<1x64xf32>
      %576 = vector.broadcast %573 : vector<13x1xf32> to vector<13x64xf32>
      %577 = vector.broadcast %575 : vector<1x64xf32> to vector<13x64xf32>
      %578 = arith.mulf %576, %577 : vector<13x64xf32>
      %579 = arith.addf %567, %578 : vector<13x64xf32>
      %c0_380 = arith.constant 0 : index
      %580 = arith.index_cast %570 : i32 to index
      %c1_381 = arith.constant 1 : index
      %c0_382 = arith.constant 0 : index
      %581 = vector.load %arg1[%c0_380, %580, %c1_381, %c0_382] : memref<1x30x15x1xf32, #tpu.memory_space<vmem>>, vector<1x1x13x1xf32>
      %582 = vector.shape_cast %581 : vector<1x1x13x1xf32> to vector<13x1xf32>
      %c9_383 = arith.constant 9 : index
      %c0_384 = arith.constant 0 : index
      %c0_385 = arith.constant 0 : index
      %583 = vector.load %arg3[%c9_383, %c0_384, %c0_385] : memref<16x1x64xf32, #tpu.memory_space<vmem>>, vector<1x1x64xf32>
      %584 = vector.shape_cast %583 : vector<1x1x64xf32> to vector<1x64xf32>
      %585 = vector.broadcast %582 : vector<13x1xf32> to vector<13x64xf32>
      %586 = vector.broadcast %584 : vector<1x64xf32> to vector<13x64xf32>
      %587 = arith.mulf %585, %586 : vector<13x64xf32>
      %588 = arith.addf %579, %587 : vector<13x64xf32>
      %c0_386 = arith.constant 0 : index
      %589 = arith.index_cast %570 : i32 to index
      %c1_387 = arith.constant 1 : index
      %c0_388 = arith.constant 0 : index
      %590 = vector.load %arg2[%c0_386, %589, %c1_387, %c0_388] : memref<1x30x15x1xf32, #tpu.memory_space<vmem>>, vector<1x1x13x1xf32>
      %591 = vector.shape_cast %590 : vector<1x1x13x1xf32> to vector<13x1xf32>
      %c10_389 = arith.constant 10 : index
      %c0_390 = arith.constant 0 : index
      %c0_391 = arith.constant 0 : index
      %592 = vector.load %arg3[%c10_389, %c0_390, %c0_391] : memref<16x1x64xf32, #tpu.memory_space<vmem>>, vector<1x1x64xf32>
      %593 = vector.shape_cast %592 : vector<1x1x64xf32> to vector<1x64xf32>
      %594 = vector.broadcast %591 : vector<13x1xf32> to vector<13x64xf32>
      %595 = vector.broadcast %593 : vector<1x64xf32> to vector<13x64xf32>
      %596 = arith.mulf %594, %595 : vector<13x64xf32>
      %597 = arith.addf %588, %596 : vector<13x64xf32>
      %c0_392 = arith.constant 0 : index
      %598 = arith.index_cast %570 : i32 to index
      %c2_393 = arith.constant 2 : index
      %c0_394 = arith.constant 0 : index
      %599 = vector.load %arg1[%c0_392, %598, %c2_393, %c0_394] : memref<1x30x15x1xf32, #tpu.memory_space<vmem>>, vector<1x1x13x1xf32>
      %600 = vector.shape_cast %599 : vector<1x1x13x1xf32> to vector<13x1xf32>
      %c11_395 = arith.constant 11 : index
      %c0_396 = arith.constant 0 : index
      %c0_397 = arith.constant 0 : index
      %601 = vector.load %arg3[%c11_395, %c0_396, %c0_397] : memref<16x1x64xf32, #tpu.memory_space<vmem>>, vector<1x1x64xf32>
      %602 = vector.shape_cast %601 : vector<1x1x64xf32> to vector<1x64xf32>
      %603 = vector.broadcast %600 : vector<13x1xf32> to vector<13x64xf32>
      %604 = vector.broadcast %602 : vector<1x64xf32> to vector<13x64xf32>
      %605 = arith.mulf %603, %604 : vector<13x64xf32>
      %606 = arith.addf %597, %605 : vector<13x64xf32>
      %c2_i32_398 = arith.constant 2 : i32
      %607 = arith.muli %c2_i32_398, %3 : i32
      %c1_i32_399 = arith.constant 1 : i32
      %608 = arith.addi %607, %c1_i32_399 : i32
      %c3_i32_400 = arith.constant 3 : i32
      %609 = arith.addi %608, %c3_i32_400 : i32
      %c0_401 = arith.constant 0 : index
      %610 = arith.index_cast %609 : i32 to index
      %c0_402 = arith.constant 0 : index
      %c0_403 = arith.constant 0 : index
      %611 = vector.load %arg2[%c0_401, %610, %c0_402, %c0_403] : memref<1x30x15x1xf32, #tpu.memory_space<vmem>>, vector<1x1x13x1xf32>
      %612 = vector.shape_cast %611 : vector<1x1x13x1xf32> to vector<13x1xf32>
      %c12_404 = arith.constant 12 : index
      %c0_405 = arith.constant 0 : index
      %c0_406 = arith.constant 0 : index
      %613 = vector.load %arg3[%c12_404, %c0_405, %c0_406] : memref<16x1x64xf32, #tpu.memory_space<vmem>>, vector<1x1x64xf32>
      %614 = vector.shape_cast %613 : vector<1x1x64xf32> to vector<1x64xf32>
      %615 = vector.broadcast %612 : vector<13x1xf32> to vector<13x64xf32>
      %616 = vector.broadcast %614 : vector<1x64xf32> to vector<13x64xf32>
      %617 = arith.mulf %615, %616 : vector<13x64xf32>
      %618 = arith.addf %606, %617 : vector<13x64xf32>
      %c0_407 = arith.constant 0 : index
      %619 = arith.index_cast %609 : i32 to index
      %c1_408 = arith.constant 1 : index
      %c0_409 = arith.constant 0 : index
      %620 = vector.load %arg1[%c0_407, %619, %c1_408, %c0_409] : memref<1x30x15x1xf32, #tpu.memory_space<vmem>>, vector<1x1x13x1xf32>
      %621 = vector.shape_cast %620 : vector<1x1x13x1xf32> to vector<13x1xf32>
      %c13_410 = arith.constant 13 : index
      %c0_411 = arith.constant 0 : index
      %c0_412 = arith.constant 0 : index
      %622 = vector.load %arg3[%c13_410, %c0_411, %c0_412] : memref<16x1x64xf32, #tpu.memory_space<vmem>>, vector<1x1x64xf32>
      %623 = vector.shape_cast %622 : vector<1x1x64xf32> to vector<1x64xf32>
      %624 = vector.broadcast %621 : vector<13x1xf32> to vector<13x64xf32>
      %625 = vector.broadcast %623 : vector<1x64xf32> to vector<13x64xf32>
      %626 = arith.mulf %624, %625 : vector<13x64xf32>
      %627 = arith.addf %618, %626 : vector<13x64xf32>
      %c0_413 = arith.constant 0 : index
      %628 = arith.index_cast %609 : i32 to index
      %c1_414 = arith.constant 1 : index
      %c0_415 = arith.constant 0 : index
      %629 = vector.load %arg2[%c0_413, %628, %c1_414, %c0_415] : memref<1x30x15x1xf32, #tpu.memory_space<vmem>>, vector<1x1x13x1xf32>
      %630 = vector.shape_cast %629 : vector<1x1x13x1xf32> to vector<13x1xf32>
      %c14_416 = arith.constant 14 : index
      %c0_417 = arith.constant 0 : index
      %c0_418 = arith.constant 0 : index
      %631 = vector.load %arg3[%c14_416, %c0_417, %c0_418] : memref<16x1x64xf32, #tpu.memory_space<vmem>>, vector<1x1x64xf32>
      %632 = vector.shape_cast %631 : vector<1x1x64xf32> to vector<1x64xf32>
      %633 = vector.broadcast %630 : vector<13x1xf32> to vector<13x64xf32>
      %634 = vector.broadcast %632 : vector<1x64xf32> to vector<13x64xf32>
      %635 = arith.mulf %633, %634 : vector<13x64xf32>
      %636 = arith.addf %627, %635 : vector<13x64xf32>
      %c0_419 = arith.constant 0 : index
      %637 = arith.index_cast %609 : i32 to index
      %c2_420 = arith.constant 2 : index
      %c0_421 = arith.constant 0 : index
      %638 = vector.load %arg1[%c0_419, %637, %c2_420, %c0_421] : memref<1x30x15x1xf32, #tpu.memory_space<vmem>>, vector<1x1x13x1xf32>
      %639 = vector.shape_cast %638 : vector<1x1x13x1xf32> to vector<13x1xf32>
      %c15_422 = arith.constant 15 : index
      %c0_423 = arith.constant 0 : index
      %c0_424 = arith.constant 0 : index
      %640 = vector.load %arg3[%c15_422, %c0_423, %c0_424] : memref<16x1x64xf32, #tpu.memory_space<vmem>>, vector<1x1x64xf32>
      %641 = vector.shape_cast %640 : vector<1x1x64xf32> to vector<1x64xf32>
      %642 = vector.broadcast %639 : vector<13x1xf32> to vector<13x64xf32>
      %643 = vector.broadcast %641 : vector<1x64xf32> to vector<13x64xf32>
      %644 = arith.mulf %642, %643 : vector<13x64xf32>
      %645 = arith.addf %636, %644 : vector<13x64xf32>
      %646 = vector.broadcast %0 : vector<1x64xf32> to vector<13x64xf32>
      %647 = arith.addf %645, %646 : vector<13x64xf32>
      %cst_425 = arith.constant 0.000000e+00 : f32
      %648 = vector.broadcast %cst_425 : f32 to vector<13x64xf32>
      %649 = arith.maximumf %647, %648 : vector<13x64xf32>
      %650 = arith.maximumf %488, %649 : vector<13x64xf32>
      %651 = arith.truncf %650 : vector<13x64xf32> to vector<13x64xbf16>
      %c0_426 = arith.constant 0 : index
      %652 = arith.index_cast %3 : i32 to index
      %c0_427 = arith.constant 0 : index
      %c0_428 = arith.constant 0 : index
      %653 = vector.load %arg5[%c0_426, %652, %c0_427, %c0_428] : memref<1x13x13x64xbf16, #tpu.memory_space<vmem>>, vector<1x1x13x64xbf16>
      %654 = vector.shape_cast %653 : vector<1x1x13x64xbf16> to vector<13x64xbf16>
      %655 = vector.shape_cast %651 : vector<13x64xbf16> to vector<1x1x13x64xbf16>
      tpu.vector_store %arg5[%c0_426, %652, %c0_427, %c0_428], %655 {strides = array<i32>} : memref<1x13x13x64xbf16, #tpu.memory_space<vmem>>, vector<1x1x13x64xbf16>,
    }
    %c13_i32_1 = arith.constant 13 : i32
    return
  }
  func.func @transform_0(%arg0: i32) -> (i32, i32, i32, i32) {
    %c0_i32 = arith.constant 0 : i32
    %c0_i32_0 = arith.constant 0 : i32
    %c0_i32_1 = arith.constant 0 : i32
    %c0_i32_2 = arith.constant 0 : i32
    return %arg0, %c0_i32, %c0_i32_0, %c0_i32_1 : i32, i32, i32, i32
  }
  func.func @transform_1(%arg0: i32) -> (i32, i32, i32, i32) {
    %c0_i32 = arith.constant 0 : i32
    %c0_i32_0 = arith.constant 0 : i32
    %c0_i32_1 = arith.constant 0 : i32
    %c0_i32_2 = arith.constant 0 : i32
    return %arg0, %c0_i32, %c0_i32_0, %c0_i32_1 : i32, i32, i32, i32
  }
  func.func @transform_2(%arg0: i32) -> (i32, i32, i32) {
    %c0_i32 = arith.constant 0 : i32
    %c0_i32_0 = arith.constant 0 : i32
    %c0_i32_1 = arith.constant 0 : i32
    %c0_i32_2 = arith.constant 0 : i32
    return %c0_i32, %c0_i32_0, %c0_i32_1 : i32, i32, i32
  }
  func.func @transform_3(%arg0: i32) -> (i32, i32) {
    %c0_i32 = arith.constant 0 : i32
    %c0_i32_0 = arith.constant 0 : i32
    %c0_i32_1 = arith.constant 0 : i32
    return %c0_i32, %c0_i32_0 : i32, i32
  }
  func.func @transform_4(%arg0: i32) -> (i32, i32, i32, i32) {
    %c0_i32 = arith.constant 0 : i32
    %c0_i32_0 = arith.constant 0 : i32
    %c0_i32_1 = arith.constant 0 : i32
    %c0_i32_2 = arith.constant 0 : i32
    return %arg0, %c0_i32, %c0_i32_0, %c0_i32_1 : i32, i32, i32, i32
  }
}

module attributes {stable_mosaic.version = 11 : i64} {
  func.func @_conv_relu_pool_kernel(%arg0: i32, %arg1: memref<1x15x8x64xbf16, #tpu.memory_space<vmem>>, %arg2: memref<1x15x7x64xbf16, #tpu.memory_space<vmem>>, %arg3: memref<16x64x64xbf16, #tpu.memory_space<vmem>>, %arg4: memref<1x64xf32, #tpu.memory_space<vmem>>, %arg5: memref<1x6x6x64xbf16, #tpu.memory_space<vmem>>) attributes {dimension_semantics = [#tpu.dimension_semantics<parallel>], iteration_bounds = array<i64: 2>, scalar_prefetch = 0 : i64, scratch_operands = 0 : i64, tpu.core_type = #tpu.core_type<tc>, window_params = [{transform_indices = @transform_0, window_bounds = array<i64: 1, 15, 8, 64>}, {transform_indices = @transform_1, window_bounds = array<i64: 1, 15, 7, 64>}, {pipeline_mode = #tpu.pipeline_mode<synchronous>, transform_indices = @transform_2, window_bounds = array<i64: 16, 64, 64>}, {pipeline_mode = #tpu.pipeline_mode<synchronous>, transform_indices = @transform_3, window_bounds = array<i64: 1, 64>}, {transform_indices = @transform_4, window_bounds = array<i64: 1, 6, 6, 64>}]} {
    %c0 = arith.constant 0 : index
    %c0_0 = arith.constant 0 : index
    %0 = vector.load %arg4[%c0, %c0_0] : memref<1x64xf32, #tpu.memory_space<vmem>>, vector<1x64xf32>
    %c0_i32 = arith.constant 0 : i32
    %c6_i32 = arith.constant 6 : i32
    %1 = arith.addi %c0_i32, %c6_i32 : i32
    %c1_i32 = arith.constant 1 : i32
    scf.for %arg6 = %c0_i32 to %1 step %c1_i32  : i32 {
      %c1_i32_2 = arith.constant 1 : i32
      %2 = arith.muli %arg6, %c1_i32_2 : i32
      %c0_i32_3 = arith.constant 0 : i32
      %3 = arith.addi %c0_i32_3, %2 : i32
      %cst = arith.constant 0.000000e+00 : f32
      %4 = vector.broadcast %cst : f32 to vector<6x64xf32>
      %c2_i32 = arith.constant 2 : i32
      %5 = arith.muli %c2_i32, %3 : i32
      %c0_i32_4 = arith.constant 0 : i32
      %6 = arith.addi %5, %c0_i32_4 : i32
      %c0_i32_5 = arith.constant 0 : i32
      %7 = arith.addi %6, %c0_i32_5 : i32
      %c0_6 = arith.constant 0 : index
      %8 = arith.index_cast %7 : i32 to index
      %c0_7 = arith.constant 0 : index
      %c0_8 = arith.constant 0 : index
      %9 = vector.load %arg1[%c0_6, %8, %c0_7, %c0_8] : memref<1x15x8x64xbf16, #tpu.memory_space<vmem>>, vector<1x1x6x64xbf16>
      %10 = vector.shape_cast %9 : vector<1x1x6x64xbf16> to vector<6x64xbf16>
      %c0_9 = arith.constant 0 : index
      %c0_10 = arith.constant 0 : index
      %c0_11 = arith.constant 0 : index
      %11 = vector.load %arg3[%c0_9, %c0_10, %c0_11] : memref<16x64x64xbf16, #tpu.memory_space<vmem>>, vector<1x64x64xbf16>
      %12 = vector.shape_cast %11 : vector<1x64x64xbf16> to vector<64x64xbf16>
      %cst_12 = arith.constant dense<0.000000e+00> : vector<6x64xf32>
      %13 = tpu.matmul %10, %12, %cst_12 {dimension_numbers = #tpu.dot_dimension_numbers<[1], [0], [0], [1], [0, 0, 1, 1], [], []>} : vector<6x64xbf16>, vector<64x64xbf16>, vector<6x64xf32> -> vector<6x64xf32>
      %14 = arith.addf %4, %13 : vector<6x64xf32>
      %c0_13 = arith.constant 0 : index
      %15 = arith.index_cast %7 : i32 to index
      %c0_14 = arith.constant 0 : index
      %c0_15 = arith.constant 0 : index
      %16 = vector.load %arg2[%c0_13, %15, %c0_14, %c0_15] : memref<1x15x7x64xbf16, #tpu.memory_space<vmem>>, vector<1x1x6x64xbf16>
      %17 = vector.shape_cast %16 : vector<1x1x6x64xbf16> to vector<6x64xbf16>
      %c1 = arith.constant 1 : index
      %c0_16 = arith.constant 0 : index
      %c0_17 = arith.constant 0 : index
      %18 = vector.load %arg3[%c1, %c0_16, %c0_17] : memref<16x64x64xbf16, #tpu.memory_space<vmem>>, vector<1x64x64xbf16>
      %19 = vector.shape_cast %18 : vector<1x64x64xbf16> to vector<64x64xbf16>
      %cst_18 = arith.constant dense<0.000000e+00> : vector<6x64xf32>
      %20 = tpu.matmul %17, %19, %cst_18 {dimension_numbers = #tpu.dot_dimension_numbers<[1], [0], [0], [1], [0, 0, 1, 1], [], []>} : vector<6x64xbf16>, vector<64x64xbf16>, vector<6x64xf32> -> vector<6x64xf32>
      %21 = arith.addf %14, %20 : vector<6x64xf32>
      %c0_19 = arith.constant 0 : index
      %22 = arith.index_cast %7 : i32 to index
      %c1_20 = arith.constant 1 : index
      %c0_21 = arith.constant 0 : index
      %23 = vector.load %arg1[%c0_19, %22, %c1_20, %c0_21] : memref<1x15x8x64xbf16, #tpu.memory_space<vmem>>, vector<1x1x6x64xbf16>
      %24 = vector.shape_cast %23 : vector<1x1x6x64xbf16> to vector<6x64xbf16>
      %c2 = arith.constant 2 : index
      %c0_22 = arith.constant 0 : index
      %c0_23 = arith.constant 0 : index
      %25 = vector.load %arg3[%c2, %c0_22, %c0_23] : memref<16x64x64xbf16, #tpu.memory_space<vmem>>, vector<1x64x64xbf16>
      %26 = vector.shape_cast %25 : vector<1x64x64xbf16> to vector<64x64xbf16>
      %cst_24 = arith.constant dense<0.000000e+00> : vector<6x64xf32>
      %27 = tpu.matmul %24, %26, %cst_24 {dimension_numbers = #tpu.dot_dimension_numbers<[1], [0], [0], [1], [0, 0, 1, 1], [], []>} : vector<6x64xbf16>, vector<64x64xbf16>, vector<6x64xf32> -> vector<6x64xf32>
      %28 = arith.addf %21, %27 : vector<6x64xf32>
      %c0_25 = arith.constant 0 : index
      %29 = arith.index_cast %7 : i32 to index
      %c1_26 = arith.constant 1 : index
      %c0_27 = arith.constant 0 : index
      %30 = vector.load %arg2[%c0_25, %29, %c1_26, %c0_27] : memref<1x15x7x64xbf16, #tpu.memory_space<vmem>>, vector<1x1x6x64xbf16>
      %31 = vector.shape_cast %30 : vector<1x1x6x64xbf16> to vector<6x64xbf16>
      %c3 = arith.constant 3 : index
      %c0_28 = arith.constant 0 : index
      %c0_29 = arith.constant 0 : index
      %32 = vector.load %arg3[%c3, %c0_28, %c0_29] : memref<16x64x64xbf16, #tpu.memory_space<vmem>>, vector<1x64x64xbf16>
      %33 = vector.shape_cast %32 : vector<1x64x64xbf16> to vector<64x64xbf16>
      %cst_30 = arith.constant dense<0.000000e+00> : vector<6x64xf32>
      %34 = tpu.matmul %31, %33, %cst_30 {dimension_numbers = #tpu.dot_dimension_numbers<[1], [0], [0], [1], [0, 0, 1, 1], [], []>} : vector<6x64xbf16>, vector<64x64xbf16>, vector<6x64xf32> -> vector<6x64xf32>
      %35 = arith.addf %28, %34 : vector<6x64xf32>
      %c2_i32_31 = arith.constant 2 : i32
      %36 = arith.muli %c2_i32_31, %3 : i32
      %c0_i32_32 = arith.constant 0 : i32
      %37 = arith.addi %36, %c0_i32_32 : i32
      %c1_i32_33 = arith.constant 1 : i32
      %38 = arith.addi %37, %c1_i32_33 : i32
      %c0_34 = arith.constant 0 : index
      %39 = arith.index_cast %38 : i32 to index
      %c0_35 = arith.constant 0 : index
      %c0_36 = arith.constant 0 : index
      %40 = vector.load %arg1[%c0_34, %39, %c0_35, %c0_36] : memref<1x15x8x64xbf16, #tpu.memory_space<vmem>>, vector<1x1x6x64xbf16>
      %41 = vector.shape_cast %40 : vector<1x1x6x64xbf16> to vector<6x64xbf16>
      %c4 = arith.constant 4 : index
      %c0_37 = arith.constant 0 : index
      %c0_38 = arith.constant 0 : index
      %42 = vector.load %arg3[%c4, %c0_37, %c0_38] : memref<16x64x64xbf16, #tpu.memory_space<vmem>>, vector<1x64x64xbf16>
      %43 = vector.shape_cast %42 : vector<1x64x64xbf16> to vector<64x64xbf16>
      %cst_39 = arith.constant dense<0.000000e+00> : vector<6x64xf32>
      %44 = tpu.matmul %41, %43, %cst_39 {dimension_numbers = #tpu.dot_dimension_numbers<[1], [0], [0], [1], [0, 0, 1, 1], [], []>} : vector<6x64xbf16>, vector<64x64xbf16>, vector<6x64xf32> -> vector<6x64xf32>
      %45 = arith.addf %35, %44 : vector<6x64xf32>
      %c0_40 = arith.constant 0 : index
      %46 = arith.index_cast %38 : i32 to index
      %c0_41 = arith.constant 0 : index
      %c0_42 = arith.constant 0 : index
      %47 = vector.load %arg2[%c0_40, %46, %c0_41, %c0_42] : memref<1x15x7x64xbf16, #tpu.memory_space<vmem>>, vector<1x1x6x64xbf16>
      %48 = vector.shape_cast %47 : vector<1x1x6x64xbf16> to vector<6x64xbf16>
      %c5 = arith.constant 5 : index
      %c0_43 = arith.constant 0 : index
      %c0_44 = arith.constant 0 : index
      %49 = vector.load %arg3[%c5, %c0_43, %c0_44] : memref<16x64x64xbf16, #tpu.memory_space<vmem>>, vector<1x64x64xbf16>
      %50 = vector.shape_cast %49 : vector<1x64x64xbf16> to vector<64x64xbf16>
      %cst_45 = arith.constant dense<0.000000e+00> : vector<6x64xf32>
      %51 = tpu.matmul %48, %50, %cst_45 {dimension_numbers = #tpu.dot_dimension_numbers<[1], [0], [0], [1], [0, 0, 1, 1], [], []>} : vector<6x64xbf16>, vector<64x64xbf16>, vector<6x64xf32> -> vector<6x64xf32>
      %52 = arith.addf %45, %51 : vector<6x64xf32>
      %c0_46 = arith.constant 0 : index
      %53 = arith.index_cast %38 : i32 to index
      %c1_47 = arith.constant 1 : index
      %c0_48 = arith.constant 0 : index
      %54 = vector.load %arg1[%c0_46, %53, %c1_47, %c0_48] : memref<1x15x8x64xbf16, #tpu.memory_space<vmem>>, vector<1x1x6x64xbf16>
      %55 = vector.shape_cast %54 : vector<1x1x6x64xbf16> to vector<6x64xbf16>
      %c6 = arith.constant 6 : index
      %c0_49 = arith.constant 0 : index
      %c0_50 = arith.constant 0 : index
      %56 = vector.load %arg3[%c6, %c0_49, %c0_50] : memref<16x64x64xbf16, #tpu.memory_space<vmem>>, vector<1x64x64xbf16>
      %57 = vector.shape_cast %56 : vector<1x64x64xbf16> to vector<64x64xbf16>
      %cst_51 = arith.constant dense<0.000000e+00> : vector<6x64xf32>
      %58 = tpu.matmul %55, %57, %cst_51 {dimension_numbers = #tpu.dot_dimension_numbers<[1], [0], [0], [1], [0, 0, 1, 1], [], []>} : vector<6x64xbf16>, vector<64x64xbf16>, vector<6x64xf32> -> vector<6x64xf32>
      %59 = arith.addf %52, %58 : vector<6x64xf32>
      %c0_52 = arith.constant 0 : index
      %60 = arith.index_cast %38 : i32 to index
      %c1_53 = arith.constant 1 : index
      %c0_54 = arith.constant 0 : index
      %61 = vector.load %arg2[%c0_52, %60, %c1_53, %c0_54] : memref<1x15x7x64xbf16, #tpu.memory_space<vmem>>, vector<1x1x6x64xbf16>
      %62 = vector.shape_cast %61 : vector<1x1x6x64xbf16> to vector<6x64xbf16>
      %c7 = arith.constant 7 : index
      %c0_55 = arith.constant 0 : index
      %c0_56 = arith.constant 0 : index
      %63 = vector.load %arg3[%c7, %c0_55, %c0_56] : memref<16x64x64xbf16, #tpu.memory_space<vmem>>, vector<1x64x64xbf16>
      %64 = vector.shape_cast %63 : vector<1x64x64xbf16> to vector<64x64xbf16>
      %cst_57 = arith.constant dense<0.000000e+00> : vector<6x64xf32>
      %65 = tpu.matmul %62, %64, %cst_57 {dimension_numbers = #tpu.dot_dimension_numbers<[1], [0], [0], [1], [0, 0, 1, 1], [], []>} : vector<6x64xbf16>, vector<64x64xbf16>, vector<6x64xf32> -> vector<6x64xf32>
      %66 = arith.addf %59, %65 : vector<6x64xf32>
      %c2_i32_58 = arith.constant 2 : i32
      %67 = arith.muli %c2_i32_58, %3 : i32
      %c0_i32_59 = arith.constant 0 : i32
      %68 = arith.addi %67, %c0_i32_59 : i32
      %c2_i32_60 = arith.constant 2 : i32
      %69 = arith.addi %68, %c2_i32_60 : i32
      %c0_61 = arith.constant 0 : index
      %70 = arith.index_cast %69 : i32 to index
      %c0_62 = arith.constant 0 : index
      %c0_63 = arith.constant 0 : index
      %71 = vector.load %arg1[%c0_61, %70, %c0_62, %c0_63] : memref<1x15x8x64xbf16, #tpu.memory_space<vmem>>, vector<1x1x6x64xbf16>
      %72 = vector.shape_cast %71 : vector<1x1x6x64xbf16> to vector<6x64xbf16>
      %c8 = arith.constant 8 : index
      %c0_64 = arith.constant 0 : index
      %c0_65 = arith.constant 0 : index
      %73 = vector.load %arg3[%c8, %c0_64, %c0_65] : memref<16x64x64xbf16, #tpu.memory_space<vmem>>, vector<1x64x64xbf16>
      %74 = vector.shape_cast %73 : vector<1x64x64xbf16> to vector<64x64xbf16>
      %cst_66 = arith.constant dense<0.000000e+00> : vector<6x64xf32>
      %75 = tpu.matmul %72, %74, %cst_66 {dimension_numbers = #tpu.dot_dimension_numbers<[1], [0], [0], [1], [0, 0, 1, 1], [], []>} : vector<6x64xbf16>, vector<64x64xbf16>, vector<6x64xf32> -> vector<6x64xf32>
      %76 = arith.addf %66, %75 : vector<6x64xf32>
      %c0_67 = arith.constant 0 : index
      %77 = arith.index_cast %69 : i32 to index
      %c0_68 = arith.constant 0 : index
      %c0_69 = arith.constant 0 : index
      %78 = vector.load %arg2[%c0_67, %77, %c0_68, %c0_69] : memref<1x15x7x64xbf16, #tpu.memory_space<vmem>>, vector<1x1x6x64xbf16>
      %79 = vector.shape_cast %78 : vector<1x1x6x64xbf16> to vector<6x64xbf16>
      %c9 = arith.constant 9 : index
      %c0_70 = arith.constant 0 : index
      %c0_71 = arith.constant 0 : index
      %80 = vector.load %arg3[%c9, %c0_70, %c0_71] : memref<16x64x64xbf16, #tpu.memory_space<vmem>>, vector<1x64x64xbf16>
      %81 = vector.shape_cast %80 : vector<1x64x64xbf16> to vector<64x64xbf16>
      %cst_72 = arith.constant dense<0.000000e+00> : vector<6x64xf32>
      %82 = tpu.matmul %79, %81, %cst_72 {dimension_numbers = #tpu.dot_dimension_numbers<[1], [0], [0], [1], [0, 0, 1, 1], [], []>} : vector<6x64xbf16>, vector<64x64xbf16>, vector<6x64xf32> -> vector<6x64xf32>
      %83 = arith.addf %76, %82 : vector<6x64xf32>
      %c0_73 = arith.constant 0 : index
      %84 = arith.index_cast %69 : i32 to index
      %c1_74 = arith.constant 1 : index
      %c0_75 = arith.constant 0 : index
      %85 = vector.load %arg1[%c0_73, %84, %c1_74, %c0_75] : memref<1x15x8x64xbf16, #tpu.memory_space<vmem>>, vector<1x1x6x64xbf16>
      %86 = vector.shape_cast %85 : vector<1x1x6x64xbf16> to vector<6x64xbf16>
      %c10 = arith.constant 10 : index
      %c0_76 = arith.constant 0 : index
      %c0_77 = arith.constant 0 : index
      %87 = vector.load %arg3[%c10, %c0_76, %c0_77] : memref<16x64x64xbf16, #tpu.memory_space<vmem>>, vector<1x64x64xbf16>
      %88 = vector.shape_cast %87 : vector<1x64x64xbf16> to vector<64x64xbf16>
      %cst_78 = arith.constant dense<0.000000e+00> : vector<6x64xf32>
      %89 = tpu.matmul %86, %88, %cst_78 {dimension_numbers = #tpu.dot_dimension_numbers<[1], [0], [0], [1], [0, 0, 1, 1], [], []>} : vector<6x64xbf16>, vector<64x64xbf16>, vector<6x64xf32> -> vector<6x64xf32>
      %90 = arith.addf %83, %89 : vector<6x64xf32>
      %c0_79 = arith.constant 0 : index
      %91 = arith.index_cast %69 : i32 to index
      %c1_80 = arith.constant 1 : index
      %c0_81 = arith.constant 0 : index
      %92 = vector.load %arg2[%c0_79, %91, %c1_80, %c0_81] : memref<1x15x7x64xbf16, #tpu.memory_space<vmem>>, vector<1x1x6x64xbf16>
      %93 = vector.shape_cast %92 : vector<1x1x6x64xbf16> to vector<6x64xbf16>
      %c11 = arith.constant 11 : index
      %c0_82 = arith.constant 0 : index
      %c0_83 = arith.constant 0 : index
      %94 = vector.load %arg3[%c11, %c0_82, %c0_83] : memref<16x64x64xbf16, #tpu.memory_space<vmem>>, vector<1x64x64xbf16>
      %95 = vector.shape_cast %94 : vector<1x64x64xbf16> to vector<64x64xbf16>
      %cst_84 = arith.constant dense<0.000000e+00> : vector<6x64xf32>
      %96 = tpu.matmul %93, %95, %cst_84 {dimension_numbers = #tpu.dot_dimension_numbers<[1], [0], [0], [1], [0, 0, 1, 1], [], []>} : vector<6x64xbf16>, vector<64x64xbf16>, vector<6x64xf32> -> vector<6x64xf32>
      %97 = arith.addf %90, %96 : vector<6x64xf32>
      %c2_i32_85 = arith.constant 2 : i32
      %98 = arith.muli %c2_i32_85, %3 : i32
      %c0_i32_86 = arith.constant 0 : i32
      %99 = arith.addi %98, %c0_i32_86 : i32
      %c3_i32 = arith.constant 3 : i32
      %100 = arith.addi %99, %c3_i32 : i32
      %c0_87 = arith.constant 0 : index
      %101 = arith.index_cast %100 : i32 to index
      %c0_88 = arith.constant 0 : index
      %c0_89 = arith.constant 0 : index
      %102 = vector.load %arg1[%c0_87, %101, %c0_88, %c0_89] : memref<1x15x8x64xbf16, #tpu.memory_space<vmem>>, vector<1x1x6x64xbf16>
      %103 = vector.shape_cast %102 : vector<1x1x6x64xbf16> to vector<6x64xbf16>
      %c12 = arith.constant 12 : index
      %c0_90 = arith.constant 0 : index
      %c0_91 = arith.constant 0 : index
      %104 = vector.load %arg3[%c12, %c0_90, %c0_91] : memref<16x64x64xbf16, #tpu.memory_space<vmem>>, vector<1x64x64xbf16>
      %105 = vector.shape_cast %104 : vector<1x64x64xbf16> to vector<64x64xbf16>
      %cst_92 = arith.constant dense<0.000000e+00> : vector<6x64xf32>
      %106 = tpu.matmul %103, %105, %cst_92 {dimension_numbers = #tpu.dot_dimension_numbers<[1], [0], [0], [1], [0, 0, 1, 1], [], []>} : vector<6x64xbf16>, vector<64x64xbf16>, vector<6x64xf32> -> vector<6x64xf32>
      %107 = arith.addf %97, %106 : vector<6x64xf32>
      %c0_93 = arith.constant 0 : index
      %108 = arith.index_cast %100 : i32 to index
      %c0_94 = arith.constant 0 : index
      %c0_95 = arith.constant 0 : index
      %109 = vector.load %arg2[%c0_93, %108, %c0_94, %c0_95] : memref<1x15x7x64xbf16, #tpu.memory_space<vmem>>, vector<1x1x6x64xbf16>
      %110 = vector.shape_cast %109 : vector<1x1x6x64xbf16> to vector<6x64xbf16>
      %c13 = arith.constant 13 : index
      %c0_96 = arith.constant 0 : index
      %c0_97 = arith.constant 0 : index
      %111 = vector.load %arg3[%c13, %c0_96, %c0_97] : memref<16x64x64xbf16, #tpu.memory_space<vmem>>, vector<1x64x64xbf16>
      %112 = vector.shape_cast %111 : vector<1x64x64xbf16> to vector<64x64xbf16>
      %cst_98 = arith.constant dense<0.000000e+00> : vector<6x64xf32>
      %113 = tpu.matmul %110, %112, %cst_98 {dimension_numbers = #tpu.dot_dimension_numbers<[1], [0], [0], [1], [0, 0, 1, 1], [], []>} : vector<6x64xbf16>, vector<64x64xbf16>, vector<6x64xf32> -> vector<6x64xf32>
      %114 = arith.addf %107, %113 : vector<6x64xf32>
      %c0_99 = arith.constant 0 : index
      %115 = arith.index_cast %100 : i32 to index
      %c1_100 = arith.constant 1 : index
      %c0_101 = arith.constant 0 : index
      %116 = vector.load %arg1[%c0_99, %115, %c1_100, %c0_101] : memref<1x15x8x64xbf16, #tpu.memory_space<vmem>>, vector<1x1x6x64xbf16>
      %117 = vector.shape_cast %116 : vector<1x1x6x64xbf16> to vector<6x64xbf16>
      %c14 = arith.constant 14 : index
      %c0_102 = arith.constant 0 : index
      %c0_103 = arith.constant 0 : index
      %118 = vector.load %arg3[%c14, %c0_102, %c0_103] : memref<16x64x64xbf16, #tpu.memory_space<vmem>>, vector<1x64x64xbf16>
      %119 = vector.shape_cast %118 : vector<1x64x64xbf16> to vector<64x64xbf16>
      %cst_104 = arith.constant dense<0.000000e+00> : vector<6x64xf32>
      %120 = tpu.matmul %117, %119, %cst_104 {dimension_numbers = #tpu.dot_dimension_numbers<[1], [0], [0], [1], [0, 0, 1, 1], [], []>} : vector<6x64xbf16>, vector<64x64xbf16>, vector<6x64xf32> -> vector<6x64xf32>
      %121 = arith.addf %114, %120 : vector<6x64xf32>
      %c0_105 = arith.constant 0 : index
      %122 = arith.index_cast %100 : i32 to index
      %c1_106 = arith.constant 1 : index
      %c0_107 = arith.constant 0 : index
      %123 = vector.load %arg2[%c0_105, %122, %c1_106, %c0_107] : memref<1x15x7x64xbf16, #tpu.memory_space<vmem>>, vector<1x1x6x64xbf16>
      %124 = vector.shape_cast %123 : vector<1x1x6x64xbf16> to vector<6x64xbf16>
      %c15 = arith.constant 15 : index
      %c0_108 = arith.constant 0 : index
      %c0_109 = arith.constant 0 : index
      %125 = vector.load %arg3[%c15, %c0_108, %c0_109] : memref<16x64x64xbf16, #tpu.memory_space<vmem>>, vector<1x64x64xbf16>
      %126 = vector.shape_cast %125 : vector<1x64x64xbf16> to vector<64x64xbf16>
      %cst_110 = arith.constant dense<0.000000e+00> : vector<6x64xf32>
      %127 = tpu.matmul %124, %126, %cst_110 {dimension_numbers = #tpu.dot_dimension_numbers<[1], [0], [0], [1], [0, 0, 1, 1], [], []>} : vector<6x64xbf16>, vector<64x64xbf16>, vector<6x64xf32> -> vector<6x64xf32>
      %128 = arith.addf %121, %127 : vector<6x64xf32>
      %129 = vector.broadcast %0 : vector<1x64xf32> to vector<6x64xf32>
      %130 = arith.addf %128, %129 : vector<6x64xf32>
      %cst_111 = arith.constant 0.000000e+00 : f32
      %131 = vector.broadcast %cst_111 : f32 to vector<6x64xf32>
      %132 = arith.maximumf %130, %131 : vector<6x64xf32>
      %cst_112 = arith.constant 0.000000e+00 : f32
      %133 = vector.broadcast %cst_112 : f32 to vector<6x64xf32>
      %c2_i32_113 = arith.constant 2 : i32
      %134 = arith.muli %c2_i32_113, %3 : i32
      %c0_i32_114 = arith.constant 0 : i32
      %135 = arith.addi %134, %c0_i32_114 : i32
      %c0_i32_115 = arith.constant 0 : i32
      %136 = arith.addi %135, %c0_i32_115 : i32
      %c0_116 = arith.constant 0 : index
      %137 = arith.index_cast %136 : i32 to index
      %c0_117 = arith.constant 0 : index
      %c0_118 = arith.constant 0 : index
      %138 = vector.load %arg2[%c0_116, %137, %c0_117, %c0_118] : memref<1x15x7x64xbf16, #tpu.memory_space<vmem>>, vector<1x1x6x64xbf16>
      %139 = vector.shape_cast %138 : vector<1x1x6x64xbf16> to vector<6x64xbf16>
      %c0_119 = arith.constant 0 : index
      %c0_120 = arith.constant 0 : index
      %c0_121 = arith.constant 0 : index
      %140 = vector.load %arg3[%c0_119, %c0_120, %c0_121] : memref<16x64x64xbf16, #tpu.memory_space<vmem>>, vector<1x64x64xbf16>
      %141 = vector.shape_cast %140 : vector<1x64x64xbf16> to vector<64x64xbf16>
      %cst_122 = arith.constant dense<0.000000e+00> : vector<6x64xf32>
      %142 = tpu.matmul %139, %141, %cst_122 {dimension_numbers = #tpu.dot_dimension_numbers<[1], [0], [0], [1], [0, 0, 1, 1], [], []>} : vector<6x64xbf16>, vector<64x64xbf16>, vector<6x64xf32> -> vector<6x64xf32>
      %143 = arith.addf %133, %142 : vector<6x64xf32>
      %c0_123 = arith.constant 0 : index
      %144 = arith.index_cast %136 : i32 to index
      %c1_124 = arith.constant 1 : index
      %c0_125 = arith.constant 0 : index
      %145 = vector.load %arg1[%c0_123, %144, %c1_124, %c0_125] : memref<1x15x8x64xbf16, #tpu.memory_space<vmem>>, vector<1x1x6x64xbf16>
      %146 = vector.shape_cast %145 : vector<1x1x6x64xbf16> to vector<6x64xbf16>
      %c1_126 = arith.constant 1 : index
      %c0_127 = arith.constant 0 : index
      %c0_128 = arith.constant 0 : index
      %147 = vector.load %arg3[%c1_126, %c0_127, %c0_128] : memref<16x64x64xbf16, #tpu.memory_space<vmem>>, vector<1x64x64xbf16>
      %148 = vector.shape_cast %147 : vector<1x64x64xbf16> to vector<64x64xbf16>
      %cst_129 = arith.constant dense<0.000000e+00> : vector<6x64xf32>
      %149 = tpu.matmul %146, %148, %cst_129 {dimension_numbers = #tpu.dot_dimension_numbers<[1], [0], [0], [1], [0, 0, 1, 1], [], []>} : vector<6x64xbf16>, vector<64x64xbf16>, vector<6x64xf32> -> vector<6x64xf32>
      %150 = arith.addf %143, %149 : vector<6x64xf32>
      %c0_130 = arith.constant 0 : index
      %151 = arith.index_cast %136 : i32 to index
      %c1_131 = arith.constant 1 : index
      %c0_132 = arith.constant 0 : index
      %152 = vector.load %arg2[%c0_130, %151, %c1_131, %c0_132] : memref<1x15x7x64xbf16, #tpu.memory_space<vmem>>, vector<1x1x6x64xbf16>
      %153 = vector.shape_cast %152 : vector<1x1x6x64xbf16> to vector<6x64xbf16>
      %c2_133 = arith.constant 2 : index
      %c0_134 = arith.constant 0 : index
      %c0_135 = arith.constant 0 : index
      %154 = vector.load %arg3[%c2_133, %c0_134, %c0_135] : memref<16x64x64xbf16, #tpu.memory_space<vmem>>, vector<1x64x64xbf16>
      %155 = vector.shape_cast %154 : vector<1x64x64xbf16> to vector<64x64xbf16>
      %cst_136 = arith.constant dense<0.000000e+00> : vector<6x64xf32>
      %156 = tpu.matmul %153, %155, %cst_136 {dimension_numbers = #tpu.dot_dimension_numbers<[1], [0], [0], [1], [0, 0, 1, 1], [], []>} : vector<6x64xbf16>, vector<64x64xbf16>, vector<6x64xf32> -> vector<6x64xf32>
      %157 = arith.addf %150, %156 : vector<6x64xf32>
      %c0_137 = arith.constant 0 : index
      %158 = arith.index_cast %136 : i32 to index
      %c2_138 = arith.constant 2 : index
      %c0_139 = arith.constant 0 : index
      %159 = vector.load %arg1[%c0_137, %158, %c2_138, %c0_139] : memref<1x15x8x64xbf16, #tpu.memory_space<vmem>>, vector<1x1x6x64xbf16>
      %160 = vector.shape_cast %159 : vector<1x1x6x64xbf16> to vector<6x64xbf16>
      %c3_140 = arith.constant 3 : index
      %c0_141 = arith.constant 0 : index
      %c0_142 = arith.constant 0 : index
      %161 = vector.load %arg3[%c3_140, %c0_141, %c0_142] : memref<16x64x64xbf16, #tpu.memory_space<vmem>>, vector<1x64x64xbf16>
      %162 = vector.shape_cast %161 : vector<1x64x64xbf16> to vector<64x64xbf16>
      %cst_143 = arith.constant dense<0.000000e+00> : vector<6x64xf32>
      %163 = tpu.matmul %160, %162, %cst_143 {dimension_numbers = #tpu.dot_dimension_numbers<[1], [0], [0], [1], [0, 0, 1, 1], [], []>} : vector<6x64xbf16>, vector<64x64xbf16>, vector<6x64xf32> -> vector<6x64xf32>
      %164 = arith.addf %157, %163 : vector<6x64xf32>
      %c2_i32_144 = arith.constant 2 : i32
      %165 = arith.muli %c2_i32_144, %3 : i32
      %c0_i32_145 = arith.constant 0 : i32
      %166 = arith.addi %165, %c0_i32_145 : i32
      %c1_i32_146 = arith.constant 1 : i32
      %167 = arith.addi %166, %c1_i32_146 : i32
      %c0_147 = arith.constant 0 : index
      %168 = arith.index_cast %167 : i32 to index
      %c0_148 = arith.constant 0 : index
      %c0_149 = arith.constant 0 : index
      %169 = vector.load %arg2[%c0_147, %168, %c0_148, %c0_149] : memref<1x15x7x64xbf16, #tpu.memory_space<vmem>>, vector<1x1x6x64xbf16>
      %170 = vector.shape_cast %169 : vector<1x1x6x64xbf16> to vector<6x64xbf16>
      %c4_150 = arith.constant 4 : index
      %c0_151 = arith.constant 0 : index
      %c0_152 = arith.constant 0 : index
      %171 = vector.load %arg3[%c4_150, %c0_151, %c0_152] : memref<16x64x64xbf16, #tpu.memory_space<vmem>>, vector<1x64x64xbf16>
      %172 = vector.shape_cast %171 : vector<1x64x64xbf16> to vector<64x64xbf16>
      %cst_153 = arith.constant dense<0.000000e+00> : vector<6x64xf32>
      %173 = tpu.matmul %170, %172, %cst_153 {dimension_numbers = #tpu.dot_dimension_numbers<[1], [0], [0], [1], [0, 0, 1, 1], [], []>} : vector<6x64xbf16>, vector<64x64xbf16>, vector<6x64xf32> -> vector<6x64xf32>
      %174 = arith.addf %164, %173 : vector<6x64xf32>
      %c0_154 = arith.constant 0 : index
      %175 = arith.index_cast %167 : i32 to index
      %c1_155 = arith.constant 1 : index
      %c0_156 = arith.constant 0 : index
      %176 = vector.load %arg1[%c0_154, %175, %c1_155, %c0_156] : memref<1x15x8x64xbf16, #tpu.memory_space<vmem>>, vector<1x1x6x64xbf16>
      %177 = vector.shape_cast %176 : vector<1x1x6x64xbf16> to vector<6x64xbf16>
      %c5_157 = arith.constant 5 : index
      %c0_158 = arith.constant 0 : index
      %c0_159 = arith.constant 0 : index
      %178 = vector.load %arg3[%c5_157, %c0_158, %c0_159] : memref<16x64x64xbf16, #tpu.memory_space<vmem>>, vector<1x64x64xbf16>
      %179 = vector.shape_cast %178 : vector<1x64x64xbf16> to vector<64x64xbf16>
      %cst_160 = arith.constant dense<0.000000e+00> : vector<6x64xf32>
      %180 = tpu.matmul %177, %179, %cst_160 {dimension_numbers = #tpu.dot_dimension_numbers<[1], [0], [0], [1], [0, 0, 1, 1], [], []>} : vector<6x64xbf16>, vector<64x64xbf16>, vector<6x64xf32> -> vector<6x64xf32>
      %181 = arith.addf %174, %180 : vector<6x64xf32>
      %c0_161 = arith.constant 0 : index
      %182 = arith.index_cast %167 : i32 to index
      %c1_162 = arith.constant 1 : index
      %c0_163 = arith.constant 0 : index
      %183 = vector.load %arg2[%c0_161, %182, %c1_162, %c0_163] : memref<1x15x7x64xbf16, #tpu.memory_space<vmem>>, vector<1x1x6x64xbf16>
      %184 = vector.shape_cast %183 : vector<1x1x6x64xbf16> to vector<6x64xbf16>
      %c6_164 = arith.constant 6 : index
      %c0_165 = arith.constant 0 : index
      %c0_166 = arith.constant 0 : index
      %185 = vector.load %arg3[%c6_164, %c0_165, %c0_166] : memref<16x64x64xbf16, #tpu.memory_space<vmem>>, vector<1x64x64xbf16>
      %186 = vector.shape_cast %185 : vector<1x64x64xbf16> to vector<64x64xbf16>
      %cst_167 = arith.constant dense<0.000000e+00> : vector<6x64xf32>
      %187 = tpu.matmul %184, %186, %cst_167 {dimension_numbers = #tpu.dot_dimension_numbers<[1], [0], [0], [1], [0, 0, 1, 1], [], []>} : vector<6x64xbf16>, vector<64x64xbf16>, vector<6x64xf32> -> vector<6x64xf32>
      %188 = arith.addf %181, %187 : vector<6x64xf32>
      %c0_168 = arith.constant 0 : index
      %189 = arith.index_cast %167 : i32 to index
      %c2_169 = arith.constant 2 : index
      %c0_170 = arith.constant 0 : index
      %190 = vector.load %arg1[%c0_168, %189, %c2_169, %c0_170] : memref<1x15x8x64xbf16, #tpu.memory_space<vmem>>, vector<1x1x6x64xbf16>
      %191 = vector.shape_cast %190 : vector<1x1x6x64xbf16> to vector<6x64xbf16>
      %c7_171 = arith.constant 7 : index
      %c0_172 = arith.constant 0 : index
      %c0_173 = arith.constant 0 : index
      %192 = vector.load %arg3[%c7_171, %c0_172, %c0_173] : memref<16x64x64xbf16, #tpu.memory_space<vmem>>, vector<1x64x64xbf16>
      %193 = vector.shape_cast %192 : vector<1x64x64xbf16> to vector<64x64xbf16>
      %cst_174 = arith.constant dense<0.000000e+00> : vector<6x64xf32>
      %194 = tpu.matmul %191, %193, %cst_174 {dimension_numbers = #tpu.dot_dimension_numbers<[1], [0], [0], [1], [0, 0, 1, 1], [], []>} : vector<6x64xbf16>, vector<64x64xbf16>, vector<6x64xf32> -> vector<6x64xf32>
      %195 = arith.addf %188, %194 : vector<6x64xf32>
      %c2_i32_175 = arith.constant 2 : i32
      %196 = arith.muli %c2_i32_175, %3 : i32
      %c0_i32_176 = arith.constant 0 : i32
      %197 = arith.addi %196, %c0_i32_176 : i32
      %c2_i32_177 = arith.constant 2 : i32
      %198 = arith.addi %197, %c2_i32_177 : i32
      %c0_178 = arith.constant 0 : index
      %199 = arith.index_cast %198 : i32 to index
      %c0_179 = arith.constant 0 : index
      %c0_180 = arith.constant 0 : index
      %200 = vector.load %arg2[%c0_178, %199, %c0_179, %c0_180] : memref<1x15x7x64xbf16, #tpu.memory_space<vmem>>, vector<1x1x6x64xbf16>
      %201 = vector.shape_cast %200 : vector<1x1x6x64xbf16> to vector<6x64xbf16>
      %c8_181 = arith.constant 8 : index
      %c0_182 = arith.constant 0 : index
      %c0_183 = arith.constant 0 : index
      %202 = vector.load %arg3[%c8_181, %c0_182, %c0_183] : memref<16x64x64xbf16, #tpu.memory_space<vmem>>, vector<1x64x64xbf16>
      %203 = vector.shape_cast %202 : vector<1x64x64xbf16> to vector<64x64xbf16>
      %cst_184 = arith.constant dense<0.000000e+00> : vector<6x64xf32>
      %204 = tpu.matmul %201, %203, %cst_184 {dimension_numbers = #tpu.dot_dimension_numbers<[1], [0], [0], [1], [0, 0, 1, 1], [], []>} : vector<6x64xbf16>, vector<64x64xbf16>, vector<6x64xf32> -> vector<6x64xf32>
      %205 = arith.addf %195, %204 : vector<6x64xf32>
      %c0_185 = arith.constant 0 : index
      %206 = arith.index_cast %198 : i32 to index
      %c1_186 = arith.constant 1 : index
      %c0_187 = arith.constant 0 : index
      %207 = vector.load %arg1[%c0_185, %206, %c1_186, %c0_187] : memref<1x15x8x64xbf16, #tpu.memory_space<vmem>>, vector<1x1x6x64xbf16>
      %208 = vector.shape_cast %207 : vector<1x1x6x64xbf16> to vector<6x64xbf16>
      %c9_188 = arith.constant 9 : index
      %c0_189 = arith.constant 0 : index
      %c0_190 = arith.constant 0 : index
      %209 = vector.load %arg3[%c9_188, %c0_189, %c0_190] : memref<16x64x64xbf16, #tpu.memory_space<vmem>>, vector<1x64x64xbf16>
      %210 = vector.shape_cast %209 : vector<1x64x64xbf16> to vector<64x64xbf16>
      %cst_191 = arith.constant dense<0.000000e+00> : vector<6x64xf32>
      %211 = tpu.matmul %208, %210, %cst_191 {dimension_numbers = #tpu.dot_dimension_numbers<[1], [0], [0], [1], [0, 0, 1, 1], [], []>} : vector<6x64xbf16>, vector<64x64xbf16>, vector<6x64xf32> -> vector<6x64xf32>
      %212 = arith.addf %205, %211 : vector<6x64xf32>
      %c0_192 = arith.constant 0 : index
      %213 = arith.index_cast %198 : i32 to index
      %c1_193 = arith.constant 1 : index
      %c0_194 = arith.constant 0 : index
      %214 = vector.load %arg2[%c0_192, %213, %c1_193, %c0_194] : memref<1x15x7x64xbf16, #tpu.memory_space<vmem>>, vector<1x1x6x64xbf16>
      %215 = vector.shape_cast %214 : vector<1x1x6x64xbf16> to vector<6x64xbf16>
      %c10_195 = arith.constant 10 : index
      %c0_196 = arith.constant 0 : index
      %c0_197 = arith.constant 0 : index
      %216 = vector.load %arg3[%c10_195, %c0_196, %c0_197] : memref<16x64x64xbf16, #tpu.memory_space<vmem>>, vector<1x64x64xbf16>
      %217 = vector.shape_cast %216 : vector<1x64x64xbf16> to vector<64x64xbf16>
      %cst_198 = arith.constant dense<0.000000e+00> : vector<6x64xf32>
      %218 = tpu.matmul %215, %217, %cst_198 {dimension_numbers = #tpu.dot_dimension_numbers<[1], [0], [0], [1], [0, 0, 1, 1], [], []>} : vector<6x64xbf16>, vector<64x64xbf16>, vector<6x64xf32> -> vector<6x64xf32>
      %219 = arith.addf %212, %218 : vector<6x64xf32>
      %c0_199 = arith.constant 0 : index
      %220 = arith.index_cast %198 : i32 to index
      %c2_200 = arith.constant 2 : index
      %c0_201 = arith.constant 0 : index
      %221 = vector.load %arg1[%c0_199, %220, %c2_200, %c0_201] : memref<1x15x8x64xbf16, #tpu.memory_space<vmem>>, vector<1x1x6x64xbf16>
      %222 = vector.shape_cast %221 : vector<1x1x6x64xbf16> to vector<6x64xbf16>
      %c11_202 = arith.constant 11 : index
      %c0_203 = arith.constant 0 : index
      %c0_204 = arith.constant 0 : index
      %223 = vector.load %arg3[%c11_202, %c0_203, %c0_204] : memref<16x64x64xbf16, #tpu.memory_space<vmem>>, vector<1x64x64xbf16>
      %224 = vector.shape_cast %223 : vector<1x64x64xbf16> to vector<64x64xbf16>
      %cst_205 = arith.constant dense<0.000000e+00> : vector<6x64xf32>
      %225 = tpu.matmul %222, %224, %cst_205 {dimension_numbers = #tpu.dot_dimension_numbers<[1], [0], [0], [1], [0, 0, 1, 1], [], []>} : vector<6x64xbf16>, vector<64x64xbf16>, vector<6x64xf32> -> vector<6x64xf32>
      %226 = arith.addf %219, %225 : vector<6x64xf32>
      %c2_i32_206 = arith.constant 2 : i32
      %227 = arith.muli %c2_i32_206, %3 : i32
      %c0_i32_207 = arith.constant 0 : i32
      %228 = arith.addi %227, %c0_i32_207 : i32
      %c3_i32_208 = arith.constant 3 : i32
      %229 = arith.addi %228, %c3_i32_208 : i32
      %c0_209 = arith.constant 0 : index
      %230 = arith.index_cast %229 : i32 to index
      %c0_210 = arith.constant 0 : index
      %c0_211 = arith.constant 0 : index
      %231 = vector.load %arg2[%c0_209, %230, %c0_210, %c0_211] : memref<1x15x7x64xbf16, #tpu.memory_space<vmem>>, vector<1x1x6x64xbf16>
      %232 = vector.shape_cast %231 : vector<1x1x6x64xbf16> to vector<6x64xbf16>
      %c12_212 = arith.constant 12 : index
      %c0_213 = arith.constant 0 : index
      %c0_214 = arith.constant 0 : index
      %233 = vector.load %arg3[%c12_212, %c0_213, %c0_214] : memref<16x64x64xbf16, #tpu.memory_space<vmem>>, vector<1x64x64xbf16>
      %234 = vector.shape_cast %233 : vector<1x64x64xbf16> to vector<64x64xbf16>
      %cst_215 = arith.constant dense<0.000000e+00> : vector<6x64xf32>
      %235 = tpu.matmul %232, %234, %cst_215 {dimension_numbers = #tpu.dot_dimension_numbers<[1], [0], [0], [1], [0, 0, 1, 1], [], []>} : vector<6x64xbf16>, vector<64x64xbf16>, vector<6x64xf32> -> vector<6x64xf32>
      %236 = arith.addf %226, %235 : vector<6x64xf32>
      %c0_216 = arith.constant 0 : index
      %237 = arith.index_cast %229 : i32 to index
      %c1_217 = arith.constant 1 : index
      %c0_218 = arith.constant 0 : index
      %238 = vector.load %arg1[%c0_216, %237, %c1_217, %c0_218] : memref<1x15x8x64xbf16, #tpu.memory_space<vmem>>, vector<1x1x6x64xbf16>
      %239 = vector.shape_cast %238 : vector<1x1x6x64xbf16> to vector<6x64xbf16>
      %c13_219 = arith.constant 13 : index
      %c0_220 = arith.constant 0 : index
      %c0_221 = arith.constant 0 : index
      %240 = vector.load %arg3[%c13_219, %c0_220, %c0_221] : memref<16x64x64xbf16, #tpu.memory_space<vmem>>, vector<1x64x64xbf16>
      %241 = vector.shape_cast %240 : vector<1x64x64xbf16> to vector<64x64xbf16>
      %cst_222 = arith.constant dense<0.000000e+00> : vector<6x64xf32>
      %242 = tpu.matmul %239, %241, %cst_222 {dimension_numbers = #tpu.dot_dimension_numbers<[1], [0], [0], [1], [0, 0, 1, 1], [], []>} : vector<6x64xbf16>, vector<64x64xbf16>, vector<6x64xf32> -> vector<6x64xf32>
      %243 = arith.addf %236, %242 : vector<6x64xf32>
      %c0_223 = arith.constant 0 : index
      %244 = arith.index_cast %229 : i32 to index
      %c1_224 = arith.constant 1 : index
      %c0_225 = arith.constant 0 : index
      %245 = vector.load %arg2[%c0_223, %244, %c1_224, %c0_225] : memref<1x15x7x64xbf16, #tpu.memory_space<vmem>>, vector<1x1x6x64xbf16>
      %246 = vector.shape_cast %245 : vector<1x1x6x64xbf16> to vector<6x64xbf16>
      %c14_226 = arith.constant 14 : index
      %c0_227 = arith.constant 0 : index
      %c0_228 = arith.constant 0 : index
      %247 = vector.load %arg3[%c14_226, %c0_227, %c0_228] : memref<16x64x64xbf16, #tpu.memory_space<vmem>>, vector<1x64x64xbf16>
      %248 = vector.shape_cast %247 : vector<1x64x64xbf16> to vector<64x64xbf16>
      %cst_229 = arith.constant dense<0.000000e+00> : vector<6x64xf32>
      %249 = tpu.matmul %246, %248, %cst_229 {dimension_numbers = #tpu.dot_dimension_numbers<[1], [0], [0], [1], [0, 0, 1, 1], [], []>} : vector<6x64xbf16>, vector<64x64xbf16>, vector<6x64xf32> -> vector<6x64xf32>
      %250 = arith.addf %243, %249 : vector<6x64xf32>
      %c0_230 = arith.constant 0 : index
      %251 = arith.index_cast %229 : i32 to index
      %c2_231 = arith.constant 2 : index
      %c0_232 = arith.constant 0 : index
      %252 = vector.load %arg1[%c0_230, %251, %c2_231, %c0_232] : memref<1x15x8x64xbf16, #tpu.memory_space<vmem>>, vector<1x1x6x64xbf16>
      %253 = vector.shape_cast %252 : vector<1x1x6x64xbf16> to vector<6x64xbf16>
      %c15_233 = arith.constant 15 : index
      %c0_234 = arith.constant 0 : index
      %c0_235 = arith.constant 0 : index
      %254 = vector.load %arg3[%c15_233, %c0_234, %c0_235] : memref<16x64x64xbf16, #tpu.memory_space<vmem>>, vector<1x64x64xbf16>
      %255 = vector.shape_cast %254 : vector<1x64x64xbf16> to vector<64x64xbf16>
      %cst_236 = arith.constant dense<0.000000e+00> : vector<6x64xf32>
      %256 = tpu.matmul %253, %255, %cst_236 {dimension_numbers = #tpu.dot_dimension_numbers<[1], [0], [0], [1], [0, 0, 1, 1], [], []>} : vector<6x64xbf16>, vector<64x64xbf16>, vector<6x64xf32> -> vector<6x64xf32>
      %257 = arith.addf %250, %256 : vector<6x64xf32>
      %258 = vector.broadcast %0 : vector<1x64xf32> to vector<6x64xf32>
      %259 = arith.addf %257, %258 : vector<6x64xf32>
      %cst_237 = arith.constant 0.000000e+00 : f32
      %260 = vector.broadcast %cst_237 : f32 to vector<6x64xf32>
      %261 = arith.maximumf %259, %260 : vector<6x64xf32>
      %262 = arith.maximumf %132, %261 : vector<6x64xf32>
      %cst_238 = arith.constant 0.000000e+00 : f32
      %263 = vector.broadcast %cst_238 : f32 to vector<6x64xf32>
      %c2_i32_239 = arith.constant 2 : i32
      %264 = arith.muli %c2_i32_239, %3 : i32
      %c1_i32_240 = arith.constant 1 : i32
      %265 = arith.addi %264, %c1_i32_240 : i32
      %c0_i32_241 = arith.constant 0 : i32
      %266 = arith.addi %265, %c0_i32_241 : i32
      %c0_242 = arith.constant 0 : index
      %267 = arith.index_cast %266 : i32 to index
      %c0_243 = arith.constant 0 : index
      %c0_244 = arith.constant 0 : index
      %268 = vector.load %arg1[%c0_242, %267, %c0_243, %c0_244] : memref<1x15x8x64xbf16, #tpu.memory_space<vmem>>, vector<1x1x6x64xbf16>
      %269 = vector.shape_cast %268 : vector<1x1x6x64xbf16> to vector<6x64xbf16>
      %c0_245 = arith.constant 0 : index
      %c0_246 = arith.constant 0 : index
      %c0_247 = arith.constant 0 : index
      %270 = vector.load %arg3[%c0_245, %c0_246, %c0_247] : memref<16x64x64xbf16, #tpu.memory_space<vmem>>, vector<1x64x64xbf16>
      %271 = vector.shape_cast %270 : vector<1x64x64xbf16> to vector<64x64xbf16>
      %cst_248 = arith.constant dense<0.000000e+00> : vector<6x64xf32>
      %272 = tpu.matmul %269, %271, %cst_248 {dimension_numbers = #tpu.dot_dimension_numbers<[1], [0], [0], [1], [0, 0, 1, 1], [], []>} : vector<6x64xbf16>, vector<64x64xbf16>, vector<6x64xf32> -> vector<6x64xf32>
      %273 = arith.addf %263, %272 : vector<6x64xf32>
      %c0_249 = arith.constant 0 : index
      %274 = arith.index_cast %266 : i32 to index
      %c0_250 = arith.constant 0 : index
      %c0_251 = arith.constant 0 : index
      %275 = vector.load %arg2[%c0_249, %274, %c0_250, %c0_251] : memref<1x15x7x64xbf16, #tpu.memory_space<vmem>>, vector<1x1x6x64xbf16>
      %276 = vector.shape_cast %275 : vector<1x1x6x64xbf16> to vector<6x64xbf16>
      %c1_252 = arith.constant 1 : index
      %c0_253 = arith.constant 0 : index
      %c0_254 = arith.constant 0 : index
      %277 = vector.load %arg3[%c1_252, %c0_253, %c0_254] : memref<16x64x64xbf16, #tpu.memory_space<vmem>>, vector<1x64x64xbf16>
      %278 = vector.shape_cast %277 : vector<1x64x64xbf16> to vector<64x64xbf16>
      %cst_255 = arith.constant dense<0.000000e+00> : vector<6x64xf32>
      %279 = tpu.matmul %276, %278, %cst_255 {dimension_numbers = #tpu.dot_dimension_numbers<[1], [0], [0], [1], [0, 0, 1, 1], [], []>} : vector<6x64xbf16>, vector<64x64xbf16>, vector<6x64xf32> -> vector<6x64xf32>
      %280 = arith.addf %273, %279 : vector<6x64xf32>
      %c0_256 = arith.constant 0 : index
      %281 = arith.index_cast %266 : i32 to index
      %c1_257 = arith.constant 1 : index
      %c0_258 = arith.constant 0 : index
      %282 = vector.load %arg1[%c0_256, %281, %c1_257, %c0_258] : memref<1x15x8x64xbf16, #tpu.memory_space<vmem>>, vector<1x1x6x64xbf16>
      %283 = vector.shape_cast %282 : vector<1x1x6x64xbf16> to vector<6x64xbf16>
      %c2_259 = arith.constant 2 : index
      %c0_260 = arith.constant 0 : index
      %c0_261 = arith.constant 0 : index
      %284 = vector.load %arg3[%c2_259, %c0_260, %c0_261] : memref<16x64x64xbf16, #tpu.memory_space<vmem>>, vector<1x64x64xbf16>
      %285 = vector.shape_cast %284 : vector<1x64x64xbf16> to vector<64x64xbf16>
      %cst_262 = arith.constant dense<0.000000e+00> : vector<6x64xf32>
      %286 = tpu.matmul %283, %285, %cst_262 {dimension_numbers = #tpu.dot_dimension_numbers<[1], [0], [0], [1], [0, 0, 1, 1], [], []>} : vector<6x64xbf16>, vector<64x64xbf16>, vector<6x64xf32> -> vector<6x64xf32>
      %287 = arith.addf %280, %286 : vector<6x64xf32>
      %c0_263 = arith.constant 0 : index
      %288 = arith.index_cast %266 : i32 to index
      %c1_264 = arith.constant 1 : index
      %c0_265 = arith.constant 0 : index
      %289 = vector.load %arg2[%c0_263, %288, %c1_264, %c0_265] : memref<1x15x7x64xbf16, #tpu.memory_space<vmem>>, vector<1x1x6x64xbf16>
      %290 = vector.shape_cast %289 : vector<1x1x6x64xbf16> to vector<6x64xbf16>
      %c3_266 = arith.constant 3 : index
      %c0_267 = arith.constant 0 : index
      %c0_268 = arith.constant 0 : index
      %291 = vector.load %arg3[%c3_266, %c0_267, %c0_268] : memref<16x64x64xbf16, #tpu.memory_space<vmem>>, vector<1x64x64xbf16>
      %292 = vector.shape_cast %291 : vector<1x64x64xbf16> to vector<64x64xbf16>
      %cst_269 = arith.constant dense<0.000000e+00> : vector<6x64xf32>
      %293 = tpu.matmul %290, %292, %cst_269 {dimension_numbers = #tpu.dot_dimension_numbers<[1], [0], [0], [1], [0, 0, 1, 1], [], []>} : vector<6x64xbf16>, vector<64x64xbf16>, vector<6x64xf32> -> vector<6x64xf32>
      %294 = arith.addf %287, %293 : vector<6x64xf32>
      %c2_i32_270 = arith.constant 2 : i32
      %295 = arith.muli %c2_i32_270, %3 : i32
      %c1_i32_271 = arith.constant 1 : i32
      %296 = arith.addi %295, %c1_i32_271 : i32
      %c1_i32_272 = arith.constant 1 : i32
      %297 = arith.addi %296, %c1_i32_272 : i32
      %c0_273 = arith.constant 0 : index
      %298 = arith.index_cast %297 : i32 to index
      %c0_274 = arith.constant 0 : index
      %c0_275 = arith.constant 0 : index
      %299 = vector.load %arg1[%c0_273, %298, %c0_274, %c0_275] : memref<1x15x8x64xbf16, #tpu.memory_space<vmem>>, vector<1x1x6x64xbf16>
      %300 = vector.shape_cast %299 : vector<1x1x6x64xbf16> to vector<6x64xbf16>
      %c4_276 = arith.constant 4 : index
      %c0_277 = arith.constant 0 : index
      %c0_278 = arith.constant 0 : index
      %301 = vector.load %arg3[%c4_276, %c0_277, %c0_278] : memref<16x64x64xbf16, #tpu.memory_space<vmem>>, vector<1x64x64xbf16>
      %302 = vector.shape_cast %301 : vector<1x64x64xbf16> to vector<64x64xbf16>
      %cst_279 = arith.constant dense<0.000000e+00> : vector<6x64xf32>
      %303 = tpu.matmul %300, %302, %cst_279 {dimension_numbers = #tpu.dot_dimension_numbers<[1], [0], [0], [1], [0, 0, 1, 1], [], []>} : vector<6x64xbf16>, vector<64x64xbf16>, vector<6x64xf32> -> vector<6x64xf32>
      %304 = arith.addf %294, %303 : vector<6x64xf32>
      %c0_280 = arith.constant 0 : index
      %305 = arith.index_cast %297 : i32 to index
      %c0_281 = arith.constant 0 : index
      %c0_282 = arith.constant 0 : index
      %306 = vector.load %arg2[%c0_280, %305, %c0_281, %c0_282] : memref<1x15x7x64xbf16, #tpu.memory_space<vmem>>, vector<1x1x6x64xbf16>
      %307 = vector.shape_cast %306 : vector<1x1x6x64xbf16> to vector<6x64xbf16>
      %c5_283 = arith.constant 5 : index
      %c0_284 = arith.constant 0 : index
      %c0_285 = arith.constant 0 : index
      %308 = vector.load %arg3[%c5_283, %c0_284, %c0_285] : memref<16x64x64xbf16, #tpu.memory_space<vmem>>, vector<1x64x64xbf16>
      %309 = vector.shape_cast %308 : vector<1x64x64xbf16> to vector<64x64xbf16>
      %cst_286 = arith.constant dense<0.000000e+00> : vector<6x64xf32>
      %310 = tpu.matmul %307, %309, %cst_286 {dimension_numbers = #tpu.dot_dimension_numbers<[1], [0], [0], [1], [0, 0, 1, 1], [], []>} : vector<6x64xbf16>, vector<64x64xbf16>, vector<6x64xf32> -> vector<6x64xf32>
      %311 = arith.addf %304, %310 : vector<6x64xf32>
      %c0_287 = arith.constant 0 : index
      %312 = arith.index_cast %297 : i32 to index
      %c1_288 = arith.constant 1 : index
      %c0_289 = arith.constant 0 : index
      %313 = vector.load %arg1[%c0_287, %312, %c1_288, %c0_289] : memref<1x15x8x64xbf16, #tpu.memory_space<vmem>>, vector<1x1x6x64xbf16>
      %314 = vector.shape_cast %313 : vector<1x1x6x64xbf16> to vector<6x64xbf16>
      %c6_290 = arith.constant 6 : index
      %c0_291 = arith.constant 0 : index
      %c0_292 = arith.constant 0 : index
      %315 = vector.load %arg3[%c6_290, %c0_291, %c0_292] : memref<16x64x64xbf16, #tpu.memory_space<vmem>>, vector<1x64x64xbf16>
      %316 = vector.shape_cast %315 : vector<1x64x64xbf16> to vector<64x64xbf16>
      %cst_293 = arith.constant dense<0.000000e+00> : vector<6x64xf32>
      %317 = tpu.matmul %314, %316, %cst_293 {dimension_numbers = #tpu.dot_dimension_numbers<[1], [0], [0], [1], [0, 0, 1, 1], [], []>} : vector<6x64xbf16>, vector<64x64xbf16>, vector<6x64xf32> -> vector<6x64xf32>
      %318 = arith.addf %311, %317 : vector<6x64xf32>
      %c0_294 = arith.constant 0 : index
      %319 = arith.index_cast %297 : i32 to index
      %c1_295 = arith.constant 1 : index
      %c0_296 = arith.constant 0 : index
      %320 = vector.load %arg2[%c0_294, %319, %c1_295, %c0_296] : memref<1x15x7x64xbf16, #tpu.memory_space<vmem>>, vector<1x1x6x64xbf16>
      %321 = vector.shape_cast %320 : vector<1x1x6x64xbf16> to vector<6x64xbf16>
      %c7_297 = arith.constant 7 : index
      %c0_298 = arith.constant 0 : index
      %c0_299 = arith.constant 0 : index
      %322 = vector.load %arg3[%c7_297, %c0_298, %c0_299] : memref<16x64x64xbf16, #tpu.memory_space<vmem>>, vector<1x64x64xbf16>
      %323 = vector.shape_cast %322 : vector<1x64x64xbf16> to vector<64x64xbf16>
      %cst_300 = arith.constant dense<0.000000e+00> : vector<6x64xf32>
      %324 = tpu.matmul %321, %323, %cst_300 {dimension_numbers = #tpu.dot_dimension_numbers<[1], [0], [0], [1], [0, 0, 1, 1], [], []>} : vector<6x64xbf16>, vector<64x64xbf16>, vector<6x64xf32> -> vector<6x64xf32>
      %325 = arith.addf %318, %324 : vector<6x64xf32>
      %c2_i32_301 = arith.constant 2 : i32
      %326 = arith.muli %c2_i32_301, %3 : i32
      %c1_i32_302 = arith.constant 1 : i32
      %327 = arith.addi %326, %c1_i32_302 : i32
      %c2_i32_303 = arith.constant 2 : i32
      %328 = arith.addi %327, %c2_i32_303 : i32
      %c0_304 = arith.constant 0 : index
      %329 = arith.index_cast %328 : i32 to index
      %c0_305 = arith.constant 0 : index
      %c0_306 = arith.constant 0 : index
      %330 = vector.load %arg1[%c0_304, %329, %c0_305, %c0_306] : memref<1x15x8x64xbf16, #tpu.memory_space<vmem>>, vector<1x1x6x64xbf16>
      %331 = vector.shape_cast %330 : vector<1x1x6x64xbf16> to vector<6x64xbf16>
      %c8_307 = arith.constant 8 : index
      %c0_308 = arith.constant 0 : index
      %c0_309 = arith.constant 0 : index
      %332 = vector.load %arg3[%c8_307, %c0_308, %c0_309] : memref<16x64x64xbf16, #tpu.memory_space<vmem>>, vector<1x64x64xbf16>
      %333 = vector.shape_cast %332 : vector<1x64x64xbf16> to vector<64x64xbf16>
      %cst_310 = arith.constant dense<0.000000e+00> : vector<6x64xf32>
      %334 = tpu.matmul %331, %333, %cst_310 {dimension_numbers = #tpu.dot_dimension_numbers<[1], [0], [0], [1], [0, 0, 1, 1], [], []>} : vector<6x64xbf16>, vector<64x64xbf16>, vector<6x64xf32> -> vector<6x64xf32>
      %335 = arith.addf %325, %334 : vector<6x64xf32>
      %c0_311 = arith.constant 0 : index
      %336 = arith.index_cast %328 : i32 to index
      %c0_312 = arith.constant 0 : index
      %c0_313 = arith.constant 0 : index
      %337 = vector.load %arg2[%c0_311, %336, %c0_312, %c0_313] : memref<1x15x7x64xbf16, #tpu.memory_space<vmem>>, vector<1x1x6x64xbf16>
      %338 = vector.shape_cast %337 : vector<1x1x6x64xbf16> to vector<6x64xbf16>
      %c9_314 = arith.constant 9 : index
      %c0_315 = arith.constant 0 : index
      %c0_316 = arith.constant 0 : index
      %339 = vector.load %arg3[%c9_314, %c0_315, %c0_316] : memref<16x64x64xbf16, #tpu.memory_space<vmem>>, vector<1x64x64xbf16>
      %340 = vector.shape_cast %339 : vector<1x64x64xbf16> to vector<64x64xbf16>
      %cst_317 = arith.constant dense<0.000000e+00> : vector<6x64xf32>
      %341 = tpu.matmul %338, %340, %cst_317 {dimension_numbers = #tpu.dot_dimension_numbers<[1], [0], [0], [1], [0, 0, 1, 1], [], []>} : vector<6x64xbf16>, vector<64x64xbf16>, vector<6x64xf32> -> vector<6x64xf32>
      %342 = arith.addf %335, %341 : vector<6x64xf32>
      %c0_318 = arith.constant 0 : index
      %343 = arith.index_cast %328 : i32 to index
      %c1_319 = arith.constant 1 : index
      %c0_320 = arith.constant 0 : index
      %344 = vector.load %arg1[%c0_318, %343, %c1_319, %c0_320] : memref<1x15x8x64xbf16, #tpu.memory_space<vmem>>, vector<1x1x6x64xbf16>
      %345 = vector.shape_cast %344 : vector<1x1x6x64xbf16> to vector<6x64xbf16>
      %c10_321 = arith.constant 10 : index
      %c0_322 = arith.constant 0 : index
      %c0_323 = arith.constant 0 : index
      %346 = vector.load %arg3[%c10_321, %c0_322, %c0_323] : memref<16x64x64xbf16, #tpu.memory_space<vmem>>, vector<1x64x64xbf16>
      %347 = vector.shape_cast %346 : vector<1x64x64xbf16> to vector<64x64xbf16>
      %cst_324 = arith.constant dense<0.000000e+00> : vector<6x64xf32>
      %348 = tpu.matmul %345, %347, %cst_324 {dimension_numbers = #tpu.dot_dimension_numbers<[1], [0], [0], [1], [0, 0, 1, 1], [], []>} : vector<6x64xbf16>, vector<64x64xbf16>, vector<6x64xf32> -> vector<6x64xf32>
      %349 = arith.addf %342, %348 : vector<6x64xf32>
      %c0_325 = arith.constant 0 : index
      %350 = arith.index_cast %328 : i32 to index
      %c1_326 = arith.constant 1 : index
      %c0_327 = arith.constant 0 : index
      %351 = vector.load %arg2[%c0_325, %350, %c1_326, %c0_327] : memref<1x15x7x64xbf16, #tpu.memory_space<vmem>>, vector<1x1x6x64xbf16>
      %352 = vector.shape_cast %351 : vector<1x1x6x64xbf16> to vector<6x64xbf16>
      %c11_328 = arith.constant 11 : index
      %c0_329 = arith.constant 0 : index
      %c0_330 = arith.constant 0 : index
      %353 = vector.load %arg3[%c11_328, %c0_329, %c0_330] : memref<16x64x64xbf16, #tpu.memory_space<vmem>>, vector<1x64x64xbf16>
      %354 = vector.shape_cast %353 : vector<1x64x64xbf16> to vector<64x64xbf16>
      %cst_331 = arith.constant dense<0.000000e+00> : vector<6x64xf32>
      %355 = tpu.matmul %352, %354, %cst_331 {dimension_numbers = #tpu.dot_dimension_numbers<[1], [0], [0], [1], [0, 0, 1, 1], [], []>} : vector<6x64xbf16>, vector<64x64xbf16>, vector<6x64xf32> -> vector<6x64xf32>
      %356 = arith.addf %349, %355 : vector<6x64xf32>
      %c2_i32_332 = arith.constant 2 : i32
      %357 = arith.muli %c2_i32_332, %3 : i32
      %c1_i32_333 = arith.constant 1 : i32
      %358 = arith.addi %357, %c1_i32_333 : i32
      %c3_i32_334 = arith.constant 3 : i32
      %359 = arith.addi %358, %c3_i32_334 : i32
      %c0_335 = arith.constant 0 : index
      %360 = arith.index_cast %359 : i32 to index
      %c0_336 = arith.constant 0 : index
      %c0_337 = arith.constant 0 : index
      %361 = vector.load %arg1[%c0_335, %360, %c0_336, %c0_337] : memref<1x15x8x64xbf16, #tpu.memory_space<vmem>>, vector<1x1x6x64xbf16>
      %362 = vector.shape_cast %361 : vector<1x1x6x64xbf16> to vector<6x64xbf16>
      %c12_338 = arith.constant 12 : index
      %c0_339 = arith.constant 0 : index
      %c0_340 = arith.constant 0 : index
      %363 = vector.load %arg3[%c12_338, %c0_339, %c0_340] : memref<16x64x64xbf16, #tpu.memory_space<vmem>>, vector<1x64x64xbf16>
      %364 = vector.shape_cast %363 : vector<1x64x64xbf16> to vector<64x64xbf16>
      %cst_341 = arith.constant dense<0.000000e+00> : vector<6x64xf32>
      %365 = tpu.matmul %362, %364, %cst_341 {dimension_numbers = #tpu.dot_dimension_numbers<[1], [0], [0], [1], [0, 0, 1, 1], [], []>} : vector<6x64xbf16>, vector<64x64xbf16>, vector<6x64xf32> -> vector<6x64xf32>
      %366 = arith.addf %356, %365 : vector<6x64xf32>
      %c0_342 = arith.constant 0 : index
      %367 = arith.index_cast %359 : i32 to index
      %c0_343 = arith.constant 0 : index
      %c0_344 = arith.constant 0 : index
      %368 = vector.load %arg2[%c0_342, %367, %c0_343, %c0_344] : memref<1x15x7x64xbf16, #tpu.memory_space<vmem>>, vector<1x1x6x64xbf16>
      %369 = vector.shape_cast %368 : vector<1x1x6x64xbf16> to vector<6x64xbf16>
      %c13_345 = arith.constant 13 : index
      %c0_346 = arith.constant 0 : index
      %c0_347 = arith.constant 0 : index
      %370 = vector.load %arg3[%c13_345, %c0_346, %c0_347] : memref<16x64x64xbf16, #tpu.memory_space<vmem>>, vector<1x64x64xbf16>
      %371 = vector.shape_cast %370 : vector<1x64x64xbf16> to vector<64x64xbf16>
      %cst_348 = arith.constant dense<0.000000e+00> : vector<6x64xf32>
      %372 = tpu.matmul %369, %371, %cst_348 {dimension_numbers = #tpu.dot_dimension_numbers<[1], [0], [0], [1], [0, 0, 1, 1], [], []>} : vector<6x64xbf16>, vector<64x64xbf16>, vector<6x64xf32> -> vector<6x64xf32>
      %373 = arith.addf %366, %372 : vector<6x64xf32>
      %c0_349 = arith.constant 0 : index
      %374 = arith.index_cast %359 : i32 to index
      %c1_350 = arith.constant 1 : index
      %c0_351 = arith.constant 0 : index
      %375 = vector.load %arg1[%c0_349, %374, %c1_350, %c0_351] : memref<1x15x8x64xbf16, #tpu.memory_space<vmem>>, vector<1x1x6x64xbf16>
      %376 = vector.shape_cast %375 : vector<1x1x6x64xbf16> to vector<6x64xbf16>
      %c14_352 = arith.constant 14 : index
      %c0_353 = arith.constant 0 : index
      %c0_354 = arith.constant 0 : index
      %377 = vector.load %arg3[%c14_352, %c0_353, %c0_354] : memref<16x64x64xbf16, #tpu.memory_space<vmem>>, vector<1x64x64xbf16>
      %378 = vector.shape_cast %377 : vector<1x64x64xbf16> to vector<64x64xbf16>
      %cst_355 = arith.constant dense<0.000000e+00> : vector<6x64xf32>
      %379 = tpu.matmul %376, %378, %cst_355 {dimension_numbers = #tpu.dot_dimension_numbers<[1], [0], [0], [1], [0, 0, 1, 1], [], []>} : vector<6x64xbf16>, vector<64x64xbf16>, vector<6x64xf32> -> vector<6x64xf32>
      %380 = arith.addf %373, %379 : vector<6x64xf32>
      %c0_356 = arith.constant 0 : index
      %381 = arith.index_cast %359 : i32 to index
      %c1_357 = arith.constant 1 : index
      %c0_358 = arith.constant 0 : index
      %382 = vector.load %arg2[%c0_356, %381, %c1_357, %c0_358] : memref<1x15x7x64xbf16, #tpu.memory_space<vmem>>, vector<1x1x6x64xbf16>
      %383 = vector.shape_cast %382 : vector<1x1x6x64xbf16> to vector<6x64xbf16>
      %c15_359 = arith.constant 15 : index
      %c0_360 = arith.constant 0 : index
      %c0_361 = arith.constant 0 : index
      %384 = vector.load %arg3[%c15_359, %c0_360, %c0_361] : memref<16x64x64xbf16, #tpu.memory_space<vmem>>, vector<1x64x64xbf16>
      %385 = vector.shape_cast %384 : vector<1x64x64xbf16> to vector<64x64xbf16>
      %cst_362 = arith.constant dense<0.000000e+00> : vector<6x64xf32>
      %386 = tpu.matmul %383, %385, %cst_362 {dimension_numbers = #tpu.dot_dimension_numbers<[1], [0], [0], [1], [0, 0, 1, 1], [], []>} : vector<6x64xbf16>, vector<64x64xbf16>, vector<6x64xf32> -> vector<6x64xf32>
      %387 = arith.addf %380, %386 : vector<6x64xf32>
      %388 = vector.broadcast %0 : vector<1x64xf32> to vector<6x64xf32>
      %389 = arith.addf %387, %388 : vector<6x64xf32>
      %cst_363 = arith.constant 0.000000e+00 : f32
      %390 = vector.broadcast %cst_363 : f32 to vector<6x64xf32>
      %391 = arith.maximumf %389, %390 : vector<6x64xf32>
      %392 = arith.maximumf %262, %391 : vector<6x64xf32>
      %cst_364 = arith.constant 0.000000e+00 : f32
      %393 = vector.broadcast %cst_364 : f32 to vector<6x64xf32>
      %c2_i32_365 = arith.constant 2 : i32
      %394 = arith.muli %c2_i32_365, %3 : i32
      %c1_i32_366 = arith.constant 1 : i32
      %395 = arith.addi %394, %c1_i32_366 : i32
      %c0_i32_367 = arith.constant 0 : i32
      %396 = arith.addi %395, %c0_i32_367 : i32
      %c0_368 = arith.constant 0 : index
      %397 = arith.index_cast %396 : i32 to index
      %c0_369 = arith.constant 0 : index
      %c0_370 = arith.constant 0 : index
      %398 = vector.load %arg2[%c0_368, %397, %c0_369, %c0_370] : memref<1x15x7x64xbf16, #tpu.memory_space<vmem>>, vector<1x1x6x64xbf16>
      %399 = vector.shape_cast %398 : vector<1x1x6x64xbf16> to vector<6x64xbf16>
      %c0_371 = arith.constant 0 : index
      %c0_372 = arith.constant 0 : index
      %c0_373 = arith.constant 0 : index
      %400 = vector.load %arg3[%c0_371, %c0_372, %c0_373] : memref<16x64x64xbf16, #tpu.memory_space<vmem>>, vector<1x64x64xbf16>
      %401 = vector.shape_cast %400 : vector<1x64x64xbf16> to vector<64x64xbf16>
      %cst_374 = arith.constant dense<0.000000e+00> : vector<6x64xf32>
      %402 = tpu.matmul %399, %401, %cst_374 {dimension_numbers = #tpu.dot_dimension_numbers<[1], [0], [0], [1], [0, 0, 1, 1], [], []>} : vector<6x64xbf16>, vector<64x64xbf16>, vector<6x64xf32> -> vector<6x64xf32>
      %403 = arith.addf %393, %402 : vector<6x64xf32>
      %c0_375 = arith.constant 0 : index
      %404 = arith.index_cast %396 : i32 to index
      %c1_376 = arith.constant 1 : index
      %c0_377 = arith.constant 0 : index
      %405 = vector.load %arg1[%c0_375, %404, %c1_376, %c0_377] : memref<1x15x8x64xbf16, #tpu.memory_space<vmem>>, vector<1x1x6x64xbf16>
      %406 = vector.shape_cast %405 : vector<1x1x6x64xbf16> to vector<6x64xbf16>
      %c1_378 = arith.constant 1 : index
      %c0_379 = arith.constant 0 : index
      %c0_380 = arith.constant 0 : index
      %407 = vector.load %arg3[%c1_378, %c0_379, %c0_380] : memref<16x64x64xbf16, #tpu.memory_space<vmem>>, vector<1x64x64xbf16>
      %408 = vector.shape_cast %407 : vector<1x64x64xbf16> to vector<64x64xbf16>
      %cst_381 = arith.constant dense<0.000000e+00> : vector<6x64xf32>
      %409 = tpu.matmul %406, %408, %cst_381 {dimension_numbers = #tpu.dot_dimension_numbers<[1], [0], [0], [1], [0, 0, 1, 1], [], []>} : vector<6x64xbf16>, vector<64x64xbf16>, vector<6x64xf32> -> vector<6x64xf32>
      %410 = arith.addf %403, %409 : vector<6x64xf32>
      %c0_382 = arith.constant 0 : index
      %411 = arith.index_cast %396 : i32 to index
      %c1_383 = arith.constant 1 : index
      %c0_384 = arith.constant 0 : index
      %412 = vector.load %arg2[%c0_382, %411, %c1_383, %c0_384] : memref<1x15x7x64xbf16, #tpu.memory_space<vmem>>, vector<1x1x6x64xbf16>
      %413 = vector.shape_cast %412 : vector<1x1x6x64xbf16> to vector<6x64xbf16>
      %c2_385 = arith.constant 2 : index
      %c0_386 = arith.constant 0 : index
      %c0_387 = arith.constant 0 : index
      %414 = vector.load %arg3[%c2_385, %c0_386, %c0_387] : memref<16x64x64xbf16, #tpu.memory_space<vmem>>, vector<1x64x64xbf16>
      %415 = vector.shape_cast %414 : vector<1x64x64xbf16> to vector<64x64xbf16>
      %cst_388 = arith.constant dense<0.000000e+00> : vector<6x64xf32>
      %416 = tpu.matmul %413, %415, %cst_388 {dimension_numbers = #tpu.dot_dimension_numbers<[1], [0], [0], [1], [0, 0, 1, 1], [], []>} : vector<6x64xbf16>, vector<64x64xbf16>, vector<6x64xf32> -> vector<6x64xf32>
      %417 = arith.addf %410, %416 : vector<6x64xf32>
      %c0_389 = arith.constant 0 : index
      %418 = arith.index_cast %396 : i32 to index
      %c2_390 = arith.constant 2 : index
      %c0_391 = arith.constant 0 : index
      %419 = vector.load %arg1[%c0_389, %418, %c2_390, %c0_391] : memref<1x15x8x64xbf16, #tpu.memory_space<vmem>>, vector<1x1x6x64xbf16>
      %420 = vector.shape_cast %419 : vector<1x1x6x64xbf16> to vector<6x64xbf16>
      %c3_392 = arith.constant 3 : index
      %c0_393 = arith.constant 0 : index
      %c0_394 = arith.constant 0 : index
      %421 = vector.load %arg3[%c3_392, %c0_393, %c0_394] : memref<16x64x64xbf16, #tpu.memory_space<vmem>>, vector<1x64x64xbf16>
      %422 = vector.shape_cast %421 : vector<1x64x64xbf16> to vector<64x64xbf16>
      %cst_395 = arith.constant dense<0.000000e+00> : vector<6x64xf32>
      %423 = tpu.matmul %420, %422, %cst_395 {dimension_numbers = #tpu.dot_dimension_numbers<[1], [0], [0], [1], [0, 0, 1, 1], [], []>} : vector<6x64xbf16>, vector<64x64xbf16>, vector<6x64xf32> -> vector<6x64xf32>
      %424 = arith.addf %417, %423 : vector<6x64xf32>
      %c2_i32_396 = arith.constant 2 : i32
      %425 = arith.muli %c2_i32_396, %3 : i32
      %c1_i32_397 = arith.constant 1 : i32
      %426 = arith.addi %425, %c1_i32_397 : i32
      %c1_i32_398 = arith.constant 1 : i32
      %427 = arith.addi %426, %c1_i32_398 : i32
      %c0_399 = arith.constant 0 : index
      %428 = arith.index_cast %427 : i32 to index
      %c0_400 = arith.constant 0 : index
      %c0_401 = arith.constant 0 : index
      %429 = vector.load %arg2[%c0_399, %428, %c0_400, %c0_401] : memref<1x15x7x64xbf16, #tpu.memory_space<vmem>>, vector<1x1x6x64xbf16>
      %430 = vector.shape_cast %429 : vector<1x1x6x64xbf16> to vector<6x64xbf16>
      %c4_402 = arith.constant 4 : index
      %c0_403 = arith.constant 0 : index
      %c0_404 = arith.constant 0 : index
      %431 = vector.load %arg3[%c4_402, %c0_403, %c0_404] : memref<16x64x64xbf16, #tpu.memory_space<vmem>>, vector<1x64x64xbf16>
      %432 = vector.shape_cast %431 : vector<1x64x64xbf16> to vector<64x64xbf16>
      %cst_405 = arith.constant dense<0.000000e+00> : vector<6x64xf32>
      %433 = tpu.matmul %430, %432, %cst_405 {dimension_numbers = #tpu.dot_dimension_numbers<[1], [0], [0], [1], [0, 0, 1, 1], [], []>} : vector<6x64xbf16>, vector<64x64xbf16>, vector<6x64xf32> -> vector<6x64xf32>
      %434 = arith.addf %424, %433 : vector<6x64xf32>
      %c0_406 = arith.constant 0 : index
      %435 = arith.index_cast %427 : i32 to index
      %c1_407 = arith.constant 1 : index
      %c0_408 = arith.constant 0 : index
      %436 = vector.load %arg1[%c0_406, %435, %c1_407, %c0_408] : memref<1x15x8x64xbf16, #tpu.memory_space<vmem>>, vector<1x1x6x64xbf16>
      %437 = vector.shape_cast %436 : vector<1x1x6x64xbf16> to vector<6x64xbf16>
      %c5_409 = arith.constant 5 : index
      %c0_410 = arith.constant 0 : index
      %c0_411 = arith.constant 0 : index
      %438 = vector.load %arg3[%c5_409, %c0_410, %c0_411] : memref<16x64x64xbf16, #tpu.memory_space<vmem>>, vector<1x64x64xbf16>
      %439 = vector.shape_cast %438 : vector<1x64x64xbf16> to vector<64x64xbf16>
      %cst_412 = arith.constant dense<0.000000e+00> : vector<6x64xf32>
      %440 = tpu.matmul %437, %439, %cst_412 {dimension_numbers = #tpu.dot_dimension_numbers<[1], [0], [0], [1], [0, 0, 1, 1], [], []>} : vector<6x64xbf16>, vector<64x64xbf16>, vector<6x64xf32> -> vector<6x64xf32>
      %441 = arith.addf %434, %440 : vector<6x64xf32>
      %c0_413 = arith.constant 0 : index
      %442 = arith.index_cast %427 : i32 to index
      %c1_414 = arith.constant 1 : index
      %c0_415 = arith.constant 0 : index
      %443 = vector.load %arg2[%c0_413, %442, %c1_414, %c0_415] : memref<1x15x7x64xbf16, #tpu.memory_space<vmem>>, vector<1x1x6x64xbf16>
      %444 = vector.shape_cast %443 : vector<1x1x6x64xbf16> to vector<6x64xbf16>
      %c6_416 = arith.constant 6 : index
      %c0_417 = arith.constant 0 : index
      %c0_418 = arith.constant 0 : index
      %445 = vector.load %arg3[%c6_416, %c0_417, %c0_418] : memref<16x64x64xbf16, #tpu.memory_space<vmem>>, vector<1x64x64xbf16>
      %446 = vector.shape_cast %445 : vector<1x64x64xbf16> to vector<64x64xbf16>
      %cst_419 = arith.constant dense<0.000000e+00> : vector<6x64xf32>
      %447 = tpu.matmul %444, %446, %cst_419 {dimension_numbers = #tpu.dot_dimension_numbers<[1], [0], [0], [1], [0, 0, 1, 1], [], []>} : vector<6x64xbf16>, vector<64x64xbf16>, vector<6x64xf32> -> vector<6x64xf32>
      %448 = arith.addf %441, %447 : vector<6x64xf32>
      %c0_420 = arith.constant 0 : index
      %449 = arith.index_cast %427 : i32 to index
      %c2_421 = arith.constant 2 : index
      %c0_422 = arith.constant 0 : index
      %450 = vector.load %arg1[%c0_420, %449, %c2_421, %c0_422] : memref<1x15x8x64xbf16, #tpu.memory_space<vmem>>, vector<1x1x6x64xbf16>
      %451 = vector.shape_cast %450 : vector<1x1x6x64xbf16> to vector<6x64xbf16>
      %c7_423 = arith.constant 7 : index
      %c0_424 = arith.constant 0 : index
      %c0_425 = arith.constant 0 : index
      %452 = vector.load %arg3[%c7_423, %c0_424, %c0_425] : memref<16x64x64xbf16, #tpu.memory_space<vmem>>, vector<1x64x64xbf16>
      %453 = vector.shape_cast %452 : vector<1x64x64xbf16> to vector<64x64xbf16>
      %cst_426 = arith.constant dense<0.000000e+00> : vector<6x64xf32>
      %454 = tpu.matmul %451, %453, %cst_426 {dimension_numbers = #tpu.dot_dimension_numbers<[1], [0], [0], [1], [0, 0, 1, 1], [], []>} : vector<6x64xbf16>, vector<64x64xbf16>, vector<6x64xf32> -> vector<6x64xf32>
      %455 = arith.addf %448, %454 : vector<6x64xf32>
      %c2_i32_427 = arith.constant 2 : i32
      %456 = arith.muli %c2_i32_427, %3 : i32
      %c1_i32_428 = arith.constant 1 : i32
      %457 = arith.addi %456, %c1_i32_428 : i32
      %c2_i32_429 = arith.constant 2 : i32
      %458 = arith.addi %457, %c2_i32_429 : i32
      %c0_430 = arith.constant 0 : index
      %459 = arith.index_cast %458 : i32 to index
      %c0_431 = arith.constant 0 : index
      %c0_432 = arith.constant 0 : index
      %460 = vector.load %arg2[%c0_430, %459, %c0_431, %c0_432] : memref<1x15x7x64xbf16, #tpu.memory_space<vmem>>, vector<1x1x6x64xbf16>
      %461 = vector.shape_cast %460 : vector<1x1x6x64xbf16> to vector<6x64xbf16>
      %c8_433 = arith.constant 8 : index
      %c0_434 = arith.constant 0 : index
      %c0_435 = arith.constant 0 : index
      %462 = vector.load %arg3[%c8_433, %c0_434, %c0_435] : memref<16x64x64xbf16, #tpu.memory_space<vmem>>, vector<1x64x64xbf16>
      %463 = vector.shape_cast %462 : vector<1x64x64xbf16> to vector<64x64xbf16>
      %cst_436 = arith.constant dense<0.000000e+00> : vector<6x64xf32>
      %464 = tpu.matmul %461, %463, %cst_436 {dimension_numbers = #tpu.dot_dimension_numbers<[1], [0], [0], [1], [0, 0, 1, 1], [], []>} : vector<6x64xbf16>, vector<64x64xbf16>, vector<6x64xf32> -> vector<6x64xf32>
      %465 = arith.addf %455, %464 : vector<6x64xf32>
      %c0_437 = arith.constant 0 : index
      %466 = arith.index_cast %458 : i32 to index
      %c1_438 = arith.constant 1 : index
      %c0_439 = arith.constant 0 : index
      %467 = vector.load %arg1[%c0_437, %466, %c1_438, %c0_439] : memref<1x15x8x64xbf16, #tpu.memory_space<vmem>>, vector<1x1x6x64xbf16>
      %468 = vector.shape_cast %467 : vector<1x1x6x64xbf16> to vector<6x64xbf16>
      %c9_440 = arith.constant 9 : index
      %c0_441 = arith.constant 0 : index
      %c0_442 = arith.constant 0 : index
      %469 = vector.load %arg3[%c9_440, %c0_441, %c0_442] : memref<16x64x64xbf16, #tpu.memory_space<vmem>>, vector<1x64x64xbf16>
      %470 = vector.shape_cast %469 : vector<1x64x64xbf16> to vector<64x64xbf16>
      %cst_443 = arith.constant dense<0.000000e+00> : vector<6x64xf32>
      %471 = tpu.matmul %468, %470, %cst_443 {dimension_numbers = #tpu.dot_dimension_numbers<[1], [0], [0], [1], [0, 0, 1, 1], [], []>} : vector<6x64xbf16>, vector<64x64xbf16>, vector<6x64xf32> -> vector<6x64xf32>
      %472 = arith.addf %465, %471 : vector<6x64xf32>
      %c0_444 = arith.constant 0 : index
      %473 = arith.index_cast %458 : i32 to index
      %c1_445 = arith.constant 1 : index
      %c0_446 = arith.constant 0 : index
      %474 = vector.load %arg2[%c0_444, %473, %c1_445, %c0_446] : memref<1x15x7x64xbf16, #tpu.memory_space<vmem>>, vector<1x1x6x64xbf16>
      %475 = vector.shape_cast %474 : vector<1x1x6x64xbf16> to vector<6x64xbf16>
      %c10_447 = arith.constant 10 : index
      %c0_448 = arith.constant 0 : index
      %c0_449 = arith.constant 0 : index
      %476 = vector.load %arg3[%c10_447, %c0_448, %c0_449] : memref<16x64x64xbf16, #tpu.memory_space<vmem>>, vector<1x64x64xbf16>
      %477 = vector.shape_cast %476 : vector<1x64x64xbf16> to vector<64x64xbf16>
      %cst_450 = arith.constant dense<0.000000e+00> : vector<6x64xf32>
      %478 = tpu.matmul %475, %477, %cst_450 {dimension_numbers = #tpu.dot_dimension_numbers<[1], [0], [0], [1], [0, 0, 1, 1], [], []>} : vector<6x64xbf16>, vector<64x64xbf16>, vector<6x64xf32> -> vector<6x64xf32>
      %479 = arith.addf %472, %478 : vector<6x64xf32>
      %c0_451 = arith.constant 0 : index
      %480 = arith.index_cast %458 : i32 to index
      %c2_452 = arith.constant 2 : index
      %c0_453 = arith.constant 0 : index
      %481 = vector.load %arg1[%c0_451, %480, %c2_452, %c0_453] : memref<1x15x8x64xbf16, #tpu.memory_space<vmem>>, vector<1x1x6x64xbf16>
      %482 = vector.shape_cast %481 : vector<1x1x6x64xbf16> to vector<6x64xbf16>
      %c11_454 = arith.constant 11 : index
      %c0_455 = arith.constant 0 : index
      %c0_456 = arith.constant 0 : index
      %483 = vector.load %arg3[%c11_454, %c0_455, %c0_456] : memref<16x64x64xbf16, #tpu.memory_space<vmem>>, vector<1x64x64xbf16>
      %484 = vector.shape_cast %483 : vector<1x64x64xbf16> to vector<64x64xbf16>
      %cst_457 = arith.constant dense<0.000000e+00> : vector<6x64xf32>
      %485 = tpu.matmul %482, %484, %cst_457 {dimension_numbers = #tpu.dot_dimension_numbers<[1], [0], [0], [1], [0, 0, 1, 1], [], []>} : vector<6x64xbf16>, vector<64x64xbf16>, vector<6x64xf32> -> vector<6x64xf32>
      %486 = arith.addf %479, %485 : vector<6x64xf32>
      %c2_i32_458 = arith.constant 2 : i32
      %487 = arith.muli %c2_i32_458, %3 : i32
      %c1_i32_459 = arith.constant 1 : i32
      %488 = arith.addi %487, %c1_i32_459 : i32
      %c3_i32_460 = arith.constant 3 : i32
      %489 = arith.addi %488, %c3_i32_460 : i32
      %c0_461 = arith.constant 0 : index
      %490 = arith.index_cast %489 : i32 to index
      %c0_462 = arith.constant 0 : index
      %c0_463 = arith.constant 0 : index
      %491 = vector.load %arg2[%c0_461, %490, %c0_462, %c0_463] : memref<1x15x7x64xbf16, #tpu.memory_space<vmem>>, vector<1x1x6x64xbf16>
      %492 = vector.shape_cast %491 : vector<1x1x6x64xbf16> to vector<6x64xbf16>
      %c12_464 = arith.constant 12 : index
      %c0_465 = arith.constant 0 : index
      %c0_466 = arith.constant 0 : index
      %493 = vector.load %arg3[%c12_464, %c0_465, %c0_466] : memref<16x64x64xbf16, #tpu.memory_space<vmem>>, vector<1x64x64xbf16>
      %494 = vector.shape_cast %493 : vector<1x64x64xbf16> to vector<64x64xbf16>
      %cst_467 = arith.constant dense<0.000000e+00> : vector<6x64xf32>
      %495 = tpu.matmul %492, %494, %cst_467 {dimension_numbers = #tpu.dot_dimension_numbers<[1], [0], [0], [1], [0, 0, 1, 1], [], []>} : vector<6x64xbf16>, vector<64x64xbf16>, vector<6x64xf32> -> vector<6x64xf32>
      %496 = arith.addf %486, %495 : vector<6x64xf32>
      %c0_468 = arith.constant 0 : index
      %497 = arith.index_cast %489 : i32 to index
      %c1_469 = arith.constant 1 : index
      %c0_470 = arith.constant 0 : index
      %498 = vector.load %arg1[%c0_468, %497, %c1_469, %c0_470] : memref<1x15x8x64xbf16, #tpu.memory_space<vmem>>, vector<1x1x6x64xbf16>
      %499 = vector.shape_cast %498 : vector<1x1x6x64xbf16> to vector<6x64xbf16>
      %c13_471 = arith.constant 13 : index
      %c0_472 = arith.constant 0 : index
      %c0_473 = arith.constant 0 : index
      %500 = vector.load %arg3[%c13_471, %c0_472, %c0_473] : memref<16x64x64xbf16, #tpu.memory_space<vmem>>, vector<1x64x64xbf16>
      %501 = vector.shape_cast %500 : vector<1x64x64xbf16> to vector<64x64xbf16>
      %cst_474 = arith.constant dense<0.000000e+00> : vector<6x64xf32>
      %502 = tpu.matmul %499, %501, %cst_474 {dimension_numbers = #tpu.dot_dimension_numbers<[1], [0], [0], [1], [0, 0, 1, 1], [], []>} : vector<6x64xbf16>, vector<64x64xbf16>, vector<6x64xf32> -> vector<6x64xf32>
      %503 = arith.addf %496, %502 : vector<6x64xf32>
      %c0_475 = arith.constant 0 : index
      %504 = arith.index_cast %489 : i32 to index
      %c1_476 = arith.constant 1 : index
      %c0_477 = arith.constant 0 : index
      %505 = vector.load %arg2[%c0_475, %504, %c1_476, %c0_477] : memref<1x15x7x64xbf16, #tpu.memory_space<vmem>>, vector<1x1x6x64xbf16>
      %506 = vector.shape_cast %505 : vector<1x1x6x64xbf16> to vector<6x64xbf16>
      %c14_478 = arith.constant 14 : index
      %c0_479 = arith.constant 0 : index
      %c0_480 = arith.constant 0 : index
      %507 = vector.load %arg3[%c14_478, %c0_479, %c0_480] : memref<16x64x64xbf16, #tpu.memory_space<vmem>>, vector<1x64x64xbf16>
      %508 = vector.shape_cast %507 : vector<1x64x64xbf16> to vector<64x64xbf16>
      %cst_481 = arith.constant dense<0.000000e+00> : vector<6x64xf32>
      %509 = tpu.matmul %506, %508, %cst_481 {dimension_numbers = #tpu.dot_dimension_numbers<[1], [0], [0], [1], [0, 0, 1, 1], [], []>} : vector<6x64xbf16>, vector<64x64xbf16>, vector<6x64xf32> -> vector<6x64xf32>
      %510 = arith.addf %503, %509 : vector<6x64xf32>
      %c0_482 = arith.constant 0 : index
      %511 = arith.index_cast %489 : i32 to index
      %c2_483 = arith.constant 2 : index
      %c0_484 = arith.constant 0 : index
      %512 = vector.load %arg1[%c0_482, %511, %c2_483, %c0_484] : memref<1x15x8x64xbf16, #tpu.memory_space<vmem>>, vector<1x1x6x64xbf16>
      %513 = vector.shape_cast %512 : vector<1x1x6x64xbf16> to vector<6x64xbf16>
      %c15_485 = arith.constant 15 : index
      %c0_486 = arith.constant 0 : index
      %c0_487 = arith.constant 0 : index
      %514 = vector.load %arg3[%c15_485, %c0_486, %c0_487] : memref<16x64x64xbf16, #tpu.memory_space<vmem>>, vector<1x64x64xbf16>
      %515 = vector.shape_cast %514 : vector<1x64x64xbf16> to vector<64x64xbf16>
      %cst_488 = arith.constant dense<0.000000e+00> : vector<6x64xf32>
      %516 = tpu.matmul %513, %515, %cst_488 {dimension_numbers = #tpu.dot_dimension_numbers<[1], [0], [0], [1], [0, 0, 1, 1], [], []>} : vector<6x64xbf16>, vector<64x64xbf16>, vector<6x64xf32> -> vector<6x64xf32>
      %517 = arith.addf %510, %516 : vector<6x64xf32>
      %518 = vector.broadcast %0 : vector<1x64xf32> to vector<6x64xf32>
      %519 = arith.addf %517, %518 : vector<6x64xf32>
      %cst_489 = arith.constant 0.000000e+00 : f32
      %520 = vector.broadcast %cst_489 : f32 to vector<6x64xf32>
      %521 = arith.maximumf %519, %520 : vector<6x64xf32>
      %522 = arith.maximumf %392, %521 : vector<6x64xf32>
      %523 = arith.truncf %522 : vector<6x64xf32> to vector<6x64xbf16>
      %c0_490 = arith.constant 0 : index
      %524 = arith.index_cast %3 : i32 to index
      %c0_491 = arith.constant 0 : index
      %c0_492 = arith.constant 0 : index
      %525 = vector.load %arg5[%c0_490, %524, %c0_491, %c0_492] : memref<1x6x6x64xbf16, #tpu.memory_space<vmem>>, vector<1x1x6x64xbf16>
      %526 = vector.shape_cast %525 : vector<1x1x6x64xbf16> to vector<6x64xbf16>
      %527 = vector.shape_cast %523 : vector<6x64xbf16> to vector<1x1x6x64xbf16>
      tpu.vector_store %arg5[%c0_490, %524, %c0_491, %c0_492], %527 {strides = array<i32>} : memref<1x6x6x64xbf16, #tpu.memory_space<vmem>>, vector<1x1x6x64xbf16>,
    }
    %c6_i32_1 = arith.constant 6 : i32
    return
  }
  func.func @transform_0(%arg0: i32) -> (i32, i32, i32, i32) {
    %c0_i32 = arith.constant 0 : i32
    %c0_i32_0 = arith.constant 0 : i32
    %c0_i32_1 = arith.constant 0 : i32
    %c0_i32_2 = arith.constant 0 : i32
    return %arg0, %c0_i32, %c0_i32_0, %c0_i32_1 : i32, i32, i32, i32
  }
  func.func @transform_1(%arg0: i32) -> (i32, i32, i32, i32) {
    %c0_i32 = arith.constant 0 : i32
    %c0_i32_0 = arith.constant 0 : i32
    %c0_i32_1 = arith.constant 0 : i32
    %c0_i32_2 = arith.constant 0 : i32
    return %arg0, %c0_i32, %c0_i32_0, %c0_i32_1 : i32, i32, i32, i32
  }
  func.func @transform_2(%arg0: i32) -> (i32, i32, i32) {
    %c0_i32 = arith.constant 0 : i32
    %c0_i32_0 = arith.constant 0 : i32
    %c0_i32_1 = arith.constant 0 : i32
    %c0_i32_2 = arith.constant 0 : i32
    return %c0_i32, %c0_i32_0, %c0_i32_1 : i32, i32, i32
  }
  func.func @transform_3(%arg0: i32) -> (i32, i32) {
    %c0_i32 = arith.constant 0 : i32
    %c0_i32_0 = arith.constant 0 : i32
    %c0_i32_1 = arith.constant 0 : i32
    return %c0_i32, %c0_i32_0 : i32, i32
  }
  func.func @transform_4(%arg0: i32) -> (i32, i32, i32, i32) {
    %c0_i32 = arith.constant 0 : i32
    %c0_i32_0 = arith.constant 0 : i32
    %c0_i32_1 = arith.constant 0 : i32
    %c0_i32_2 = arith.constant 0 : i32
    return %arg0, %c0_i32, %c0_i32_0, %c0_i32_1 : i32, i32, i32, i32
  }
}

module attributes {stable_mosaic.version = 11 : i64} {
  func.func @_fc_head_kernel(%arg0: memref<2x256xbf16, #tpu.memory_space<vmem>>, %arg1: memref<2x10xbf16, #tpu.memory_space<vmem>>, %arg2: memref<256x64xbf16, #tpu.memory_space<vmem>>, %arg3: memref<1x64xf32, #tpu.memory_space<vmem>>, %arg4: memref<64x16xbf16, #tpu.memory_space<vmem>>, %arg5: memref<10x16xbf16, #tpu.memory_space<vmem>>, %arg6: memref<1x16xf32, #tpu.memory_space<vmem>>, %arg7: memref<2x16xf32, #tpu.memory_space<vmem>>) attributes {dimension_semantics = [], scalar_prefetch = 0 : i64, scratch_operands = 0 : i64, tpu.core_type = #tpu.core_type<tc>} {
    %c0 = arith.constant 0 : index
    %c0_0 = arith.constant 0 : index
    %0 = vector.load %arg0[%c0, %c0_0] : memref<2x256xbf16, #tpu.memory_space<vmem>>, vector<2x256xbf16>
    %c0_1 = arith.constant 0 : index
    %c0_2 = arith.constant 0 : index
    %1 = vector.load %arg2[%c0_1, %c0_2] : memref<256x64xbf16, #tpu.memory_space<vmem>>, vector<256x64xbf16>
    %cst = arith.constant dense<0.000000e+00> : vector<2x64xf32>
    %2 = tpu.matmul %0, %1, %cst {dimension_numbers = #tpu.dot_dimension_numbers<[1], [0], [0], [1], [0, 0, 1, 1], [], []>} : vector<2x256xbf16>, vector<256x64xbf16>, vector<2x64xf32> -> vector<2x64xf32>
    %c0_3 = arith.constant 0 : index
    %c0_4 = arith.constant 0 : index
    %3 = vector.load %arg3[%c0_3, %c0_4] : memref<1x64xf32, #tpu.memory_space<vmem>>, vector<1x64xf32>
    %4 = vector.broadcast %3 : vector<1x64xf32> to vector<2x64xf32>
    %5 = arith.addf %2, %4 : vector<2x64xf32>
    %cst_5 = arith.constant 0.000000e+00 : f32
    %6 = vector.broadcast %cst_5 : f32 to vector<2x64xf32>
    %7 = arith.maximumf %5, %6 : vector<2x64xf32>
    %8 = arith.truncf %7 : vector<2x64xf32> to vector<2x64xbf16>
    %c0_6 = arith.constant 0 : index
    %c0_7 = arith.constant 0 : index
    %9 = vector.load %arg4[%c0_6, %c0_7] : memref<64x16xbf16, #tpu.memory_space<vmem>>, vector<64x16xbf16>
    %cst_8 = arith.constant dense<0.000000e+00> : vector<2x16xf32>
    %10 = tpu.matmul %8, %9, %cst_8 {dimension_numbers = #tpu.dot_dimension_numbers<[1], [0], [0], [1], [0, 0, 1, 1], [], []>} : vector<2x64xbf16>, vector<64x16xbf16>, vector<2x16xf32> -> vector<2x16xf32>
    %c0_9 = arith.constant 0 : index
    %c0_10 = arith.constant 0 : index
    %11 = vector.load %arg1[%c0_9, %c0_10] : memref<2x10xbf16, #tpu.memory_space<vmem>>, vector<2x10xbf16>
    %c0_11 = arith.constant 0 : index
    %c0_12 = arith.constant 0 : index
    %12 = vector.load %arg5[%c0_11, %c0_12] : memref<10x16xbf16, #tpu.memory_space<vmem>>, vector<10x16xbf16>
    %cst_13 = arith.constant dense<0.000000e+00> : vector<2x16xf32>
    %13 = tpu.matmul %11, %12, %cst_13 {dimension_numbers = #tpu.dot_dimension_numbers<[1], [0], [0], [1], [0, 0, 1, 1], [], []>} : vector<2x10xbf16>, vector<10x16xbf16>, vector<2x16xf32> -> vector<2x16xf32>
    %14 = arith.addf %10, %13 : vector<2x16xf32>
    %c0_14 = arith.constant 0 : index
    %c0_15 = arith.constant 0 : index
    %15 = vector.load %arg6[%c0_14, %c0_15] : memref<1x16xf32, #tpu.memory_space<vmem>>, vector<1x16xf32>
    %16 = vector.broadcast %15 : vector<1x16xf32> to vector<2x16xf32>
    %17 = arith.addf %14, %16 : vector<2x16xf32>
    %c0_16 = arith.constant 0 : index
    %c0_17 = arith.constant 0 : index
    %18 = vector.load %arg7[%c0_16, %c0_17] : memref<2x16xf32, #tpu.memory_space<vmem>>, vector<2x16xf32>
    tpu.vector_store %arg7[%c0_16, %c0_17], %17 {strides = array<i32>} : memref<2x16xf32, #tpu.memory_space<vmem>>, vector<2x16xf32>,
    return
  }
}

module attributes {stable_mosaic.version = 11 : i64} {
  func.func @_conv_relu_pool_kernel(%arg0: i32, %arg1: memref<1x8x4x64xbf16, #tpu.memory_space<vmem>>, %arg2: memref<1x8x4x64xbf16, #tpu.memory_space<vmem>>, %arg3: memref<16x64x64xbf16, #tpu.memory_space<vmem>>, %arg4: memref<1x64xf32, #tpu.memory_space<vmem>>, %arg5: memref<1x2x2x64xbf16, #tpu.memory_space<vmem>>) attributes {dimension_semantics = [#tpu.dimension_semantics<parallel>], iteration_bounds = array<i64: 2>, scalar_prefetch = 0 : i64, scratch_operands = 0 : i64, tpu.core_type = #tpu.core_type<tc>, window_params = [{transform_indices = @transform_0, window_bounds = array<i64: 1, 8, 4, 64>}, {transform_indices = @transform_1, window_bounds = array<i64: 1, 8, 4, 64>}, {pipeline_mode = #tpu.pipeline_mode<synchronous>, transform_indices = @transform_2, window_bounds = array<i64: 16, 64, 64>}, {pipeline_mode = #tpu.pipeline_mode<synchronous>, transform_indices = @transform_3, window_bounds = array<i64: 1, 64>}, {transform_indices = @transform_4, window_bounds = array<i64: 1, 2, 2, 64>}]} {
    %c0 = arith.constant 0 : index
    %c0_0 = arith.constant 0 : index
    %0 = vector.load %arg4[%c0, %c0_0] : memref<1x64xf32, #tpu.memory_space<vmem>>, vector<1x64xf32>
    %c0_i32 = arith.constant 0 : i32
    %c2_i32 = arith.constant 2 : i32
    %1 = arith.addi %c0_i32, %c2_i32 : i32
    %c1_i32 = arith.constant 1 : i32
    scf.for %arg6 = %c0_i32 to %1 step %c1_i32  : i32 {
      %c1_i32_2 = arith.constant 1 : i32
      %2 = arith.muli %arg6, %c1_i32_2 : i32
      %c0_i32_3 = arith.constant 0 : i32
      %3 = arith.addi %c0_i32_3, %2 : i32
      %cst = arith.constant 0.000000e+00 : f32
      %4 = vector.broadcast %cst : f32 to vector<2x64xf32>
      %c2_i32_4 = arith.constant 2 : i32
      %5 = arith.muli %c2_i32_4, %3 : i32
      %c0_i32_5 = arith.constant 0 : i32
      %6 = arith.addi %5, %c0_i32_5 : i32
      %c0_i32_6 = arith.constant 0 : i32
      %7 = arith.addi %6, %c0_i32_6 : i32
      %c0_7 = arith.constant 0 : index
      %8 = arith.index_cast %7 : i32 to index
      %c0_8 = arith.constant 0 : index
      %c0_9 = arith.constant 0 : index
      %9 = vector.load %arg1[%c0_7, %8, %c0_8, %c0_9] : memref<1x8x4x64xbf16, #tpu.memory_space<vmem>>, vector<1x1x2x64xbf16>
      %10 = vector.shape_cast %9 : vector<1x1x2x64xbf16> to vector<2x64xbf16>
      %c0_10 = arith.constant 0 : index
      %c0_11 = arith.constant 0 : index
      %c0_12 = arith.constant 0 : index
      %11 = vector.load %arg3[%c0_10, %c0_11, %c0_12] : memref<16x64x64xbf16, #tpu.memory_space<vmem>>, vector<1x64x64xbf16>
      %12 = vector.shape_cast %11 : vector<1x64x64xbf16> to vector<64x64xbf16>
      %cst_13 = arith.constant dense<0.000000e+00> : vector<2x64xf32>
      %13 = tpu.matmul %10, %12, %cst_13 {dimension_numbers = #tpu.dot_dimension_numbers<[1], [0], [0], [1], [0, 0, 1, 1], [], []>} : vector<2x64xbf16>, vector<64x64xbf16>, vector<2x64xf32> -> vector<2x64xf32>
      %14 = arith.addf %4, %13 : vector<2x64xf32>
      %c0_14 = arith.constant 0 : index
      %15 = arith.index_cast %7 : i32 to index
      %c0_15 = arith.constant 0 : index
      %c0_16 = arith.constant 0 : index
      %16 = vector.load %arg2[%c0_14, %15, %c0_15, %c0_16] : memref<1x8x4x64xbf16, #tpu.memory_space<vmem>>, vector<1x1x2x64xbf16>
      %17 = vector.shape_cast %16 : vector<1x1x2x64xbf16> to vector<2x64xbf16>
      %c1 = arith.constant 1 : index
      %c0_17 = arith.constant 0 : index
      %c0_18 = arith.constant 0 : index
      %18 = vector.load %arg3[%c1, %c0_17, %c0_18] : memref<16x64x64xbf16, #tpu.memory_space<vmem>>, vector<1x64x64xbf16>
      %19 = vector.shape_cast %18 : vector<1x64x64xbf16> to vector<64x64xbf16>
      %cst_19 = arith.constant dense<0.000000e+00> : vector<2x64xf32>
      %20 = tpu.matmul %17, %19, %cst_19 {dimension_numbers = #tpu.dot_dimension_numbers<[1], [0], [0], [1], [0, 0, 1, 1], [], []>} : vector<2x64xbf16>, vector<64x64xbf16>, vector<2x64xf32> -> vector<2x64xf32>
      %21 = arith.addf %14, %20 : vector<2x64xf32>
      %c0_20 = arith.constant 0 : index
      %22 = arith.index_cast %7 : i32 to index
      %c1_21 = arith.constant 1 : index
      %c0_22 = arith.constant 0 : index
      %23 = vector.load %arg1[%c0_20, %22, %c1_21, %c0_22] : memref<1x8x4x64xbf16, #tpu.memory_space<vmem>>, vector<1x1x2x64xbf16>
      %24 = vector.shape_cast %23 : vector<1x1x2x64xbf16> to vector<2x64xbf16>
      %c2 = arith.constant 2 : index
      %c0_23 = arith.constant 0 : index
      %c0_24 = arith.constant 0 : index
      %25 = vector.load %arg3[%c2, %c0_23, %c0_24] : memref<16x64x64xbf16, #tpu.memory_space<vmem>>, vector<1x64x64xbf16>
      %26 = vector.shape_cast %25 : vector<1x64x64xbf16> to vector<64x64xbf16>
      %cst_25 = arith.constant dense<0.000000e+00> : vector<2x64xf32>
      %27 = tpu.matmul %24, %26, %cst_25 {dimension_numbers = #tpu.dot_dimension_numbers<[1], [0], [0], [1], [0, 0, 1, 1], [], []>} : vector<2x64xbf16>, vector<64x64xbf16>, vector<2x64xf32> -> vector<2x64xf32>
      %28 = arith.addf %21, %27 : vector<2x64xf32>
      %c0_26 = arith.constant 0 : index
      %29 = arith.index_cast %7 : i32 to index
      %c1_27 = arith.constant 1 : index
      %c0_28 = arith.constant 0 : index
      %30 = vector.load %arg2[%c0_26, %29, %c1_27, %c0_28] : memref<1x8x4x64xbf16, #tpu.memory_space<vmem>>, vector<1x1x2x64xbf16>
      %31 = vector.shape_cast %30 : vector<1x1x2x64xbf16> to vector<2x64xbf16>
      %c3 = arith.constant 3 : index
      %c0_29 = arith.constant 0 : index
      %c0_30 = arith.constant 0 : index
      %32 = vector.load %arg3[%c3, %c0_29, %c0_30] : memref<16x64x64xbf16, #tpu.memory_space<vmem>>, vector<1x64x64xbf16>
      %33 = vector.shape_cast %32 : vector<1x64x64xbf16> to vector<64x64xbf16>
      %cst_31 = arith.constant dense<0.000000e+00> : vector<2x64xf32>
      %34 = tpu.matmul %31, %33, %cst_31 {dimension_numbers = #tpu.dot_dimension_numbers<[1], [0], [0], [1], [0, 0, 1, 1], [], []>} : vector<2x64xbf16>, vector<64x64xbf16>, vector<2x64xf32> -> vector<2x64xf32>
      %35 = arith.addf %28, %34 : vector<2x64xf32>
      %c2_i32_32 = arith.constant 2 : i32
      %36 = arith.muli %c2_i32_32, %3 : i32
      %c0_i32_33 = arith.constant 0 : i32
      %37 = arith.addi %36, %c0_i32_33 : i32
      %c1_i32_34 = arith.constant 1 : i32
      %38 = arith.addi %37, %c1_i32_34 : i32
      %c0_35 = arith.constant 0 : index
      %39 = arith.index_cast %38 : i32 to index
      %c0_36 = arith.constant 0 : index
      %c0_37 = arith.constant 0 : index
      %40 = vector.load %arg1[%c0_35, %39, %c0_36, %c0_37] : memref<1x8x4x64xbf16, #tpu.memory_space<vmem>>, vector<1x1x2x64xbf16>
      %41 = vector.shape_cast %40 : vector<1x1x2x64xbf16> to vector<2x64xbf16>
      %c4 = arith.constant 4 : index
      %c0_38 = arith.constant 0 : index
      %c0_39 = arith.constant 0 : index
      %42 = vector.load %arg3[%c4, %c0_38, %c0_39] : memref<16x64x64xbf16, #tpu.memory_space<vmem>>, vector<1x64x64xbf16>
      %43 = vector.shape_cast %42 : vector<1x64x64xbf16> to vector<64x64xbf16>
      %cst_40 = arith.constant dense<0.000000e+00> : vector<2x64xf32>
      %44 = tpu.matmul %41, %43, %cst_40 {dimension_numbers = #tpu.dot_dimension_numbers<[1], [0], [0], [1], [0, 0, 1, 1], [], []>} : vector<2x64xbf16>, vector<64x64xbf16>, vector<2x64xf32> -> vector<2x64xf32>
      %45 = arith.addf %35, %44 : vector<2x64xf32>
      %c0_41 = arith.constant 0 : index
      %46 = arith.index_cast %38 : i32 to index
      %c0_42 = arith.constant 0 : index
      %c0_43 = arith.constant 0 : index
      %47 = vector.load %arg2[%c0_41, %46, %c0_42, %c0_43] : memref<1x8x4x64xbf16, #tpu.memory_space<vmem>>, vector<1x1x2x64xbf16>
      %48 = vector.shape_cast %47 : vector<1x1x2x64xbf16> to vector<2x64xbf16>
      %c5 = arith.constant 5 : index
      %c0_44 = arith.constant 0 : index
      %c0_45 = arith.constant 0 : index
      %49 = vector.load %arg3[%c5, %c0_44, %c0_45] : memref<16x64x64xbf16, #tpu.memory_space<vmem>>, vector<1x64x64xbf16>
      %50 = vector.shape_cast %49 : vector<1x64x64xbf16> to vector<64x64xbf16>
      %cst_46 = arith.constant dense<0.000000e+00> : vector<2x64xf32>
      %51 = tpu.matmul %48, %50, %cst_46 {dimension_numbers = #tpu.dot_dimension_numbers<[1], [0], [0], [1], [0, 0, 1, 1], [], []>} : vector<2x64xbf16>, vector<64x64xbf16>, vector<2x64xf32> -> vector<2x64xf32>
      %52 = arith.addf %45, %51 : vector<2x64xf32>
      %c0_47 = arith.constant 0 : index
      %53 = arith.index_cast %38 : i32 to index
      %c1_48 = arith.constant 1 : index
      %c0_49 = arith.constant 0 : index
      %54 = vector.load %arg1[%c0_47, %53, %c1_48, %c0_49] : memref<1x8x4x64xbf16, #tpu.memory_space<vmem>>, vector<1x1x2x64xbf16>
      %55 = vector.shape_cast %54 : vector<1x1x2x64xbf16> to vector<2x64xbf16>
      %c6 = arith.constant 6 : index
      %c0_50 = arith.constant 0 : index
      %c0_51 = arith.constant 0 : index
      %56 = vector.load %arg3[%c6, %c0_50, %c0_51] : memref<16x64x64xbf16, #tpu.memory_space<vmem>>, vector<1x64x64xbf16>
      %57 = vector.shape_cast %56 : vector<1x64x64xbf16> to vector<64x64xbf16>
      %cst_52 = arith.constant dense<0.000000e+00> : vector<2x64xf32>
      %58 = tpu.matmul %55, %57, %cst_52 {dimension_numbers = #tpu.dot_dimension_numbers<[1], [0], [0], [1], [0, 0, 1, 1], [], []>} : vector<2x64xbf16>, vector<64x64xbf16>, vector<2x64xf32> -> vector<2x64xf32>
      %59 = arith.addf %52, %58 : vector<2x64xf32>
      %c0_53 = arith.constant 0 : index
      %60 = arith.index_cast %38 : i32 to index
      %c1_54 = arith.constant 1 : index
      %c0_55 = arith.constant 0 : index
      %61 = vector.load %arg2[%c0_53, %60, %c1_54, %c0_55] : memref<1x8x4x64xbf16, #tpu.memory_space<vmem>>, vector<1x1x2x64xbf16>
      %62 = vector.shape_cast %61 : vector<1x1x2x64xbf16> to vector<2x64xbf16>
      %c7 = arith.constant 7 : index
      %c0_56 = arith.constant 0 : index
      %c0_57 = arith.constant 0 : index
      %63 = vector.load %arg3[%c7, %c0_56, %c0_57] : memref<16x64x64xbf16, #tpu.memory_space<vmem>>, vector<1x64x64xbf16>
      %64 = vector.shape_cast %63 : vector<1x64x64xbf16> to vector<64x64xbf16>
      %cst_58 = arith.constant dense<0.000000e+00> : vector<2x64xf32>
      %65 = tpu.matmul %62, %64, %cst_58 {dimension_numbers = #tpu.dot_dimension_numbers<[1], [0], [0], [1], [0, 0, 1, 1], [], []>} : vector<2x64xbf16>, vector<64x64xbf16>, vector<2x64xf32> -> vector<2x64xf32>
      %66 = arith.addf %59, %65 : vector<2x64xf32>
      %c2_i32_59 = arith.constant 2 : i32
      %67 = arith.muli %c2_i32_59, %3 : i32
      %c0_i32_60 = arith.constant 0 : i32
      %68 = arith.addi %67, %c0_i32_60 : i32
      %c2_i32_61 = arith.constant 2 : i32
      %69 = arith.addi %68, %c2_i32_61 : i32
      %c0_62 = arith.constant 0 : index
      %70 = arith.index_cast %69 : i32 to index
      %c0_63 = arith.constant 0 : index
      %c0_64 = arith.constant 0 : index
      %71 = vector.load %arg1[%c0_62, %70, %c0_63, %c0_64] : memref<1x8x4x64xbf16, #tpu.memory_space<vmem>>, vector<1x1x2x64xbf16>
      %72 = vector.shape_cast %71 : vector<1x1x2x64xbf16> to vector<2x64xbf16>
      %c8 = arith.constant 8 : index
      %c0_65 = arith.constant 0 : index
      %c0_66 = arith.constant 0 : index
      %73 = vector.load %arg3[%c8, %c0_65, %c0_66] : memref<16x64x64xbf16, #tpu.memory_space<vmem>>, vector<1x64x64xbf16>
      %74 = vector.shape_cast %73 : vector<1x64x64xbf16> to vector<64x64xbf16>
      %cst_67 = arith.constant dense<0.000000e+00> : vector<2x64xf32>
      %75 = tpu.matmul %72, %74, %cst_67 {dimension_numbers = #tpu.dot_dimension_numbers<[1], [0], [0], [1], [0, 0, 1, 1], [], []>} : vector<2x64xbf16>, vector<64x64xbf16>, vector<2x64xf32> -> vector<2x64xf32>
      %76 = arith.addf %66, %75 : vector<2x64xf32>
      %c0_68 = arith.constant 0 : index
      %77 = arith.index_cast %69 : i32 to index
      %c0_69 = arith.constant 0 : index
      %c0_70 = arith.constant 0 : index
      %78 = vector.load %arg2[%c0_68, %77, %c0_69, %c0_70] : memref<1x8x4x64xbf16, #tpu.memory_space<vmem>>, vector<1x1x2x64xbf16>
      %79 = vector.shape_cast %78 : vector<1x1x2x64xbf16> to vector<2x64xbf16>
      %c9 = arith.constant 9 : index
      %c0_71 = arith.constant 0 : index
      %c0_72 = arith.constant 0 : index
      %80 = vector.load %arg3[%c9, %c0_71, %c0_72] : memref<16x64x64xbf16, #tpu.memory_space<vmem>>, vector<1x64x64xbf16>
      %81 = vector.shape_cast %80 : vector<1x64x64xbf16> to vector<64x64xbf16>
      %cst_73 = arith.constant dense<0.000000e+00> : vector<2x64xf32>
      %82 = tpu.matmul %79, %81, %cst_73 {dimension_numbers = #tpu.dot_dimension_numbers<[1], [0], [0], [1], [0, 0, 1, 1], [], []>} : vector<2x64xbf16>, vector<64x64xbf16>, vector<2x64xf32> -> vector<2x64xf32>
      %83 = arith.addf %76, %82 : vector<2x64xf32>
      %c0_74 = arith.constant 0 : index
      %84 = arith.index_cast %69 : i32 to index
      %c1_75 = arith.constant 1 : index
      %c0_76 = arith.constant 0 : index
      %85 = vector.load %arg1[%c0_74, %84, %c1_75, %c0_76] : memref<1x8x4x64xbf16, #tpu.memory_space<vmem>>, vector<1x1x2x64xbf16>
      %86 = vector.shape_cast %85 : vector<1x1x2x64xbf16> to vector<2x64xbf16>
      %c10 = arith.constant 10 : index
      %c0_77 = arith.constant 0 : index
      %c0_78 = arith.constant 0 : index
      %87 = vector.load %arg3[%c10, %c0_77, %c0_78] : memref<16x64x64xbf16, #tpu.memory_space<vmem>>, vector<1x64x64xbf16>
      %88 = vector.shape_cast %87 : vector<1x64x64xbf16> to vector<64x64xbf16>
      %cst_79 = arith.constant dense<0.000000e+00> : vector<2x64xf32>
      %89 = tpu.matmul %86, %88, %cst_79 {dimension_numbers = #tpu.dot_dimension_numbers<[1], [0], [0], [1], [0, 0, 1, 1], [], []>} : vector<2x64xbf16>, vector<64x64xbf16>, vector<2x64xf32> -> vector<2x64xf32>
      %90 = arith.addf %83, %89 : vector<2x64xf32>
      %c0_80 = arith.constant 0 : index
      %91 = arith.index_cast %69 : i32 to index
      %c1_81 = arith.constant 1 : index
      %c0_82 = arith.constant 0 : index
      %92 = vector.load %arg2[%c0_80, %91, %c1_81, %c0_82] : memref<1x8x4x64xbf16, #tpu.memory_space<vmem>>, vector<1x1x2x64xbf16>
      %93 = vector.shape_cast %92 : vector<1x1x2x64xbf16> to vector<2x64xbf16>
      %c11 = arith.constant 11 : index
      %c0_83 = arith.constant 0 : index
      %c0_84 = arith.constant 0 : index
      %94 = vector.load %arg3[%c11, %c0_83, %c0_84] : memref<16x64x64xbf16, #tpu.memory_space<vmem>>, vector<1x64x64xbf16>
      %95 = vector.shape_cast %94 : vector<1x64x64xbf16> to vector<64x64xbf16>
      %cst_85 = arith.constant dense<0.000000e+00> : vector<2x64xf32>
      %96 = tpu.matmul %93, %95, %cst_85 {dimension_numbers = #tpu.dot_dimension_numbers<[1], [0], [0], [1], [0, 0, 1, 1], [], []>} : vector<2x64xbf16>, vector<64x64xbf16>, vector<2x64xf32> -> vector<2x64xf32>
      %97 = arith.addf %90, %96 : vector<2x64xf32>
      %c2_i32_86 = arith.constant 2 : i32
      %98 = arith.muli %c2_i32_86, %3 : i32
      %c0_i32_87 = arith.constant 0 : i32
      %99 = arith.addi %98, %c0_i32_87 : i32
      %c3_i32 = arith.constant 3 : i32
      %100 = arith.addi %99, %c3_i32 : i32
      %c0_88 = arith.constant 0 : index
      %101 = arith.index_cast %100 : i32 to index
      %c0_89 = arith.constant 0 : index
      %c0_90 = arith.constant 0 : index
      %102 = vector.load %arg1[%c0_88, %101, %c0_89, %c0_90] : memref<1x8x4x64xbf16, #tpu.memory_space<vmem>>, vector<1x1x2x64xbf16>
      %103 = vector.shape_cast %102 : vector<1x1x2x64xbf16> to vector<2x64xbf16>
      %c12 = arith.constant 12 : index
      %c0_91 = arith.constant 0 : index
      %c0_92 = arith.constant 0 : index
      %104 = vector.load %arg3[%c12, %c0_91, %c0_92] : memref<16x64x64xbf16, #tpu.memory_space<vmem>>, vector<1x64x64xbf16>
      %105 = vector.shape_cast %104 : vector<1x64x64xbf16> to vector<64x64xbf16>
      %cst_93 = arith.constant dense<0.000000e+00> : vector<2x64xf32>
      %106 = tpu.matmul %103, %105, %cst_93 {dimension_numbers = #tpu.dot_dimension_numbers<[1], [0], [0], [1], [0, 0, 1, 1], [], []>} : vector<2x64xbf16>, vector<64x64xbf16>, vector<2x64xf32> -> vector<2x64xf32>
      %107 = arith.addf %97, %106 : vector<2x64xf32>
      %c0_94 = arith.constant 0 : index
      %108 = arith.index_cast %100 : i32 to index
      %c0_95 = arith.constant 0 : index
      %c0_96 = arith.constant 0 : index
      %109 = vector.load %arg2[%c0_94, %108, %c0_95, %c0_96] : memref<1x8x4x64xbf16, #tpu.memory_space<vmem>>, vector<1x1x2x64xbf16>
      %110 = vector.shape_cast %109 : vector<1x1x2x64xbf16> to vector<2x64xbf16>
      %c13 = arith.constant 13 : index
      %c0_97 = arith.constant 0 : index
      %c0_98 = arith.constant 0 : index
      %111 = vector.load %arg3[%c13, %c0_97, %c0_98] : memref<16x64x64xbf16, #tpu.memory_space<vmem>>, vector<1x64x64xbf16>
      %112 = vector.shape_cast %111 : vector<1x64x64xbf16> to vector<64x64xbf16>
      %cst_99 = arith.constant dense<0.000000e+00> : vector<2x64xf32>
      %113 = tpu.matmul %110, %112, %cst_99 {dimension_numbers = #tpu.dot_dimension_numbers<[1], [0], [0], [1], [0, 0, 1, 1], [], []>} : vector<2x64xbf16>, vector<64x64xbf16>, vector<2x64xf32> -> vector<2x64xf32>
      %114 = arith.addf %107, %113 : vector<2x64xf32>
      %c0_100 = arith.constant 0 : index
      %115 = arith.index_cast %100 : i32 to index
      %c1_101 = arith.constant 1 : index
      %c0_102 = arith.constant 0 : index
      %116 = vector.load %arg1[%c0_100, %115, %c1_101, %c0_102] : memref<1x8x4x64xbf16, #tpu.memory_space<vmem>>, vector<1x1x2x64xbf16>
      %117 = vector.shape_cast %116 : vector<1x1x2x64xbf16> to vector<2x64xbf16>
      %c14 = arith.constant 14 : index
      %c0_103 = arith.constant 0 : index
      %c0_104 = arith.constant 0 : index
      %118 = vector.load %arg3[%c14, %c0_103, %c0_104] : memref<16x64x64xbf16, #tpu.memory_space<vmem>>, vector<1x64x64xbf16>
      %119 = vector.shape_cast %118 : vector<1x64x64xbf16> to vector<64x64xbf16>
      %cst_105 = arith.constant dense<0.000000e+00> : vector<2x64xf32>
      %120 = tpu.matmul %117, %119, %cst_105 {dimension_numbers = #tpu.dot_dimension_numbers<[1], [0], [0], [1], [0, 0, 1, 1], [], []>} : vector<2x64xbf16>, vector<64x64xbf16>, vector<2x64xf32> -> vector<2x64xf32>
      %121 = arith.addf %114, %120 : vector<2x64xf32>
      %c0_106 = arith.constant 0 : index
      %122 = arith.index_cast %100 : i32 to index
      %c1_107 = arith.constant 1 : index
      %c0_108 = arith.constant 0 : index
      %123 = vector.load %arg2[%c0_106, %122, %c1_107, %c0_108] : memref<1x8x4x64xbf16, #tpu.memory_space<vmem>>, vector<1x1x2x64xbf16>
      %124 = vector.shape_cast %123 : vector<1x1x2x64xbf16> to vector<2x64xbf16>
      %c15 = arith.constant 15 : index
      %c0_109 = arith.constant 0 : index
      %c0_110 = arith.constant 0 : index
      %125 = vector.load %arg3[%c15, %c0_109, %c0_110] : memref<16x64x64xbf16, #tpu.memory_space<vmem>>, vector<1x64x64xbf16>
      %126 = vector.shape_cast %125 : vector<1x64x64xbf16> to vector<64x64xbf16>
      %cst_111 = arith.constant dense<0.000000e+00> : vector<2x64xf32>
      %127 = tpu.matmul %124, %126, %cst_111 {dimension_numbers = #tpu.dot_dimension_numbers<[1], [0], [0], [1], [0, 0, 1, 1], [], []>} : vector<2x64xbf16>, vector<64x64xbf16>, vector<2x64xf32> -> vector<2x64xf32>
      %128 = arith.addf %121, %127 : vector<2x64xf32>
      %129 = vector.broadcast %0 : vector<1x64xf32> to vector<2x64xf32>
      %130 = arith.addf %128, %129 : vector<2x64xf32>
      %cst_112 = arith.constant 0.000000e+00 : f32
      %131 = vector.broadcast %cst_112 : f32 to vector<2x64xf32>
      %132 = arith.maximumf %130, %131 : vector<2x64xf32>
      %cst_113 = arith.constant 0.000000e+00 : f32
      %133 = vector.broadcast %cst_113 : f32 to vector<2x64xf32>
      %c2_i32_114 = arith.constant 2 : i32
      %134 = arith.muli %c2_i32_114, %3 : i32
      %c0_i32_115 = arith.constant 0 : i32
      %135 = arith.addi %134, %c0_i32_115 : i32
      %c0_i32_116 = arith.constant 0 : i32
      %136 = arith.addi %135, %c0_i32_116 : i32
      %c0_117 = arith.constant 0 : index
      %137 = arith.index_cast %136 : i32 to index
      %c0_118 = arith.constant 0 : index
      %c0_119 = arith.constant 0 : index
      %138 = vector.load %arg2[%c0_117, %137, %c0_118, %c0_119] : memref<1x8x4x64xbf16, #tpu.memory_space<vmem>>, vector<1x1x2x64xbf16>
      %139 = vector.shape_cast %138 : vector<1x1x2x64xbf16> to vector<2x64xbf16>
      %c0_120 = arith.constant 0 : index
      %c0_121 = arith.constant 0 : index
      %c0_122 = arith.constant 0 : index
      %140 = vector.load %arg3[%c0_120, %c0_121, %c0_122] : memref<16x64x64xbf16, #tpu.memory_space<vmem>>, vector<1x64x64xbf16>
      %141 = vector.shape_cast %140 : vector<1x64x64xbf16> to vector<64x64xbf16>
      %cst_123 = arith.constant dense<0.000000e+00> : vector<2x64xf32>
      %142 = tpu.matmul %139, %141, %cst_123 {dimension_numbers = #tpu.dot_dimension_numbers<[1], [0], [0], [1], [0, 0, 1, 1], [], []>} : vector<2x64xbf16>, vector<64x64xbf16>, vector<2x64xf32> -> vector<2x64xf32>
      %143 = arith.addf %133, %142 : vector<2x64xf32>
      %c0_124 = arith.constant 0 : index
      %144 = arith.index_cast %136 : i32 to index
      %c1_125 = arith.constant 1 : index
      %c0_126 = arith.constant 0 : index
      %145 = vector.load %arg1[%c0_124, %144, %c1_125, %c0_126] : memref<1x8x4x64xbf16, #tpu.memory_space<vmem>>, vector<1x1x2x64xbf16>
      %146 = vector.shape_cast %145 : vector<1x1x2x64xbf16> to vector<2x64xbf16>
      %c1_127 = arith.constant 1 : index
      %c0_128 = arith.constant 0 : index
      %c0_129 = arith.constant 0 : index
      %147 = vector.load %arg3[%c1_127, %c0_128, %c0_129] : memref<16x64x64xbf16, #tpu.memory_space<vmem>>, vector<1x64x64xbf16>
      %148 = vector.shape_cast %147 : vector<1x64x64xbf16> to vector<64x64xbf16>
      %cst_130 = arith.constant dense<0.000000e+00> : vector<2x64xf32>
      %149 = tpu.matmul %146, %148, %cst_130 {dimension_numbers = #tpu.dot_dimension_numbers<[1], [0], [0], [1], [0, 0, 1, 1], [], []>} : vector<2x64xbf16>, vector<64x64xbf16>, vector<2x64xf32> -> vector<2x64xf32>
      %150 = arith.addf %143, %149 : vector<2x64xf32>
      %c0_131 = arith.constant 0 : index
      %151 = arith.index_cast %136 : i32 to index
      %c1_132 = arith.constant 1 : index
      %c0_133 = arith.constant 0 : index
      %152 = vector.load %arg2[%c0_131, %151, %c1_132, %c0_133] : memref<1x8x4x64xbf16, #tpu.memory_space<vmem>>, vector<1x1x2x64xbf16>
      %153 = vector.shape_cast %152 : vector<1x1x2x64xbf16> to vector<2x64xbf16>
      %c2_134 = arith.constant 2 : index
      %c0_135 = arith.constant 0 : index
      %c0_136 = arith.constant 0 : index
      %154 = vector.load %arg3[%c2_134, %c0_135, %c0_136] : memref<16x64x64xbf16, #tpu.memory_space<vmem>>, vector<1x64x64xbf16>
      %155 = vector.shape_cast %154 : vector<1x64x64xbf16> to vector<64x64xbf16>
      %cst_137 = arith.constant dense<0.000000e+00> : vector<2x64xf32>
      %156 = tpu.matmul %153, %155, %cst_137 {dimension_numbers = #tpu.dot_dimension_numbers<[1], [0], [0], [1], [0, 0, 1, 1], [], []>} : vector<2x64xbf16>, vector<64x64xbf16>, vector<2x64xf32> -> vector<2x64xf32>
      %157 = arith.addf %150, %156 : vector<2x64xf32>
      %c0_138 = arith.constant 0 : index
      %158 = arith.index_cast %136 : i32 to index
      %c2_139 = arith.constant 2 : index
      %c0_140 = arith.constant 0 : index
      %159 = vector.load %arg1[%c0_138, %158, %c2_139, %c0_140] : memref<1x8x4x64xbf16, #tpu.memory_space<vmem>>, vector<1x1x2x64xbf16>
      %160 = vector.shape_cast %159 : vector<1x1x2x64xbf16> to vector<2x64xbf16>
      %c3_141 = arith.constant 3 : index
      %c0_142 = arith.constant 0 : index
      %c0_143 = arith.constant 0 : index
      %161 = vector.load %arg3[%c3_141, %c0_142, %c0_143] : memref<16x64x64xbf16, #tpu.memory_space<vmem>>, vector<1x64x64xbf16>
      %162 = vector.shape_cast %161 : vector<1x64x64xbf16> to vector<64x64xbf16>
      %cst_144 = arith.constant dense<0.000000e+00> : vector<2x64xf32>
      %163 = tpu.matmul %160, %162, %cst_144 {dimension_numbers = #tpu.dot_dimension_numbers<[1], [0], [0], [1], [0, 0, 1, 1], [], []>} : vector<2x64xbf16>, vector<64x64xbf16>, vector<2x64xf32> -> vector<2x64xf32>
      %164 = arith.addf %157, %163 : vector<2x64xf32>
      %c2_i32_145 = arith.constant 2 : i32
      %165 = arith.muli %c2_i32_145, %3 : i32
      %c0_i32_146 = arith.constant 0 : i32
      %166 = arith.addi %165, %c0_i32_146 : i32
      %c1_i32_147 = arith.constant 1 : i32
      %167 = arith.addi %166, %c1_i32_147 : i32
      %c0_148 = arith.constant 0 : index
      %168 = arith.index_cast %167 : i32 to index
      %c0_149 = arith.constant 0 : index
      %c0_150 = arith.constant 0 : index
      %169 = vector.load %arg2[%c0_148, %168, %c0_149, %c0_150] : memref<1x8x4x64xbf16, #tpu.memory_space<vmem>>, vector<1x1x2x64xbf16>
      %170 = vector.shape_cast %169 : vector<1x1x2x64xbf16> to vector<2x64xbf16>
      %c4_151 = arith.constant 4 : index
      %c0_152 = arith.constant 0 : index
      %c0_153 = arith.constant 0 : index
      %171 = vector.load %arg3[%c4_151, %c0_152, %c0_153] : memref<16x64x64xbf16, #tpu.memory_space<vmem>>, vector<1x64x64xbf16>
      %172 = vector.shape_cast %171 : vector<1x64x64xbf16> to vector<64x64xbf16>
      %cst_154 = arith.constant dense<0.000000e+00> : vector<2x64xf32>
      %173 = tpu.matmul %170, %172, %cst_154 {dimension_numbers = #tpu.dot_dimension_numbers<[1], [0], [0], [1], [0, 0, 1, 1], [], []>} : vector<2x64xbf16>, vector<64x64xbf16>, vector<2x64xf32> -> vector<2x64xf32>
      %174 = arith.addf %164, %173 : vector<2x64xf32>
      %c0_155 = arith.constant 0 : index
      %175 = arith.index_cast %167 : i32 to index
      %c1_156 = arith.constant 1 : index
      %c0_157 = arith.constant 0 : index
      %176 = vector.load %arg1[%c0_155, %175, %c1_156, %c0_157] : memref<1x8x4x64xbf16, #tpu.memory_space<vmem>>, vector<1x1x2x64xbf16>
      %177 = vector.shape_cast %176 : vector<1x1x2x64xbf16> to vector<2x64xbf16>
      %c5_158 = arith.constant 5 : index
      %c0_159 = arith.constant 0 : index
      %c0_160 = arith.constant 0 : index
      %178 = vector.load %arg3[%c5_158, %c0_159, %c0_160] : memref<16x64x64xbf16, #tpu.memory_space<vmem>>, vector<1x64x64xbf16>
      %179 = vector.shape_cast %178 : vector<1x64x64xbf16> to vector<64x64xbf16>
      %cst_161 = arith.constant dense<0.000000e+00> : vector<2x64xf32>
      %180 = tpu.matmul %177, %179, %cst_161 {dimension_numbers = #tpu.dot_dimension_numbers<[1], [0], [0], [1], [0, 0, 1, 1], [], []>} : vector<2x64xbf16>, vector<64x64xbf16>, vector<2x64xf32> -> vector<2x64xf32>
      %181 = arith.addf %174, %180 : vector<2x64xf32>
      %c0_162 = arith.constant 0 : index
      %182 = arith.index_cast %167 : i32 to index
      %c1_163 = arith.constant 1 : index
      %c0_164 = arith.constant 0 : index
      %183 = vector.load %arg2[%c0_162, %182, %c1_163, %c0_164] : memref<1x8x4x64xbf16, #tpu.memory_space<vmem>>, vector<1x1x2x64xbf16>
      %184 = vector.shape_cast %183 : vector<1x1x2x64xbf16> to vector<2x64xbf16>
      %c6_165 = arith.constant 6 : index
      %c0_166 = arith.constant 0 : index
      %c0_167 = arith.constant 0 : index
      %185 = vector.load %arg3[%c6_165, %c0_166, %c0_167] : memref<16x64x64xbf16, #tpu.memory_space<vmem>>, vector<1x64x64xbf16>
      %186 = vector.shape_cast %185 : vector<1x64x64xbf16> to vector<64x64xbf16>
      %cst_168 = arith.constant dense<0.000000e+00> : vector<2x64xf32>
      %187 = tpu.matmul %184, %186, %cst_168 {dimension_numbers = #tpu.dot_dimension_numbers<[1], [0], [0], [1], [0, 0, 1, 1], [], []>} : vector<2x64xbf16>, vector<64x64xbf16>, vector<2x64xf32> -> vector<2x64xf32>
      %188 = arith.addf %181, %187 : vector<2x64xf32>
      %c0_169 = arith.constant 0 : index
      %189 = arith.index_cast %167 : i32 to index
      %c2_170 = arith.constant 2 : index
      %c0_171 = arith.constant 0 : index
      %190 = vector.load %arg1[%c0_169, %189, %c2_170, %c0_171] : memref<1x8x4x64xbf16, #tpu.memory_space<vmem>>, vector<1x1x2x64xbf16>
      %191 = vector.shape_cast %190 : vector<1x1x2x64xbf16> to vector<2x64xbf16>
      %c7_172 = arith.constant 7 : index
      %c0_173 = arith.constant 0 : index
      %c0_174 = arith.constant 0 : index
      %192 = vector.load %arg3[%c7_172, %c0_173, %c0_174] : memref<16x64x64xbf16, #tpu.memory_space<vmem>>, vector<1x64x64xbf16>
      %193 = vector.shape_cast %192 : vector<1x64x64xbf16> to vector<64x64xbf16>
      %cst_175 = arith.constant dense<0.000000e+00> : vector<2x64xf32>
      %194 = tpu.matmul %191, %193, %cst_175 {dimension_numbers = #tpu.dot_dimension_numbers<[1], [0], [0], [1], [0, 0, 1, 1], [], []>} : vector<2x64xbf16>, vector<64x64xbf16>, vector<2x64xf32> -> vector<2x64xf32>
      %195 = arith.addf %188, %194 : vector<2x64xf32>
      %c2_i32_176 = arith.constant 2 : i32
      %196 = arith.muli %c2_i32_176, %3 : i32
      %c0_i32_177 = arith.constant 0 : i32
      %197 = arith.addi %196, %c0_i32_177 : i32
      %c2_i32_178 = arith.constant 2 : i32
      %198 = arith.addi %197, %c2_i32_178 : i32
      %c0_179 = arith.constant 0 : index
      %199 = arith.index_cast %198 : i32 to index
      %c0_180 = arith.constant 0 : index
      %c0_181 = arith.constant 0 : index
      %200 = vector.load %arg2[%c0_179, %199, %c0_180, %c0_181] : memref<1x8x4x64xbf16, #tpu.memory_space<vmem>>, vector<1x1x2x64xbf16>
      %201 = vector.shape_cast %200 : vector<1x1x2x64xbf16> to vector<2x64xbf16>
      %c8_182 = arith.constant 8 : index
      %c0_183 = arith.constant 0 : index
      %c0_184 = arith.constant 0 : index
      %202 = vector.load %arg3[%c8_182, %c0_183, %c0_184] : memref<16x64x64xbf16, #tpu.memory_space<vmem>>, vector<1x64x64xbf16>
      %203 = vector.shape_cast %202 : vector<1x64x64xbf16> to vector<64x64xbf16>
      %cst_185 = arith.constant dense<0.000000e+00> : vector<2x64xf32>
      %204 = tpu.matmul %201, %203, %cst_185 {dimension_numbers = #tpu.dot_dimension_numbers<[1], [0], [0], [1], [0, 0, 1, 1], [], []>} : vector<2x64xbf16>, vector<64x64xbf16>, vector<2x64xf32> -> vector<2x64xf32>
      %205 = arith.addf %195, %204 : vector<2x64xf32>
      %c0_186 = arith.constant 0 : index
      %206 = arith.index_cast %198 : i32 to index
      %c1_187 = arith.constant 1 : index
      %c0_188 = arith.constant 0 : index
      %207 = vector.load %arg1[%c0_186, %206, %c1_187, %c0_188] : memref<1x8x4x64xbf16, #tpu.memory_space<vmem>>, vector<1x1x2x64xbf16>
      %208 = vector.shape_cast %207 : vector<1x1x2x64xbf16> to vector<2x64xbf16>
      %c9_189 = arith.constant 9 : index
      %c0_190 = arith.constant 0 : index
      %c0_191 = arith.constant 0 : index
      %209 = vector.load %arg3[%c9_189, %c0_190, %c0_191] : memref<16x64x64xbf16, #tpu.memory_space<vmem>>, vector<1x64x64xbf16>
      %210 = vector.shape_cast %209 : vector<1x64x64xbf16> to vector<64x64xbf16>
      %cst_192 = arith.constant dense<0.000000e+00> : vector<2x64xf32>
      %211 = tpu.matmul %208, %210, %cst_192 {dimension_numbers = #tpu.dot_dimension_numbers<[1], [0], [0], [1], [0, 0, 1, 1], [], []>} : vector<2x64xbf16>, vector<64x64xbf16>, vector<2x64xf32> -> vector<2x64xf32>
      %212 = arith.addf %205, %211 : vector<2x64xf32>
      %c0_193 = arith.constant 0 : index
      %213 = arith.index_cast %198 : i32 to index
      %c1_194 = arith.constant 1 : index
      %c0_195 = arith.constant 0 : index
      %214 = vector.load %arg2[%c0_193, %213, %c1_194, %c0_195] : memref<1x8x4x64xbf16, #tpu.memory_space<vmem>>, vector<1x1x2x64xbf16>
      %215 = vector.shape_cast %214 : vector<1x1x2x64xbf16> to vector<2x64xbf16>
      %c10_196 = arith.constant 10 : index
      %c0_197 = arith.constant 0 : index
      %c0_198 = arith.constant 0 : index
      %216 = vector.load %arg3[%c10_196, %c0_197, %c0_198] : memref<16x64x64xbf16, #tpu.memory_space<vmem>>, vector<1x64x64xbf16>
      %217 = vector.shape_cast %216 : vector<1x64x64xbf16> to vector<64x64xbf16>
      %cst_199 = arith.constant dense<0.000000e+00> : vector<2x64xf32>
      %218 = tpu.matmul %215, %217, %cst_199 {dimension_numbers = #tpu.dot_dimension_numbers<[1], [0], [0], [1], [0, 0, 1, 1], [], []>} : vector<2x64xbf16>, vector<64x64xbf16>, vector<2x64xf32> -> vector<2x64xf32>
      %219 = arith.addf %212, %218 : vector<2x64xf32>
      %c0_200 = arith.constant 0 : index
      %220 = arith.index_cast %198 : i32 to index
      %c2_201 = arith.constant 2 : index
      %c0_202 = arith.constant 0 : index
      %221 = vector.load %arg1[%c0_200, %220, %c2_201, %c0_202] : memref<1x8x4x64xbf16, #tpu.memory_space<vmem>>, vector<1x1x2x64xbf16>
      %222 = vector.shape_cast %221 : vector<1x1x2x64xbf16> to vector<2x64xbf16>
      %c11_203 = arith.constant 11 : index
      %c0_204 = arith.constant 0 : index
      %c0_205 = arith.constant 0 : index
      %223 = vector.load %arg3[%c11_203, %c0_204, %c0_205] : memref<16x64x64xbf16, #tpu.memory_space<vmem>>, vector<1x64x64xbf16>
      %224 = vector.shape_cast %223 : vector<1x64x64xbf16> to vector<64x64xbf16>
      %cst_206 = arith.constant dense<0.000000e+00> : vector<2x64xf32>
      %225 = tpu.matmul %222, %224, %cst_206 {dimension_numbers = #tpu.dot_dimension_numbers<[1], [0], [0], [1], [0, 0, 1, 1], [], []>} : vector<2x64xbf16>, vector<64x64xbf16>, vector<2x64xf32> -> vector<2x64xf32>
      %226 = arith.addf %219, %225 : vector<2x64xf32>
      %c2_i32_207 = arith.constant 2 : i32
      %227 = arith.muli %c2_i32_207, %3 : i32
      %c0_i32_208 = arith.constant 0 : i32
      %228 = arith.addi %227, %c0_i32_208 : i32
      %c3_i32_209 = arith.constant 3 : i32
      %229 = arith.addi %228, %c3_i32_209 : i32
      %c0_210 = arith.constant 0 : index
      %230 = arith.index_cast %229 : i32 to index
      %c0_211 = arith.constant 0 : index
      %c0_212 = arith.constant 0 : index
      %231 = vector.load %arg2[%c0_210, %230, %c0_211, %c0_212] : memref<1x8x4x64xbf16, #tpu.memory_space<vmem>>, vector<1x1x2x64xbf16>
      %232 = vector.shape_cast %231 : vector<1x1x2x64xbf16> to vector<2x64xbf16>
      %c12_213 = arith.constant 12 : index
      %c0_214 = arith.constant 0 : index
      %c0_215 = arith.constant 0 : index
      %233 = vector.load %arg3[%c12_213, %c0_214, %c0_215] : memref<16x64x64xbf16, #tpu.memory_space<vmem>>, vector<1x64x64xbf16>
      %234 = vector.shape_cast %233 : vector<1x64x64xbf16> to vector<64x64xbf16>
      %cst_216 = arith.constant dense<0.000000e+00> : vector<2x64xf32>
      %235 = tpu.matmul %232, %234, %cst_216 {dimension_numbers = #tpu.dot_dimension_numbers<[1], [0], [0], [1], [0, 0, 1, 1], [], []>} : vector<2x64xbf16>, vector<64x64xbf16>, vector<2x64xf32> -> vector<2x64xf32>
      %236 = arith.addf %226, %235 : vector<2x64xf32>
      %c0_217 = arith.constant 0 : index
      %237 = arith.index_cast %229 : i32 to index
      %c1_218 = arith.constant 1 : index
      %c0_219 = arith.constant 0 : index
      %238 = vector.load %arg1[%c0_217, %237, %c1_218, %c0_219] : memref<1x8x4x64xbf16, #tpu.memory_space<vmem>>, vector<1x1x2x64xbf16>
      %239 = vector.shape_cast %238 : vector<1x1x2x64xbf16> to vector<2x64xbf16>
      %c13_220 = arith.constant 13 : index
      %c0_221 = arith.constant 0 : index
      %c0_222 = arith.constant 0 : index
      %240 = vector.load %arg3[%c13_220, %c0_221, %c0_222] : memref<16x64x64xbf16, #tpu.memory_space<vmem>>, vector<1x64x64xbf16>
      %241 = vector.shape_cast %240 : vector<1x64x64xbf16> to vector<64x64xbf16>
      %cst_223 = arith.constant dense<0.000000e+00> : vector<2x64xf32>
      %242 = tpu.matmul %239, %241, %cst_223 {dimension_numbers = #tpu.dot_dimension_numbers<[1], [0], [0], [1], [0, 0, 1, 1], [], []>} : vector<2x64xbf16>, vector<64x64xbf16>, vector<2x64xf32> -> vector<2x64xf32>
      %243 = arith.addf %236, %242 : vector<2x64xf32>
      %c0_224 = arith.constant 0 : index
      %244 = arith.index_cast %229 : i32 to index
      %c1_225 = arith.constant 1 : index
      %c0_226 = arith.constant 0 : index
      %245 = vector.load %arg2[%c0_224, %244, %c1_225, %c0_226] : memref<1x8x4x64xbf16, #tpu.memory_space<vmem>>, vector<1x1x2x64xbf16>
      %246 = vector.shape_cast %245 : vector<1x1x2x64xbf16> to vector<2x64xbf16>
      %c14_227 = arith.constant 14 : index
      %c0_228 = arith.constant 0 : index
      %c0_229 = arith.constant 0 : index
      %247 = vector.load %arg3[%c14_227, %c0_228, %c0_229] : memref<16x64x64xbf16, #tpu.memory_space<vmem>>, vector<1x64x64xbf16>
      %248 = vector.shape_cast %247 : vector<1x64x64xbf16> to vector<64x64xbf16>
      %cst_230 = arith.constant dense<0.000000e+00> : vector<2x64xf32>
      %249 = tpu.matmul %246, %248, %cst_230 {dimension_numbers = #tpu.dot_dimension_numbers<[1], [0], [0], [1], [0, 0, 1, 1], [], []>} : vector<2x64xbf16>, vector<64x64xbf16>, vector<2x64xf32> -> vector<2x64xf32>
      %250 = arith.addf %243, %249 : vector<2x64xf32>
      %c0_231 = arith.constant 0 : index
      %251 = arith.index_cast %229 : i32 to index
      %c2_232 = arith.constant 2 : index
      %c0_233 = arith.constant 0 : index
      %252 = vector.load %arg1[%c0_231, %251, %c2_232, %c0_233] : memref<1x8x4x64xbf16, #tpu.memory_space<vmem>>, vector<1x1x2x64xbf16>
      %253 = vector.shape_cast %252 : vector<1x1x2x64xbf16> to vector<2x64xbf16>
      %c15_234 = arith.constant 15 : index
      %c0_235 = arith.constant 0 : index
      %c0_236 = arith.constant 0 : index
      %254 = vector.load %arg3[%c15_234, %c0_235, %c0_236] : memref<16x64x64xbf16, #tpu.memory_space<vmem>>, vector<1x64x64xbf16>
      %255 = vector.shape_cast %254 : vector<1x64x64xbf16> to vector<64x64xbf16>
      %cst_237 = arith.constant dense<0.000000e+00> : vector<2x64xf32>
      %256 = tpu.matmul %253, %255, %cst_237 {dimension_numbers = #tpu.dot_dimension_numbers<[1], [0], [0], [1], [0, 0, 1, 1], [], []>} : vector<2x64xbf16>, vector<64x64xbf16>, vector<2x64xf32> -> vector<2x64xf32>
      %257 = arith.addf %250, %256 : vector<2x64xf32>
      %258 = vector.broadcast %0 : vector<1x64xf32> to vector<2x64xf32>
      %259 = arith.addf %257, %258 : vector<2x64xf32>
      %cst_238 = arith.constant 0.000000e+00 : f32
      %260 = vector.broadcast %cst_238 : f32 to vector<2x64xf32>
      %261 = arith.maximumf %259, %260 : vector<2x64xf32>
      %262 = arith.maximumf %132, %261 : vector<2x64xf32>
      %cst_239 = arith.constant 0.000000e+00 : f32
      %263 = vector.broadcast %cst_239 : f32 to vector<2x64xf32>
      %c2_i32_240 = arith.constant 2 : i32
      %264 = arith.muli %c2_i32_240, %3 : i32
      %c1_i32_241 = arith.constant 1 : i32
      %265 = arith.addi %264, %c1_i32_241 : i32
      %c0_i32_242 = arith.constant 0 : i32
      %266 = arith.addi %265, %c0_i32_242 : i32
      %c0_243 = arith.constant 0 : index
      %267 = arith.index_cast %266 : i32 to index
      %c0_244 = arith.constant 0 : index
      %c0_245 = arith.constant 0 : index
      %268 = vector.load %arg1[%c0_243, %267, %c0_244, %c0_245] : memref<1x8x4x64xbf16, #tpu.memory_space<vmem>>, vector<1x1x2x64xbf16>
      %269 = vector.shape_cast %268 : vector<1x1x2x64xbf16> to vector<2x64xbf16>
      %c0_246 = arith.constant 0 : index
      %c0_247 = arith.constant 0 : index
      %c0_248 = arith.constant 0 : index
      %270 = vector.load %arg3[%c0_246, %c0_247, %c0_248] : memref<16x64x64xbf16, #tpu.memory_space<vmem>>, vector<1x64x64xbf16>
      %271 = vector.shape_cast %270 : vector<1x64x64xbf16> to vector<64x64xbf16>
      %cst_249 = arith.constant dense<0.000000e+00> : vector<2x64xf32>
      %272 = tpu.matmul %269, %271, %cst_249 {dimension_numbers = #tpu.dot_dimension_numbers<[1], [0], [0], [1], [0, 0, 1, 1], [], []>} : vector<2x64xbf16>, vector<64x64xbf16>, vector<2x64xf32> -> vector<2x64xf32>
      %273 = arith.addf %263, %272 : vector<2x64xf32>
      %c0_250 = arith.constant 0 : index
      %274 = arith.index_cast %266 : i32 to index
      %c0_251 = arith.constant 0 : index
      %c0_252 = arith.constant 0 : index
      %275 = vector.load %arg2[%c0_250, %274, %c0_251, %c0_252] : memref<1x8x4x64xbf16, #tpu.memory_space<vmem>>, vector<1x1x2x64xbf16>
      %276 = vector.shape_cast %275 : vector<1x1x2x64xbf16> to vector<2x64xbf16>
      %c1_253 = arith.constant 1 : index
      %c0_254 = arith.constant 0 : index
      %c0_255 = arith.constant 0 : index
      %277 = vector.load %arg3[%c1_253, %c0_254, %c0_255] : memref<16x64x64xbf16, #tpu.memory_space<vmem>>, vector<1x64x64xbf16>
      %278 = vector.shape_cast %277 : vector<1x64x64xbf16> to vector<64x64xbf16>
      %cst_256 = arith.constant dense<0.000000e+00> : vector<2x64xf32>
      %279 = tpu.matmul %276, %278, %cst_256 {dimension_numbers = #tpu.dot_dimension_numbers<[1], [0], [0], [1], [0, 0, 1, 1], [], []>} : vector<2x64xbf16>, vector<64x64xbf16>, vector<2x64xf32> -> vector<2x64xf32>
      %280 = arith.addf %273, %279 : vector<2x64xf32>
      %c0_257 = arith.constant 0 : index
      %281 = arith.index_cast %266 : i32 to index
      %c1_258 = arith.constant 1 : index
      %c0_259 = arith.constant 0 : index
      %282 = vector.load %arg1[%c0_257, %281, %c1_258, %c0_259] : memref<1x8x4x64xbf16, #tpu.memory_space<vmem>>, vector<1x1x2x64xbf16>
      %283 = vector.shape_cast %282 : vector<1x1x2x64xbf16> to vector<2x64xbf16>
      %c2_260 = arith.constant 2 : index
      %c0_261 = arith.constant 0 : index
      %c0_262 = arith.constant 0 : index
      %284 = vector.load %arg3[%c2_260, %c0_261, %c0_262] : memref<16x64x64xbf16, #tpu.memory_space<vmem>>, vector<1x64x64xbf16>
      %285 = vector.shape_cast %284 : vector<1x64x64xbf16> to vector<64x64xbf16>
      %cst_263 = arith.constant dense<0.000000e+00> : vector<2x64xf32>
      %286 = tpu.matmul %283, %285, %cst_263 {dimension_numbers = #tpu.dot_dimension_numbers<[1], [0], [0], [1], [0, 0, 1, 1], [], []>} : vector<2x64xbf16>, vector<64x64xbf16>, vector<2x64xf32> -> vector<2x64xf32>
      %287 = arith.addf %280, %286 : vector<2x64xf32>
      %c0_264 = arith.constant 0 : index
      %288 = arith.index_cast %266 : i32 to index
      %c1_265 = arith.constant 1 : index
      %c0_266 = arith.constant 0 : index
      %289 = vector.load %arg2[%c0_264, %288, %c1_265, %c0_266] : memref<1x8x4x64xbf16, #tpu.memory_space<vmem>>, vector<1x1x2x64xbf16>
      %290 = vector.shape_cast %289 : vector<1x1x2x64xbf16> to vector<2x64xbf16>
      %c3_267 = arith.constant 3 : index
      %c0_268 = arith.constant 0 : index
      %c0_269 = arith.constant 0 : index
      %291 = vector.load %arg3[%c3_267, %c0_268, %c0_269] : memref<16x64x64xbf16, #tpu.memory_space<vmem>>, vector<1x64x64xbf16>
      %292 = vector.shape_cast %291 : vector<1x64x64xbf16> to vector<64x64xbf16>
      %cst_270 = arith.constant dense<0.000000e+00> : vector<2x64xf32>
      %293 = tpu.matmul %290, %292, %cst_270 {dimension_numbers = #tpu.dot_dimension_numbers<[1], [0], [0], [1], [0, 0, 1, 1], [], []>} : vector<2x64xbf16>, vector<64x64xbf16>, vector<2x64xf32> -> vector<2x64xf32>
      %294 = arith.addf %287, %293 : vector<2x64xf32>
      %c2_i32_271 = arith.constant 2 : i32
      %295 = arith.muli %c2_i32_271, %3 : i32
      %c1_i32_272 = arith.constant 1 : i32
      %296 = arith.addi %295, %c1_i32_272 : i32
      %c1_i32_273 = arith.constant 1 : i32
      %297 = arith.addi %296, %c1_i32_273 : i32
      %c0_274 = arith.constant 0 : index
      %298 = arith.index_cast %297 : i32 to index
      %c0_275 = arith.constant 0 : index
      %c0_276 = arith.constant 0 : index
      %299 = vector.load %arg1[%c0_274, %298, %c0_275, %c0_276] : memref<1x8x4x64xbf16, #tpu.memory_space<vmem>>, vector<1x1x2x64xbf16>
      %300 = vector.shape_cast %299 : vector<1x1x2x64xbf16> to vector<2x64xbf16>
      %c4_277 = arith.constant 4 : index
      %c0_278 = arith.constant 0 : index
      %c0_279 = arith.constant 0 : index
      %301 = vector.load %arg3[%c4_277, %c0_278, %c0_279] : memref<16x64x64xbf16, #tpu.memory_space<vmem>>, vector<1x64x64xbf16>
      %302 = vector.shape_cast %301 : vector<1x64x64xbf16> to vector<64x64xbf16>
      %cst_280 = arith.constant dense<0.000000e+00> : vector<2x64xf32>
      %303 = tpu.matmul %300, %302, %cst_280 {dimension_numbers = #tpu.dot_dimension_numbers<[1], [0], [0], [1], [0, 0, 1, 1], [], []>} : vector<2x64xbf16>, vector<64x64xbf16>, vector<2x64xf32> -> vector<2x64xf32>
      %304 = arith.addf %294, %303 : vector<2x64xf32>
      %c0_281 = arith.constant 0 : index
      %305 = arith.index_cast %297 : i32 to index
      %c0_282 = arith.constant 0 : index
      %c0_283 = arith.constant 0 : index
      %306 = vector.load %arg2[%c0_281, %305, %c0_282, %c0_283] : memref<1x8x4x64xbf16, #tpu.memory_space<vmem>>, vector<1x1x2x64xbf16>
      %307 = vector.shape_cast %306 : vector<1x1x2x64xbf16> to vector<2x64xbf16>
      %c5_284 = arith.constant 5 : index
      %c0_285 = arith.constant 0 : index
      %c0_286 = arith.constant 0 : index
      %308 = vector.load %arg3[%c5_284, %c0_285, %c0_286] : memref<16x64x64xbf16, #tpu.memory_space<vmem>>, vector<1x64x64xbf16>
      %309 = vector.shape_cast %308 : vector<1x64x64xbf16> to vector<64x64xbf16>
      %cst_287 = arith.constant dense<0.000000e+00> : vector<2x64xf32>
      %310 = tpu.matmul %307, %309, %cst_287 {dimension_numbers = #tpu.dot_dimension_numbers<[1], [0], [0], [1], [0, 0, 1, 1], [], []>} : vector<2x64xbf16>, vector<64x64xbf16>, vector<2x64xf32> -> vector<2x64xf32>
      %311 = arith.addf %304, %310 : vector<2x64xf32>
      %c0_288 = arith.constant 0 : index
      %312 = arith.index_cast %297 : i32 to index
      %c1_289 = arith.constant 1 : index
      %c0_290 = arith.constant 0 : index
      %313 = vector.load %arg1[%c0_288, %312, %c1_289, %c0_290] : memref<1x8x4x64xbf16, #tpu.memory_space<vmem>>, vector<1x1x2x64xbf16>
      %314 = vector.shape_cast %313 : vector<1x1x2x64xbf16> to vector<2x64xbf16>
      %c6_291 = arith.constant 6 : index
      %c0_292 = arith.constant 0 : index
      %c0_293 = arith.constant 0 : index
      %315 = vector.load %arg3[%c6_291, %c0_292, %c0_293] : memref<16x64x64xbf16, #tpu.memory_space<vmem>>, vector<1x64x64xbf16>
      %316 = vector.shape_cast %315 : vector<1x64x64xbf16> to vector<64x64xbf16>
      %cst_294 = arith.constant dense<0.000000e+00> : vector<2x64xf32>
      %317 = tpu.matmul %314, %316, %cst_294 {dimension_numbers = #tpu.dot_dimension_numbers<[1], [0], [0], [1], [0, 0, 1, 1], [], []>} : vector<2x64xbf16>, vector<64x64xbf16>, vector<2x64xf32> -> vector<2x64xf32>
      %318 = arith.addf %311, %317 : vector<2x64xf32>
      %c0_295 = arith.constant 0 : index
      %319 = arith.index_cast %297 : i32 to index
      %c1_296 = arith.constant 1 : index
      %c0_297 = arith.constant 0 : index
      %320 = vector.load %arg2[%c0_295, %319, %c1_296, %c0_297] : memref<1x8x4x64xbf16, #tpu.memory_space<vmem>>, vector<1x1x2x64xbf16>
      %321 = vector.shape_cast %320 : vector<1x1x2x64xbf16> to vector<2x64xbf16>
      %c7_298 = arith.constant 7 : index
      %c0_299 = arith.constant 0 : index
      %c0_300 = arith.constant 0 : index
      %322 = vector.load %arg3[%c7_298, %c0_299, %c0_300] : memref<16x64x64xbf16, #tpu.memory_space<vmem>>, vector<1x64x64xbf16>
      %323 = vector.shape_cast %322 : vector<1x64x64xbf16> to vector<64x64xbf16>
      %cst_301 = arith.constant dense<0.000000e+00> : vector<2x64xf32>
      %324 = tpu.matmul %321, %323, %cst_301 {dimension_numbers = #tpu.dot_dimension_numbers<[1], [0], [0], [1], [0, 0, 1, 1], [], []>} : vector<2x64xbf16>, vector<64x64xbf16>, vector<2x64xf32> -> vector<2x64xf32>
      %325 = arith.addf %318, %324 : vector<2x64xf32>
      %c2_i32_302 = arith.constant 2 : i32
      %326 = arith.muli %c2_i32_302, %3 : i32
      %c1_i32_303 = arith.constant 1 : i32
      %327 = arith.addi %326, %c1_i32_303 : i32
      %c2_i32_304 = arith.constant 2 : i32
      %328 = arith.addi %327, %c2_i32_304 : i32
      %c0_305 = arith.constant 0 : index
      %329 = arith.index_cast %328 : i32 to index
      %c0_306 = arith.constant 0 : index
      %c0_307 = arith.constant 0 : index
      %330 = vector.load %arg1[%c0_305, %329, %c0_306, %c0_307] : memref<1x8x4x64xbf16, #tpu.memory_space<vmem>>, vector<1x1x2x64xbf16>
      %331 = vector.shape_cast %330 : vector<1x1x2x64xbf16> to vector<2x64xbf16>
      %c8_308 = arith.constant 8 : index
      %c0_309 = arith.constant 0 : index
      %c0_310 = arith.constant 0 : index
      %332 = vector.load %arg3[%c8_308, %c0_309, %c0_310] : memref<16x64x64xbf16, #tpu.memory_space<vmem>>, vector<1x64x64xbf16>
      %333 = vector.shape_cast %332 : vector<1x64x64xbf16> to vector<64x64xbf16>
      %cst_311 = arith.constant dense<0.000000e+00> : vector<2x64xf32>
      %334 = tpu.matmul %331, %333, %cst_311 {dimension_numbers = #tpu.dot_dimension_numbers<[1], [0], [0], [1], [0, 0, 1, 1], [], []>} : vector<2x64xbf16>, vector<64x64xbf16>, vector<2x64xf32> -> vector<2x64xf32>
      %335 = arith.addf %325, %334 : vector<2x64xf32>
      %c0_312 = arith.constant 0 : index
      %336 = arith.index_cast %328 : i32 to index
      %c0_313 = arith.constant 0 : index
      %c0_314 = arith.constant 0 : index
      %337 = vector.load %arg2[%c0_312, %336, %c0_313, %c0_314] : memref<1x8x4x64xbf16, #tpu.memory_space<vmem>>, vector<1x1x2x64xbf16>
      %338 = vector.shape_cast %337 : vector<1x1x2x64xbf16> to vector<2x64xbf16>
      %c9_315 = arith.constant 9 : index
      %c0_316 = arith.constant 0 : index
      %c0_317 = arith.constant 0 : index
      %339 = vector.load %arg3[%c9_315, %c0_316, %c0_317] : memref<16x64x64xbf16, #tpu.memory_space<vmem>>, vector<1x64x64xbf16>
      %340 = vector.shape_cast %339 : vector<1x64x64xbf16> to vector<64x64xbf16>
      %cst_318 = arith.constant dense<0.000000e+00> : vector<2x64xf32>
      %341 = tpu.matmul %338, %340, %cst_318 {dimension_numbers = #tpu.dot_dimension_numbers<[1], [0], [0], [1], [0, 0, 1, 1], [], []>} : vector<2x64xbf16>, vector<64x64xbf16>, vector<2x64xf32> -> vector<2x64xf32>
      %342 = arith.addf %335, %341 : vector<2x64xf32>
      %c0_319 = arith.constant 0 : index
      %343 = arith.index_cast %328 : i32 to index
      %c1_320 = arith.constant 1 : index
      %c0_321 = arith.constant 0 : index
      %344 = vector.load %arg1[%c0_319, %343, %c1_320, %c0_321] : memref<1x8x4x64xbf16, #tpu.memory_space<vmem>>, vector<1x1x2x64xbf16>
      %345 = vector.shape_cast %344 : vector<1x1x2x64xbf16> to vector<2x64xbf16>
      %c10_322 = arith.constant 10 : index
      %c0_323 = arith.constant 0 : index
      %c0_324 = arith.constant 0 : index
      %346 = vector.load %arg3[%c10_322, %c0_323, %c0_324] : memref<16x64x64xbf16, #tpu.memory_space<vmem>>, vector<1x64x64xbf16>
      %347 = vector.shape_cast %346 : vector<1x64x64xbf16> to vector<64x64xbf16>
      %cst_325 = arith.constant dense<0.000000e+00> : vector<2x64xf32>
      %348 = tpu.matmul %345, %347, %cst_325 {dimension_numbers = #tpu.dot_dimension_numbers<[1], [0], [0], [1], [0, 0, 1, 1], [], []>} : vector<2x64xbf16>, vector<64x64xbf16>, vector<2x64xf32> -> vector<2x64xf32>
      %349 = arith.addf %342, %348 : vector<2x64xf32>
      %c0_326 = arith.constant 0 : index
      %350 = arith.index_cast %328 : i32 to index
      %c1_327 = arith.constant 1 : index
      %c0_328 = arith.constant 0 : index
      %351 = vector.load %arg2[%c0_326, %350, %c1_327, %c0_328] : memref<1x8x4x64xbf16, #tpu.memory_space<vmem>>, vector<1x1x2x64xbf16>
      %352 = vector.shape_cast %351 : vector<1x1x2x64xbf16> to vector<2x64xbf16>
      %c11_329 = arith.constant 11 : index
      %c0_330 = arith.constant 0 : index
      %c0_331 = arith.constant 0 : index
      %353 = vector.load %arg3[%c11_329, %c0_330, %c0_331] : memref<16x64x64xbf16, #tpu.memory_space<vmem>>, vector<1x64x64xbf16>
      %354 = vector.shape_cast %353 : vector<1x64x64xbf16> to vector<64x64xbf16>
      %cst_332 = arith.constant dense<0.000000e+00> : vector<2x64xf32>
      %355 = tpu.matmul %352, %354, %cst_332 {dimension_numbers = #tpu.dot_dimension_numbers<[1], [0], [0], [1], [0, 0, 1, 1], [], []>} : vector<2x64xbf16>, vector<64x64xbf16>, vector<2x64xf32> -> vector<2x64xf32>
      %356 = arith.addf %349, %355 : vector<2x64xf32>
      %c2_i32_333 = arith.constant 2 : i32
      %357 = arith.muli %c2_i32_333, %3 : i32
      %c1_i32_334 = arith.constant 1 : i32
      %358 = arith.addi %357, %c1_i32_334 : i32
      %c3_i32_335 = arith.constant 3 : i32
      %359 = arith.addi %358, %c3_i32_335 : i32
      %c0_336 = arith.constant 0 : index
      %360 = arith.index_cast %359 : i32 to index
      %c0_337 = arith.constant 0 : index
      %c0_338 = arith.constant 0 : index
      %361 = vector.load %arg1[%c0_336, %360, %c0_337, %c0_338] : memref<1x8x4x64xbf16, #tpu.memory_space<vmem>>, vector<1x1x2x64xbf16>
      %362 = vector.shape_cast %361 : vector<1x1x2x64xbf16> to vector<2x64xbf16>
      %c12_339 = arith.constant 12 : index
      %c0_340 = arith.constant 0 : index
      %c0_341 = arith.constant 0 : index
      %363 = vector.load %arg3[%c12_339, %c0_340, %c0_341] : memref<16x64x64xbf16, #tpu.memory_space<vmem>>, vector<1x64x64xbf16>
      %364 = vector.shape_cast %363 : vector<1x64x64xbf16> to vector<64x64xbf16>
      %cst_342 = arith.constant dense<0.000000e+00> : vector<2x64xf32>
      %365 = tpu.matmul %362, %364, %cst_342 {dimension_numbers = #tpu.dot_dimension_numbers<[1], [0], [0], [1], [0, 0, 1, 1], [], []>} : vector<2x64xbf16>, vector<64x64xbf16>, vector<2x64xf32> -> vector<2x64xf32>
      %366 = arith.addf %356, %365 : vector<2x64xf32>
      %c0_343 = arith.constant 0 : index
      %367 = arith.index_cast %359 : i32 to index
      %c0_344 = arith.constant 0 : index
      %c0_345 = arith.constant 0 : index
      %368 = vector.load %arg2[%c0_343, %367, %c0_344, %c0_345] : memref<1x8x4x64xbf16, #tpu.memory_space<vmem>>, vector<1x1x2x64xbf16>
      %369 = vector.shape_cast %368 : vector<1x1x2x64xbf16> to vector<2x64xbf16>
      %c13_346 = arith.constant 13 : index
      %c0_347 = arith.constant 0 : index
      %c0_348 = arith.constant 0 : index
      %370 = vector.load %arg3[%c13_346, %c0_347, %c0_348] : memref<16x64x64xbf16, #tpu.memory_space<vmem>>, vector<1x64x64xbf16>
      %371 = vector.shape_cast %370 : vector<1x64x64xbf16> to vector<64x64xbf16>
      %cst_349 = arith.constant dense<0.000000e+00> : vector<2x64xf32>
      %372 = tpu.matmul %369, %371, %cst_349 {dimension_numbers = #tpu.dot_dimension_numbers<[1], [0], [0], [1], [0, 0, 1, 1], [], []>} : vector<2x64xbf16>, vector<64x64xbf16>, vector<2x64xf32> -> vector<2x64xf32>
      %373 = arith.addf %366, %372 : vector<2x64xf32>
      %c0_350 = arith.constant 0 : index
      %374 = arith.index_cast %359 : i32 to index
      %c1_351 = arith.constant 1 : index
      %c0_352 = arith.constant 0 : index
      %375 = vector.load %arg1[%c0_350, %374, %c1_351, %c0_352] : memref<1x8x4x64xbf16, #tpu.memory_space<vmem>>, vector<1x1x2x64xbf16>
      %376 = vector.shape_cast %375 : vector<1x1x2x64xbf16> to vector<2x64xbf16>
      %c14_353 = arith.constant 14 : index
      %c0_354 = arith.constant 0 : index
      %c0_355 = arith.constant 0 : index
      %377 = vector.load %arg3[%c14_353, %c0_354, %c0_355] : memref<16x64x64xbf16, #tpu.memory_space<vmem>>, vector<1x64x64xbf16>
      %378 = vector.shape_cast %377 : vector<1x64x64xbf16> to vector<64x64xbf16>
      %cst_356 = arith.constant dense<0.000000e+00> : vector<2x64xf32>
      %379 = tpu.matmul %376, %378, %cst_356 {dimension_numbers = #tpu.dot_dimension_numbers<[1], [0], [0], [1], [0, 0, 1, 1], [], []>} : vector<2x64xbf16>, vector<64x64xbf16>, vector<2x64xf32> -> vector<2x64xf32>
      %380 = arith.addf %373, %379 : vector<2x64xf32>
      %c0_357 = arith.constant 0 : index
      %381 = arith.index_cast %359 : i32 to index
      %c1_358 = arith.constant 1 : index
      %c0_359 = arith.constant 0 : index
      %382 = vector.load %arg2[%c0_357, %381, %c1_358, %c0_359] : memref<1x8x4x64xbf16, #tpu.memory_space<vmem>>, vector<1x1x2x64xbf16>
      %383 = vector.shape_cast %382 : vector<1x1x2x64xbf16> to vector<2x64xbf16>
      %c15_360 = arith.constant 15 : index
      %c0_361 = arith.constant 0 : index
      %c0_362 = arith.constant 0 : index
      %384 = vector.load %arg3[%c15_360, %c0_361, %c0_362] : memref<16x64x64xbf16, #tpu.memory_space<vmem>>, vector<1x64x64xbf16>
      %385 = vector.shape_cast %384 : vector<1x64x64xbf16> to vector<64x64xbf16>
      %cst_363 = arith.constant dense<0.000000e+00> : vector<2x64xf32>
      %386 = tpu.matmul %383, %385, %cst_363 {dimension_numbers = #tpu.dot_dimension_numbers<[1], [0], [0], [1], [0, 0, 1, 1], [], []>} : vector<2x64xbf16>, vector<64x64xbf16>, vector<2x64xf32> -> vector<2x64xf32>
      %387 = arith.addf %380, %386 : vector<2x64xf32>
      %388 = vector.broadcast %0 : vector<1x64xf32> to vector<2x64xf32>
      %389 = arith.addf %387, %388 : vector<2x64xf32>
      %cst_364 = arith.constant 0.000000e+00 : f32
      %390 = vector.broadcast %cst_364 : f32 to vector<2x64xf32>
      %391 = arith.maximumf %389, %390 : vector<2x64xf32>
      %392 = arith.maximumf %262, %391 : vector<2x64xf32>
      %cst_365 = arith.constant 0.000000e+00 : f32
      %393 = vector.broadcast %cst_365 : f32 to vector<2x64xf32>
      %c2_i32_366 = arith.constant 2 : i32
      %394 = arith.muli %c2_i32_366, %3 : i32
      %c1_i32_367 = arith.constant 1 : i32
      %395 = arith.addi %394, %c1_i32_367 : i32
      %c0_i32_368 = arith.constant 0 : i32
      %396 = arith.addi %395, %c0_i32_368 : i32
      %c0_369 = arith.constant 0 : index
      %397 = arith.index_cast %396 : i32 to index
      %c0_370 = arith.constant 0 : index
      %c0_371 = arith.constant 0 : index
      %398 = vector.load %arg2[%c0_369, %397, %c0_370, %c0_371] : memref<1x8x4x64xbf16, #tpu.memory_space<vmem>>, vector<1x1x2x64xbf16>
      %399 = vector.shape_cast %398 : vector<1x1x2x64xbf16> to vector<2x64xbf16>
      %c0_372 = arith.constant 0 : index
      %c0_373 = arith.constant 0 : index
      %c0_374 = arith.constant 0 : index
      %400 = vector.load %arg3[%c0_372, %c0_373, %c0_374] : memref<16x64x64xbf16, #tpu.memory_space<vmem>>, vector<1x64x64xbf16>
      %401 = vector.shape_cast %400 : vector<1x64x64xbf16> to vector<64x64xbf16>
      %cst_375 = arith.constant dense<0.000000e+00> : vector<2x64xf32>
      %402 = tpu.matmul %399, %401, %cst_375 {dimension_numbers = #tpu.dot_dimension_numbers<[1], [0], [0], [1], [0, 0, 1, 1], [], []>} : vector<2x64xbf16>, vector<64x64xbf16>, vector<2x64xf32> -> vector<2x64xf32>
      %403 = arith.addf %393, %402 : vector<2x64xf32>
      %c0_376 = arith.constant 0 : index
      %404 = arith.index_cast %396 : i32 to index
      %c1_377 = arith.constant 1 : index
      %c0_378 = arith.constant 0 : index
      %405 = vector.load %arg1[%c0_376, %404, %c1_377, %c0_378] : memref<1x8x4x64xbf16, #tpu.memory_space<vmem>>, vector<1x1x2x64xbf16>
      %406 = vector.shape_cast %405 : vector<1x1x2x64xbf16> to vector<2x64xbf16>
      %c1_379 = arith.constant 1 : index
      %c0_380 = arith.constant 0 : index
      %c0_381 = arith.constant 0 : index
      %407 = vector.load %arg3[%c1_379, %c0_380, %c0_381] : memref<16x64x64xbf16, #tpu.memory_space<vmem>>, vector<1x64x64xbf16>
      %408 = vector.shape_cast %407 : vector<1x64x64xbf16> to vector<64x64xbf16>
      %cst_382 = arith.constant dense<0.000000e+00> : vector<2x64xf32>
      %409 = tpu.matmul %406, %408, %cst_382 {dimension_numbers = #tpu.dot_dimension_numbers<[1], [0], [0], [1], [0, 0, 1, 1], [], []>} : vector<2x64xbf16>, vector<64x64xbf16>, vector<2x64xf32> -> vector<2x64xf32>
      %410 = arith.addf %403, %409 : vector<2x64xf32>
      %c0_383 = arith.constant 0 : index
      %411 = arith.index_cast %396 : i32 to index
      %c1_384 = arith.constant 1 : index
      %c0_385 = arith.constant 0 : index
      %412 = vector.load %arg2[%c0_383, %411, %c1_384, %c0_385] : memref<1x8x4x64xbf16, #tpu.memory_space<vmem>>, vector<1x1x2x64xbf16>
      %413 = vector.shape_cast %412 : vector<1x1x2x64xbf16> to vector<2x64xbf16>
      %c2_386 = arith.constant 2 : index
      %c0_387 = arith.constant 0 : index
      %c0_388 = arith.constant 0 : index
      %414 = vector.load %arg3[%c2_386, %c0_387, %c0_388] : memref<16x64x64xbf16, #tpu.memory_space<vmem>>, vector<1x64x64xbf16>
      %415 = vector.shape_cast %414 : vector<1x64x64xbf16> to vector<64x64xbf16>
      %cst_389 = arith.constant dense<0.000000e+00> : vector<2x64xf32>
      %416 = tpu.matmul %413, %415, %cst_389 {dimension_numbers = #tpu.dot_dimension_numbers<[1], [0], [0], [1], [0, 0, 1, 1], [], []>} : vector<2x64xbf16>, vector<64x64xbf16>, vector<2x64xf32> -> vector<2x64xf32>
      %417 = arith.addf %410, %416 : vector<2x64xf32>
      %c0_390 = arith.constant 0 : index
      %418 = arith.index_cast %396 : i32 to index
      %c2_391 = arith.constant 2 : index
      %c0_392 = arith.constant 0 : index
      %419 = vector.load %arg1[%c0_390, %418, %c2_391, %c0_392] : memref<1x8x4x64xbf16, #tpu.memory_space<vmem>>, vector<1x1x2x64xbf16>
      %420 = vector.shape_cast %419 : vector<1x1x2x64xbf16> to vector<2x64xbf16>
      %c3_393 = arith.constant 3 : index
      %c0_394 = arith.constant 0 : index
      %c0_395 = arith.constant 0 : index
      %421 = vector.load %arg3[%c3_393, %c0_394, %c0_395] : memref<16x64x64xbf16, #tpu.memory_space<vmem>>, vector<1x64x64xbf16>
      %422 = vector.shape_cast %421 : vector<1x64x64xbf16> to vector<64x64xbf16>
      %cst_396 = arith.constant dense<0.000000e+00> : vector<2x64xf32>
      %423 = tpu.matmul %420, %422, %cst_396 {dimension_numbers = #tpu.dot_dimension_numbers<[1], [0], [0], [1], [0, 0, 1, 1], [], []>} : vector<2x64xbf16>, vector<64x64xbf16>, vector<2x64xf32> -> vector<2x64xf32>
      %424 = arith.addf %417, %423 : vector<2x64xf32>
      %c2_i32_397 = arith.constant 2 : i32
      %425 = arith.muli %c2_i32_397, %3 : i32
      %c1_i32_398 = arith.constant 1 : i32
      %426 = arith.addi %425, %c1_i32_398 : i32
      %c1_i32_399 = arith.constant 1 : i32
      %427 = arith.addi %426, %c1_i32_399 : i32
      %c0_400 = arith.constant 0 : index
      %428 = arith.index_cast %427 : i32 to index
      %c0_401 = arith.constant 0 : index
      %c0_402 = arith.constant 0 : index
      %429 = vector.load %arg2[%c0_400, %428, %c0_401, %c0_402] : memref<1x8x4x64xbf16, #tpu.memory_space<vmem>>, vector<1x1x2x64xbf16>
      %430 = vector.shape_cast %429 : vector<1x1x2x64xbf16> to vector<2x64xbf16>
      %c4_403 = arith.constant 4 : index
      %c0_404 = arith.constant 0 : index
      %c0_405 = arith.constant 0 : index
      %431 = vector.load %arg3[%c4_403, %c0_404, %c0_405] : memref<16x64x64xbf16, #tpu.memory_space<vmem>>, vector<1x64x64xbf16>
      %432 = vector.shape_cast %431 : vector<1x64x64xbf16> to vector<64x64xbf16>
      %cst_406 = arith.constant dense<0.000000e+00> : vector<2x64xf32>
      %433 = tpu.matmul %430, %432, %cst_406 {dimension_numbers = #tpu.dot_dimension_numbers<[1], [0], [0], [1], [0, 0, 1, 1], [], []>} : vector<2x64xbf16>, vector<64x64xbf16>, vector<2x64xf32> -> vector<2x64xf32>
      %434 = arith.addf %424, %433 : vector<2x64xf32>
      %c0_407 = arith.constant 0 : index
      %435 = arith.index_cast %427 : i32 to index
      %c1_408 = arith.constant 1 : index
      %c0_409 = arith.constant 0 : index
      %436 = vector.load %arg1[%c0_407, %435, %c1_408, %c0_409] : memref<1x8x4x64xbf16, #tpu.memory_space<vmem>>, vector<1x1x2x64xbf16>
      %437 = vector.shape_cast %436 : vector<1x1x2x64xbf16> to vector<2x64xbf16>
      %c5_410 = arith.constant 5 : index
      %c0_411 = arith.constant 0 : index
      %c0_412 = arith.constant 0 : index
      %438 = vector.load %arg3[%c5_410, %c0_411, %c0_412] : memref<16x64x64xbf16, #tpu.memory_space<vmem>>, vector<1x64x64xbf16>
      %439 = vector.shape_cast %438 : vector<1x64x64xbf16> to vector<64x64xbf16>
      %cst_413 = arith.constant dense<0.000000e+00> : vector<2x64xf32>
      %440 = tpu.matmul %437, %439, %cst_413 {dimension_numbers = #tpu.dot_dimension_numbers<[1], [0], [0], [1], [0, 0, 1, 1], [], []>} : vector<2x64xbf16>, vector<64x64xbf16>, vector<2x64xf32> -> vector<2x64xf32>
      %441 = arith.addf %434, %440 : vector<2x64xf32>
      %c0_414 = arith.constant 0 : index
      %442 = arith.index_cast %427 : i32 to index
      %c1_415 = arith.constant 1 : index
      %c0_416 = arith.constant 0 : index
      %443 = vector.load %arg2[%c0_414, %442, %c1_415, %c0_416] : memref<1x8x4x64xbf16, #tpu.memory_space<vmem>>, vector<1x1x2x64xbf16>
      %444 = vector.shape_cast %443 : vector<1x1x2x64xbf16> to vector<2x64xbf16>
      %c6_417 = arith.constant 6 : index
      %c0_418 = arith.constant 0 : index
      %c0_419 = arith.constant 0 : index
      %445 = vector.load %arg3[%c6_417, %c0_418, %c0_419] : memref<16x64x64xbf16, #tpu.memory_space<vmem>>, vector<1x64x64xbf16>
      %446 = vector.shape_cast %445 : vector<1x64x64xbf16> to vector<64x64xbf16>
      %cst_420 = arith.constant dense<0.000000e+00> : vector<2x64xf32>
      %447 = tpu.matmul %444, %446, %cst_420 {dimension_numbers = #tpu.dot_dimension_numbers<[1], [0], [0], [1], [0, 0, 1, 1], [], []>} : vector<2x64xbf16>, vector<64x64xbf16>, vector<2x64xf32> -> vector<2x64xf32>
      %448 = arith.addf %441, %447 : vector<2x64xf32>
      %c0_421 = arith.constant 0 : index
      %449 = arith.index_cast %427 : i32 to index
      %c2_422 = arith.constant 2 : index
      %c0_423 = arith.constant 0 : index
      %450 = vector.load %arg1[%c0_421, %449, %c2_422, %c0_423] : memref<1x8x4x64xbf16, #tpu.memory_space<vmem>>, vector<1x1x2x64xbf16>
      %451 = vector.shape_cast %450 : vector<1x1x2x64xbf16> to vector<2x64xbf16>
      %c7_424 = arith.constant 7 : index
      %c0_425 = arith.constant 0 : index
      %c0_426 = arith.constant 0 : index
      %452 = vector.load %arg3[%c7_424, %c0_425, %c0_426] : memref<16x64x64xbf16, #tpu.memory_space<vmem>>, vector<1x64x64xbf16>
      %453 = vector.shape_cast %452 : vector<1x64x64xbf16> to vector<64x64xbf16>
      %cst_427 = arith.constant dense<0.000000e+00> : vector<2x64xf32>
      %454 = tpu.matmul %451, %453, %cst_427 {dimension_numbers = #tpu.dot_dimension_numbers<[1], [0], [0], [1], [0, 0, 1, 1], [], []>} : vector<2x64xbf16>, vector<64x64xbf16>, vector<2x64xf32> -> vector<2x64xf32>
      %455 = arith.addf %448, %454 : vector<2x64xf32>
      %c2_i32_428 = arith.constant 2 : i32
      %456 = arith.muli %c2_i32_428, %3 : i32
      %c1_i32_429 = arith.constant 1 : i32
      %457 = arith.addi %456, %c1_i32_429 : i32
      %c2_i32_430 = arith.constant 2 : i32
      %458 = arith.addi %457, %c2_i32_430 : i32
      %c0_431 = arith.constant 0 : index
      %459 = arith.index_cast %458 : i32 to index
      %c0_432 = arith.constant 0 : index
      %c0_433 = arith.constant 0 : index
      %460 = vector.load %arg2[%c0_431, %459, %c0_432, %c0_433] : memref<1x8x4x64xbf16, #tpu.memory_space<vmem>>, vector<1x1x2x64xbf16>
      %461 = vector.shape_cast %460 : vector<1x1x2x64xbf16> to vector<2x64xbf16>
      %c8_434 = arith.constant 8 : index
      %c0_435 = arith.constant 0 : index
      %c0_436 = arith.constant 0 : index
      %462 = vector.load %arg3[%c8_434, %c0_435, %c0_436] : memref<16x64x64xbf16, #tpu.memory_space<vmem>>, vector<1x64x64xbf16>
      %463 = vector.shape_cast %462 : vector<1x64x64xbf16> to vector<64x64xbf16>
      %cst_437 = arith.constant dense<0.000000e+00> : vector<2x64xf32>
      %464 = tpu.matmul %461, %463, %cst_437 {dimension_numbers = #tpu.dot_dimension_numbers<[1], [0], [0], [1], [0, 0, 1, 1], [], []>} : vector<2x64xbf16>, vector<64x64xbf16>, vector<2x64xf32> -> vector<2x64xf32>
      %465 = arith.addf %455, %464 : vector<2x64xf32>
      %c0_438 = arith.constant 0 : index
      %466 = arith.index_cast %458 : i32 to index
      %c1_439 = arith.constant 1 : index
      %c0_440 = arith.constant 0 : index
      %467 = vector.load %arg1[%c0_438, %466, %c1_439, %c0_440] : memref<1x8x4x64xbf16, #tpu.memory_space<vmem>>, vector<1x1x2x64xbf16>
      %468 = vector.shape_cast %467 : vector<1x1x2x64xbf16> to vector<2x64xbf16>
      %c9_441 = arith.constant 9 : index
      %c0_442 = arith.constant 0 : index
      %c0_443 = arith.constant 0 : index
      %469 = vector.load %arg3[%c9_441, %c0_442, %c0_443] : memref<16x64x64xbf16, #tpu.memory_space<vmem>>, vector<1x64x64xbf16>
      %470 = vector.shape_cast %469 : vector<1x64x64xbf16> to vector<64x64xbf16>
      %cst_444 = arith.constant dense<0.000000e+00> : vector<2x64xf32>
      %471 = tpu.matmul %468, %470, %cst_444 {dimension_numbers = #tpu.dot_dimension_numbers<[1], [0], [0], [1], [0, 0, 1, 1], [], []>} : vector<2x64xbf16>, vector<64x64xbf16>, vector<2x64xf32> -> vector<2x64xf32>
      %472 = arith.addf %465, %471 : vector<2x64xf32>
      %c0_445 = arith.constant 0 : index
      %473 = arith.index_cast %458 : i32 to index
      %c1_446 = arith.constant 1 : index
      %c0_447 = arith.constant 0 : index
      %474 = vector.load %arg2[%c0_445, %473, %c1_446, %c0_447] : memref<1x8x4x64xbf16, #tpu.memory_space<vmem>>, vector<1x1x2x64xbf16>
      %475 = vector.shape_cast %474 : vector<1x1x2x64xbf16> to vector<2x64xbf16>
      %c10_448 = arith.constant 10 : index
      %c0_449 = arith.constant 0 : index
      %c0_450 = arith.constant 0 : index
      %476 = vector.load %arg3[%c10_448, %c0_449, %c0_450] : memref<16x64x64xbf16, #tpu.memory_space<vmem>>, vector<1x64x64xbf16>
      %477 = vector.shape_cast %476 : vector<1x64x64xbf16> to vector<64x64xbf16>
      %cst_451 = arith.constant dense<0.000000e+00> : vector<2x64xf32>
      %478 = tpu.matmul %475, %477, %cst_451 {dimension_numbers = #tpu.dot_dimension_numbers<[1], [0], [0], [1], [0, 0, 1, 1], [], []>} : vector<2x64xbf16>, vector<64x64xbf16>, vector<2x64xf32> -> vector<2x64xf32>
      %479 = arith.addf %472, %478 : vector<2x64xf32>
      %c0_452 = arith.constant 0 : index
      %480 = arith.index_cast %458 : i32 to index
      %c2_453 = arith.constant 2 : index
      %c0_454 = arith.constant 0 : index
      %481 = vector.load %arg1[%c0_452, %480, %c2_453, %c0_454] : memref<1x8x4x64xbf16, #tpu.memory_space<vmem>>, vector<1x1x2x64xbf16>
      %482 = vector.shape_cast %481 : vector<1x1x2x64xbf16> to vector<2x64xbf16>
      %c11_455 = arith.constant 11 : index
      %c0_456 = arith.constant 0 : index
      %c0_457 = arith.constant 0 : index
      %483 = vector.load %arg3[%c11_455, %c0_456, %c0_457] : memref<16x64x64xbf16, #tpu.memory_space<vmem>>, vector<1x64x64xbf16>
      %484 = vector.shape_cast %483 : vector<1x64x64xbf16> to vector<64x64xbf16>
      %cst_458 = arith.constant dense<0.000000e+00> : vector<2x64xf32>
      %485 = tpu.matmul %482, %484, %cst_458 {dimension_numbers = #tpu.dot_dimension_numbers<[1], [0], [0], [1], [0, 0, 1, 1], [], []>} : vector<2x64xbf16>, vector<64x64xbf16>, vector<2x64xf32> -> vector<2x64xf32>
      %486 = arith.addf %479, %485 : vector<2x64xf32>
      %c2_i32_459 = arith.constant 2 : i32
      %487 = arith.muli %c2_i32_459, %3 : i32
      %c1_i32_460 = arith.constant 1 : i32
      %488 = arith.addi %487, %c1_i32_460 : i32
      %c3_i32_461 = arith.constant 3 : i32
      %489 = arith.addi %488, %c3_i32_461 : i32
      %c0_462 = arith.constant 0 : index
      %490 = arith.index_cast %489 : i32 to index
      %c0_463 = arith.constant 0 : index
      %c0_464 = arith.constant 0 : index
      %491 = vector.load %arg2[%c0_462, %490, %c0_463, %c0_464] : memref<1x8x4x64xbf16, #tpu.memory_space<vmem>>, vector<1x1x2x64xbf16>
      %492 = vector.shape_cast %491 : vector<1x1x2x64xbf16> to vector<2x64xbf16>
      %c12_465 = arith.constant 12 : index
      %c0_466 = arith.constant 0 : index
      %c0_467 = arith.constant 0 : index
      %493 = vector.load %arg3[%c12_465, %c0_466, %c0_467] : memref<16x64x64xbf16, #tpu.memory_space<vmem>>, vector<1x64x64xbf16>
      %494 = vector.shape_cast %493 : vector<1x64x64xbf16> to vector<64x64xbf16>
      %cst_468 = arith.constant dense<0.000000e+00> : vector<2x64xf32>
      %495 = tpu.matmul %492, %494, %cst_468 {dimension_numbers = #tpu.dot_dimension_numbers<[1], [0], [0], [1], [0, 0, 1, 1], [], []>} : vector<2x64xbf16>, vector<64x64xbf16>, vector<2x64xf32> -> vector<2x64xf32>
      %496 = arith.addf %486, %495 : vector<2x64xf32>
      %c0_469 = arith.constant 0 : index
      %497 = arith.index_cast %489 : i32 to index
      %c1_470 = arith.constant 1 : index
      %c0_471 = arith.constant 0 : index
      %498 = vector.load %arg1[%c0_469, %497, %c1_470, %c0_471] : memref<1x8x4x64xbf16, #tpu.memory_space<vmem>>, vector<1x1x2x64xbf16>
      %499 = vector.shape_cast %498 : vector<1x1x2x64xbf16> to vector<2x64xbf16>
      %c13_472 = arith.constant 13 : index
      %c0_473 = arith.constant 0 : index
      %c0_474 = arith.constant 0 : index
      %500 = vector.load %arg3[%c13_472, %c0_473, %c0_474] : memref<16x64x64xbf16, #tpu.memory_space<vmem>>, vector<1x64x64xbf16>
      %501 = vector.shape_cast %500 : vector<1x64x64xbf16> to vector<64x64xbf16>
      %cst_475 = arith.constant dense<0.000000e+00> : vector<2x64xf32>
      %502 = tpu.matmul %499, %501, %cst_475 {dimension_numbers = #tpu.dot_dimension_numbers<[1], [0], [0], [1], [0, 0, 1, 1], [], []>} : vector<2x64xbf16>, vector<64x64xbf16>, vector<2x64xf32> -> vector<2x64xf32>
      %503 = arith.addf %496, %502 : vector<2x64xf32>
      %c0_476 = arith.constant 0 : index
      %504 = arith.index_cast %489 : i32 to index
      %c1_477 = arith.constant 1 : index
      %c0_478 = arith.constant 0 : index
      %505 = vector.load %arg2[%c0_476, %504, %c1_477, %c0_478] : memref<1x8x4x64xbf16, #tpu.memory_space<vmem>>, vector<1x1x2x64xbf16>
      %506 = vector.shape_cast %505 : vector<1x1x2x64xbf16> to vector<2x64xbf16>
      %c14_479 = arith.constant 14 : index
      %c0_480 = arith.constant 0 : index
      %c0_481 = arith.constant 0 : index
      %507 = vector.load %arg3[%c14_479, %c0_480, %c0_481] : memref<16x64x64xbf16, #tpu.memory_space<vmem>>, vector<1x64x64xbf16>
      %508 = vector.shape_cast %507 : vector<1x64x64xbf16> to vector<64x64xbf16>
      %cst_482 = arith.constant dense<0.000000e+00> : vector<2x64xf32>
      %509 = tpu.matmul %506, %508, %cst_482 {dimension_numbers = #tpu.dot_dimension_numbers<[1], [0], [0], [1], [0, 0, 1, 1], [], []>} : vector<2x64xbf16>, vector<64x64xbf16>, vector<2x64xf32> -> vector<2x64xf32>
      %510 = arith.addf %503, %509 : vector<2x64xf32>
      %c0_483 = arith.constant 0 : index
      %511 = arith.index_cast %489 : i32 to index
      %c2_484 = arith.constant 2 : index
      %c0_485 = arith.constant 0 : index
      %512 = vector.load %arg1[%c0_483, %511, %c2_484, %c0_485] : memref<1x8x4x64xbf16, #tpu.memory_space<vmem>>, vector<1x1x2x64xbf16>
      %513 = vector.shape_cast %512 : vector<1x1x2x64xbf16> to vector<2x64xbf16>
      %c15_486 = arith.constant 15 : index
      %c0_487 = arith.constant 0 : index
      %c0_488 = arith.constant 0 : index
      %514 = vector.load %arg3[%c15_486, %c0_487, %c0_488] : memref<16x64x64xbf16, #tpu.memory_space<vmem>>, vector<1x64x64xbf16>
      %515 = vector.shape_cast %514 : vector<1x64x64xbf16> to vector<64x64xbf16>
      %cst_489 = arith.constant dense<0.000000e+00> : vector<2x64xf32>
      %516 = tpu.matmul %513, %515, %cst_489 {dimension_numbers = #tpu.dot_dimension_numbers<[1], [0], [0], [1], [0, 0, 1, 1], [], []>} : vector<2x64xbf16>, vector<64x64xbf16>, vector<2x64xf32> -> vector<2x64xf32>
      %517 = arith.addf %510, %516 : vector<2x64xf32>
      %518 = vector.broadcast %0 : vector<1x64xf32> to vector<2x64xf32>
      %519 = arith.addf %517, %518 : vector<2x64xf32>
      %cst_490 = arith.constant 0.000000e+00 : f32
      %520 = vector.broadcast %cst_490 : f32 to vector<2x64xf32>
      %521 = arith.maximumf %519, %520 : vector<2x64xf32>
      %522 = arith.maximumf %392, %521 : vector<2x64xf32>
      %523 = arith.truncf %522 : vector<2x64xf32> to vector<2x64xbf16>
      %c0_491 = arith.constant 0 : index
      %524 = arith.index_cast %3 : i32 to index
      %c0_492 = arith.constant 0 : index
      %c0_493 = arith.constant 0 : index
      %525 = vector.load %arg5[%c0_491, %524, %c0_492, %c0_493] : memref<1x2x2x64xbf16, #tpu.memory_space<vmem>>, vector<1x1x2x64xbf16>
      %526 = vector.shape_cast %525 : vector<1x1x2x64xbf16> to vector<2x64xbf16>
      %527 = vector.shape_cast %523 : vector<2x64xbf16> to vector<1x1x2x64xbf16>
      tpu.vector_store %arg5[%c0_491, %524, %c0_492, %c0_493], %527 {strides = array<i32>} : memref<1x2x2x64xbf16, #tpu.memory_space<vmem>>, vector<1x1x2x64xbf16>,
    }
    %c2_i32_1 = arith.constant 2 : i32
    return
  }
  func.func @transform_0(%arg0: i32) -> (i32, i32, i32, i32) {
    %c0_i32 = arith.constant 0 : i32
    %c0_i32_0 = arith.constant 0 : i32
    %c0_i32_1 = arith.constant 0 : i32
    %c0_i32_2 = arith.constant 0 : i32
    return %arg0, %c0_i32, %c0_i32_0, %c0_i32_1 : i32, i32, i32, i32
  }
  func.func @transform_1(%arg0: i32) -> (i32, i32, i32, i32) {
    %c0_i32 = arith.constant 0 : i32
    %c0_i32_0 = arith.constant 0 : i32
    %c0_i32_1 = arith.constant 0 : i32
    %c0_i32_2 = arith.constant 0 : i32
    return %arg0, %c0_i32, %c0_i32_0, %c0_i32_1 : i32, i32, i32, i32
  }
  func.func @transform_2(%arg0: i32) -> (i32, i32, i32) {
    %c0_i32 = arith.constant 0 : i32
    %c0_i32_0 = arith.constant 0 : i32
    %c0_i32_1 = arith.constant 0 : i32
    %c0_i32_2 = arith.constant 0 : i32
    return %c0_i32, %c0_i32_0, %c0_i32_1 : i32, i32, i32
  }
  func.func @transform_3(%arg0: i32) -> (i32, i32) {
    %c0_i32 = arith.constant 0 : i32
    %c0_i32_0 = arith.constant 0 : i32
    %c0_i32_1 = arith.constant 0 : i32
    return %c0_i32, %c0_i32_0 : i32, i32
  }
  func.func @transform_4(%arg0: i32) -> (i32, i32, i32, i32) {
    %c0_i32 = arith.constant 0 : i32
    %c0_i32_0 = arith.constant 0 : i32
    %c0_i32_1 = arith.constant 0 : i32
    %c0_i32_2 = arith.constant 0 : i32
    return %arg0, %c0_i32, %c0_i32_0, %c0_i32_1 : i32, i32, i32, i32
  }
}

</mosaic_0001>

<llo_original>
// kernel: encoder_forward.4
$region0: #{encoder_forward.4}
  #allocation0 [shape = 'u32[]', space=smem, size = 0x4, offset = 0x4, fixed_abs, tag = 'smem constant byte address 0x4 - core index']
  #allocation1 [shape = 'u32[72,128]{1,0:T(1,128)}', space=vmem, size = 0x9000, scoped, tag = 'internal scratch']
  %s0 = inlined_call_operand.vmem [shape: f32[2,30,15,1], index: 0, kind: input, shape index: {}]
  %s1 = inlined_call_operand.vmem [shape: f32[2,30,15,1], index: 1, kind: input, shape index: {}]
  %s2 = inlined_call_operand.vmem [shape: f32[16,1,64], index: 2, kind: input, shape index: {}]
  %s3 = inlined_call_operand.vmem [shape: f32[1,64], index: 3, kind: input, shape index: {}]
  %s4 = inlined_call_operand.vmem [shape: bf16[2,13,13,64], index: 4, kind: output, shape index: {}]
  %s5 = sld [smem:[#allocation0]]
  $region56: #{encoder_forward.4} parent=0
    _
  %s7 = ssub.s32 1, %s5
  %s8 = scalar_select 0, %s7, %s5
  loop: start=0, step=1, limit=4
  $region2: #{encoder_forward.4} parent=0 // loop_pre_header
    _
  $region3: #{encoder_forward.4} parent=0 // loop_header
    %s10 = sphi 0, %s14
    %p11 = scmp.ge.s32.totalorder %s10, 4
    %s20 = sphi 0, %s22
    %s23 = sphi 0, %s20
    %s24 = sphi 0, %s23
    %s40 = sphi 0, %s24
    %s46 = sphi 0, %s48
    %s49 = sphi 0, %s46
    %s50 = sphi 0, %s49
    %s66 = sphi 0, %s50
    %s70 = sphi 0, %s70
    %s72 = sphi 0, %s70
    %s73 = sphi 0, %s72
    %s87 = sphi 0, %s73
    %s91 = sphi 0, %s91
    %s93 = sphi 0, %s91
    %s94 = sphi 0, %s93
    %s108 = sphi 0, %s94
    %s114 = sphi 0, %s116
    %s117 = sphi 0, %s114
    %s118 = sphi 0, %s117
    %s134 = sphi 0, %s118
  $region4: #{encoder_forward.4} parent=0 // loop_header_branch
    %13 = sbr.rel (%p11) target = $region8
  $region5: #{encoder_forward.4} parent=0 // loop_body
    %s15 = ssub.s32 %s10, 1
    %s16 = ssub.s32 %s10, 2
    %s17 = sadd.s32 %s10, 1
    %s18 = ssub.s32 %s10, %s17
    %p19 = scmp.eq.s32.totalorder %s18, 0
    %s21 = sadd.s32 %s20, 1
    %s22 = scalar_select %p19, %s20, %s21
    %p25 = pneg %p19
    %p26 = scmp.eq.s32.totalorder %s10, 1
    %p27 = por %p25, %p26
    %p28 = scmp.ne.s32.totalorder %s20, %s23
    %p29 = scmp.eq.s32.totalorder %s10, 0
    %p30 = por %p28, %p29
    %p31 = scmp.ne.s32.totalorder %s20, %s23
    %p32 = scmp.eq.s32.totalorder %s15, 1
    %p33 = por %p31, %p32
    %p34 = scmp.ne.s32.totalorder %s23, %s24
    %p35 = scmp.eq.s32.totalorder %s15, 0
    %p36 = por %p34, %p35
    %p37 = scmp.ne.s32.totalorder %s23, %s24
    %p38 = scmp.eq.s32.totalorder %s16, 1
    %p39 = por %p37, %p38
    %p41 = scmp.ne.s32.totalorder %s24, %s40
    %p42 = scmp.eq.s32.totalorder %s16, 0
    %p43 = por %p41, %p42
    %s44 = ssub.s32 %s10, %s17
    %p45 = scmp.eq.s32.totalorder %s44, 0
    %s47 = sadd.s32 %s46, 1
    %s48 = scalar_select %p45, %s46, %s47
    %p51 = pneg %p45
    %p52 = scmp.eq.s32.totalorder %s10, 1
    %p53 = por %p51, %p52
    %p54 = scmp.ne.s32.totalorder %s46, %s49
    %p55 = scmp.eq.s32.totalorder %s10, 0
    %p56 = por %p54, %p55
    %p57 = scmp.ne.s32.totalorder %s46, %s49
    %p58 = scmp.eq.s32.totalorder %s15, 1
    %p59 = por %p57, %p58
    %p60 = scmp.ne.s32.totalorder %s49, %s50
    %p61 = scmp.eq.s32.totalorder %s15, 0
    %p62 = por %p60, %p61
    %p63 = scmp.ne.s32.totalorder %s49, %s50
    %p64 = scmp.eq.s32.totalorder %s16, 1
    %p65 = por %p63, %p64
    %p67 = scmp.ne.s32.totalorder %s50, %s66
    %p68 = scmp.eq.s32.totalorder %s16, 0
    %p69 = por %p67, %p68
    %s71 = sadd.s32 %s70, 1
    %p74 = scmp.eq.s32.totalorder %s10, 1
    %p75 = scmp.ne.s32.totalorder %s70, %s72
    %p76 = scmp.eq.s32.totalorder %s10, 0
    %p77 = por %p75, %p76
    %p78 = scmp.ne.s32.totalorder %s70, %s72
    %p79 = scmp.eq.s32.totalorder %s15, 1
    %p80 = por %p78, %p79
    %p81 = scmp.ne.s32.totalorder %s72, %s73
    %p82 = scmp.eq.s32.totalorder %s15, 0
    %p83 = por %p81, %p82
    %p84 = scmp.ne.s32.totalorder %s72, %s73
    %p85 = scmp.eq.s32.totalorder %s16, 1
    %p86 = por %p84, %p85
    %p88 = scmp.ne.s32.totalorder %s73, %s87
    %p89 = scmp.eq.s32.totalorder %s16, 0
    %p90 = por %p88, %p89
    %s92 = sadd.s32 %s91, 1
    %p95 = scmp.eq.s32.totalorder %s10, 1
    %p96 = scmp.ne.s32.totalorder %s91, %s93
    %p97 = scmp.eq.s32.totalorder %s10, 0
    %p98 = por %p96, %p97
    %p99 = scmp.ne.s32.totalorder %s91, %s93
    %p100 = scmp.eq.s32.totalorder %s15, 1
    %p101 = por %p99, %p100
    %p102 = scmp.ne.s32.totalorder %s93, %s94
    %p103 = scmp.eq.s32.totalorder %s15, 0
    %p104 = por %p102, %p103
    %p105 = scmp.ne.s32.totalorder %s93, %s94
    %p106 = scmp.eq.s32.totalorder %s16, 1
    %p107 = por %p105, %p106
    %p109 = scmp.ne.s32.totalorder %s94, %s108
    %p110 = scmp.eq.s32.totalorder %s16, 0
    %p111 = por %p109, %p110
    %s112 = ssub.s32 %s10, %s17
    %p113 = scmp.eq.s32.totalorder %s112, 0
    %s115 = sadd.s32 %s114, 1
    %s116 = scalar_select %p113, %s114, %s115
    %p119 = pneg %p113
    %p120 = scmp.eq.s32.totalorder %s10, 1
    %p121 = por %p119, %p120
    %p122 = scmp.ne.s32.totalorder %s114, %s117
    %p123 = scmp.eq.s32.totalorder %s10, 0
    %p124 = por %p122, %p123
    %p125 = scmp.ne.s32.totalorder %s114, %s117
    %p126 = scmp.eq.s32.totalorder %s15, 1
    %p127 = por %p125, %p126
    %p128 = scmp.ne.s32.totalorder %s117, %s118
    %p129 = scmp.eq.s32.totalorder %s15, 0
    %p130 = por %p128, %p129
    %p131 = scmp.ne.s32.totalorder %s117, %s118
    %p132 = scmp.eq.s32.totalorder %s16, 1
    %p133 = por %p131, %p132
    %p135 = scmp.ne.s32.totalorder %s118, %s134
    %p136 = scmp.eq.s32.totalorder %s16, 0
    %p137 = por %p135, %p136
    %p138 = scmp.le.s32.totalorder 1, %s10
    %p139 = scmp.lt.s32.totalorder %s10, 3
    %p140 = pnand %p138, %p139
    %p141 = pneg %p140
    // Predicated region
    $region9: #{encoder_forward.4} parent=5 // pred_check
      _
    $region10: #{encoder_forward.4} parent=5 // pred_check_branch
      %143 = sbr.rel (%p140) target = $region12
    $region11: #{encoder_forward.4} parent=5 // pred_region
      %s144 = ssub.s32 %s10, 1
      // Predicated region
      $region13: #{encoder_forward.4} parent=11 // pred_check
        %p145 = pneg %p83
      $region14: #{encoder_forward.4} parent=11 // pred_check_branch
        %147 = sbr.rel (%p145) target = $region16
      $region15: #{encoder_forward.4} parent=11 // pred_region
        _
      $region16: #{encoder_forward.4} parent=11 // pred_fallthru
        _
      // Predicated region
      $region17: #{encoder_forward.4} parent=11 // pred_check
        %p148 = pneg %p104
      $region18: #{encoder_forward.4} parent=11 // pred_check_branch
        %150 = sbr.rel (%p148) target = $region20
      $region19: #{encoder_forward.4} parent=11 // pred_region
        _
      $region20: #{encoder_forward.4} parent=11 // pred_fallthru
        _
    $region12: #{encoder_forward.4} parent=5 // pred_fallthru
      _
    %p151 = scmp.lt.s32.totalorder %s10, 2
    // Predicated region
    $region21: #{encoder_forward.4} parent=5 // pred_check
      %p152 = pneg %p151
    $region22: #{encoder_forward.4} parent=5 // pred_check_branch
      %154 = sbr.rel (%p152) target = $region24
    $region23: #{encoder_forward.4} parent=5 // pred_region
      // Predicated region
      $region25: #{encoder_forward.4} parent=23 // pred_check
        %p155 = pneg %p30
      $region26: #{encoder_forward.4} parent=23 // pred_check_branch
        %157 = sbr.rel (%p155) target = $region28
      $region27: #{encoder_forward.4} parent=23 // pred_region
        %p158 = scmp.lt.s32.totalorder %s10, 1
        %s159 = scalar_select %p158, %s10, 1
        %s160 = smul.addr %s159, 60
        %s161 = smul.addr %s160, 8
        %s162 = scalar_lea.vmem %s0, %s161
      $region28: #{encoder_forward.4} parent=23 // pred_fallthru
        _
      // Predicated region
      $region29: #{encoder_forward.4} parent=23 // pred_check
        %p163 = pneg %p56
      $region30: #{encoder_forward.4} parent=23 // pred_check_branch
        %165 = sbr.rel (%p163) target = $region32
      $region31: #{encoder_forward.4} parent=23 // pred_region
        %p166 = scmp.lt.s32.totalorder %s10, 1
        %s167 = scalar_select %p166, %s10, 1
        %s168 = smul.addr %s167, 60
        %s169 = smul.addr %s168, 8
        %s170 = scalar_lea.vmem %s1, %s169
      $region32: #{encoder_forward.4} parent=23 // pred_fallthru
        _
    $region24: #{encoder_forward.4} parent=5 // pred_fallthru
      _
    %p171 = scmp.le.s32.totalorder 1, %s10
    %p172 = scmp.lt.s32.totalorder %s10, 3
    %p173 = pnand %p171, %p172
    %p174 = pneg %p173
    // Predicated region
    $region33: #{encoder_forward.4} parent=5 // pred_check
      _
    $region34: #{encoder_forward.4} parent=5 // pred_check_branch
      %176 = sbr.rel (%p173) target = $region36
    $region35: #{encoder_forward.4} parent=5 // pred_region
      %s177 = ssub.s32 %s10, 1
      %p178 = scmp.lt.s32.totalorder %s15, 1
      %s179 = scalar_select %p178, %s15, 1
      %s180 = smul.addr %s179, 60
      %s181 = smul.addr %s180, 8
      %s182 = scalar_lea.vmem %s0, %s181
      %p183 = pneg %p36
      %p184 = pneg %p33
      %p185 = scmp.lt.s32.totalorder %s15, 1
      %s186 = scalar_select %p185, %s15, 1
      %s187 = smul.addr %s186, 60
      %s188 = smul.addr %s187, 8
      %s189 = scalar_lea.vmem %s1, %s188
      %p190 = pneg %p62
      %p191 = pneg %p59
      %p192 = pneg %p83
      %p193 = pneg %p80
      %p194 = pneg %p104
      %p195 = pneg %p101
      %p196 = pneg %p130
      %p197 = pneg %p127
      %p198 = scmp.lt.s32.totalorder %s15, 1
      %s199 = scalar_select %p198, %s15, 1
      %s200 = smul.addr %s199, 26
      %s201 = smul.addr %s200, 4
      %s202 = scalar_lea.vmem %s4, %s201
      %p203 = scmp.lt.s32.totalorder %s15, 1
      %s204 = scalar_select %p203, %s15, 1
      %s205 = smul.addr %s204, 60
      %s206 = smul.addr %s205, 8
      %s207 = scalar_lea.vmem %s0, %s206
      %p208 = scmp.lt.s32.totalorder %s15, 1
      %s209 = scalar_select %p208, %s15, 1
      %s210 = smul.addr %s209, 60
      %s211 = smul.addr %s210, 8
      %s212 = scalar_lea.vmem %s1, %s211
      %p213 = scmp.lt.s32.totalorder %s15, 1
      %s214 = scalar_select %p213, %s15, 1
      %s215 = smul.addr %s214, 26
      %s216 = smul.addr %s215, 4
      %s217 = scalar_lea.vmem %s4, %s216
      %v218 = vld [vmem:[%s3] sm:$0x1]
      loop: start=0, step=1, limit=13
      $region37: #{encoder_forward.4} parent=35 // loop_pre_header
        _
      $region38: #{encoder_forward.4} parent=35 // loop_header
        %s220 = sphi 0, %s224
        %p221 = scmp.ge.s32.totalorder %s220, 13
      $region39: #{encoder_forward.4} parent=35 // loop_header_branch
        %223 = sbr.rel (%p221) target = $region43
      $region40: #{encoder_forward.4} parent=35 // loop_body
        %s225 = smul.u32 %s220, 2
        %s226 = smul.u32 %s225, 16
        %s227 = scalar_lea.vmem %s207, %s226
        %v228 = vld [vmem:[%s227] sm:$0xff]
        %v229 = vld [vmem:[%s227 + $0x8] sm:$0x1f]
        %v230 = vld [vmem:[%s2] sm:$0x1]
        %232 = vset.pattern.permute.xlu0 0
        %233 = vperm.xlu0 %232, %v228
        %v234 = vpop.permute.xlu0 %233
        %237 = vset.pattern.permute.xlu0 0
        %238 = vperm.xlu0 %237, %v229
        %v239 = vpop.permute.xlu0 %238
        %v242 = vperm.slane %v230, 0
        %v244 = vmul.f32 %v234, %v242
        %v245 = vmul.f32 %v239, %v242
        %v246 = vadd.f32 %v244, 0.0
        %v247 = vadd.f32 %v245, 0.0
        %s248 = scalar_lea.vmem %s212, %s226
        %v249 = vld [vmem:[%s248] sm:$0xff]
        %v250 = vld [vmem:[%s248 + $0x8] sm:$0x1f]
        %s251 = scalar_lea.vmem %s2, 1
        %v252 = vld [vmem:[%s251] sm:$0x1]
        %254 = vset.pattern.permute.xlu0 0
        %255 = vperm.xlu0 %254, %v249
        %v256 = vpop.permute.xlu0 %255
        %259 = vset.pattern.permute.xlu0 0
        %260 = vperm.xlu0 %259, %v250
        %v261 = vpop.permute.xlu0 %260
        %v264 = vperm.slane %v252, 0
        %v266 = vmul.f32 %v256, %v264
        %v267 = vmul.f32 %v261, %v264
        %v268 = vadd.f32 %v246, %v266
        %v269 = vadd.f32 %v247, %v267
        %v270 = vld [vmem:[%s227 + $0x1] sm:$0xff]
        %v271 = vld [vmem:[%s227 + $0x9] sm:$0x1f]
        %s272 = scalar_lea.vmem %s2, 2
        %v273 = vld [vmem:[%s272] sm:$0x1]
        %275 = vset.pattern.permute.xlu0 0
        %276 = vperm.xlu0 %275, %v270
        %v277 = vpop.permute.xlu0 %276
        %280 = vset.pattern.permute.xlu0 0
        %281 = vperm.xlu0 %280, %v271
        %v282 = vpop.permute.xlu0 %281
        %v285 = vperm.slane %v273, 0
        %v287 = vmul.f32 %v277, %v285
        %v288 = vmul.f32 %v282, %v285
        %v289 = vadd.f32 %v268, %v287
        %v290 = vadd.f32 %v269, %v288
        %v291 = vld [vmem:[%s248 + $0x1] sm:$0xff]
        %v292 = vld [vmem:[%s248 + $0x9] sm:$0x1f]
        %s293 = scalar_lea.vmem %s2, 3
        %v294 = vld [vmem:[%s293] sm:$0x1]
        %296 = vset.pattern.permute.xlu0 0
        %297 = vperm.xlu0 %296, %v291
        %v298 = vpop.permute.xlu0 %297
        %301 = vset.pattern.permute.xlu0 0
        %302 = vperm.xlu0 %301, %v292
        %v303 = vpop.permute.xlu0 %302
        %v306 = vperm.slane %v294, 0
        %v308 = vmul.f32 %v298, %v306
        %v309 = vmul.f32 %v303, %v306
        %v310 = vadd.f32 %v289, %v308
        %v311 = vadd.f32 %v290, %v309
        %s312 = sadd.s32 %s225, 1
        %s313 = smul.u32 %s312, 16
        %s314 = scalar_lea.vmem %s207, %s313
        %v315 = vld [vmem:[%s314] sm:$0xff]
        %v316 = vld [vmem:[%s314 + $0x8] sm:$0x1f]
        %s317 = scalar_lea.vmem %s2, 4
        %v318 = vld [vmem:[%s317] sm:$0x1]
        %320 = vset.pattern.permute.xlu0 0
        %321 = vperm.xlu0 %320, %v315
        %v322 = vpop.permute.xlu0 %321
        %325 = vset.pattern.permute.xlu0 0
        %326 = vperm.xlu0 %325, %v316
        %v327 = vpop.permute.xlu0 %326
        %v330 = vperm.slane %v318, 0
        %v332 = vmul.f32 %v322, %v330
        %v333 = vmul.f32 %v327, %v330
        %v334 = vadd.f32 %v310, %v332
        %v335 = vadd.f32 %v311, %v333
        %s336 = scalar_lea.vmem %s212, %s313
        %v337 = vld [vmem:[%s336] sm:$0xff]
        %v338 = vld [vmem:[%s336 + $0x8] sm:$0x1f]
        %s339 = scalar_lea.vmem %s2, 5
        %v340 = vld [vmem:[%s339] sm:$0x1]
        %342 = vset.pattern.permute.xlu0 0
        %343 = vperm.xlu0 %342, %v337
        %v344 = vpop.permute.xlu0 %343
        %347 = vset.pattern.permute.xlu0 0
        %348 = vperm.xlu0 %347, %v338
        %v349 = vpop.permute.xlu0 %348
        %v352 = vperm.slane %v340, 0
        %v354 = vmul.f32 %v344, %v352
        %v355 = vmul.f32 %v349, %v352
        %v356 = vadd.f32 %v334, %v354
        %v357 = vadd.f32 %v335, %v355
        %v358 = vld [vmem:[%s314 + $0x1] sm:$0xff]
        %v359 = vld [vmem:[%s314 + $0x9] sm:$0x1f]
        %s360 = scalar_lea.vmem %s2, 6
        %v361 = vld [vmem:[%s360] sm:$0x1]
        %363 = vset.pattern.permute.xlu0 0
        %364 = vperm.xlu0 %363, %v358
        %v365 = vpop.permute.xlu0 %364
        %368 = vset.pattern.permute.xlu0 0
        %369 = vperm.xlu0 %368, %v359
        %v370 = vpop.permute.xlu0 %369
        %v373 = vperm.slane %v361, 0
        %v375 = vmul.f32 %v365, %v373
        %v376 = vmul.f32 %v370, %v373
        %v377 = vadd.f32 %v356, %v375
        %v378 = vadd.f32 %v357, %v376
        %v379 = vld [vmem:[%s336 + $0x1] sm:$0xff]
        %v380 = vld [vmem:[%s336 + $0x9] sm:$0x1f]
        %s381 = scalar_lea.vmem %s2, 7
        %v382 = vld [vmem:[%s381] sm:$0x1]
        %384 = vset.pattern.permute.xlu0 0
        %385 = vperm.xlu0 %384, %v379
        %v386 = vpop.permute.xlu0 %385
        %389 = vset.pattern.permute.xlu0 0
        %390 = vperm.xlu0 %389, %v380
        %v391 = vpop.permute.xlu0 %390
        %v394 = vperm.slane %v382, 0
        %v396 = vmul.f32 %v386, %v394
        %v397 = vmul.f32 %v391, %v394
        %v398 = vadd.f32 %v377, %v396
        %v399 = vadd.f32 %v378, %v397
        %s400 = sadd.s32 %s225, 2
        %s401 = smul.u32 %s400, 16
        %s402 = scalar_lea.vmem %s207, %s401
        %v403 = vld [vmem:[%s402] sm:$0xff]
        %v404 = vld [vmem:[%s402 + $0x8] sm:$0x1f]
        %s405 = scalar_lea.vmem %s2, 8
        %v406 = vld [vmem:[%s405] sm:$0x1]
        %408 = vset.pattern.permute.xlu0 0
        %409 = vperm.xlu0 %408, %v403
        %v410 = vpop.permute.xlu0 %409
        %413 = vset.pattern.permute.xlu0 0
        %414 = vperm.xlu0 %413, %v404
        %v415 = vpop.permute.xlu0 %414
        %v418 = vperm.slane %v406, 0
        %v420 = vmul.f32 %v410, %v418
        %v421 = vmul.f32 %v415, %v418
        %v422 = vadd.f32 %v398, %v420
        %v423 = vadd.f32 %v399, %v421
        %s424 = scalar_lea.vmem %s212, %s401
        %v425 = vld [vmem:[%s424] sm:$0xff]
        %v426 = vld [vmem:[%s424 + $0x8] sm:$0x1f]
        %s427 = scalar_lea.vmem %s2, 9
        %v428 = vld [vmem:[%s427] sm:$0x1]
        %430 = vset.pattern.permute.xlu0 0
        %431 = vperm.xlu0 %430, %v425
        %v432 = vpop.permute.xlu0 %431
        %435 = vset.pattern.permute.xlu0 0
        %436 = vperm.xlu0 %435, %v426
        %v437 = vpop.permute.xlu0 %436
        %v440 = vperm.slane %v428, 0
        %v442 = vmul.f32 %v432, %v440
        %v443 = vmul.f32 %v437, %v440
        %v444 = vadd.f32 %v422, %v442
        %v445 = vadd.f32 %v423, %v443
        %v446 = vld [vmem:[%s402 + $0x1] sm:$0xff]
        %v447 = vld [vmem:[%s402 + $0x9] sm:$0x1f]
        %s448 = scalar_lea.vmem %s2, 10
        %v449 = vld [vmem:[%s448] sm:$0x1]
        %451 = vset.pattern.permute.xlu0 0
        %452 = vperm.xlu0 %451, %v446
        %v453 = vpop.permute.xlu0 %452
        %456 = vset.pattern.permute.xlu0 0
        %457 = vperm.xlu0 %456, %v447
        %v458 = vpop.permute.xlu0 %457
        %v461 = vperm.slane %v449, 0
        %v463 = vmul.f32 %v453, %v461
        %v464 = vmul.f32 %v458, %v461
        %v465 = vadd.f32 %v444, %v463
        %v466 = vadd.f32 %v445, %v464
        %v467 = vld [vmem:[%s424 + $0x1] sm:$0xff]
        %v468 = vld [vmem:[%s424 + $0x9] sm:$0x1f]
        %s469 = scalar_lea.vmem %s2, 11
        %v470 = vld [vmem:[%s469] sm:$0x1]
        %472 = vset.pattern.permute.xlu0 0
        %473 = vperm.xlu0 %472, %v467
        %v474 = vpop.permute.xlu0 %473
        %477 = vset.pattern.permute.xlu0 0
        %478 = vperm.xlu0 %477, %v468
        %v479 = vpop.permute.xlu0 %478
        %v482 = vperm.slane %v470, 0
        %v484 = vmul.f32 %v474, %v482
        %v485 = vmul.f32 %v479, %v482
        %v486 = vadd.f32 %v465, %v484
        %v487 = vadd.f32 %v466, %v485
        %s488 = sadd.s32 %s225, 3
        %s489 = smul.u32 %s488, 16
        %s490 = scalar_lea.vmem %s207, %s489
        %v491 = vld [vmem:[%s490] sm:$0xff]
        %v492 = vld [vmem:[%s490 + $0x8] sm:$0x1f]
        %s493 = scalar_lea.vmem %s2, 12
        %v494 = vld [vmem:[%s493] sm:$0x1]
        %496 = vset.pattern.permute.xlu0 0
        %497 = vperm.xlu0 %496, %v491
        %v498 = vpop.permute.xlu0 %497
        %501 = vset.pattern.permute.xlu0 0
        %502 = vperm.xlu0 %501, %v492
        %v503 = vpop.permute.xlu0 %502
        %v506 = vperm.slane %v494, 0
        %v508 = vmul.f32 %v498, %v506
        %v509 = vmul.f32 %v503, %v506
        %v510 = vadd.f32 %v486, %v508
        %v511 = vadd.f32 %v487, %v509
        %s512 = scalar_lea.vmem %s212, %s489
        %v513 = vld [vmem:[%s512] sm:$0xff]
        %v514 = vld [vmem:[%s512 + $0x8] sm:$0x1f]
        %s515 = scalar_lea.vmem %s2, 13
        %v516 = vld [vmem:[%s515] sm:$0x1]
        %518 = vset.pattern.permute.xlu0 0
        %519 = vperm.xlu0 %518, %v513
        %v520 = vpop.permute.xlu0 %519
        %523 = vset.pattern.permute.xlu0 0
        %524 = vperm.xlu0 %523, %v514
        %v525 = vpop.permute.xlu0 %524
        %v528 = vperm.slane %v516, 0
        %v530 = vmul.f32 %v520, %v528
        %v531 = vmul.f32 %v525, %v528
        %v532 = vadd.f32 %v510, %v530
        %v533 = vadd.f32 %v511, %v531
        %v534 = vld [vmem:[%s490 + $0x1] sm:$0xff]
        %v535 = vld [vmem:[%s490 + $0x9] sm:$0x1f]
        %s536 = scalar_lea.vmem %s2, 14
        %v537 = vld [vmem:[%s536] sm:$0x1]
        %539 = vset.pattern.permute.xlu0 0
        %540 = vperm.xlu0 %539, %v534
        %v541 = vpop.permute.xlu0 %540
        %544 = vset.pattern.permute.xlu0 0
        %545 = vperm.xlu0 %544, %v535
        %v546 = vpop.permute.xlu0 %545
        %v549 = vperm.slane %v537, 0
        %v551 = vmul.f32 %v541, %v549
        %v552 = vmul.f32 %v546, %v549
        %v553 = vadd.f32 %v532, %v551
        %v554 = vadd.f32 %v533, %v552
        %v555 = vld [vmem:[%s512 + $0x1] sm:$0xff]
        %v556 = vld [vmem:[%s512 + $0x9] sm:$0x1f]
        %s557 = scalar_lea.vmem %s2, 15
        %v558 = vld [vmem:[%s557] sm:$0x1]
        %560 = vset.pattern.permute.xlu0 0
        %561 = vperm.xlu0 %560, %v555
        %v562 = vpop.permute.xlu0 %561
        %565 = vset.pattern.permute.xlu0 0
        %566 = vperm.xlu0 %565, %v556
        %v567 = vpop.permute.xlu0 %566
        %v570 = vperm.slane %v558, 0
        %v572 = vmul.f32 %v562, %v570
        %v573 = vmul.f32 %v567, %v570
        %v574 = vadd.f32 %v553, %v572
        %v575 = vadd.f32 %v554, %v573
        %v577 = vperm.slane %v218, 0
        %v579 = vadd.f32 %v574, %v577
        %v580 = vadd.f32 %v575, %v577
        %v581 = vmax.f32 %v579, 0.0
        %v582 = vmax.f32 %v580, 0.0
        %v583 = vmul.f32 %v256, %v242
        %v584 = vmul.f32 %v261, %v242
        %v585 = vadd.f32 %v583, 0.0
        %v586 = vadd.f32 %v584, 0.0
        %v587 = vmul.f32 %v277, %v264
        %v588 = vmul.f32 %v282, %v264
        %v589 = vadd.f32 %v585, %v587
        %v590 = vadd.f32 %v586, %v588
        %v591 = vmul.f32 %v298, %v285
        %v592 = vmul.f32 %v303, %v285
        %v593 = vadd.f32 %v589, %v591
        %v594 = vadd.f32 %v590, %v592
        %v595 = vld [vmem:[%s227 + $0x2] sm:$0xff]
        %v596 = vld [vmem:[%s227 + $0xa] sm:$0x1f]
        %598 = vset.pattern.permute.xlu0 0
        %599 = vperm.xlu0 %598, %v595
        %v600 = vpop.permute.xlu0 %599
        %603 = vset.pattern.permute.xlu0 0
        %604 = vperm.xlu0 %603, %v596
        %v605 = vpop.permute.xlu0 %604
        %v607 = vmul.f32 %v600, %v306
        %v608 = vmul.f32 %v605, %v306
        %v609 = vadd.f32 %v593, %v607
        %v610 = vadd.f32 %v594, %v608
        %v611 = vmul.f32 %v344, %v330
        %v612 = vmul.f32 %v349, %v330
        %v613 = vadd.f32 %v609, %v611
        %v614 = vadd.f32 %v610, %v612
        %v615 = vmul.f32 %v365, %v352
        %v616 = vmul.f32 %v370, %v352
        %v617 = vadd.f32 %v613, %v615
        %v618 = vadd.f32 %v614, %v616
        %v619 = vmul.f32 %v386, %v373
        %v620 = vmul.f32 %v391, %v373
        %v621 = vadd.f32 %v617, %v619
        %v622 = vadd.f32 %v618, %v620
        %v623 = vld [vmem:[%s314 + $0x2] sm:$0xff]
        %v624 = vld [vmem:[%s314 + $0xa] sm:$0x1f]
        %626 = vset.pattern.permute.xlu0 0
        %627 = vperm.xlu0 %626, %v623
        %v628 = vpop.permute.xlu0 %627
        %631 = vset.pattern.permute.xlu0 0
        %632 = vperm.xlu0 %631, %v624
        %v633 = vpop.permute.xlu0 %632
        %v635 = vmul.f32 %v628, %v394
        %v636 = vmul.f32 %v633, %v394
        %v637 = vadd.f32 %v621, %v635
        %v638 = vadd.f32 %v622, %v636
        %v639 = vmul.f32 %v432, %v418
        %v640 = vmul.f32 %v437, %v418
        %v641 = vadd.f32 %v637, %v639
        %v642 = vadd.f32 %v638, %v640
        %v643 = vmul.f32 %v453, %v440
        %v644 = vmul.f32 %v458, %v440
        %v645 = vadd.f32 %v641, %v643
        %v646 = vadd.f32 %v642, %v644
        %v647 = vmul.f32 %v474, %v461
        %v648 = vmul.f32 %v479, %v461
        %v649 = vadd.f32 %v645, %v647
        %v650 = vadd.f32 %v646, %v648
        %v651 = vld [vmem:[%s402 + $0x2] sm:$0xff]
        %v652 = vld [vmem:[%s402 + $0xa] sm:$0x1f]
        %654 = vset.pattern.permute.xlu0 0
        %655 = vperm.xlu0 %654, %v651
        %v656 = vpop.permute.xlu0 %655
        %659 = vset.pattern.permute.xlu0 0
        %660 = vperm.xlu0 %659, %v652
        %v661 = vpop.permute.xlu0 %660
        %v663 = vmul.f32 %v656, %v482
        %v664 = vmul.f32 %v661, %v482
        %v665 = vadd.f32 %v649, %v663
        %v666 = vadd.f32 %v650, %v664
        %v667 = vmul.f32 %v520, %v506
        %v668 = vmul.f32 %v525, %v506
        %v669 = vadd.f32 %v665, %v667
        %v670 = vadd.f32 %v666, %v668
        %v671 = vmul.f32 %v541, %v528
        %v672 = vmul.f32 %v546, %v528
        %v673 = vadd.f32 %v669, %v671
        %v674 = vadd.f32 %v670, %v672
        %v675 = vmul.f32 %v562, %v549
        %v676 = vmul.f32 %v567, %v549
        %v677 = vadd.f32 %v673, %v675
        %v678 = vadd.f32 %v674, %v676
        %v679 = vld [vmem:[%s490 + $0x2] sm:$0xff]
        %v680 = vld [vmem:[%s490 + $0xa] sm:$0x1f]
        %682 = vset.pattern.permute.xlu0 0
        %683 = vperm.xlu0 %682, %v679
        %v684 = vpop.permute.xlu0 %683
        %687 = vset.pattern.permute.xlu0 0
        %688 = vperm.xlu0 %687, %v680
        %v689 = vpop.permute.xlu0 %688
        %v691 = vmul.f32 %v684, %v570
        %v692 = vmul.f32 %v689, %v570
        %v693 = vadd.f32 %v677, %v691
        %v694 = vadd.f32 %v678, %v692
        %v695 = vadd.f32 %v693, %v577
        %v696 = vadd.f32 %v694, %v577
        %v697 = vmax.f32 %v695, 0.0
        %v698 = vmax.f32 %v696, 0.0
        %v699 = vmax.f32 %v581, %v697
        %v700 = vmax.f32 %v582, %v698
        %v701 = vmul.f32 %v322, %v242
        %v702 = vmul.f32 %v327, %v242
        %v703 = vadd.f32 %v701, 0.0
        %v704 = vadd.f32 %v702, 0.0
        %v705 = vmul.f32 %v344, %v264
        %v706 = vmul.f32 %v349, %v264
        %v707 = vadd.f32 %v703, %v705
        %v708 = vadd.f32 %v704, %v706
        %v709 = vmul.f32 %v365, %v285
        %v710 = vmul.f32 %v370, %v285
        %v711 = vadd.f32 %v707, %v709
        %v712 = vadd.f32 %v708, %v710
        %v713 = vmul.f32 %v386, %v306
        %v714 = vmul.f32 %v391, %v306
        %v715 = vadd.f32 %v711, %v713
        %v716 = vadd.f32 %v712, %v714
        %v717 = vmul.f32 %v410, %v330
        %v718 = vmul.f32 %v415, %v330
        %v719 = vadd.f32 %v715, %v717
        %v720 = vadd.f32 %v716, %v718
        %v721 = vmul.f32 %v432, %v352
        %v722 = vmul.f32 %v437, %v352
        %v723 = vadd.f32 %v719, %v721
        %v724 = vadd.f32 %v720, %v722
        %v725 = vmul.f32 %v453, %v373
        %v726 = vmul.f32 %v458, %v373
        %v727 = vadd.f32 %v723, %v725
        %v728 = vadd.f32 %v724, %v726
        %v729 = vmul.f32 %v474, %v394
        %v730 = vmul.f32 %v479, %v394
        %v731 = vadd.f32 %v727, %v729
        %v732 = vadd.f32 %v728, %v730
        %v733 = vmul.f32 %v498, %v418
        %v734 = vmul.f32 %v503, %v418
        %v735 = vadd.f32 %v731, %v733
        %v736 = vadd.f32 %v732, %v734
        %v737 = vmul.f32 %v520, %v440
        %v738 = vmul.f32 %v525, %v440
        %v739 = vadd.f32 %v735, %v737
        %v740 = vadd.f32 %v736, %v738
        %v741 = vmul.f32 %v541, %v461
        %v742 = vmul.f32 %v546, %v461
        %v743 = vadd.f32 %v739, %v741
        %v744 = vadd.f32 %v740, %v742
        %v745 = vmul.f32 %v562, %v482
        %v746 = vmul.f32 %v567, %v482
        %v747 = vadd.f32 %v743, %v745
        %v748 = vadd.f32 %v744, %v746
        %s749 = sadd.s32 %s225, 4
        %s750 = smul.u32 %s749, 16
        %s751 = scalar_lea.vmem %s207, %s750
        %v752 = vld [vmem:[%s751] sm:$0xff]
        %v753 = vld [vmem:[%s751 + $0x8] sm:$0x1f]
        %755 = vset.pattern.permute.xlu0 0
        %756 = vperm.xlu0 %755, %v752
        %v757 = vpop.permute.xlu0 %756
        %760 = vset.pattern.permute.xlu0 0
        %761 = vperm.xlu0 %760, %v753
        %v762 = vpop.permute.xlu0 %761
        %v764 = vmul.f32 %v757, %v506
        %v765 = vmul.f32 %v762, %v506
        %v766 = vadd.f32 %v747, %v764
        %v767 = vadd.f32 %v748, %v765
        %s768 = scalar_lea.vmem %s212, %s750
        %v769 = vld [vmem:[%s768] sm:$0xff]
        %v770 = vld [vmem:[%s768 + $0x8] sm:$0x1f]
        %772 = vset.pattern.permute.xlu0 0
        %773 = vperm.xlu0 %772, %v769
        %v774 = vpop.permute.xlu0 %773
        %777 = vset.pattern.permute.xlu0 0
        %778 = vperm.xlu0 %777, %v770
        %v779 = vpop.permute.xlu0 %778
        %v781 = vmul.f32 %v774, %v528
        %v782 = vmul.f32 %v779, %v528
        %v783 = vadd.f32 %v766, %v781
        %v784 = vadd.f32 %v767, %v782
        %v785 = vld [vmem:[%s751 + $0x1] sm:$0xff]
        %v786 = vld [vmem:[%s751 + $0x9] sm:$0x1f]
        %788 = vset.pattern.permute.xlu0 0
        %789 = vperm.xlu0 %788, %v785
        %v790 = vpop.permute.xlu0 %789
        %793 = vset.pattern.permute.xlu0 0
        %794 = vperm.xlu0 %793, %v786
        %v795 = vpop.permute.xlu0 %794
        %v797 = vmul.f32 %v790, %v549
        %v798 = vmul.f32 %v795, %v549
        %v799 = vadd.f32 %v783, %v797
        %v800 = vadd.f32 %v784, %v798
        %v801 = vld [vmem:[%s768 + $0x1] sm:$0xff]
        %v802 = vld [vmem:[%s768 + $0x9] sm:$0x1f]
        %804 = vset.pattern.permute.xlu0 0
        %805 = vperm.xlu0 %804, %v801
        %v806 = vpop.permute.xlu0 %805
        %809 = vset.pattern.permute.xlu0 0
        %810 = vperm.xlu0 %809, %v802
        %v811 = vpop.permute.xlu0 %810
        %v813 = vmul.f32 %v806, %v570
        %v814 = vmul.f32 %v811, %v570
        %v815 = vadd.f32 %v799, %v813
        %v816 = vadd.f32 %v800, %v814
        %v817 = vadd.f32 %v815, %v577
        %v818 = vadd.f32 %v816, %v577
        %v819 = vmax.f32 %v817, 0.0
        %v820 = vmax.f32 %v818, 0.0
        %v821 = vmax.f32 %v699, %v819
        %v822 = vmax.f32 %v700, %v820
        %v823 = vmul.f32 %v344, %v242
        %v824 = vmul.f32 %v349, %v242
        %v825 = vadd.f32 %v823, 0.0
        %v826 = vadd.f32 %v824, 0.0
        %v827 = vmul.f32 %v365, %v264
        %v828 = vmul.f32 %v370, %v264
        %v829 = vadd.f32 %v825, %v827
        %v830 = vadd.f32 %v826, %v828
        %v831 = vmul.f32 %v386, %v285
        %v832 = vmul.f32 %v391, %v285
        %v833 = vadd.f32 %v829, %v831
        %v834 = vadd.f32 %v830, %v832
        %v835 = vmul.f32 %v628, %v306
        %v836 = vmul.f32 %v633, %v306
        %v837 = vadd.f32 %v833, %v835
        %v838 = vadd.f32 %v834, %v836
        %v839 = vmul.f32 %v432, %v330
        %v840 = vmul.f32 %v437, %v330
        %v841 = vadd.f32 %v837, %v839
        %v842 = vadd.f32 %v838, %v840
        %v843 = vmul.f32 %v453, %v352
        %v844 = vmul.f32 %v458, %v352
        %v845 = vadd.f32 %v841, %v843
        %v846 = vadd.f32 %v842, %v844
        %v847 = vmul.f32 %v474, %v373
        %v848 = vmul.f32 %v479, %v373
        %v849 = vadd.f32 %v845, %v847
        %v850 = vadd.f32 %v846, %v848
        %v851 = vmul.f32 %v656, %v394
        %v852 = vmul.f32 %v661, %v394
        %v853 = vadd.f32 %v849, %v851
        %v854 = vadd.f32 %v850, %v852
        %v855 = vmul.f32 %v520, %v418
        %v856 = vmul.f32 %v525, %v418
        %v857 = vadd.f32 %v853, %v855
        %v858 = vadd.f32 %v854, %v856
        %v859 = vmul.f32 %v541, %v440
        %v860 = vmul.f32 %v546, %v440
        %v861 = vadd.f32 %v857, %v859
        %v862 = vadd.f32 %v858, %v860
        %v863 = vmul.f32 %v562, %v461
        %v864 = vmul.f32 %v567, %v461
        %v865 = vadd.f32 %v861, %v863
        %v866 = vadd.f32 %v862, %v864
        %v867 = vmul.f32 %v684, %v482
        %v868 = vmul.f32 %v689, %v482
        %v869 = vadd.f32 %v865, %v867
        %v870 = vadd.f32 %v866, %v868
        %v871 = vmul.f32 %v774, %v506
        %v872 = vmul.f32 %v779, %v506
        %v873 = vadd.f32 %v869, %v871
        %v874 = vadd.f32 %v870, %v872
        %v875 = vmul.f32 %v790, %v528
        %v876 = vmul.f32 %v795, %v528
        %v877 = vadd.f32 %v873, %v875
        %v878 = vadd.f32 %v874, %v876
        %v879 = vmul.f32 %v806, %v549
        %v880 = vmul.f32 %v811, %v549
        %v881 = vadd.f32 %v877, %v879
        %v882 = vadd.f32 %v878, %v880
        %v883 = vld [vmem:[%s751 + $0x2] sm:$0xff]
        %v884 = vld [vmem:[%s751 + $0xa] sm:$0x1f]
        %886 = vset.pattern.permute.xlu0 0
        %887 = vperm.xlu0 %886, %v883
        %v888 = vpop.permute.xlu0 %887
        %891 = vset.pattern.permute.xlu0 0
        %892 = vperm.xlu0 %891, %v884
        %v893 = vpop.permute.xlu0 %892
        %v895 = vmul.f32 %v888, %v570
        %v896 = vmul.f32 %v893, %v570
        %v897 = vadd.f32 %v881, %v895
        %v898 = vadd.f32 %v882, %v896
        %v899 = vadd.f32 %v897, %v577
        %v900 = vadd.f32 %v898, %v577
        %v901 = vmax.f32 %v899, 0.0
        %v902 = vmax.f32 %v900, 0.0
        %v903 = vmax.f32 %v821, %v901
        %v904 = vmax.f32 %v822, %v902
        %v905 = vpack.c.bf16 %v903, %v903
        %v906 = vpack.c.bf16 %v904, %v904
        %s907 = smul.addr %s225, 4
        %s908 = scalar_lea.vmem %s217, %s907
        %vm909 = vcmask 519168
        %910 = vst.msk [vmem:[%s908] sm:$0xf] %vm909, %v905
        %vm911 = vcmask 518144
        %vm912 = vsmask.f32 2304
        %vm913 = vmand %vm911, %vm912
        %v914 = vld [vmem:[%s908 + $0x4] sm:$0x7]
        %v915 = vsel %vm913, %v906, %v914
        %916 = vst [vmem:[%s908 + $0x4] sm:$0x7] %v915
      $region41: #{encoder_forward.4} parent=35 // loop_footer
        %s224 = sadd.s32 1, %s220
      $region42: #{encoder_forward.4} parent=35 // loop_footer_branch
        %219 = sbr.rel target = $region38
      $region43: #{encoder_forward.4} parent=35 // loop_exit
        _
      %p917 = scmp.lt.s32.totalorder %s15, 1
      %s918 = scalar_select %p917, %s15, 1
      %s919 = smul.addr %s918, 26
      %s920 = smul.addr %s919, 4
      %s921 = scalar_lea.vmem %s4, %s920
      // Predicated region
      $region44: #{encoder_forward.4} parent=35 // pred_check
        %p922 = pneg %p127
      $region45: #{encoder_forward.4} parent=35 // pred_check_branch
        %924 = sbr.rel (%p922) target = $region47
      $region46: #{encoder_forward.4} parent=35 // pred_region
        _
      $region47: #{encoder_forward.4} parent=35 // pred_fallthru
        _
    $region36: #{encoder_forward.4} parent=5 // pred_fallthru
      _
    %p925 = scmp.le.s32.totalorder 2, %s10
    // Predicated region
    $region48: #{encoder_forward.4} parent=5 // pred_check
      %p926 = pneg %p925
    $region49: #{encoder_forward.4} parent=5 // pred_check_branch
      %928 = sbr.rel (%p926) target = $region51
    $region50: #{encoder_forward.4} parent=5 // pred_region
      %s929 = ssub.s32 %s10, 2
      // Predicated region
      $region52: #{encoder_forward.4} parent=50 // pred_check
        %p930 = pneg %p133
      $region53: #{encoder_forward.4} parent=50 // pred_check_branch
        %932 = sbr.rel (%p930) target = $region55
      $region54: #{encoder_forward.4} parent=50 // pred_region
        %p933 = scmp.lt.s32.totalorder %s16, 1
        %s934 = scalar_select %p933, %s16, 1
        %s935 = smul.addr %s934, 26
        %s936 = smul.addr %s935, 4
        %s937 = scalar_lea.vmem %s4, %s936
      $region55: #{encoder_forward.4} parent=50 // pred_fallthru
        _
    $region51: #{encoder_forward.4} parent=5 // pred_fallthru
      _
  $region6: #{encoder_forward.4} parent=0 // loop_footer
    %s14 = sadd.s32 1, %s10
  $region7: #{encoder_forward.4} parent=0 // loop_footer_branch
    %9 = sbr.rel target = $region3
  $region8: #{encoder_forward.4} parent=0 // loop_exit
    _

// kernel: encoder_forward.7
$region0: #{encoder_forward.7}
  #allocation0 [shape = 'u32[]', space=smem, size = 0x4, offset = 0x4, fixed_abs, tag = 'smem constant byte address 0x4 - core index']
  #allocation1 [shape = 'u32[72,128]{1,0:T(1,128)}', space=vmem, size = 0x9000, scoped, tag = 'internal scratch']
  %s0 = inlined_call_operand.vmem [shape: bf16[2,256], index: 0, kind: input, shape index: {}]
  %s1 = inlined_call_operand.vmem [shape: bf16[2,10], index: 1, kind: input, shape index: {}]
  %s2 = inlined_call_operand.vmem [shape: bf16[256,64], index: 2, kind: input, shape index: {}]
  %s3 = inlined_call_operand.vmem [shape: f32[1,64], index: 3, kind: input, shape index: {}]
  %s4 = inlined_call_operand.vmem [shape: bf16[64,16], index: 4, kind: input, shape index: {}]
  %s5 = inlined_call_operand.vmem [shape: bf16[10,16], index: 5, kind: input, shape index: {}]
  %s6 = inlined_call_operand.vmem [shape: f32[1,16], index: 6, kind: input, shape index: {}]
  %s7 = inlined_call_operand.hbm [shape: f32[2,16], index: 7, kind: output, shape index: {}]
  %s8 = sld [smem:[#allocation0]]
  $region38: #{encoder_forward.7} parent=0
    _
  %s10 = ssub.s32 1, %s8
  %s11 = scalar_select 0, %s10, %s8
  $region1: #{encoder_forward.7} parent=0
    #allocation2 [shape = 'u8[1024]{0}', space=vmem, size = 0x400, scoped, tag = 'output window, operand 0, single buffered']
    #allocation3 [shape = 's32[1]{0}', space=sflag, size = 0x4, scoped, tag = 'scoped memory for encoder_forward.7']
    %12 = vsyncpa [#allocation3], 0
    // Predicated region
    $region2: #{encoder_forward.7} parent=1 // pred_check
      _
    $region3: #{encoder_forward.7} parent=1 // pred_check_branch
      %14 = sbr.rel (0) target = $region5
    $region4: #{encoder_forward.7} parent=1 // pred_region
      _
    $region5: #{encoder_forward.7} parent=1 // pred_fallthru
      _
    // Predicated region
    $region6: #{encoder_forward.7} parent=1 // pred_check
      _
    $region7: #{encoder_forward.7} parent=1 // pred_check_branch
      %16 = sbr.rel (0) target = $region9
    $region8: #{encoder_forward.7} parent=1 // pred_region
      _
    $region9: #{encoder_forward.7} parent=1 // pred_fallthru
      _
    // Predicated region
    $region10: #{encoder_forward.7} parent=1 // pred_check
      _
    $region11: #{encoder_forward.7} parent=1 // pred_check_branch
      %18 = sbr.rel (0) target = $region13
    $region12: #{encoder_forward.7} parent=1 // pred_region
      _
    $region13: #{encoder_forward.7} parent=1 // pred_fallthru
      _
    // Predicated region
    $region14: #{encoder_forward.7} parent=1 // pred_check
      _
    $region15: #{encoder_forward.7} parent=1 // pred_check_branch
      %20 = sbr.rel (0) target = $region17
    $region16: #{encoder_forward.7} parent=1 // pred_region
      _
    $region17: #{encoder_forward.7} parent=1 // pred_fallthru
      _
    // Predicated region
    $region18: #{encoder_forward.7} parent=1 // pred_check
      _
    $region19: #{encoder_forward.7} parent=1 // pred_check_branch
      %22 = sbr.rel (0) target = $region21
    $region20: #{encoder_forward.7} parent=1 // pred_region
      _
    $region21: #{encoder_forward.7} parent=1 // pred_fallthru
      _
    // Predicated region
    $region22: #{encoder_forward.7} parent=1 // pred_check
      _
    $region23: #{encoder_forward.7} parent=1 // pred_check_branch
      %24 = sbr.rel (0) target = $region25
    $region24: #{encoder_forward.7} parent=1 // pred_region
      _
    $region25: #{encoder_forward.7} parent=1 // pred_fallthru
      _
    // Predicated region
    $region26: #{encoder_forward.7} parent=1 // pred_check
      _
    $region27: #{encoder_forward.7} parent=1 // pred_check_branch
      %26 = sbr.rel (0) target = $region29
    $region28: #{encoder_forward.7} parent=1 // pred_region
      _
    $region29: #{encoder_forward.7} parent=1 // pred_fallthru
      _
    %v28 = vld [vmem:[%s0] sm:$0x3]
    %v29 = vld [vmem:[%s2] sm:$0xf]
    %v30 = vld [vmem:[%s2 + $0x4] sm:$0xf]
    %v31 = vld [vmem:[%s2 + $0x8] sm:$0xf]
    %v32 = vld [vmem:[%s2 + $0xc] sm:$0xf]
    %v33 = vld [vmem:[%s2 + $0x10] sm:$0xf]
    %v34 = vld [vmem:[%s2 + $0x14] sm:$0xf]
    %v35 = vld [vmem:[%s2 + $0x18] sm:$0xf]
    %v36 = vld [vmem:[%s2 + $0x1c] sm:$0xf]
    %v37 = vld [vmem:[%s2 + $0x20] sm:$0xf]
    %v38 = vld [vmem:[%s2 + $0x24] sm:$0xf]
    %v39 = vld [vmem:[%s2 + $0x28] sm:$0xf]
    %v40 = vld [vmem:[%s2 + $0x2c] sm:$0xf]
    %v41 = vld [vmem:[%s2 + $0x30] sm:$0xf]
    %v42 = vld [vmem:[%s2 + $0x34] sm:$0xf]
    %v43 = vld [vmem:[%s2 + $0x38] sm:$0xf]
    %v44 = vld [vmem:[%s2 + $0x3c] sm:$0xf]
    %v45 = vld [vmem:[%s2 + $0x40] sm:$0xf]
    %v46 = vld [vmem:[%s2 + $0x44] sm:$0xf]
    %v47 = vld [vmem:[%s2 + $0x48] sm:$0xf]
    %v48 = vld [vmem:[%s2 + $0x4c] sm:$0xf]
    %v49 = vld [vmem:[%s2 + $0x50] sm:$0xf]
    %v50 = vld [vmem:[%s2 + $0x54] sm:$0xf]
    %v51 = vld [vmem:[%s2 + $0x58] sm:$0xf]
    %v52 = vld [vmem:[%s2 + $0x5c] sm:$0xf]
    %v53 = vld [vmem:[%s2 + $0x60] sm:$0xf]
    %v54 = vld [vmem:[%s2 + $0x64] sm:$0xf]
    %v55 = vld [vmem:[%s2 + $0x68] sm:$0xf]
    %v56 = vld [vmem:[%s2 + $0x6c] sm:$0xf]
    %v57 = vld [vmem:[%s2 + $0x70] sm:$0xf]
    %v58 = vld [vmem:[%s2 + $0x74] sm:$0xf]
    %v59 = vld [vmem:[%s2 + $0x78] sm:$0xf]
    %v60 = vld [vmem:[%s2 + $0x7c] sm:$0xf]
    %v61 = vld [vmem:[%s3] sm:$0x1]
    %v63 = vperm.slane %v61, 0
    %66 = vst [vmem:[#allocation1] ss:$9 sm:$0xff] %v28
    %v67 = vld [vmem:[#allocation1] sm:$0xff]
    %v68 = vld [vmem:[#allocation1 + $0x9] sm:$0xff]
    %v103 = vunpack.c.l.b16 %v29
    %v104 = vunpack.c.l.b16 %v30
    %v105 = vunpack.c.l.b16 %v31
    %v106 = vunpack.c.l.b16 %v32
    %v107 = vunpack.c.l.b16 %v33
    %v108 = vunpack.c.l.b16 %v34
    %v109 = vunpack.c.l.b16 %v35
    %v110 = vunpack.c.l.b16 %v36
    %v111 = vunpack.c.l.b16 %v37
    %v112 = vunpack.c.l.b16 %v38
    %v113 = vunpack.c.l.b16 %v39
    %v114 = vunpack.c.l.b16 %v40
    %v115 = vunpack.c.l.b16 %v41
    %v116 = vunpack.c.l.b16 %v42
    %v117 = vunpack.c.l.b16 %v43
    %v118 = vunpack.c.l.b16 %v44
    %v119 = vunpack.c.l.b16 %v45
    %v120 = vunpack.c.l.b16 %v46
    %v121 = vunpack.c.l.b16 %v47
    %v122 = vunpack.c.l.b16 %v48
    %v123 = vunpack.c.l.b16 %v49
    %v124 = vunpack.c.l.b16 %v50
    %v125 = vunpack.c.l.b16 %v51
    %v126 = vunpack.c.l.b16 %v52
    %v127 = vunpack.c.l.b16 %v53
    %v128 = vunpack.c.l.b16 %v54
    %v129 = vunpack.c.l.b16 %v55
    %v130 = vunpack.c.l.b16 %v56
    %v131 = vunpack.c.l.b16 %v57
    %v132 = vunpack.c.l.b16 %v58
    %v133 = vunpack.c.l.b16 %v59
    %v134 = vunpack.c.l.b16 %v60
    %v135 = vpack.c.b16 %v104, %v103
    %v136 = vpack.c.b16 %v106, %v105
    %v137 = vpack.c.b16 %v108, %v107
    %v138 = vpack.c.b16 %v110, %v109
    %v139 = vpack.c.b16 %v112, %v111
    %v140 = vpack.c.b16 %v114, %v113
    %v141 = vpack.c.b16 %v116, %v115
    %v142 = vpack.c.b16 %v118, %v117
    %v143 = vpack.c.b16 %v120, %v119
    %v144 = vpack.c.b16 %v122, %v121
    %v145 = vpack.c.b16 %v124, %v123
    %v146 = vpack.c.b16 %v126, %v125
    %v147 = vpack.c.b16 %v128, %v127
    %v148 = vpack.c.b16 %v130, %v129
    %v149 = vpack.c.b16 %v132, %v131
    %v150 = vpack.c.b16 %v134, %v133
    %167 = vmatpush.bf16.msra.mxu0 %v142
    %168 = vmatpush.bf16.msra.mxu0 %v141
    %169 = vmatpush.bf16.msra.mxu0 %v140
    %170 = vmatpush.bf16.msra.mxu0 %v139
    %171 = vmatpush.bf16.msra.mxu0 %v138
    %172 = vmatpush.bf16.msra.mxu0 %v137
    %173 = vmatpush.bf16.msra.mxu0 %v136
    %174 = vmatpush.bf16.msra.mxu0 %v135
    %175 = vmatmul.bf16.gmra.mxu0 %v67
    %v176 = vpop.f32.mrf.mxu0
    %v177 = vadd.f32 %v63, %v176
    %v178 = vpop.f32.mrf.mxu0
    %179 = vdwg.mxu0
    %180 = vmatpush.bf16.msra.mxu0 %v150
    %181 = vmatpush.bf16.msra.mxu0 %v149
    %182 = vmatpush.bf16.msra.mxu0 %v148
    %183 = vmatpush.bf16.msra.mxu0 %v147
    %184 = vmatpush.bf16.msra.mxu0 %v146
    %185 = vmatpush.bf16.msra.mxu0 %v145
    %186 = vmatpush.bf16.msra.mxu0 %v144
    %187 = vmatpush.bf16.msra.mxu0 %v143
    %188 = vmatmul.bf16.gmra.mxu0 %v68
    %v189 = vpop.f32.mrf.mxu0
    %v190 = vadd.f32 %v177, %v189
    %v191 = vpop.f32.mrf.mxu0
    %192 = vdwg.mxu0
    %v193 = vmax.f32 %v190, 0.0
    %v194 = vpack.c.bf16 %v193, %v193
    %v195 = vld [vmem:[%s4] sm:$0xf]
    %v196 = vld [vmem:[%s4 + $0x4] sm:$0xf]
    %v197 = vld [vmem:[%s4 + $0x8] sm:$0xf]
    %v198 = vld [vmem:[%s4 + $0xc] sm:$0xf]
    %v199 = vld [vmem:[%s4 + $0x10] sm:$0xf]
    %v200 = vld [vmem:[%s4 + $0x14] sm:$0xf]
    %v201 = vld [vmem:[%s4 + $0x18] sm:$0xf]
    %v202 = vld [vmem:[%s4 + $0x1c] sm:$0xf]
    %v203 = vld [vmem:[%s1] sm:$0x1]
    %v204 = vld [vmem:[%s5] sm:$0xf]
    %v205 = vld [vmem:[%s5 + $0x4] sm:$0x1]
    %v208 = vunpack.c.l.b16 %v204
    %v209 = vunpack.c.l.b16 %v205
    %v210 = vpack.c.b16 %v209, %v208
    %vm211 = vcmask 80896
    %v213 = vsel %vm211, %v203, 0
    %vm215 = vcmask 1044480
    %v217 = vsel %vm215, %v210, 0
    %219 = vmatpush.bf16.msra.mxu0 0
    %220 = vmatpush.bf16.msra.mxu0 0
    %221 = vmatpush.bf16.msra.mxu0 0
    %222 = vmatpush.bf16.msra.mxu0 0
    %223 = vmatpush.bf16.msra.mxu0 0
    %224 = vmatpush.bf16.msra.mxu0 0
    %225 = vmatpush.bf16.msra.mxu0 0
    %226 = vmatpush.bf16.msra.mxu0 %v217
    %227 = vmatmul.bf16.gmra.mxu0 %v213
    %v228 = vpop.f32.mrf.mxu0
    %v229 = vadd.f32 0.0, %v228
    %v230 = vpop.f32.mrf.mxu0
    %231 = vdwg.mxu0
    %v240 = vunpack.c.l.b16 %v195
    %v241 = vunpack.c.l.b16 %v196
    %v242 = vunpack.c.l.b16 %v197
    %v243 = vunpack.c.l.b16 %v198
    %v244 = vunpack.c.l.b16 %v199
    %v245 = vunpack.c.l.b16 %v200
    %v246 = vunpack.c.l.b16 %v201
    %v247 = vunpack.c.l.b16 %v202
    %v248 = vpack.c.b16 %v241, %v240
    %v249 = vpack.c.b16 %v243, %v242
    %v250 = vpack.c.b16 %v245, %v244
    %v251 = vpack.c.b16 %v247, %v246
    %vm256 = vcmask 523264
    %v258 = vsel %vm256, %v194, 0
    %260 = vmatpush.bf16.msra.mxu0 0
    %261 = vmatpush.bf16.msra.mxu0 0
    %262 = vmatpush.bf16.msra.mxu0 0
    %263 = vmatpush.bf16.msra.mxu0 0
    %264 = vmatpush.bf16.msra.mxu0 %v251
    %265 = vmatpush.bf16.msra.mxu0 %v250
    %266 = vmatpush.bf16.msra.mxu0 %v249
    %267 = vmatpush.bf16.msra.mxu0 %v248
    %268 = vmatmul.bf16.gmra.mxu0 %v258
    %v269 = vpop.f32.mrf.mxu0
    %v270 = vadd.f32 %v229, %v269
    %v271 = vpop.f32.mrf.mxu0
    %272 = vdwg.mxu0
    %v273 = vld [vmem:[%s6] sm:$0x1]
    %v275 = vperm.slane %v273, 0
    %v277 = vadd.f32 %v270, %v275
    %vm278 = vcmask 123904
    %279 = vst.msk [vmem:[#allocation2] sm:$0x3] %vm278, %v277
    // Predicated region
    $region30: #{encoder_forward.7} parent=1 // pred_check
      _
    $region31: #{encoder_forward.7} parent=1 // pred_check_branch
      %281 = sbr.rel (0) target = $region33
    $region32: #{encoder_forward.7} parent=1 // pred_region
      %283 = vsyncadd [#allocation3], 0
      %s285 = sshll.u32 [#allocation2], 4
      %s286 = int_to_ptr.vmem [resolvable:$true] %s285
      %s287 = sshll.u32 %s7, 4
      %s288 = int_to_ptr.hbm [resolvable:$true] %s287
      %290 = dma.vmem_to_hbm [thread:$0]  %s286, 32, %s288, [#allocation3]
    $region33: #{encoder_forward.7} parent=1 // pred_fallthru
      _
    // Predicated region
    $region34: #{encoder_forward.7} parent=1 // pred_check
      _
    $region35: #{encoder_forward.7} parent=1 // pred_check_branch
      %292 = sbr.rel (0) target = $region37
    $region36: #{encoder_forward.7} parent=1 // pred_region
      %294 = dma.done [#allocation3], 32
    $region37: #{encoder_forward.7} parent=1 // pred_fallthru
      _
    %295 = vsyncpa [#allocation3], 1

// kernel: encoder_forward.5
$region0: #{encoder_forward.5}
  #allocation0 [shape = 'u32[]', space=smem, size = 0x4, offset = 0x4, fixed_abs, tag = 'smem constant byte address 0x4 - core index']
  #allocation1 [shape = 'u32[72,128]{1,0:T(1,128)}', space=vmem, size = 0x9000, scoped, tag = 'internal scratch']
  %s0 = inlined_call_operand.vmem [shape: bf16[2,15,8,64], index: 0, kind: input, shape index: {}]
  %s1 = inlined_call_operand.vmem [shape: bf16[2,15,7,64], index: 1, kind: input, shape index: {}]
  %s2 = inlined_call_operand.vmem [shape: bf16[16,64,64], index: 2, kind: input, shape index: {}]
  %s3 = inlined_call_operand.vmem [shape: f32[1,64], index: 3, kind: input, shape index: {}]
  %s4 = inlined_call_operand.vmem [shape: bf16[2,6,6,64], index: 4, kind: output, shape index: {}]
  %s5 = sld [smem:[#allocation0]]
  $region56: #{encoder_forward.5} parent=0
    _
  %s7 = ssub.s32 1, %s5
  %s8 = scalar_select 0, %s7, %s5
  loop: start=0, step=1, limit=4
  $region2: #{encoder_forward.5} parent=0 // loop_pre_header
    _
  $region3: #{encoder_forward.5} parent=0 // loop_header
    %s10 = sphi 0, %s14
    %p11 = scmp.ge.s32.totalorder %s10, 4
    %s20 = sphi 0, %s22
    %s23 = sphi 0, %s20
    %s24 = sphi 0, %s23
    %s40 = sphi 0, %s24
    %s46 = sphi 0, %s48
    %s49 = sphi 0, %s46
    %s50 = sphi 0, %s49
    %s66 = sphi 0, %s50
    %s70 = sphi 0, %s70
    %s72 = sphi 0, %s70
    %s73 = sphi 0, %s72
    %s87 = sphi 0, %s73
    %s91 = sphi 0, %s91
    %s93 = sphi 0, %s91
    %s94 = sphi 0, %s93
    %s108 = sphi 0, %s94
    %s114 = sphi 0, %s116
    %s117 = sphi 0, %s114
    %s118 = sphi 0, %s117
    %s134 = sphi 0, %s118
  $region4: #{encoder_forward.5} parent=0 // loop_header_branch
    %13 = sbr.rel (%p11) target = $region8
  $region5: #{encoder_forward.5} parent=0 // loop_body
    %s15 = ssub.s32 %s10, 1
    %s16 = ssub.s32 %s10, 2
    %s17 = sadd.s32 %s10, 1
    %s18 = ssub.s32 %s10, %s17
    %p19 = scmp.eq.s32.totalorder %s18, 0
    %s21 = sadd.s32 %s20, 1
    %s22 = scalar_select %p19, %s20, %s21
    %p25 = pneg %p19
    %p26 = scmp.eq.s32.totalorder %s10, 1
    %p27 = por %p25, %p26
    %p28 = scmp.ne.s32.totalorder %s20, %s23
    %p29 = scmp.eq.s32.totalorder %s10, 0
    %p30 = por %p28, %p29
    %p31 = scmp.ne.s32.totalorder %s20, %s23
    %p32 = scmp.eq.s32.totalorder %s15, 1
    %p33 = por %p31, %p32
    %p34 = scmp.ne.s32.totalorder %s23, %s24
    %p35 = scmp.eq.s32.totalorder %s15, 0
    %p36 = por %p34, %p35
    %p37 = scmp.ne.s32.totalorder %s23, %s24
    %p38 = scmp.eq.s32.totalorder %s16, 1
    %p39 = por %p37, %p38
    %p41 = scmp.ne.s32.totalorder %s24, %s40
    %p42 = scmp.eq.s32.totalorder %s16, 0
    %p43 = por %p41, %p42
    %s44 = ssub.s32 %s10, %s17
    %p45 = scmp.eq.s32.totalorder %s44, 0
    %s47 = sadd.s32 %s46, 1
    %s48 = scalar_select %p45, %s46, %s47
    %p51 = pneg %p45
    %p52 = scmp.eq.s32.totalorder %s10, 1
    %p53 = por %p51, %p52
    %p54 = scmp.ne.s32.totalorder %s46, %s49
    %p55 = scmp.eq.s32.totalorder %s10, 0
    %p56 = por %p54, %p55
    %p57 = scmp.ne.s32.totalorder %s46, %s49
    %p58 = scmp.eq.s32.totalorder %s15, 1
    %p59 = por %p57, %p58
    %p60 = scmp.ne.s32.totalorder %s49, %s50
    %p61 = scmp.eq.s32.totalorder %s15, 0
    %p62 = por %p60, %p61
    %p63 = scmp.ne.s32.totalorder %s49, %s50
    %p64 = scmp.eq.s32.totalorder %s16, 1
    %p65 = por %p63, %p64
    %p67 = scmp.ne.s32.totalorder %s50, %s66
    %p68 = scmp.eq.s32.totalorder %s16, 0
    %p69 = por %p67, %p68
    %s71 = sadd.s32 %s70, 1
    %p74 = scmp.eq.s32.totalorder %s10, 1
    %p75 = scmp.ne.s32.totalorder %s70, %s72
    %p76 = scmp.eq.s32.totalorder %s10, 0
    %p77 = por %p75, %p76
    %p78 = scmp.ne.s32.totalorder %s70, %s72
    %p79 = scmp.eq.s32.totalorder %s15, 1
    %p80 = por %p78, %p79
    %p81 = scmp.ne.s32.totalorder %s72, %s73
    %p82 = scmp.eq.s32.totalorder %s15, 0
    %p83 = por %p81, %p82
    %p84 = scmp.ne.s32.totalorder %s72, %s73
    %p85 = scmp.eq.s32.totalorder %s16, 1
    %p86 = por %p84, %p85
    %p88 = scmp.ne.s32.totalorder %s73, %s87
    %p89 = scmp.eq.s32.totalorder %s16, 0
    %p90 = por %p88, %p89
    %s92 = sadd.s32 %s91, 1
    %p95 = scmp.eq.s32.totalorder %s10, 1
    %p96 = scmp.ne.s32.totalorder %s91, %s93
    %p97 = scmp.eq.s32.totalorder %s10, 0
    %p98 = por %p96, %p97
    %p99 = scmp.ne.s32.totalorder %s91, %s93
    %p100 = scmp.eq.s32.totalorder %s15, 1
    %p101 = por %p99, %p100
    %p102 = scmp.ne.s32.totalorder %s93, %s94
    %p103 = scmp.eq.s32.totalorder %s15, 0
    %p104 = por %p102, %p103
    %p105 = scmp.ne.s32.totalorder %s93, %s94
    %p106 = scmp.eq.s32.totalorder %s16, 1
    %p107 = por %p105, %p106
    %p109 = scmp.ne.s32.totalorder %s94, %s108
    %p110 = scmp.eq.s32.totalorder %s16, 0
    %p111 = por %p109, %p110
    %s112 = ssub.s32 %s10, %s17
    %p113 = scmp.eq.s32.totalorder %s112, 0
    %s115 = sadd.s32 %s114, 1
    %s116 = scalar_select %p113, %s114, %s115
    %p119 = pneg %p113
    %p120 = scmp.eq.s32.totalorder %s10, 1
    %p121 = por %p119, %p120
    %p122 = scmp.ne.s32.totalorder %s114, %s117
    %p123 = scmp.eq.s32.totalorder %s10, 0
    %p124 = por %p122, %p123
    %p125 = scmp.ne.s32.totalorder %s114, %s117
    %p126 = scmp.eq.s32.totalorder %s15, 1
    %p127 = por %p125, %p126
    %p128 = scmp.ne.s32.totalorder %s117, %s118
    %p129 = scmp.eq.s32.totalorder %s15, 0
    %p130 = por %p128, %p129
    %p131 = scmp.ne.s32.totalorder %s117, %s118
    %p132 = scmp.eq.s32.totalorder %s16, 1
    %p133 = por %p131, %p132
    %p135 = scmp.ne.s32.totalorder %s118, %s134
    %p136 = scmp.eq.s32.totalorder %s16, 0
    %p137 = por %p135, %p136
    %p138 = scmp.le.s32.totalorder 1, %s10
    %p139 = scmp.lt.s32.totalorder %s10, 3
    %p140 = pnand %p138, %p139
    %p141 = pneg %p140
    // Predicated region
    $region9: #{encoder_forward.5} parent=5 // pred_check
      _
    $region10: #{encoder_forward.5} parent=5 // pred_check_branch
      %143 = sbr.rel (%p140) target = $region12
    $region11: #{encoder_forward.5} parent=5 // pred_region
      %s144 = ssub.s32 %s10, 1
      // Predicated region
      $region13: #{encoder_forward.5} parent=11 // pred_check
        %p145 = pneg %p83
      $region14: #{encoder_forward.5} parent=11 // pred_check_branch
        %147 = sbr.rel (%p145) target = $region16
      $region15: #{encoder_forward.5} parent=11 // pred_region
        _
      $region16: #{encoder_forward.5} parent=11 // pred_fallthru
        _
      // Predicated region
      $region17: #{encoder_forward.5} parent=11 // pred_check
        %p148 = pneg %p104
      $region18: #{encoder_forward.5} parent=11 // pred_check_branch
        %150 = sbr.rel (%p148) target = $region20
      $region19: #{encoder_forward.5} parent=11 // pred_region
        _
      $region20: #{encoder_forward.5} parent=11 // pred_fallthru
        _
    $region12: #{encoder_forward.5} parent=5 // pred_fallthru
      _
    %p151 = scmp.lt.s32.totalorder %s10, 2
    // Predicated region
    $region21: #{encoder_forward.5} parent=5 // pred_check
      %p152 = pneg %p151
    $region22: #{encoder_forward.5} parent=5 // pred_check_branch
      %154 = sbr.rel (%p152) target = $region24
    $region23: #{encoder_forward.5} parent=5 // pred_region
      // Predicated region
      $region25: #{encoder_forward.5} parent=23 // pred_check
        %p155 = pneg %p30
      $region26: #{encoder_forward.5} parent=23 // pred_check_branch
        %157 = sbr.rel (%p155) target = $region28
      $region27: #{encoder_forward.5} parent=23 // pred_region
        %p158 = scmp.lt.s32.totalorder %s10, 1
        %s159 = scalar_select %p158, %s10, 1
        %s160 = smul.addr %s159, 15
        %s161 = smul.addr %s160, 4
        %s162 = scalar_lea.vmem %s0, %s161
      $region28: #{encoder_forward.5} parent=23 // pred_fallthru
        _
      // Predicated region
      $region29: #{encoder_forward.5} parent=23 // pred_check
        %p163 = pneg %p56
      $region30: #{encoder_forward.5} parent=23 // pred_check_branch
        %165 = sbr.rel (%p163) target = $region32
      $region31: #{encoder_forward.5} parent=23 // pred_region
        %p166 = scmp.lt.s32.totalorder %s10, 1
        %s167 = scalar_select %p166, %s10, 1
        %s168 = smul.addr %s167, 15
        %s169 = smul.addr %s168, 4
        %s170 = scalar_lea.vmem %s1, %s169
      $region32: #{encoder_forward.5} parent=23 // pred_fallthru
        _
    $region24: #{encoder_forward.5} parent=5 // pred_fallthru
      _
    %p171 = scmp.le.s32.totalorder 1, %s10
    %p172 = scmp.lt.s32.totalorder %s10, 3
    %p173 = pnand %p171, %p172
    %p174 = pneg %p173
    // Predicated region
    $region33: #{encoder_forward.5} parent=5 // pred_check
      _
    $region34: #{encoder_forward.5} parent=5 // pred_check_branch
      %176 = sbr.rel (%p173) target = $region36
    $region35: #{encoder_forward.5} parent=5 // pred_region
      %s177 = ssub.s32 %s10, 1
      %p178 = scmp.lt.s32.totalorder %s15, 1
      %s179 = scalar_select %p178, %s15, 1
      %s180 = smul.addr %s179, 15
      %s181 = smul.addr %s180, 4
      %s182 = scalar_lea.vmem %s0, %s181
      %p183 = pneg %p36
      %p184 = pneg %p33
      %p185 = scmp.lt.s32.totalorder %s15, 1
      %s186 = scalar_select %p185, %s15, 1
      %s187 = smul.addr %s186, 15
      %s188 = smul.addr %s187, 4
      %s189 = scalar_lea.vmem %s1, %s188
      %p190 = pneg %p62
      %p191 = pneg %p59
      %p192 = pneg %p83
      %p193 = pneg %p80
      %p194 = pneg %p104
      %p195 = pneg %p101
      %p196 = pneg %p130
      %p197 = pneg %p127
      %p198 = scmp.lt.s32.totalorder %s15, 1
      %s199 = scalar_select %p198, %s15, 1
      %s200 = smul.addr %s199, 6
      %s201 = smul.addr %s200, 4
      %s202 = scalar_lea.vmem %s4, %s201
      %p203 = scmp.lt.s32.totalorder %s15, 1
      %s204 = scalar_select %p203, %s15, 1
      %s205 = smul.addr %s204, 15
      %s206 = smul.addr %s205, 4
      %s207 = scalar_lea.vmem %s0, %s206
      %p208 = scmp.lt.s32.totalorder %s15, 1
      %s209 = scalar_select %p208, %s15, 1
      %s210 = smul.addr %s209, 15
      %s211 = smul.addr %s210, 4
      %s212 = scalar_lea.vmem %s1, %s211
      %p213 = scmp.lt.s32.totalorder %s15, 1
      %s214 = scalar_select %p213, %s15, 1
      %s215 = smul.addr %s214, 6
      %s216 = smul.addr %s215, 4
      %s217 = scalar_lea.vmem %s4, %s216
      %v219 = vld [vmem:[%s3] sm:$0x1]
      loop: start=0, step=1, limit=6
      $region37: #{encoder_forward.5} parent=35 // loop_pre_header
        _
      $region38: #{encoder_forward.5} parent=35 // loop_header
        %s221 = sphi 0, %s225
        %p222 = scmp.ge.s32.totalorder %s221, 6
      $region39: #{encoder_forward.5} parent=35 // loop_header_branch
        %224 = sbr.rel (%p222) target = $region43
      $region40: #{encoder_forward.5} parent=35 // loop_body
        %s226 = smul.u32 %s221, 2
        %s227 = smul.addr %s226, 4
        %s228 = scalar_lea.vmem %s207, %s227
        %v229 = vld [vmem:[%s228] sm:$0x7]
        %v230 = vld [vmem:[%s2] sm:$0xf]
        %v231 = vld [vmem:[%s2 + $0x4] sm:$0xf]
        %v232 = vld [vmem:[%s2 + $0x8] sm:$0xf]
        %v233 = vld [vmem:[%s2 + $0xc] sm:$0xf]
        %v234 = vld [vmem:[%s2 + $0x10] sm:$0xf]
        %v235 = vld [vmem:[%s2 + $0x14] sm:$0xf]
        %v236 = vld [vmem:[%s2 + $0x18] sm:$0xf]
        %v237 = vld [vmem:[%s2 + $0x1c] sm:$0xf]
        %s238 = smul.addr %s226, 4
        %s239 = scalar_lea.vmem %s212, %s238
        %v240 = vld [vmem:[%s239] sm:$0x7]
        %s241 = scalar_lea.vmem %s2, 32
        %v242 = vld [vmem:[%s241] sm:$0xf]
        %v243 = vld [vmem:[%s241 + $0x4] sm:$0xf]
        %v244 = vld [vmem:[%s241 + $0x8] sm:$0xf]
        %v245 = vld [vmem:[%s241 + $0xc] sm:$0xf]
        %v246 = vld [vmem:[%s241 + $0x10] sm:$0xf]
        %v247 = vld [vmem:[%s241 + $0x14] sm:$0xf]
        %v248 = vld [vmem:[%s241 + $0x18] sm:$0xf]
        %v249 = vld [vmem:[%s241 + $0x1c] sm:$0xf]
        %v258 = vunpack.c.l.b16 %v242
        %v259 = vunpack.c.l.b16 %v243
        %v260 = vunpack.c.l.b16 %v244
        %v261 = vunpack.c.l.b16 %v245
        %v262 = vunpack.c.l.b16 %v246
        %v263 = vunpack.c.l.b16 %v247
        %v264 = vunpack.c.l.b16 %v248
        %v265 = vunpack.c.l.b16 %v249
        %v266 = vpack.c.b16 %v259, %v258
        %v267 = vpack.c.b16 %v261, %v260
        %v268 = vpack.c.b16 %v263, %v262
        %v269 = vpack.c.b16 %v265, %v264
        %vm274 = vcmask 523264
        %v276 = vsel %vm274, %v240, 0
        %278 = vmatpush.bf16.msra.mxu0 0
        %279 = vmatpush.bf16.msra.mxu0 0
        %280 = vmatpush.bf16.msra.mxu0 0
        %281 = vmatpush.bf16.msra.mxu0 0
        %282 = vmatpush.bf16.msra.mxu0 %v269
        %283 = vmatpush.bf16.msra.mxu0 %v268
        %284 = vmatpush.bf16.msra.mxu0 %v267
        %285 = vmatpush.bf16.msra.mxu0 %v266
        %286 = vmatmul.bf16.gmra.mxu0 %v276
        %v287 = vpop.f32.mrf.mxu0
        %v288 = vadd.f32 0.0, %v287
        %v289 = vpop.f32.mrf.mxu0
        %290 = vdwg.mxu0
        %v299 = vunpack.c.l.b16 %v230
        %v300 = vunpack.c.l.b16 %v231
        %v301 = vunpack.c.l.b16 %v232
        %v302 = vunpack.c.l.b16 %v233
        %v303 = vunpack.c.l.b16 %v234
        %v304 = vunpack.c.l.b16 %v235
        %v305 = vunpack.c.l.b16 %v236
        %v306 = vunpack.c.l.b16 %v237
        %v307 = vpack.c.b16 %v300, %v299
        %v308 = vpack.c.b16 %v302, %v301
        %v309 = vpack.c.b16 %v304, %v303
        %v310 = vpack.c.b16 %v306, %v305
        %v316 = vsel %vm274, %v229, 0
        %318 = vmatpush.bf16.msra.mxu0 0
        %319 = vmatpush.bf16.msra.mxu0 0
        %320 = vmatpush.bf16.msra.mxu0 0
        %321 = vmatpush.bf16.msra.mxu0 0
        %322 = vmatpush.bf16.msra.mxu0 %v310
        %323 = vmatpush.bf16.msra.mxu0 %v309
        %324 = vmatpush.bf16.msra.mxu0 %v308
        %325 = vmatpush.bf16.msra.mxu0 %v307
        %326 = vmatmul.bf16.gmra.mxu0 %v316
        %v327 = vpop.f32.mrf.mxu0
        %v328 = vadd.f32 %v288, %v327
        %v329 = vpop.f32.mrf.mxu0
        %330 = vdwg.mxu0
        %v331 = vld [vmem:[%s228] sm:$0xf]
        %s332 = scalar_lea.vmem %s2, 64
        %v333 = vld [vmem:[%s332] sm:$0xf]
        %v334 = vld [vmem:[%s332 + $0x4] sm:$0xf]
        %v335 = vld [vmem:[%s332 + $0x8] sm:$0xf]
        %v336 = vld [vmem:[%s332 + $0xc] sm:$0xf]
        %v337 = vld [vmem:[%s332 + $0x10] sm:$0xf]
        %v338 = vld [vmem:[%s332 + $0x14] sm:$0xf]
        %v339 = vld [vmem:[%s332 + $0x18] sm:$0xf]
        %v340 = vld [vmem:[%s332 + $0x1c] sm:$0xf]
        %v342 = vunpack.c.l.b16 %v331
        %v343 = vpack.c.b16 %v342, %v342
        %v345 = vshrl.u32 %v343, 16
        %v347 = vshll.u32 %v343, 16
        %v349 = vrot.slane %v347, 1
        %v350 = vor.u32 %v345, %v349
        %v359 = vunpack.c.l.b16 %v333
        %v360 = vunpack.c.l.b16 %v334
        %v361 = vunpack.c.l.b16 %v335
        %v362 = vunpack.c.l.b16 %v336
        %v363 = vunpack.c.l.b16 %v337
        %v364 = vunpack.c.l.b16 %v338
        %v365 = vunpack.c.l.b16 %v339
        %v366 = vunpack.c.l.b16 %v340
        %v367 = vpack.c.b16 %v360, %v359
        %v368 = vpack.c.b16 %v362, %v361
        %v369 = vpack.c.b16 %v364, %v363
        %v370 = vpack.c.b16 %v366, %v365
        %v376 = vsel %vm274, %v350, 0
        %378 = vmatpush.bf16.msra.mxu0 0
        %379 = vmatpush.bf16.msra.mxu0 0
        %380 = vmatpush.bf16.msra.mxu0 0
        %381 = vmatpush.bf16.msra.mxu0 0
        %382 = vmatpush.bf16.msra.mxu0 %v370
        %383 = vmatpush.bf16.msra.mxu0 %v369
        %384 = vmatpush.bf16.msra.mxu0 %v368
        %385 = vmatpush.bf16.msra.mxu0 %v367
        %386 = vmatmul.bf16.gmra.mxu0 %v376
        %v387 = vpop.f32.mrf.mxu0
        %v388 = vadd.f32 0.0, %v387
        %v389 = vpop.f32.mrf.mxu0
        %390 = vdwg.mxu0
        %v391 = vadd.f32 %v328, %v388
        %v392 = vld [vmem:[%s239] sm:$0xf]
        %s393 = scalar_lea.vmem %s2, 96
        %v394 = vld [vmem:[%s393] sm:$0xf]
        %v395 = vld [vmem:[%s393 + $0x4] sm:$0xf]
        %v396 = vld [vmem:[%s393 + $0x8] sm:$0xf]
        %v397 = vld [vmem:[%s393 + $0xc] sm:$0xf]
        %v398 = vld [vmem:[%s393 + $0x10] sm:$0xf]
        %v399 = vld [vmem:[%s393 + $0x14] sm:$0xf]
        %v400 = vld [vmem:[%s393 + $0x18] sm:$0xf]
        %v401 = vld [vmem:[%s393 + $0x1c] sm:$0xf]
        %v403 = vunpack.c.l.b16 %v392
        %v404 = vpack.c.b16 %v403, %v403
        %v406 = vshrl.u32 %v404, 16
        %v408 = vshll.u32 %v404, 16
        %v410 = vrot.slane %v408, 1
        %v411 = vor.u32 %v406, %v410
        %v420 = vunpack.c.l.b16 %v394
        %v421 = vunpack.c.l.b16 %v395
        %v422 = vunpack.c.l.b16 %v396
        %v423 = vunpack.c.l.b16 %v397
        %v424 = vunpack.c.l.b16 %v398
        %v425 = vunpack.c.l.b16 %v399
        %v426 = vunpack.c.l.b16 %v400
        %v427 = vunpack.c.l.b16 %v401
        %v428 = vpack.c.b16 %v421, %v420
        %v429 = vpack.c.b16 %v423, %v422
        %v430 = vpack.c.b16 %v425, %v424
        %v431 = vpack.c.b16 %v427, %v426
        %v437 = vsel %vm274, %v411, 0
        %439 = vmatpush.bf16.msra.mxu0 0
        %440 = vmatpush.bf16.msra.mxu0 0
        %441 = vmatpush.bf16.msra.mxu0 0
        %442 = vmatpush.bf16.msra.mxu0 0
        %443 = vmatpush.bf16.msra.mxu0 %v431
        %444 = vmatpush.bf16.msra.mxu0 %v430
        %445 = vmatpush.bf16.msra.mxu0 %v429
        %446 = vmatpush.bf16.msra.mxu0 %v428
        %447 = vmatmul.bf16.gmra.mxu0 %v437
        %v448 = vpop.f32.mrf.mxu0
        %v449 = vadd.f32 0.0, %v448
        %v450 = vpop.f32.mrf.mxu0
        %451 = vdwg.mxu0
        %v452 = vadd.f32 %v391, %v449
        %s453 = sadd.s32 %s226, 1
        %s454 = smul.addr %s453, 4
        %s455 = scalar_lea.vmem %s207, %s454
        %v456 = vld [vmem:[%s455] sm:$0x7]
        %s457 = scalar_lea.vmem %s2, 128
        %v458 = vld [vmem:[%s457] sm:$0xf]
        %v459 = vld [vmem:[%s457 + $0x4] sm:$0xf]
        %v460 = vld [vmem:[%s457 + $0x8] sm:$0xf]
        %v461 = vld [vmem:[%s457 + $0xc] sm:$0xf]
        %v462 = vld [vmem:[%s457 + $0x10] sm:$0xf]
        %v463 = vld [vmem:[%s457 + $0x14] sm:$0xf]
        %v464 = vld [vmem:[%s457 + $0x18] sm:$0xf]
        %v465 = vld [vmem:[%s457 + $0x1c] sm:$0xf]
        %v474 = vunpack.c.l.b16 %v458
        %v475 = vunpack.c.l.b16 %v459
        %v476 = vunpack.c.l.b16 %v460
        %v477 = vunpack.c.l.b16 %v461
        %v478 = vunpack.c.l.b16 %v462
        %v479 = vunpack.c.l.b16 %v463
        %v480 = vunpack.c.l.b16 %v464
        %v481 = vunpack.c.l.b16 %v465
        %v482 = vpack.c.b16 %v475, %v474
        %v483 = vpack.c.b16 %v477, %v476
        %v484 = vpack.c.b16 %v479, %v478
        %v485 = vpack.c.b16 %v481, %v480
        %v491 = vsel %vm274, %v456, 0
        %493 = vmatpush.bf16.msra.mxu0 0
        %494 = vmatpush.bf16.msra.mxu0 0
        %495 = vmatpush.bf16.msra.mxu0 0
        %496 = vmatpush.bf16.msra.mxu0 0
        %497 = vmatpush.bf16.msra.mxu0 %v485
        %498 = vmatpush.bf16.msra.mxu0 %v484
        %499 = vmatpush.bf16.msra.mxu0 %v483
        %500 = vmatpush.bf16.msra.mxu0 %v482
        %501 = vmatmul.bf16.gmra.mxu0 %v491
        %v502 = vpop.f32.mrf.mxu0
        %v503 = vadd.f32 0.0, %v502
        %v504 = vpop.f32.mrf.mxu0
        %505 = vdwg.mxu0
        %v506 = vadd.f32 %v452, %v503
        %s507 = smul.addr %s453, 4
        %s508 = scalar_lea.vmem %s212, %s507
        %v509 = vld [vmem:[%s508] sm:$0x7]
        %s510 = scalar_lea.vmem %s2, 160
        %v511 = vld [vmem:[%s510] sm:$0xf]
        %v512 = vld [vmem:[%s510 + $0x4] sm:$0xf]
        %v513 = vld [vmem:[%s510 + $0x8] sm:$0xf]
        %v514 = vld [vmem:[%s510 + $0xc] sm:$0xf]
        %v515 = vld [vmem:[%s510 + $0x10] sm:$0xf]
        %v516 = vld [vmem:[%s510 + $0x14] sm:$0xf]
        %v517 = vld [vmem:[%s510 + $0x18] sm:$0xf]
        %v518 = vld [vmem:[%s510 + $0x1c] sm:$0xf]
        %v527 = vunpack.c.l.b16 %v511
        %v528 = vunpack.c.l.b16 %v512
        %v529 = vunpack.c.l.b16 %v513
        %v530 = vunpack.c.l.b16 %v514
        %v531 = vunpack.c.l.b16 %v515
        %v532 = vunpack.c.l.b16 %v516
        %v533 = vunpack.c.l.b16 %v517
        %v534 = vunpack.c.l.b16 %v518
        %v535 = vpack.c.b16 %v528, %v527
        %v536 = vpack.c.b16 %v530, %v529
        %v537 = vpack.c.b16 %v532, %v531
        %v538 = vpack.c.b16 %v534, %v533
        %v544 = vsel %vm274, %v509, 0
        %546 = vmatpush.bf16.msra.mxu0 0
        %547 = vmatpush.bf16.msra.mxu0 0
        %548 = vmatpush.bf16.msra.mxu0 0
        %549 = vmatpush.bf16.msra.mxu0 0
        %550 = vmatpush.bf16.msra.mxu0 %v538
        %551 = vmatpush.bf16.msra.mxu0 %v537
        %552 = vmatpush.bf16.msra.mxu0 %v536
        %553 = vmatpush.bf16.msra.mxu0 %v535
        %554 = vmatmul.bf16.gmra.mxu0 %v544
        %v555 = vpop.f32.mrf.mxu0
        %v556 = vadd.f32 0.0, %v555
        %v557 = vpop.f32.mrf.mxu0
        %558 = vdwg.mxu0
        %v559 = vadd.f32 %v506, %v556
        %v560 = vld [vmem:[%s455] sm:$0xf]
        %s561 = scalar_lea.vmem %s2, 192
        %v562 = vld [vmem:[%s561] sm:$0xf]
        %v563 = vld [vmem:[%s561 + $0x4] sm:$0xf]
        %v564 = vld [vmem:[%s561 + $0x8] sm:$0xf]
        %v565 = vld [vmem:[%s561 + $0xc] sm:$0xf]
        %v566 = vld [vmem:[%s561 + $0x10] sm:$0xf]
        %v567 = vld [vmem:[%s561 + $0x14] sm:$0xf]
        %v568 = vld [vmem:[%s561 + $0x18] sm:$0xf]
        %v569 = vld [vmem:[%s561 + $0x1c] sm:$0xf]
        %v571 = vunpack.c.l.b16 %v560
        %v572 = vpack.c.b16 %v571, %v571
        %v574 = vshrl.u32 %v572, 16
        %v576 = vshll.u32 %v572, 16
        %v578 = vrot.slane %v576, 1
        %v579 = vor.u32 %v574, %v578
        %v588 = vunpack.c.l.b16 %v562
        %v589 = vunpack.c.l.b16 %v563
        %v590 = vunpack.c.l.b16 %v564
        %v591 = vunpack.c.l.b16 %v565
        %v592 = vunpack.c.l.b16 %v566
        %v593 = vunpack.c.l.b16 %v567
        %v594 = vunpack.c.l.b16 %v568
        %v595 = vunpack.c.l.b16 %v569
        %v596 = vpack.c.b16 %v589, %v588
        %v597 = vpack.c.b16 %v591, %v590
        %v598 = vpack.c.b16 %v593, %v592
        %v599 = vpack.c.b16 %v595, %v594
        %v605 = vsel %vm274, %v579, 0
        %607 = vmatpush.bf16.msra.mxu0 0
        %608 = vmatpush.bf16.msra.mxu0 0
        %609 = vmatpush.bf16.msra.mxu0 0
        %610 = vmatpush.bf16.msra.mxu0 0
        %611 = vmatpush.bf16.msra.mxu0 %v599
        %612 = vmatpush.bf16.msra.mxu0 %v598
        %613 = vmatpush.bf16.msra.mxu0 %v597
        %614 = vmatpush.bf16.msra.mxu0 %v596
        %615 = vmatmul.bf16.gmra.mxu0 %v605
        %v616 = vpop.f32.mrf.mxu0
        %v617 = vadd.f32 0.0, %v616
        %v618 = vpop.f32.mrf.mxu0
        %619 = vdwg.mxu0
        %v620 = vadd.f32 %v559, %v617
        %v621 = vld [vmem:[%s508] sm:$0xf]
        %s622 = scalar_lea.vmem %s2, 224
        %v623 = vld [vmem:[%s622] sm:$0xf]
        %v624 = vld [vmem:[%s622 + $0x4] sm:$0xf]
        %v625 = vld [vmem:[%s622 + $0x8] sm:$0xf]
        %v626 = vld [vmem:[%s622 + $0xc] sm:$0xf]
        %v627 = vld [vmem:[%s622 + $0x10] sm:$0xf]
        %v628 = vld [vmem:[%s622 + $0x14] sm:$0xf]
        %v629 = vld [vmem:[%s622 + $0x18] sm:$0xf]
        %v630 = vld [vmem:[%s622 + $0x1c] sm:$0xf]
        %v632 = vunpack.c.l.b16 %v621
        %v633 = vpack.c.b16 %v632, %v632
        %v635 = vshrl.u32 %v633, 16
        %v637 = vshll.u32 %v633, 16
        %v639 = vrot.slane %v637, 1
        %v640 = vor.u32 %v635, %v639
        %v649 = vunpack.c.l.b16 %v623
        %v650 = vunpack.c.l.b16 %v624
        %v651 = vunpack.c.l.b16 %v625
        %v652 = vunpack.c.l.b16 %v626
        %v653 = vunpack.c.l.b16 %v627
        %v654 = vunpack.c.l.b16 %v628
        %v655 = vunpack.c.l.b16 %v629
        %v656 = vunpack.c.l.b16 %v630
        %v657 = vpack.c.b16 %v650, %v649
        %v658 = vpack.c.b16 %v652, %v651
        %v659 = vpack.c.b16 %v654, %v653
        %v660 = vpack.c.b16 %v656, %v655
        %v666 = vsel %vm274, %v640, 0
        %668 = vmatpush.bf16.msra.mxu0 0
        %669 = vmatpush.bf16.msra.mxu0 0
        %670 = vmatpush.bf16.msra.mxu0 0
        %671 = vmatpush.bf16.msra.mxu0 0
        %672 = vmatpush.bf16.msra.mxu0 %v660
        %673 = vmatpush.bf16.msra.mxu0 %v659
        %674 = vmatpush.bf16.msra.mxu0 %v658
        %675 = vmatpush.bf16.msra.mxu0 %v657
        %676 = vmatmul.bf16.gmra.mxu0 %v666
        %v677 = vpop.f32.mrf.mxu0
        %v678 = vadd.f32 0.0, %v677
        %v679 = vpop.f32.mrf.mxu0
        %680 = vdwg.mxu0
        %v681 = vadd.f32 %v620, %v678
        %s682 = sadd.s32 %s226, 2
        %s683 = smul.addr %s682, 4
        %s684 = scalar_lea.vmem %s207, %s683
        %v685 = vld [vmem:[%s684] sm:$0x7]
        %s686 = scalar_lea.vmem %s2, 256
        %v687 = vld [vmem:[%s686] sm:$0xf]
        %v688 = vld [vmem:[%s686 + $0x4] sm:$0xf]
        %v689 = vld [vmem:[%s686 + $0x8] sm:$0xf]
        %v690 = vld [vmem:[%s686 + $0xc] sm:$0xf]
        %v691 = vld [vmem:[%s686 + $0x10] sm:$0xf]
        %v692 = vld [vmem:[%s686 + $0x14] sm:$0xf]
        %v693 = vld [vmem:[%s686 + $0x18] sm:$0xf]
        %v694 = vld [vmem:[%s686 + $0x1c] sm:$0xf]
        %v703 = vunpack.c.l.b16 %v687
        %v704 = vunpack.c.l.b16 %v688
        %v705 = vunpack.c.l.b16 %v689
        %v706 = vunpack.c.l.b16 %v690
        %v707 = vunpack.c.l.b16 %v691
        %v708 = vunpack.c.l.b16 %v692
        %v709 = vunpack.c.l.b16 %v693
        %v710 = vunpack.c.l.b16 %v694
        %v711 = vpack.c.b16 %v704, %v703
        %v712 = vpack.c.b16 %v706, %v705
        %v713 = vpack.c.b16 %v708, %v707
        %v714 = vpack.c.b16 %v710, %v709
        %v720 = vsel %vm274, %v685, 0
        %722 = vmatpush.bf16.msra.mxu0 0
        %723 = vmatpush.bf16.msra.mxu0 0
        %724 = vmatpush.bf16.msra.mxu0 0
        %725 = vmatpush.bf16.msra.mxu0 0
        %726 = vmatpush.bf16.msra.mxu0 %v714
        %727 = vmatpush.bf16.msra.mxu0 %v713
        %728 = vmatpush.bf16.msra.mxu0 %v712
        %729 = vmatpush.bf16.msra.mxu0 %v711
        %730 = vmatmul.bf16.gmra.mxu0 %v720
        %v731 = vpop.f32.mrf.mxu0
        %v732 = vadd.f32 0.0, %v731
        %v733 = vpop.f32.mrf.mxu0
        %734 = vdwg.mxu0
        %v735 = vadd.f32 %v681, %v732
        %s736 = smul.addr %s682, 4
        %s737 = scalar_lea.vmem %s212, %s736
        %v738 = vld [vmem:[%s737] sm:$0x7]
        %s739 = scalar_lea.vmem %s2, 288
        %v740 = vld [vmem:[%s739] sm:$0xf]
        %v741 = vld [vmem:[%s739 + $0x4] sm:$0xf]
        %v742 = vld [vmem:[%s739 + $0x8] sm:$0xf]
        %v743 = vld [vmem:[%s739 + $0xc] sm:$0xf]
        %v744 = vld [vmem:[%s739 + $0x10] sm:$0xf]
        %v745 = vld [vmem:[%s739 + $0x14] sm:$0xf]
        %v746 = vld [vmem:[%s739 + $0x18] sm:$0xf]
        %v747 = vld [vmem:[%s739 + $0x1c] sm:$0xf]
        %v756 = vunpack.c.l.b16 %v740
        %v757 = vunpack.c.l.b16 %v741
        %v758 = vunpack.c.l.b16 %v742
        %v759 = vunpack.c.l.b16 %v743
        %v760 = vunpack.c.l.b16 %v744
        %v761 = vunpack.c.l.b16 %v745
        %v762 = vunpack.c.l.b16 %v746
        %v763 = vunpack.c.l.b16 %v747
        %v764 = vpack.c.b16 %v757, %v756
        %v765 = vpack.c.b16 %v759, %v758
        %v766 = vpack.c.b16 %v761, %v760
        %v767 = vpack.c.b16 %v763, %v762
        %v773 = vsel %vm274, %v738, 0
        %775 = vmatpush.bf16.msra.mxu0 0
        %776 = vmatpush.bf16.msra.mxu0 0
        %777 = vmatpush.bf16.msra.mxu0 0
        %778 = vmatpush.bf16.msra.mxu0 0
        %779 = vmatpush.bf16.msra.mxu0 %v767
        %780 = vmatpush.bf16.msra.mxu0 %v766
        %781 = vmatpush.bf16.msra.mxu0 %v765
        %782 = vmatpush.bf16.msra.mxu0 %v764
        %783 = vmatmul.bf16.gmra.mxu0 %v773
        %v784 = vpop.f32.mrf.mxu0
        %v785 = vadd.f32 0.0, %v784
        %v786 = vpop.f32.mrf.mxu0
        %787 = vdwg.mxu0
        %v788 = vadd.f32 %v735, %v785
        %v789 = vld [vmem:[%s684] sm:$0xf]
        %s790 = scalar_lea.vmem %s2, 320
        %v791 = vld [vmem:[%s790] sm:$0xf]
        %v792 = vld [vmem:[%s790 + $0x4] sm:$0xf]
        %v793 = vld [vmem:[%s790 + $0x8] sm:$0xf]
        %v794 = vld [vmem:[%s790 + $0xc] sm:$0xf]
        %v795 = vld [vmem:[%s790 + $0x10] sm:$0xf]
        %v796 = vld [vmem:[%s790 + $0x14] sm:$0xf]
        %v797 = vld [vmem:[%s790 + $0x18] sm:$0xf]
        %v798 = vld [vmem:[%s790 + $0x1c] sm:$0xf]
        %v800 = vunpack.c.l.b16 %v789
        %v801 = vpack.c.b16 %v800, %v800
        %v803 = vshrl.u32 %v801, 16
        %v805 = vshll.u32 %v801, 16
        %v807 = vrot.slane %v805, 1
        %v808 = vor.u32 %v803, %v807
        %v817 = vunpack.c.l.b16 %v791
        %v818 = vunpack.c.l.b16 %v792
        %v819 = vunpack.c.l.b16 %v793
        %v820 = vunpack.c.l.b16 %v794
        %v821 = vunpack.c.l.b16 %v795
        %v822 = vunpack.c.l.b16 %v796
        %v823 = vunpack.c.l.b16 %v797
        %v824 = vunpack.c.l.b16 %v798
        %v825 = vpack.c.b16 %v818, %v817
        %v826 = vpack.c.b16 %v820, %v819
        %v827 = vpack.c.b16 %v822, %v821
        %v828 = vpack.c.b16 %v824, %v823
        %v834 = vsel %vm274, %v808, 0
        %836 = vmatpush.bf16.msra.mxu0 0
        %837 = vmatpush.bf16.msra.mxu0 0
        %838 = vmatpush.bf16.msra.mxu0 0
        %839 = vmatpush.bf16.msra.mxu0 0
        %840 = vmatpush.bf16.msra.mxu0 %v828
        %841 = vmatpush.bf16.msra.mxu0 %v827
        %842 = vmatpush.bf16.msra.mxu0 %v826
        %843 = vmatpush.bf16.msra.mxu0 %v825
        %844 = vmatmul.bf16.gmra.mxu0 %v834
        %v845 = vpop.f32.mrf.mxu0
        %v846 = vadd.f32 0.0, %v845
        %v847 = vpop.f32.mrf.mxu0
        %848 = vdwg.mxu0
        %v849 = vadd.f32 %v788, %v846
        %v850 = vld [vmem:[%s737] sm:$0xf]
        %s851 = scalar_lea.vmem %s2, 352
        %v852 = vld [vmem:[%s851] sm:$0xf]
        %v853 = vld [vmem:[%s851 + $0x4] sm:$0xf]
        %v854 = vld [vmem:[%s851 + $0x8] sm:$0xf]
        %v855 = vld [vmem:[%s851 + $0xc] sm:$0xf]
        %v856 = vld [vmem:[%s851 + $0x10] sm:$0xf]
        %v857 = vld [vmem:[%s851 + $0x14] sm:$0xf]
        %v858 = vld [vmem:[%s851 + $0x18] sm:$0xf]
        %v859 = vld [vmem:[%s851 + $0x1c] sm:$0xf]
        %v861 = vunpack.c.l.b16 %v850
        %v862 = vpack.c.b16 %v861, %v861
        %v864 = vshrl.u32 %v862, 16
        %v866 = vshll.u32 %v862, 16
        %v868 = vrot.slane %v866, 1
        %v869 = vor.u32 %v864, %v868
        %v878 = vunpack.c.l.b16 %v852
        %v879 = vunpack.c.l.b16 %v853
        %v880 = vunpack.c.l.b16 %v854
        %v881 = vunpack.c.l.b16 %v855
        %v882 = vunpack.c.l.b16 %v856
        %v883 = vunpack.c.l.b16 %v857
        %v884 = vunpack.c.l.b16 %v858
        %v885 = vunpack.c.l.b16 %v859
        %v886 = vpack.c.b16 %v879, %v878
        %v887 = vpack.c.b16 %v881, %v880
        %v888 = vpack.c.b16 %v883, %v882
        %v889 = vpack.c.b16 %v885, %v884
        %v895 = vsel %vm274, %v869, 0
        %897 = vmatpush.bf16.msra.mxu0 0
        %898 = vmatpush.bf16.msra.mxu0 0
        %899 = vmatpush.bf16.msra.mxu0 0
        %900 = vmatpush.bf16.msra.mxu0 0
        %901 = vmatpush.bf16.msra.mxu0 %v889
        %902 = vmatpush.bf16.msra.mxu0 %v888
        %903 = vmatpush.bf16.msra.mxu0 %v887
        %904 = vmatpush.bf16.msra.mxu0 %v886
        %905 = vmatmul.bf16.gmra.mxu0 %v895
        %v906 = vpop.f32.mrf.mxu0
        %v907 = vadd.f32 0.0, %v906
        %v908 = vpop.f32.mrf.mxu0
        %909 = vdwg.mxu0
        %v910 = vadd.f32 %v849, %v907
        %s911 = sadd.s32 %s226, 3
        %s912 = smul.addr %s911, 4
        %s913 = scalar_lea.vmem %s207, %s912
        %v914 = vld [vmem:[%s913] sm:$0x7]
        %s915 = scalar_lea.vmem %s2, 384
        %v916 = vld [vmem:[%s915] sm:$0xf]
        %v917 = vld [vmem:[%s915 + $0x4] sm:$0xf]
        %v918 = vld [vmem:[%s915 + $0x8] sm:$0xf]
        %v919 = vld [vmem:[%s915 + $0xc] sm:$0xf]
        %v920 = vld [vmem:[%s915 + $0x10] sm:$0xf]
        %v921 = vld [vmem:[%s915 + $0x14] sm:$0xf]
        %v922 = vld [vmem:[%s915 + $0x18] sm:$0xf]
        %v923 = vld [vmem:[%s915 + $0x1c] sm:$0xf]
        %v932 = vunpack.c.l.b16 %v916
        %v933 = vunpack.c.l.b16 %v917
        %v934 = vunpack.c.l.b16 %v918
        %v935 = vunpack.c.l.b16 %v919
        %v936 = vunpack.c.l.b16 %v920
        %v937 = vunpack.c.l.b16 %v921
        %v938 = vunpack.c.l.b16 %v922
        %v939 = vunpack.c.l.b16 %v923
        %v940 = vpack.c.b16 %v933, %v932
        %v941 = vpack.c.b16 %v935, %v934
        %v942 = vpack.c.b16 %v937, %v936
        %v943 = vpack.c.b16 %v939, %v938
        %v949 = vsel %vm274, %v914, 0
        %951 = vmatpush.bf16.msra.mxu0 0
        %952 = vmatpush.bf16.msra.mxu0 0
        %953 = vmatpush.bf16.msra.mxu0 0
        %954 = vmatpush.bf16.msra.mxu0 0
        %955 = vmatpush.bf16.msra.mxu0 %v943
        %956 = vmatpush.bf16.msra.mxu0 %v942
        %957 = vmatpush.bf16.msra.mxu0 %v941
        %958 = vmatpush.bf16.msra.mxu0 %v940
        %959 = vmatmul.bf16.gmra.mxu0 %v949
        %v960 = vpop.f32.mrf.mxu0
        %v961 = vadd.f32 0.0, %v960
        %v962 = vpop.f32.mrf.mxu0
        %963 = vdwg.mxu0
        %v964 = vadd.f32 %v910, %v961
        %s965 = smul.addr %s911, 4
        %s966 = scalar_lea.vmem %s212, %s965
        %v967 = vld [vmem:[%s966] sm:$0x7]
        %s968 = scalar_lea.vmem %s2, 416
        %v969 = vld [vmem:[%s968] sm:$0xf]
        %v970 = vld [vmem:[%s968 + $0x4] sm:$0xf]
        %v971 = vld [vmem:[%s968 + $0x8] sm:$0xf]
        %v972 = vld [vmem:[%s968 + $0xc] sm:$0xf]
        %v973 = vld [vmem:[%s968 + $0x10] sm:$0xf]
        %v974 = vld [vmem:[%s968 + $0x14] sm:$0xf]
        %v975 = vld [vmem:[%s968 + $0x18] sm:$0xf]
        %v976 = vld [vmem:[%s968 + $0x1c] sm:$0xf]
        %v985 = vunpack.c.l.b16 %v969
        %v986 = vunpack.c.l.b16 %v970
        %v987 = vunpack.c.l.b16 %v971
        %v988 = vunpack.c.l.b16 %v972
        %v989 = vunpack.c.l.b16 %v973
        %v990 = vunpack.c.l.b16 %v974
        %v991 = vunpack.c.l.b16 %v975
        %v992 = vunpack.c.l.b16 %v976
        %v993 = vpack.c.b16 %v986, %v985
        %v994 = vpack.c.b16 %v988, %v987
        %v995 = vpack.c.b16 %v990, %v989
        %v996 = vpack.c.b16 %v992, %v991
        %v1002 = vsel %vm274, %v967, 0
        %1004 = vmatpush.bf16.msra.mxu0 0
        %1005 = vmatpush.bf16.msra.mxu0 0
        %1006 = vmatpush.bf16.msra.mxu0 0
        %1007 = vmatpush.bf16.msra.mxu0 0
        %1008 = vmatpush.bf16.msra.mxu0 %v996
        %1009 = vmatpush.bf16.msra.mxu0 %v995
        %1010 = vmatpush.bf16.msra.mxu0 %v994
        %1011 = vmatpush.bf16.msra.mxu0 %v993
        %1012 = vmatmul.bf16.gmra.mxu0 %v1002
        %v1013 = vpop.f32.mrf.mxu0
        %v1014 = vadd.f32 0.0, %v1013
        %v1015 = vpop.f32.mrf.mxu0
        %1016 = vdwg.mxu0
        %v1017 = vadd.f32 %v964, %v1014
        %v1018 = vld [vmem:[%s913] sm:$0xf]
        %s1019 = scalar_lea.vmem %s2, 448
        %v1020 = vld [vmem:[%s1019] sm:$0xf]
        %v1021 = vld [vmem:[%s1019 + $0x4] sm:$0xf]
        %v1022 = vld [vmem:[%s1019 + $0x8] sm:$0xf]
        %v1023 = vld [vmem:[%s1019 + $0xc] sm:$0xf]
        %v1024 = vld [vmem:[%s1019 + $0x10] sm:$0xf]
        %v1025 = vld [vmem:[%s1019 + $0x14] sm:$0xf]
        %v1026 = vld [vmem:[%s1019 + $0x18] sm:$0xf]
        %v1027 = vld [vmem:[%s1019 + $0x1c] sm:$0xf]
        %v1029 = vunpack.c.l.b16 %v1018
        %v1030 = vpack.c.b16 %v1029, %v1029
        %v1032 = vshrl.u32 %v1030, 16
        %v1034 = vshll.u32 %v1030, 16
        %v1036 = vrot.slane %v1034, 1
        %v1037 = vor.u32 %v1032, %v1036
        %v1046 = vunpack.c.l.b16 %v1020
        %v1047 = vunpack.c.l.b16 %v1021
        %v1048 = vunpack.c.l.b16 %v1022
        %v1049 = vunpack.c.l.b16 %v1023
        %v1050 = vunpack.c.l.b16 %v1024
        %v1051 = vunpack.c.l.b16 %v1025
        %v1052 = vunpack.c.l.b16 %v1026
        %v1053 = vunpack.c.l.b16 %v1027
        %v1054 = vpack.c.b16 %v1047, %v1046
        %v1055 = vpack.c.b16 %v1049, %v1048
        %v1056 = vpack.c.b16 %v1051, %v1050
        %v1057 = vpack.c.b16 %v1053, %v1052
        %v1063 = vsel %vm274, %v1037, 0
        %1065 = vmatpush.bf16.msra.mxu0 0
        %1066 = vmatpush.bf16.msra.mxu0 0
        %1067 = vmatpush.bf16.msra.mxu0 0
        %1068 = vmatpush.bf16.msra.mxu0 0
        %1069 = vmatpush.bf16.msra.mxu0 %v1057
        %1070 = vmatpush.bf16.msra.mxu0 %v1056
        %1071 = vmatpush.bf16.msra.mxu0 %v1055
        %1072 = vmatpush.bf16.msra.mxu0 %v1054
        %1073 = vmatmul.bf16.gmra.mxu0 %v1063
        %v1074 = vpop.f32.mrf.mxu0
        %v1075 = vadd.f32 0.0, %v1074
        %v1076 = vpop.f32.mrf.mxu0
        %1077 = vdwg.mxu0
        %v1078 = vadd.f32 %v1017, %v1075
        %v1079 = vld [vmem:[%s966] sm:$0xf]
        %s1080 = scalar_lea.vmem %s2, 480
        %v1081 = vld [vmem:[%s1080] sm:$0xf]
        %v1082 = vld [vmem:[%s1080 + $0x4] sm:$0xf]
        %v1083 = vld [vmem:[%s1080 + $0x8] sm:$0xf]
        %v1084 = vld [vmem:[%s1080 + $0xc] sm:$0xf]
        %v1085 = vld [vmem:[%s1080 + $0x10] sm:$0xf]
        %v1086 = vld [vmem:[%s1080 + $0x14] sm:$0xf]
        %v1087 = vld [vmem:[%s1080 + $0x18] sm:$0xf]
        %v1088 = vld [vmem:[%s1080 + $0x1c] sm:$0xf]
        %v1090 = vunpack.c.l.b16 %v1079
        %v1091 = vpack.c.b16 %v1090, %v1090
        %v1093 = vshrl.u32 %v1091, 16
        %v1095 = vshll.u32 %v1091, 16
        %v1097 = vrot.slane %v1095, 1
        %v1098 = vor.u32 %v1093, %v1097
        %v1107 = vunpack.c.l.b16 %v1081
        %v1108 = vunpack.c.l.b16 %v1082
        %v1109 = vunpack.c.l.b16 %v1083
        %v1110 = vunpack.c.l.b16 %v1084
        %v1111 = vunpack.c.l.b16 %v1085
        %v1112 = vunpack.c.l.b16 %v1086
        %v1113 = vunpack.c.l.b16 %v1087
        %v1114 = vunpack.c.l.b16 %v1088
        %v1115 = vpack.c.b16 %v1108, %v1107
        %v1116 = vpack.c.b16 %v1110, %v1109
        %v1117 = vpack.c.b16 %v1112, %v1111
        %v1118 = vpack.c.b16 %v1114, %v1113
        %v1124 = vsel %vm274, %v1098, 0
        %1126 = vmatpush.bf16.msra.mxu0 0
        %1127 = vmatpush.bf16.msra.mxu0 0
        %1128 = vmatpush.bf16.msra.mxu0 0
        %1129 = vmatpush.bf16.msra.mxu0 0
        %1130 = vmatpush.bf16.msra.mxu0 %v1118
        %1131 = vmatpush.bf16.msra.mxu0 %v1117
        %1132 = vmatpush.bf16.msra.mxu0 %v1116
        %1133 = vmatpush.bf16.msra.mxu0 %v1115
        %1134 = vmatmul.bf16.gmra.mxu0 %v1124
        %v1135 = vpop.f32.mrf.mxu0
        %v1136 = vadd.f32 0.0, %v1135
        %v1137 = vpop.f32.mrf.mxu0
        %1138 = vdwg.mxu0
        %v1139 = vadd.f32 %v1078, %v1136
        %v1141 = vperm.slane %v219, 0
        %v1143 = vadd.f32 %v1139, %v1141
        %v1144 = vmax.f32 %v1143, 0.0
        %1145 = vmatpush.bf16.msra.mxu0 0
        %1146 = vmatpush.bf16.msra.mxu0 0
        %1147 = vmatpush.bf16.msra.mxu0 0
        %1148 = vmatpush.bf16.msra.mxu0 0
        %1149 = vmatpush.bf16.msra.mxu0 %v269
        %1150 = vmatpush.bf16.msra.mxu0 %v268
        %1151 = vmatpush.bf16.msra.mxu0 %v267
        %1152 = vmatpush.bf16.msra.mxu0 %v266
        %1153 = vmatmul.bf16.gmra.mxu0 %v376
        %v1154 = vpop.f32.mrf.mxu0
        %v1155 = vadd.f32 0.0, %v1154
        %v1156 = vpop.f32.mrf.mxu0
        %1157 = vdwg.mxu0
        %1158 = vmatpush.bf16.msra.mxu0 0
        %1159 = vmatpush.bf16.msra.mxu0 0
        %1160 = vmatpush.bf16.msra.mxu0 0
        %1161 = vmatpush.bf16.msra.mxu0 0
        %1162 = vmatpush.bf16.msra.mxu0 %v310
        %1163 = vmatpush.bf16.msra.mxu0 %v309
        %1164 = vmatpush.bf16.msra.mxu0 %v308
        %1165 = vmatpush.bf16.msra.mxu0 %v307
        %1166 = vmatmul.bf16.gmra.mxu0 %v276
        %v1167 = vpop.f32.mrf.mxu0
        %v1168 = vadd.f32 %v1155, %v1167
        %v1169 = vpop.f32.mrf.mxu0
        %1170 = vdwg.mxu0
        %1171 = vmatpush.bf16.msra.mxu0 0
        %1172 = vmatpush.bf16.msra.mxu0 0
        %1173 = vmatpush.bf16.msra.mxu0 0
        %1174 = vmatpush.bf16.msra.mxu0 0
        %1175 = vmatpush.bf16.msra.mxu0 %v370
        %1176 = vmatpush.bf16.msra.mxu0 %v369
        %1177 = vmatpush.bf16.msra.mxu0 %v368
        %1178 = vmatpush.bf16.msra.mxu0 %v367
        %1179 = vmatmul.bf16.gmra.mxu0 %v437
        %v1180 = vpop.f32.mrf.mxu0
        %v1181 = vadd.f32 0.0, %v1180
        %v1182 = vpop.f32.mrf.mxu0
        %1183 = vdwg.mxu0
        %v1184 = vadd.f32 %v1168, %v1181
        %v1185 = vld [vmem:[%s228] sm:$0xe]
        %v1187 = vunpack.c.l.b16 %v1185
        %v1188 = vpack.c.b16 %v1187, %v1187
        %v1189 = vrot.slane %v1188, 1
        %v1191 = vsel %vm274, %v1189, 0
        %1193 = vmatpush.bf16.msra.mxu0 0
        %1194 = vmatpush.bf16.msra.mxu0 0
        %1195 = vmatpush.bf16.msra.mxu0 0
        %1196 = vmatpush.bf16.msra.mxu0 0
        %1197 = vmatpush.bf16.msra.mxu0 %v431
        %1198 = vmatpush.bf16.msra.mxu0 %v430
        %1199 = vmatpush.bf16.msra.mxu0 %v429
        %1200 = vmatpush.bf16.msra.mxu0 %v428
        %1201 = vmatmul.bf16.gmra.mxu0 %v1191
        %v1202 = vpop.f32.mrf.mxu0
        %v1203 = vadd.f32 0.0, %v1202
        %v1204 = vpop.f32.mrf.mxu0
        %1205 = vdwg.mxu0
        %v1206 = vadd.f32 %v1184, %v1203
        %1207 = vmatpush.bf16.msra.mxu0 0
        %1208 = vmatpush.bf16.msra.mxu0 0
        %1209 = vmatpush.bf16.msra.mxu0 0
        %1210 = vmatpush.bf16.msra.mxu0 0
        %1211 = vmatpush.bf16.msra.mxu0 %v485
        %1212 = vmatpush.bf16.msra.mxu0 %v484
        %1213 = vmatpush.bf16.msra.mxu0 %v483
        %1214 = vmatpush.bf16.msra.mxu0 %v482
        %1215 = vmatmul.bf16.gmra.mxu0 %v544
        %v1216 = vpop.f32.mrf.mxu0
        %v1217 = vadd.f32 0.0, %v1216
        %v1218 = vpop.f32.mrf.mxu0
        %1219 = vdwg.mxu0
        %v1220 = vadd.f32 %v1206, %v1217
        %1221 = vmatpush.bf16.msra.mxu0 0
        %1222 = vmatpush.bf16.msra.mxu0 0
        %1223 = vmatpush.bf16.msra.mxu0 0
        %1224 = vmatpush.bf16.msra.mxu0 0
        %1225 = vmatpush.bf16.msra.mxu0 %v538
        %1226 = vmatpush.bf16.msra.mxu0 %v537
        %1227 = vmatpush.bf16.msra.mxu0 %v536
        %1228 = vmatpush.bf16.msra.mxu0 %v535
        %1229 = vmatmul.bf16.gmra.mxu0 %v605
        %v1230 = vpop.f32.mrf.mxu0
        %v1231 = vadd.f32 0.0, %v1230
        %v1232 = vpop.f32.mrf.mxu0
        %1233 = vdwg.mxu0
        %v1234 = vadd.f32 %v1220, %v1231
        %1235 = vmatpush.bf16.msra.mxu0 0
        %1236 = vmatpush.bf16.msra.mxu0 0
        %1237 = vmatpush.bf16.msra.mxu0 0
        %1238 = vmatpush.bf16.msra.mxu0 0
        %1239 = vmatpush.bf16.msra.mxu0 %v599
        %1240 = vmatpush.bf16.msra.mxu0 %v598
        %1241 = vmatpush.bf16.msra.mxu0 %v597
        %1242 = vmatpush.bf16.msra.mxu0 %v596
        %1243 = vmatmul.bf16.gmra.mxu0 %v666
        %v1244 = vpop.f32.mrf.mxu0
        %v1245 = vadd.f32 0.0, %v1244
        %v1246 = vpop.f32.mrf.mxu0
        %1247 = vdwg.mxu0
        %v1248 = vadd.f32 %v1234, %v1245
        %v1249 = vld [vmem:[%s455] sm:$0xe]
        %v1251 = vunpack.c.l.b16 %v1249
        %v1252 = vpack.c.b16 %v1251, %v1251
        %v1253 = vrot.slane %v1252, 1
        %v1255 = vsel %vm274, %v1253, 0
        %1257 = vmatpush.bf16.msra.mxu0 0
        %1258 = vmatpush.bf16.msra.mxu0 0
        %1259 = vmatpush.bf16.msra.mxu0 0
        %1260 = vmatpush.bf16.msra.mxu0 0
        %1261 = vmatpush.bf16.msra.mxu0 %v660
        %1262 = vmatpush.bf16.msra.mxu0 %v659
        %1263 = vmatpush.bf16.msra.mxu0 %v658
        %1264 = vmatpush.bf16.msra.mxu0 %v657
        %1265 = vmatmul.bf16.gmra.mxu0 %v1255
        %v1266 = vpop.f32.mrf.mxu0
        %v1267 = vadd.f32 0.0, %v1266
        %v1268 = vpop.f32.mrf.mxu0
        %1269 = vdwg.mxu0
        %v1270 = vadd.f32 %v1248, %v1267
        %1271 = vmatpush.bf16.msra.mxu0 0
        %1272 = vmatpush.bf16.msra.mxu0 0
        %1273 = vmatpush.bf16.msra.mxu0 0
        %1274 = vmatpush.bf16.msra.mxu0 0
        %1275 = vmatpush.bf16.msra.mxu0 %v714
        %1276 = vmatpush.bf16.msra.mxu0 %v713
        %1277 = vmatpush.bf16.msra.mxu0 %v712
        %1278 = vmatpush.bf16.msra.mxu0 %v711
        %1279 = vmatmul.bf16.gmra.mxu0 %v773
        %v1280 = vpop.f32.mrf.mxu0
        %v1281 = vadd.f32 0.0, %v1280
        %v1282 = vpop.f32.mrf.mxu0
        %1283 = vdwg.mxu0
        %v1284 = vadd.f32 %v1270, %v1281
        %1285 = vmatpush.bf16.msra.mxu0 0
        %1286 = vmatpush.bf16.msra.mxu0 0
        %1287 = vmatpush.bf16.msra.mxu0 0
        %1288 = vmatpush.bf16.msra.mxu0 0
        %1289 = vmatpush.bf16.msra.mxu0 %v767
        %1290 = vmatpush.bf16.msra.mxu0 %v766
        %1291 = vmatpush.bf16.msra.mxu0 %v765
        %1292 = vmatpush.bf16.msra.mxu0 %v764
        %1293 = vmatmul.bf16.gmra.mxu0 %v834
        %v1294 = vpop.f32.mrf.mxu0
        %v1295 = vadd.f32 0.0, %v1294
        %v1296 = vpop.f32.mrf.mxu0
        %1297 = vdwg.mxu0
        %v1298 = vadd.f32 %v1284, %v1295
        %1299 = vmatpush.bf16.msra.mxu0 0
        %1300 = vmatpush.bf16.msra.mxu0 0
        %1301 = vmatpush.bf16.msra.mxu0 0
        %1302 = vmatpush.bf16.msra.mxu0 0
        %1303 = vmatpush.bf16.msra.mxu0 %v828
        %1304 = vmatpush.bf16.msra.mxu0 %v827
        %1305 = vmatpush.bf16.msra.mxu0 %v826
        %1306 = vmatpush.bf16.msra.mxu0 %v825
        %1307 = vmatmul.bf16.gmra.mxu0 %v895
        %v1308 = vpop.f32.mrf.mxu0
        %v1309 = vadd.f32 0.0, %v1308
        %v1310 = vpop.f32.mrf.mxu0
        %1311 = vdwg.mxu0
        %v1312 = vadd.f32 %v1298, %v1309
        %v1313 = vld [vmem:[%s684] sm:$0xe]
        %v1315 = vunpack.c.l.b16 %v1313
        %v1316 = vpack.c.b16 %v1315, %v1315
        %v1317 = vrot.slane %v1316, 1
        %v1319 = vsel %vm274, %v1317, 0
        %1321 = vmatpush.bf16.msra.mxu0 0
        %1322 = vmatpush.bf16.msra.mxu0 0
        %1323 = vmatpush.bf16.msra.mxu0 0
        %1324 = vmatpush.bf16.msra.mxu0 0
        %1325 = vmatpush.bf16.msra.mxu0 %v889
        %1326 = vmatpush.bf16.msra.mxu0 %v888
        %1327 = vmatpush.bf16.msra.mxu0 %v887
        %1328 = vmatpush.bf16.msra.mxu0 %v886
        %1329 = vmatmul.bf16.gmra.mxu0 %v1319
        %v1330 = vpop.f32.mrf.mxu0
        %v1331 = vadd.f32 0.0, %v1330
        %v1332 = vpop.f32.mrf.mxu0
        %1333 = vdwg.mxu0
        %v1334 = vadd.f32 %v1312, %v1331
        %1335 = vmatpush.bf16.msra.mxu0 0
        %1336 = vmatpush.bf16.msra.mxu0 0
        %1337 = vmatpush.bf16.msra.mxu0 0
        %1338 = vmatpush.bf16.msra.mxu0 0
        %1339 = vmatpush.bf16.msra.mxu0 %v943
        %1340 = vmatpush.bf16.msra.mxu0 %v942
        %1341 = vmatpush.bf16.msra.mxu0 %v941
        %1342 = vmatpush.bf16.msra.mxu0 %v940
        %1343 = vmatmul.bf16.gmra.mxu0 %v1002
        %v1344 = vpop.f32.mrf.mxu0
        %v1345 = vadd.f32 0.0, %v1344
        %v1346 = vpop.f32.mrf.mxu0
        %1347 = vdwg.mxu0
        %v1348 = vadd.f32 %v1334, %v1345
        %1349 = vmatpush.bf16.msra.mxu0 0
        %1350 = vmatpush.bf16.msra.mxu0 0
        %1351 = vmatpush.bf16.msra.mxu0 0
        %1352 = vmatpush.bf16.msra.mxu0 0
        %1353 = vmatpush.bf16.msra.mxu0 %v996
        %1354 = vmatpush.bf16.msra.mxu0 %v995
        %1355 = vmatpush.bf16.msra.mxu0 %v994
        %1356 = vmatpush.bf16.msra.mxu0 %v993
        %1357 = vmatmul.bf16.gmra.mxu0 %v1063
        %v1358 = vpop.f32.mrf.mxu0
        %v1359 = vadd.f32 0.0, %v1358
        %v1360 = vpop.f32.mrf.mxu0
        %1361 = vdwg.mxu0
        %v1362 = vadd.f32 %v1348, %v1359
        %1363 = vmatpush.bf16.msra.mxu0 0
        %1364 = vmatpush.bf16.msra.mxu0 0
        %1365 = vmatpush.bf16.msra.mxu0 0
        %1366 = vmatpush.bf16.msra.mxu0 0
        %1367 = vmatpush.bf16.msra.mxu0 %v1057
        %1368 = vmatpush.bf16.msra.mxu0 %v1056
        %1369 = vmatpush.bf16.msra.mxu0 %v1055
        %1370 = vmatpush.bf16.msra.mxu0 %v1054
        %1371 = vmatmul.bf16.gmra.mxu0 %v1124
        %v1372 = vpop.f32.mrf.mxu0
        %v1373 = vadd.f32 0.0, %v1372
        %v1374 = vpop.f32.mrf.mxu0
        %1375 = vdwg.mxu0
        %v1376 = vadd.f32 %v1362, %v1373
        %v1377 = vld [vmem:[%s913] sm:$0xe]
        %v1379 = vunpack.c.l.b16 %v1377
        %v1380 = vpack.c.b16 %v1379, %v1379
        %v1381 = vrot.slane %v1380, 1
        %v1383 = vsel %vm274, %v1381, 0
        %1385 = vmatpush.bf16.msra.mxu0 0
        %1386 = vmatpush.bf16.msra.mxu0 0
        %1387 = vmatpush.bf16.msra.mxu0 0
        %1388 = vmatpush.bf16.msra.mxu0 0
        %1389 = vmatpush.bf16.msra.mxu0 %v1118
        %1390 = vmatpush.bf16.msra.mxu0 %v1117
        %1391 = vmatpush.bf16.msra.mxu0 %v1116
        %1392 = vmatpush.bf16.msra.mxu0 %v1115
        %1393 = vmatmul.bf16.gmra.mxu0 %v1383
        %v1394 = vpop.f32.mrf.mxu0
        %v1395 = vadd.f32 0.0, %v1394
        %v1396 = vpop.f32.mrf.mxu0
        %1397 = vdwg.mxu0
        %v1398 = vadd.f32 %v1376, %v1395
        %v1399 = vadd.f32 %v1398, %v1141
        %v1400 = vmax.f32 %v1399, 0.0
        %v1401 = vmax.f32 %v1144, %v1400
        %1402 = vmatpush.bf16.msra.mxu0 0
        %1403 = vmatpush.bf16.msra.mxu0 0
        %1404 = vmatpush.bf16.msra.mxu0 0
        %1405 = vmatpush.bf16.msra.mxu0 0
        %1406 = vmatpush.bf16.msra.mxu0 %v269
        %1407 = vmatpush.bf16.msra.mxu0 %v268
        %1408 = vmatpush.bf16.msra.mxu0 %v267
        %1409 = vmatpush.bf16.msra.mxu0 %v266
        %1410 = vmatmul.bf16.gmra.mxu0 %v544
        %v1411 = vpop.f32.mrf.mxu0
        %v1412 = vadd.f32 0.0, %v1411
        %v1413 = vpop.f32.mrf.mxu0
        %1414 = vdwg.mxu0
        %1415 = vmatpush.bf16.msra.mxu0 0
        %1416 = vmatpush.bf16.msra.mxu0 0
        %1417 = vmatpush.bf16.msra.mxu0 0
        %1418 = vmatpush.bf16.msra.mxu0 0
        %1419 = vmatpush.bf16.msra.mxu0 %v310
        %1420 = vmatpush.bf16.msra.mxu0 %v309
        %1421 = vmatpush.bf16.msra.mxu0 %v308
        %1422 = vmatpush.bf16.msra.mxu0 %v307
        %1423 = vmatmul.bf16.gmra.mxu0 %v491
        %v1424 = vpop.f32.mrf.mxu0
        %v1425 = vadd.f32 %v1412, %v1424
        %v1426 = vpop.f32.mrf.mxu0
        %1427 = vdwg.mxu0
        %1428 = vmatpush.bf16.msra.mxu0 0
        %1429 = vmatpush.bf16.msra.mxu0 0
        %1430 = vmatpush.bf16.msra.mxu0 0
        %1431 = vmatpush.bf16.msra.mxu0 0
        %1432 = vmatpush.bf16.msra.mxu0 %v370
        %1433 = vmatpush.bf16.msra.mxu0 %v369
        %1434 = vmatpush.bf16.msra.mxu0 %v368
        %1435 = vmatpush.bf16.msra.mxu0 %v367
        %1436 = vmatmul.bf16.gmra.mxu0 %v605
        %v1437 = vpop.f32.mrf.mxu0
        %v1438 = vadd.f32 0.0, %v1437
        %v1439 = vpop.f32.mrf.mxu0
        %1440 = vdwg.mxu0
        %v1441 = vadd.f32 %v1425, %v1438
        %1442 = vmatpush.bf16.msra.mxu0 0
        %1443 = vmatpush.bf16.msra.mxu0 0
        %1444 = vmatpush.bf16.msra.mxu0 0
        %1445 = vmatpush.bf16.msra.mxu0 0
        %1446 = vmatpush.bf16.msra.mxu0 %v431
        %1447 = vmatpush.bf16.msra.mxu0 %v430
        %1448 = vmatpush.bf16.msra.mxu0 %v429
        %1449 = vmatpush.bf16.msra.mxu0 %v428
        %1450 = vmatmul.bf16.gmra.mxu0 %v666
        %v1451 = vpop.f32.mrf.mxu0
        %v1452 = vadd.f32 0.0, %v1451
        %v1453 = vpop.f32.mrf.mxu0
        %1454 = vdwg.mxu0
        %v1455 = vadd.f32 %v1441, %v1452
        %1456 = vmatpush.bf16.msra.mxu0 0
        %1457 = vmatpush.bf16.msra.mxu0 0
        %1458 = vmatpush.bf16.msra.mxu0 0
        %1459 = vmatpush.bf16.msra.mxu0 0
        %1460 = vmatpush.bf16.msra.mxu0 %v485
        %1461 = vmatpush.bf16.msra.mxu0 %v484
        %1462 = vmatpush.bf16.msra.mxu0 %v483
        %1463 = vmatpush.bf16.msra.mxu0 %v482
        %1464 = vmatmul.bf16.gmra.mxu0 %v720
        %v1465 = vpop.f32.mrf.mxu0
        %v1466 = vadd.f32 0.0, %v1465
        %v1467 = vpop.f32.mrf.mxu0
        %1468 = vdwg.mxu0
        %v1469 = vadd.f32 %v1455, %v1466
        %1470 = vmatpush.bf16.msra.mxu0 0
        %1471 = vmatpush.bf16.msra.mxu0 0
        %1472 = vmatpush.bf16.msra.mxu0 0
        %1473 = vmatpush.bf16.msra.mxu0 0
        %1474 = vmatpush.bf16.msra.mxu0 %v538
        %1475 = vmatpush.bf16.msra.mxu0 %v537
        %1476 = vmatpush.bf16.msra.mxu0 %v536
        %1477 = vmatpush.bf16.msra.mxu0 %v535
        %1478 = vmatmul.bf16.gmra.mxu0 %v773
        %v1479 = vpop.f32.mrf.mxu0
        %v1480 = vadd.f32 0.0, %v1479
        %v1481 = vpop.f32.mrf.mxu0
        %1482 = vdwg.mxu0
        %v1483 = vadd.f32 %v1469, %v1480
        %1484 = vmatpush.bf16.msra.mxu0 0
        %1485 = vmatpush.bf16.msra.mxu0 0
        %1486 = vmatpush.bf16.msra.mxu0 0
        %1487 = vmatpush.bf16.msra.mxu0 0
        %1488 = vmatpush.bf16.msra.mxu0 %v599
        %1489 = vmatpush.bf16.msra.mxu0 %v598
        %1490 = vmatpush.bf16.msra.mxu0 %v597
        %1491 = vmatpush.bf16.msra.mxu0 %v596
        %1492 = vmatmul.bf16.gmra.mxu0 %v834
        %v1493 = vpop.f32.mrf.mxu0
        %v1494 = vadd.f32 0.0, %v1493
        %v1495 = vpop.f32.mrf.mxu0
        %1496 = vdwg.mxu0
        %v1497 = vadd.f32 %v1483, %v1494
        %1498 = vmatpush.bf16.msra.mxu0 0
        %1499 = vmatpush.bf16.msra.mxu0 0
        %1500 = vmatpush.bf16.msra.mxu0 0
        %1501 = vmatpush.bf16.msra.mxu0 0
        %1502 = vmatpush.bf16.msra.mxu0 %v660
        %1503 = vmatpush.bf16.msra.mxu0 %v659
        %1504 = vmatpush.bf16.msra.mxu0 %v658
        %1505 = vmatpush.bf16.msra.mxu0 %v657
        %1506 = vmatmul.bf16.gmra.mxu0 %v895
        %v1507 = vpop.f32.mrf.mxu0
        %v1508 = vadd.f32 0.0, %v1507
        %v1509 = vpop.f32.mrf.mxu0
        %1510 = vdwg.mxu0
        %v1511 = vadd.f32 %v1497, %v1508
        %1512 = vmatpush.bf16.msra.mxu0 0
        %1513 = vmatpush.bf16.msra.mxu0 0
        %1514 = vmatpush.bf16.msra.mxu0 0
        %1515 = vmatpush.bf16.msra.mxu0 0
        %1516 = vmatpush.bf16.msra.mxu0 %v714
        %1517 = vmatpush.bf16.msra.mxu0 %v713
        %1518 = vmatpush.bf16.msra.mxu0 %v712
        %1519 = vmatpush.bf16.msra.mxu0 %v711
        %1520 = vmatmul.bf16.gmra.mxu0 %v949
        %v1521 = vpop.f32.mrf.mxu0
        %v1522 = vadd.f32 0.0, %v1521
        %v1523 = vpop.f32.mrf.mxu0
        %1524 = vdwg.mxu0
        %v1525 = vadd.f32 %v1511, %v1522
        %1526 = vmatpush.bf16.msra.mxu0 0
        %1527 = vmatpush.bf16.msra.mxu0 0
        %1528 = vmatpush.bf16.msra.mxu0 0
        %1529 = vmatpush.bf16.msra.mxu0 0
        %1530 = vmatpush.bf16.msra.mxu0 %v767
        %1531 = vmatpush.bf16.msra.mxu0 %v766
        %1532 = vmatpush.bf16.msra.mxu0 %v765
        %1533 = vmatpush.bf16.msra.mxu0 %v764
        %1534 = vmatmul.bf16.gmra.mxu0 %v1002
        %v1535 = vpop.f32.mrf.mxu0
        %v1536 = vadd.f32 0.0, %v1535
        %v1537 = vpop.f32.mrf.mxu0
        %1538 = vdwg.mxu0
        %v1539 = vadd.f32 %v1525, %v1536
        %1540 = vmatpush.bf16.msra.mxu0 0
        %1541 = vmatpush.bf16.msra.mxu0 0
        %1542 = vmatpush.bf16.msra.mxu0 0
        %1543 = vmatpush.bf16.msra.mxu0 0
        %1544 = vmatpush.bf16.msra.mxu0 %v828
        %1545 = vmatpush.bf16.msra.mxu0 %v827
        %1546 = vmatpush.bf16.msra.mxu0 %v826
        %1547 = vmatpush.bf16.msra.mxu0 %v825
        %1548 = vmatmul.bf16.gmra.mxu0 %v1063
        %v1549 = vpop.f32.mrf.mxu0
        %v1550 = vadd.f32 0.0, %v1549
        %v1551 = vpop.f32.mrf.mxu0
        %1552 = vdwg.mxu0
        %v1553 = vadd.f32 %v1539, %v1550
        %1554 = vmatpush.bf16.msra.mxu0 0
        %1555 = vmatpush.bf16.msra.mxu0 0
        %1556 = vmatpush.bf16.msra.mxu0 0
        %1557 = vmatpush.bf16.msra.mxu0 0
        %1558 = vmatpush.bf16.msra.mxu0 %v889
        %1559 = vmatpush.bf16.msra.mxu0 %v888
        %1560 = vmatpush.bf16.msra.mxu0 %v887
        %1561 = vmatpush.bf16.msra.mxu0 %v886
        %1562 = vmatmul.bf16.gmra.mxu0 %v1124
        %v1563 = vpop.f32.mrf.mxu0
        %v1564 = vadd.f32 0.0, %v1563
        %v1565 = vpop.f32.mrf.mxu0
        %1566 = vdwg.mxu0
        %v1567 = vadd.f32 %v1553, %v1564
        %s1568 = sadd.s32 %s226, 4
        %s1569 = smul.addr %s1568, 4
        %s1570 = scalar_lea.vmem %s207, %s1569
        %v1571 = vld [vmem:[%s1570] sm:$0x7]
        %v1573 = vsel %vm274, %v1571, 0
        %1575 = vmatpush.bf16.msra.mxu0 0
        %1576 = vmatpush.bf16.msra.mxu0 0
        %1577 = vmatpush.bf16.msra.mxu0 0
        %1578 = vmatpush.bf16.msra.mxu0 0
        %1579 = vmatpush.bf16.msra.mxu0 %v943
        %1580 = vmatpush.bf16.msra.mxu0 %v942
        %1581 = vmatpush.bf16.msra.mxu0 %v941
        %1582 = vmatpush.bf16.msra.mxu0 %v940
        %1583 = vmatmul.bf16.gmra.mxu0 %v1573
        %v1584 = vpop.f32.mrf.mxu0
        %v1585 = vadd.f32 0.0, %v1584
        %v1586 = vpop.f32.mrf.mxu0
        %1587 = vdwg.mxu0
        %v1588 = vadd.f32 %v1567, %v1585
        %s1589 = smul.addr %s1568, 4
        %s1590 = scalar_lea.vmem %s212, %s1589
        %v1591 = vld [vmem:[%s1590] sm:$0x7]
        %v1593 = vsel %vm274, %v1591, 0
        %1595 = vmatpush.bf16.msra.mxu0 0
        %1596 = vmatpush.bf16.msra.mxu0 0
        %1597 = vmatpush.bf16.msra.mxu0 0
        %1598 = vmatpush.bf16.msra.mxu0 0
        %1599 = vmatpush.bf16.msra.mxu0 %v996
        %1600 = vmatpush.bf16.msra.mxu0 %v995
        %1601 = vmatpush.bf16.msra.mxu0 %v994
        %1602 = vmatpush.bf16.msra.mxu0 %v993
        %1603 = vmatmul.bf16.gmra.mxu0 %v1593
        %v1604 = vpop.f32.mrf.mxu0
        %v1605 = vadd.f32 0.0, %v1604
        %v1606 = vpop.f32.mrf.mxu0
        %1607 = vdwg.mxu0
        %v1608 = vadd.f32 %v1588, %v1605
        %v1609 = vld [vmem:[%s1570] sm:$0xf]
        %v1611 = vunpack.c.l.b16 %v1609
        %v1612 = vpack.c.b16 %v1611, %v1611
        %v1614 = vshrl.u32 %v1612, 16
        %v1616 = vshll.u32 %v1612, 16
        %v1618 = vrot.slane %v1616, 1
        %v1619 = vor.u32 %v1614, %v1618
        %v1621 = vsel %vm274, %v1619, 0
        %1623 = vmatpush.bf16.msra.mxu0 0
        %1624 = vmatpush.bf16.msra.mxu0 0
        %1625 = vmatpush.bf16.msra.mxu0 0
        %1626 = vmatpush.bf16.msra.mxu0 0
        %1627 = vmatpush.bf16.msra.mxu0 %v1057
        %1628 = vmatpush.bf16.msra.mxu0 %v1056
        %1629 = vmatpush.bf16.msra.mxu0 %v1055
        %1630 = vmatpush.bf16.msra.mxu0 %v1054
        %1631 = vmatmul.bf16.gmra.mxu0 %v1621
        %v1632 = vpop.f32.mrf.mxu0
        %v1633 = vadd.f32 0.0, %v1632
        %v1634 = vpop.f32.mrf.mxu0
        %1635 = vdwg.mxu0
        %v1636 = vadd.f32 %v1608, %v1633
        %v1637 = vld [vmem:[%s1590] sm:$0xf]
        %v1639 = vunpack.c.l.b16 %v1637
        %v1640 = vpack.c.b16 %v1639, %v1639
        %v1642 = vshrl.u32 %v1640, 16
        %v1644 = vshll.u32 %v1640, 16
        %v1646 = vrot.slane %v1644, 1
        %v1647 = vor.u32 %v1642, %v1646
        %v1649 = vsel %vm274, %v1647, 0
        %1651 = vmatpush.bf16.msra.mxu0 0
        %1652 = vmatpush.bf16.msra.mxu0 0
        %1653 = vmatpush.bf16.msra.mxu0 0
        %1654 = vmatpush.bf16.msra.mxu0 0
        %1655 = vmatpush.bf16.msra.mxu0 %v1118
        %1656 = vmatpush.bf16.msra.mxu0 %v1117
        %1657 = vmatpush.bf16.msra.mxu0 %v1116
        %1658 = vmatpush.bf16.msra.mxu0 %v1115
        %1659 = vmatmul.bf16.gmra.mxu0 %v1649
        %v1660 = vpop.f32.mrf.mxu0
        %v1661 = vadd.f32 0.0, %v1660
        %v1662 = vpop.f32.mrf.mxu0
        %1663 = vdwg.mxu0
        %v1664 = vadd.f32 %v1636, %v1661
        %v1665 = vadd.f32 %v1664, %v1141
        %v1666 = vmax.f32 %v1665, 0.0
        %v1667 = vmax.f32 %v1401, %v1666
        %1668 = vmatpush.bf16.msra.mxu0 0
        %1669 = vmatpush.bf16.msra.mxu0 0
        %1670 = vmatpush.bf16.msra.mxu0 0
        %1671 = vmatpush.bf16.msra.mxu0 0
        %1672 = vmatpush.bf16.msra.mxu0 %v269
        %1673 = vmatpush.bf16.msra.mxu0 %v268
        %1674 = vmatpush.bf16.msra.mxu0 %v267
        %1675 = vmatpush.bf16.msra.mxu0 %v266
        %1676 = vmatmul.bf16.gmra.mxu0 %v605
        %v1677 = vpop.f32.mrf.mxu0
        %v1678 = vadd.f32 0.0, %v1677
        %v1679 = vpop.f32.mrf.mxu0
        %1680 = vdwg.mxu0
        %1681 = vmatpush.bf16.msra.mxu0 0
        %1682 = vmatpush.bf16.msra.mxu0 0
        %1683 = vmatpush.bf16.msra.mxu0 0
        %1684 = vmatpush.bf16.msra.mxu0 0
        %1685 = vmatpush.bf16.msra.mxu0 %v310
        %1686 = vmatpush.bf16.msra.mxu0 %v309
        %1687 = vmatpush.bf16.msra.mxu0 %v308
        %1688 = vmatpush.bf16.msra.mxu0 %v307
        %1689 = vmatmul.bf16.gmra.mxu0 %v544
        %v1690 = vpop.f32.mrf.mxu0
        %v1691 = vadd.f32 %v1678, %v1690
        %v1692 = vpop.f32.mrf.mxu0
        %1693 = vdwg.mxu0
        %1694 = vmatpush.bf16.msra.mxu0 0
        %1695 = vmatpush.bf16.msra.mxu0 0
        %1696 = vmatpush.bf16.msra.mxu0 0
        %1697 = vmatpush.bf16.msra.mxu0 0
        %1698 = vmatpush.bf16.msra.mxu0 %v370
        %1699 = vmatpush.bf16.msra.mxu0 %v369
        %1700 = vmatpush.bf16.msra.mxu0 %v368
        %1701 = vmatpush.bf16.msra.mxu0 %v367
        %1702 = vmatmul.bf16.gmra.mxu0 %v666
        %v1703 = vpop.f32.mrf.mxu0
        %v1704 = vadd.f32 0.0, %v1703
        %v1705 = vpop.f32.mrf.mxu0
        %1706 = vdwg.mxu0
        %v1707 = vadd.f32 %v1691, %v1704
        %1708 = vmatpush.bf16.msra.mxu0 0
        %1709 = vmatpush.bf16.msra.mxu0 0
        %1710 = vmatpush.bf16.msra.mxu0 0
        %1711 = vmatpush.bf16.msra.mxu0 0
        %1712 = vmatpush.bf16.msra.mxu0 %v431
        %1713 = vmatpush.bf16.msra.mxu0 %v430
        %1714 = vmatpush.bf16.msra.mxu0 %v429
        %1715 = vmatpush.bf16.msra.mxu0 %v428
        %1716 = vmatmul.bf16.gmra.mxu0 %v1255
        %v1717 = vpop.f32.mrf.mxu0
        %v1718 = vadd.f32 0.0, %v1717
        %v1719 = vpop.f32.mrf.mxu0
        %1720 = vdwg.mxu0
        %v1721 = vadd.f32 %v1707, %v1718
        %1722 = vmatpush.bf16.msra.mxu0 0
        %1723 = vmatpush.bf16.msra.mxu0 0
        %1724 = vmatpush.bf16.msra.mxu0 0
        %1725 = vmatpush.bf16.msra.mxu0 0
        %1726 = vmatpush.bf16.msra.mxu0 %v485
        %1727 = vmatpush.bf16.msra.mxu0 %v484
        %1728 = vmatpush.bf16.msra.mxu0 %v483
        %1729 = vmatpush.bf16.msra.mxu0 %v482
        %1730 = vmatmul.bf16.gmra.mxu0 %v773
        %v1731 = vpop.f32.mrf.mxu0
        %v1732 = vadd.f32 0.0, %v1731
        %v1733 = vpop.f32.mrf.mxu0
        %1734 = vdwg.mxu0
        %v1735 = vadd.f32 %v1721, %v1732
        %1736 = vmatpush.bf16.msra.mxu0 0
        %1737 = vmatpush.bf16.msra.mxu0 0
        %1738 = vmatpush.bf16.msra.mxu0 0
        %1739 = vmatpush.bf16.msra.mxu0 0
        %1740 = vmatpush.bf16.msra.mxu0 %v538
        %1741 = vmatpush.bf16.msra.mxu0 %v537
        %1742 = vmatpush.bf16.msra.mxu0 %v536
        %1743 = vmatpush.bf16.msra.mxu0 %v535
        %1744 = vmatmul.bf16.gmra.mxu0 %v834
        %v1745 = vpop.f32.mrf.mxu0
        %v1746 = vadd.f32 0.0, %v1745
        %v1747 = vpop.f32.mrf.mxu0
        %1748 = vdwg.mxu0
        %v1749 = vadd.f32 %v1735, %v1746
        %1750 = vmatpush.bf16.msra.mxu0 0
        %1751 = vmatpush.bf16.msra.mxu0 0
        %1752 = vmatpush.bf16.msra.mxu0 0
        %1753 = vmatpush.bf16.msra.mxu0 0
        %1754 = vmatpush.bf16.msra.mxu0 %v599
        %1755 = vmatpush.bf16.msra.mxu0 %v598
        %1756 = vmatpush.bf16.msra.mxu0 %v597
        %1757 = vmatpush.bf16.msra.mxu0 %v596
        %1758 = vmatmul.bf16.gmra.mxu0 %v895
        %v1759 = vpop.f32.mrf.mxu0
        %v1760 = vadd.f32 0.0, %v1759
        %v1761 = vpop.f32.mrf.mxu0
        %1762 = vdwg.mxu0
        %v1763 = vadd.f32 %v1749, %v1760
        %1764 = vmatpush.bf16.msra.mxu0 0
        %1765 = vmatpush.bf16.msra.mxu0 0
        %1766 = vmatpush.bf16.msra.mxu0 0
        %1767 = vmatpush.bf16.msra.mxu0 0
        %1768 = vmatpush.bf16.msra.mxu0 %v660
        %1769 = vmatpush.bf16.msra.mxu0 %v659
        %1770 = vmatpush.bf16.msra.mxu0 %v658
        %1771 = vmatpush.bf16.msra.mxu0 %v657
        %1772 = vmatmul.bf16.gmra.mxu0 %v1319
        %v1773 = vpop.f32.mrf.mxu0
        %v1774 = vadd.f32 0.0, %v1773
        %v1775 = vpop.f32.mrf.mxu0
        %1776 = vdwg.mxu0
        %v1777 = vadd.f32 %v1763, %v1774
        %1778 = vmatpush.bf16.msra.mxu0 0
        %1779 = vmatpush.bf16.msra.mxu0 0
        %1780 = vmatpush.bf16.msra.mxu0 0
        %1781 = vmatpush.bf16.msra.mxu0 0
        %1782 = vmatpush.bf16.msra.mxu0 %v714
        %1783 = vmatpush.bf16.msra.mxu0 %v713
        %1784 = vmatpush.bf16.msra.mxu0 %v712
        %1785 = vmatpush.bf16.msra.mxu0 %v711
        %1786 = vmatmul.bf16.gmra.mxu0 %v1002
        %v1787 = vpop.f32.mrf.mxu0
        %v1788 = vadd.f32 0.0, %v1787
        %v1789 = vpop.f32.mrf.mxu0
        %1790 = vdwg.mxu0
        %v1791 = vadd.f32 %v1777, %v1788
        %1792 = vmatpush.bf16.msra.mxu0 0
        %1793 = vmatpush.bf16.msra.mxu0 0
        %1794 = vmatpush.bf16.msra.mxu0 0
        %1795 = vmatpush.bf16.msra.mxu0 0
        %1796 = vmatpush.bf16.msra.mxu0 %v767
        %1797 = vmatpush.bf16.msra.mxu0 %v766
        %1798 = vmatpush.bf16.msra.mxu0 %v765
        %1799 = vmatpush.bf16.msra.mxu0 %v764
        %1800 = vmatmul.bf16.gmra.mxu0 %v1063
        %v1801 = vpop.f32.mrf.mxu0
        %v1802 = vadd.f32 0.0, %v1801
        %v1803 = vpop.f32.mrf.mxu0
        %1804 = vdwg.mxu0
        %v1805 = vadd.f32 %v1791, %v1802
        %1806 = vmatpush.bf16.msra.mxu0 0
        %1807 = vmatpush.bf16.msra.mxu0 0
        %1808 = vmatpush.bf16.msra.mxu0 0
        %1809 = vmatpush.bf16.msra.mxu0 0
        %1810 = vmatpush.bf16.msra.mxu0 %v828
        %1811 = vmatpush.bf16.msra.mxu0 %v827
        %1812 = vmatpush.bf16.msra.mxu0 %v826
        %1813 = vmatpush.bf16.msra.mxu0 %v825
        %1814 = vmatmul.bf16.gmra.mxu0 %v1124
        %v1815 = vpop.f32.mrf.mxu0
        %v1816 = vadd.f32 0.0, %v1815
        %v1817 = vpop.f32.mrf.mxu0
        %1818 = vdwg.mxu0
        %v1819 = vadd.f32 %v1805, %v1816
        %1820 = vmatpush.bf16.msra.mxu0 0
        %1821 = vmatpush.bf16.msra.mxu0 0
        %1822 = vmatpush.bf16.msra.mxu0 0
        %1823 = vmatpush.bf16.msra.mxu0 0
        %1824 = vmatpush.bf16.msra.mxu0 %v889
        %1825 = vmatpush.bf16.msra.mxu0 %v888
        %1826 = vmatpush.bf16.msra.mxu0 %v887
        %1827 = vmatpush.bf16.msra.mxu0 %v886
        %1828 = vmatmul.bf16.gmra.mxu0 %v1383
        %v1829 = vpop.f32.mrf.mxu0
        %v1830 = vadd.f32 0.0, %v1829
        %v1831 = vpop.f32.mrf.mxu0
        %1832 = vdwg.mxu0
        %v1833 = vadd.f32 %v1819, %v1830
        %1834 = vmatpush.bf16.msra.mxu0 0
        %1835 = vmatpush.bf16.msra.mxu0 0
        %1836 = vmatpush.bf16.msra.mxu0 0
        %1837 = vmatpush.bf16.msra.mxu0 0
        %1838 = vmatpush.bf16.msra.mxu0 %v943
        %1839 = vmatpush.bf16.msra.mxu0 %v942
        %1840 = vmatpush.bf16.msra.mxu0 %v941
        %1841 = vmatpush.bf16.msra.mxu0 %v940
        %1842 = vmatmul.bf16.gmra.mxu0 %v1593
        %v1843 = vpop.f32.mrf.mxu0
        %v1844 = vadd.f32 0.0, %v1843
        %v1845 = vpop.f32.mrf.mxu0
        %1846 = vdwg.mxu0
        %v1847 = vadd.f32 %v1833, %v1844
        %1848 = vmatpush.bf16.msra.mxu0 0
        %1849 = vmatpush.bf16.msra.mxu0 0
        %1850 = vmatpush.bf16.msra.mxu0 0
        %1851 = vmatpush.bf16.msra.mxu0 0
        %1852 = vmatpush.bf16.msra.mxu0 %v996
        %1853 = vmatpush.bf16.msra.mxu0 %v995
        %1854 = vmatpush.bf16.msra.mxu0 %v994
        %1855 = vmatpush.bf16.msra.mxu0 %v993
        %1856 = vmatmul.bf16.gmra.mxu0 %v1621
        %v1857 = vpop.f32.mrf.mxu0
        %v1858 = vadd.f32 0.0, %v1857
        %v1859 = vpop.f32.mrf.mxu0
        %1860 = vdwg.mxu0
        %v1861 = vadd.f32 %v1847, %v1858
        %1862 = vmatpush.bf16.msra.mxu0 0
        %1863 = vmatpush.bf16.msra.mxu0 0
        %1864 = vmatpush.bf16.msra.mxu0 0
        %1865 = vmatpush.bf16.msra.mxu0 0
        %1866 = vmatpush.bf16.msra.mxu0 %v1057
        %1867 = vmatpush.bf16.msra.mxu0 %v1056
        %1868 = vmatpush.bf16.msra.mxu0 %v1055
        %1869 = vmatpush.bf16.msra.mxu0 %v1054
        %1870 = vmatmul.bf16.gmra.mxu0 %v1649
        %v1871 = vpop.f32.mrf.mxu0
        %v1872 = vadd.f32 0.0, %v1871
        %v1873 = vpop.f32.mrf.mxu0
        %1874 = vdwg.mxu0
        %v1875 = vadd.f32 %v1861, %v1872
        %v1876 = vld [vmem:[%s1570] sm:$0xe]
        %v1878 = vunpack.c.l.b16 %v1876
        %v1879 = vpack.c.b16 %v1878, %v1878
        %v1880 = vrot.slane %v1879, 1
        %v1882 = vsel %vm274, %v1880, 0
        %1884 = vmatpush.bf16.msra.mxu0 0
        %1885 = vmatpush.bf16.msra.mxu0 0
        %1886 = vmatpush.bf16.msra.mxu0 0
        %1887 = vmatpush.bf16.msra.mxu0 0
        %1888 = vmatpush.bf16.msra.mxu0 %v1118
        %1889 = vmatpush.bf16.msra.mxu0 %v1117
        %1890 = vmatpush.bf16.msra.mxu0 %v1116
        %1891 = vmatpush.bf16.msra.mxu0 %v1115
        %1892 = vmatmul.bf16.gmra.mxu0 %v1882
        %v1893 = vpop.f32.mrf.mxu0
        %v1894 = vadd.f32 0.0, %v1893
        %v1895 = vpop.f32.mrf.mxu0
        %1896 = vdwg.mxu0
        %v1897 = vadd.f32 %v1875, %v1894
        %v1898 = vadd.f32 %v1897, %v1141
        %v1899 = vmax.f32 %v1898, 0.0
        %v1900 = vmax.f32 %v1667, %v1899
        %v1901 = vpack.c.bf16 %v1900, %v1900
        %s1902 = smul.addr %s221, 4
        %s1903 = scalar_lea.vmem %s217, %s1902
        %vm1904 = vcmask 518144
        %1905 = vst.msk [vmem:[%s1903] sm:$0x7] %vm1904, %v1901
      $region41: #{encoder_forward.5} parent=35 // loop_footer
        %s225 = sadd.s32 1, %s221
      $region42: #{encoder_forward.5} parent=35 // loop_footer_branch
        %220 = sbr.rel target = $region38
      $region43: #{encoder_forward.5} parent=35 // loop_exit
        _
      %p1906 = scmp.lt.s32.totalorder %s15, 1
      %s1907 = scalar_select %p1906, %s15, 1
      %s1908 = smul.addr %s1907, 6
      %s1909 = smul.addr %s1908, 4
      %s1910 = scalar_lea.vmem %s4, %s1909
      // Predicated region
      $region44: #{encoder_forward.5} parent=35 // pred_check
        %p1911 = pneg %p127
      $region45: #{encoder_forward.5} parent=35 // pred_check_branch
        %1913 = sbr.rel (%p1911) target = $region47
      $region46: #{encoder_forward.5} parent=35 // pred_region
        _
      $region47: #{encoder_forward.5} parent=35 // pred_fallthru
        _
    $region36: #{encoder_forward.5} parent=5 // pred_fallthru
      _
    %p1914 = scmp.le.s32.totalorder 2, %s10
    // Predicated region
    $region48: #{encoder_forward.5} parent=5 // pred_check
      %p1915 = pneg %p1914
    $region49: #{encoder_forward.5} parent=5 // pred_check_branch
      %1917 = sbr.rel (%p1915) target = $region51
    $region50: #{encoder_forward.5} parent=5 // pred_region
      %s1918 = ssub.s32 %s10, 2
      // Predicated region
      $region52: #{encoder_forward.5} parent=50 // pred_check
        %p1919 = pneg %p133
      $region53: #{encoder_forward.5} parent=50 // pred_check_branch
        %1921 = sbr.rel (%p1919) target = $region55
      $region54: #{encoder_forward.5} parent=50 // pred_region
        %p1922 = scmp.lt.s32.totalorder %s16, 1
        %s1923 = scalar_select %p1922, %s16, 1
        %s1924 = smul.addr %s1923, 6
        %s1925 = smul.addr %s1924, 4
        %s1926 = scalar_lea.vmem %s4, %s1925
      $region55: #{encoder_forward.5} parent=50 // pred_fallthru
        _
    $region51: #{encoder_forward.5} parent=5 // pred_fallthru
      _
  $region6: #{encoder_forward.5} parent=0 // loop_footer
    %s14 = sadd.s32 1, %s10
  $region7: #{encoder_forward.5} parent=0 // loop_footer_branch
    %9 = sbr.rel target = $region3
  $region8: #{encoder_forward.5} parent=0 // loop_exit
    _

// kernel: encoder_forward.6
$region0: #{encoder_forward.6}
  #allocation0 [shape = 'u32[]', space=smem, size = 0x4, offset = 0x4, fixed_abs, tag = 'smem constant byte address 0x4 - core index']
  #allocation1 [shape = 'u32[72,128]{1,0:T(1,128)}', space=vmem, size = 0x9000, scoped, tag = 'internal scratch']
  %s0 = inlined_call_operand.vmem [shape: bf16[2,8,4,64], index: 0, kind: input, shape index: {}]
  %s1 = inlined_call_operand.vmem [shape: bf16[2,8,4,64], index: 1, kind: input, shape index: {}]
  %s2 = inlined_call_operand.vmem [shape: bf16[16,64,64], index: 2, kind: input, shape index: {}]
  %s3 = inlined_call_operand.vmem [shape: f32[1,64], index: 3, kind: input, shape index: {}]
  %s4 = inlined_call_operand.vmem [shape: bf16[2,2,2,64], index: 4, kind: output, shape index: {}]
  %s5 = sld [smem:[#allocation0]]
  $region56: #{encoder_forward.6} parent=0
    _
  %s7 = ssub.s32 1, %s5
  %s8 = scalar_select 0, %s7, %s5
  loop: start=0, step=1, limit=4
  $region2: #{encoder_forward.6} parent=0 // loop_pre_header
    _
  $region3: #{encoder_forward.6} parent=0 // loop_header
    %s10 = sphi 0, %s14
    %p11 = scmp.ge.s32.totalorder %s10, 4
    %s20 = sphi 0, %s22
    %s23 = sphi 0, %s20
    %s24 = sphi 0, %s23
    %s40 = sphi 0, %s24
    %s46 = sphi 0, %s48
    %s49 = sphi 0, %s46
    %s50 = sphi 0, %s49
    %s66 = sphi 0, %s50
    %s70 = sphi 0, %s70
    %s72 = sphi 0, %s70
    %s73 = sphi 0, %s72
    %s87 = sphi 0, %s73
    %s91 = sphi 0, %s91
    %s93 = sphi 0, %s91
    %s94 = sphi 0, %s93
    %s108 = sphi 0, %s94
    %s114 = sphi 0, %s116
    %s117 = sphi 0, %s114
    %s118 = sphi 0, %s117
    %s134 = sphi 0, %s118
  $region4: #{encoder_forward.6} parent=0 // loop_header_branch
    %13 = sbr.rel (%p11) target = $region8
  $region5: #{encoder_forward.6} parent=0 // loop_body
    %s15 = ssub.s32 %s10, 1
    %s16 = ssub.s32 %s10, 2
    %s17 = sadd.s32 %s10, 1
    %s18 = ssub.s32 %s10, %s17
    %p19 = scmp.eq.s32.totalorder %s18, 0
    %s21 = sadd.s32 %s20, 1
    %s22 = scalar_select %p19, %s20, %s21
    %p25 = pneg %p19
    %p26 = scmp.eq.s32.totalorder %s10, 1
    %p27 = por %p25, %p26
    %p28 = scmp.ne.s32.totalorder %s20, %s23
    %p29 = scmp.eq.s32.totalorder %s10, 0
    %p30 = por %p28, %p29
    %p31 = scmp.ne.s32.totalorder %s20, %s23
    %p32 = scmp.eq.s32.totalorder %s15, 1
    %p33 = por %p31, %p32
    %p34 = scmp.ne.s32.totalorder %s23, %s24
    %p35 = scmp.eq.s32.totalorder %s15, 0
    %p36 = por %p34, %p35
    %p37 = scmp.ne.s32.totalorder %s23, %s24
    %p38 = scmp.eq.s32.totalorder %s16, 1
    %p39 = por %p37, %p38
    %p41 = scmp.ne.s32.totalorder %s24, %s40
    %p42 = scmp.eq.s32.totalorder %s16, 0
    %p43 = por %p41, %p42
    %s44 = ssub.s32 %s10, %s17
    %p45 = scmp.eq.s32.totalorder %s44, 0
    %s47 = sadd.s32 %s46, 1
    %s48 = scalar_select %p45, %s46, %s47
    %p51 = pneg %p45
    %p52 = scmp.eq.s32.totalorder %s10, 1
    %p53 = por %p51, %p52
    %p54 = scmp.ne.s32.totalorder %s46, %s49
    %p55 = scmp.eq.s32.totalorder %s10, 0
    %p56 = por %p54, %p55
    %p57 = scmp.ne.s32.totalorder %s46, %s49
    %p58 = scmp.eq.s32.totalorder %s15, 1
    %p59 = por %p57, %p58
    %p60 = scmp.ne.s32.totalorder %s49, %s50
    %p61 = scmp.eq.s32.totalorder %s15, 0
    %p62 = por %p60, %p61
    %p63 = scmp.ne.s32.totalorder %s49, %s50
    %p64 = scmp.eq.s32.totalorder %s16, 1
    %p65 = por %p63, %p64
    %p67 = scmp.ne.s32.totalorder %s50, %s66
    %p68 = scmp.eq.s32.totalorder %s16, 0
    %p69 = por %p67, %p68
    %s71 = sadd.s32 %s70, 1
    %p74 = scmp.eq.s32.totalorder %s10, 1
    %p75 = scmp.ne.s32.totalorder %s70, %s72
    %p76 = scmp.eq.s32.totalorder %s10, 0
    %p77 = por %p75, %p76
    %p78 = scmp.ne.s32.totalorder %s70, %s72
    %p79 = scmp.eq.s32.totalorder %s15, 1
    %p80 = por %p78, %p79
    %p81 = scmp.ne.s32.totalorder %s72, %s73
    %p82 = scmp.eq.s32.totalorder %s15, 0
    %p83 = por %p81, %p82
    %p84 = scmp.ne.s32.totalorder %s72, %s73
    %p85 = scmp.eq.s32.totalorder %s16, 1
    %p86 = por %p84, %p85
    %p88 = scmp.ne.s32.totalorder %s73, %s87
    %p89 = scmp.eq.s32.totalorder %s16, 0
    %p90 = por %p88, %p89
    %s92 = sadd.s32 %s91, 1
    %p95 = scmp.eq.s32.totalorder %s10, 1
    %p96 = scmp.ne.s32.totalorder %s91, %s93
    %p97 = scmp.eq.s32.totalorder %s10, 0
    %p98 = por %p96, %p97
    %p99 = scmp.ne.s32.totalorder %s91, %s93
    %p100 = scmp.eq.s32.totalorder %s15, 1
    %p101 = por %p99, %p100
    %p102 = scmp.ne.s32.totalorder %s93, %s94
    %p103 = scmp.eq.s32.totalorder %s15, 0
    %p104 = por %p102, %p103
    %p105 = scmp.ne.s32.totalorder %s93, %s94
    %p106 = scmp.eq.s32.totalorder %s16, 1
    %p107 = por %p105, %p106
    %p109 = scmp.ne.s32.totalorder %s94, %s108
    %p110 = scmp.eq.s32.totalorder %s16, 0
    %p111 = por %p109, %p110
    %s112 = ssub.s32 %s10, %s17
    %p113 = scmp.eq.s32.totalorder %s112, 0
    %s115 = sadd.s32 %s114, 1
    %s116 = scalar_select %p113, %s114, %s115
    %p119 = pneg %p113
    %p120 = scmp.eq.s32.totalorder %s10, 1
    %p121 = por %p119, %p120
    %p122 = scmp.ne.s32.totalorder %s114, %s117
    %p123 = scmp.eq.s32.totalorder %s10, 0
    %p124 = por %p122, %p123
    %p125 = scmp.ne.s32.totalorder %s114, %s117
    %p126 = scmp.eq.s32.totalorder %s15, 1
    %p127 = por %p125, %p126
    %p128 = scmp.ne.s32.totalorder %s117, %s118
    %p129 = scmp.eq.s32.totalorder %s15, 0
    %p130 = por %p128, %p129
    %p131 = scmp.ne.s32.totalorder %s117, %s118
    %p132 = scmp.eq.s32.totalorder %s16, 1
    %p133 = por %p131, %p132
    %p135 = scmp.ne.s32.totalorder %s118, %s134
    %p136 = scmp.eq.s32.totalorder %s16, 0
    %p137 = por %p135, %p136
    %p138 = scmp.le.s32.totalorder 1, %s10
    %p139 = scmp.lt.s32.totalorder %s10, 3
    %p140 = pnand %p138, %p139
    %p141 = pneg %p140
    // Predicated region
    $region9: #{encoder_forward.6} parent=5 // pred_check
      _
    $region10: #{encoder_forward.6} parent=5 // pred_check_branch
      %143 = sbr.rel (%p140) target = $region12
    $region11: #{encoder_forward.6} parent=5 // pred_region
      %s144 = ssub.s32 %s10, 1
      // Predicated region
      $region13: #{encoder_forward.6} parent=11 // pred_check
        %p145 = pneg %p83
      $region14: #{encoder_forward.6} parent=11 // pred_check_branch
        %147 = sbr.rel (%p145) target = $region16
      $region15: #{encoder_forward.6} parent=11 // pred_region
        _
      $region16: #{encoder_forward.6} parent=11 // pred_fallthru
        _
      // Predicated region
      $region17: #{encoder_forward.6} parent=11 // pred_check
        %p148 = pneg %p104
      $region18: #{encoder_forward.6} parent=11 // pred_check_branch
        %150 = sbr.rel (%p148) target = $region20
      $region19: #{encoder_forward.6} parent=11 // pred_region
        _
      $region20: #{encoder_forward.6} parent=11 // pred_fallthru
        _
    $region12: #{encoder_forward.6} parent=5 // pred_fallthru
      _
    %p151 = scmp.lt.s32.totalorder %s10, 2
    // Predicated region
    $region21: #{encoder_forward.6} parent=5 // pred_check
      %p152 = pneg %p151
    $region22: #{encoder_forward.6} parent=5 // pred_check_branch
      %154 = sbr.rel (%p152) target = $region24
    $region23: #{encoder_forward.6} parent=5 // pred_region
      // Predicated region
      $region25: #{encoder_forward.6} parent=23 // pred_check
        %p155 = pneg %p30
      $region26: #{encoder_forward.6} parent=23 // pred_check_branch
        %157 = sbr.rel (%p155) target = $region28
      $region27: #{encoder_forward.6} parent=23 // pred_region
        %p158 = scmp.lt.s32.totalorder %s10, 1
        %s159 = scalar_select %p158, %s10, 1
        %s160 = smul.addr %s159, 8
        %s161 = smul.addr %s160, 2
        %s162 = scalar_lea.vmem %s0, %s161
      $region28: #{encoder_forward.6} parent=23 // pred_fallthru
        _
      // Predicated region
      $region29: #{encoder_forward.6} parent=23 // pred_check
        %p163 = pneg %p56
      $region30: #{encoder_forward.6} parent=23 // pred_check_branch
        %165 = sbr.rel (%p163) target = $region32
      $region31: #{encoder_forward.6} parent=23 // pred_region
        %p166 = scmp.lt.s32.totalorder %s10, 1
        %s167 = scalar_select %p166, %s10, 1
        %s168 = smul.addr %s167, 8
        %s169 = smul.addr %s168, 2
        %s170 = scalar_lea.vmem %s1, %s169
      $region32: #{encoder_forward.6} parent=23 // pred_fallthru
        _
    $region24: #{encoder_forward.6} parent=5 // pred_fallthru
      _
    %p171 = scmp.le.s32.totalorder 1, %s10
    %p172 = scmp.lt.s32.totalorder %s10, 3
    %p173 = pnand %p171, %p172
    %p174 = pneg %p173
    // Predicated region
    $region33: #{encoder_forward.6} parent=5 // pred_check
      _
    $region34: #{encoder_forward.6} parent=5 // pred_check_branch
      %176 = sbr.rel (%p173) target = $region36
    $region35: #{encoder_forward.6} parent=5 // pred_region
      %s177 = ssub.s32 %s10, 1
      %p178 = scmp.lt.s32.totalorder %s15, 1
      %s179 = scalar_select %p178, %s15, 1
      %s180 = smul.addr %s179, 8
      %s181 = smul.addr %s180, 2
      %s182 = scalar_lea.vmem %s0, %s181
      %p183 = pneg %p36
      %p184 = pneg %p33
      %p185 = scmp.lt.s32.totalorder %s15, 1
      %s186 = scalar_select %p185, %s15, 1
      %s187 = smul.addr %s186, 8
      %s188 = smul.addr %s187, 2
      %s189 = scalar_lea.vmem %s1, %s188
      %p190 = pneg %p62
      %p191 = pneg %p59
      %p192 = pneg %p83
      %p193 = pneg %p80
      %p194 = pneg %p104
      %p195 = pneg %p101
      %p196 = pneg %p130
      %p197 = pneg %p127
      %p198 = scmp.lt.s32.totalorder %s15, 1
      %s199 = scalar_select %p198, %s15, 1
      %s200 = smul.addr %s199, 2
      %s201 = scalar_lea.vmem %s4, %s200
      %p202 = scmp.lt.s32.totalorder %s15, 1
      %s203 = scalar_select %p202, %s15, 1
      %s204 = smul.addr %s203, 8
      %s205 = smul.addr %s204, 2
      %s206 = scalar_lea.vmem %s0, %s205
      %p207 = scmp.lt.s32.totalorder %s15, 1
      %s208 = scalar_select %p207, %s15, 1
      %s209 = smul.addr %s208, 8
      %s210 = smul.addr %s209, 2
      %s211 = scalar_lea.vmem %s1, %s210
      %p212 = scmp.lt.s32.totalorder %s15, 1
      %s213 = scalar_select %p212, %s15, 1
      %s214 = smul.addr %s213, 2
      %s215 = scalar_lea.vmem %s4, %s214
      %v217 = vld [vmem:[%s3] sm:$0x1]
      loop: start=0, step=1, limit=2
      $region37: #{encoder_forward.6} parent=35 // loop_pre_header
        _
      $region38: #{encoder_forward.6} parent=35 // loop_header
        %s219 = sphi 0, %s223
        %p220 = scmp.ge.s32.totalorder %s219, 2
      $region39: #{encoder_forward.6} parent=35 // loop_header_branch
        %222 = sbr.rel (%p220) target = $region43
      $region40: #{encoder_forward.6} parent=35 // loop_body
        %s224 = smul.u32 %s219, 2
        %s225 = smul.addr %s224, 2
        %s226 = scalar_lea.vmem %s206, %s225
        %v227 = vld [vmem:[%s226] sm:$0x1]
        %v228 = vld [vmem:[%s2] sm:$0xf]
        %v229 = vld [vmem:[%s2 + $0x4] sm:$0xf]
        %v230 = vld [vmem:[%s2 + $0x8] sm:$0xf]
        %v231 = vld [vmem:[%s2 + $0xc] sm:$0xf]
        %v232 = vld [vmem:[%s2 + $0x10] sm:$0xf]
        %v233 = vld [vmem:[%s2 + $0x14] sm:$0xf]
        %v234 = vld [vmem:[%s2 + $0x18] sm:$0xf]
        %v235 = vld [vmem:[%s2 + $0x1c] sm:$0xf]
        %s236 = smul.addr %s224, 2
        %s237 = scalar_lea.vmem %s211, %s236
        %v238 = vld [vmem:[%s237] sm:$0x1]
        %s239 = scalar_lea.vmem %s2, 32
        %v240 = vld [vmem:[%s239] sm:$0xf]
        %v241 = vld [vmem:[%s239 + $0x4] sm:$0xf]
        %v242 = vld [vmem:[%s239 + $0x8] sm:$0xf]
        %v243 = vld [vmem:[%s239 + $0xc] sm:$0xf]
        %v244 = vld [vmem:[%s239 + $0x10] sm:$0xf]
        %v245 = vld [vmem:[%s239 + $0x14] sm:$0xf]
        %v246 = vld [vmem:[%s239 + $0x18] sm:$0xf]
        %v247 = vld [vmem:[%s239 + $0x1c] sm:$0xf]
        %v256 = vunpack.c.l.b16 %v240
        %v257 = vunpack.c.l.b16 %v241
        %v258 = vunpack.c.l.b16 %v242
        %v259 = vunpack.c.l.b16 %v243
        %v260 = vunpack.c.l.b16 %v244
        %v261 = vunpack.c.l.b16 %v245
        %v262 = vunpack.c.l.b16 %v246
        %v263 = vunpack.c.l.b16 %v247
        %v264 = vpack.c.b16 %v257, %v256
        %v265 = vpack.c.b16 %v259, %v258
        %v266 = vpack.c.b16 %v261, %v260
        %v267 = vpack.c.b16 %v263, %v262
        %vm272 = vcmask 523264
        %v274 = vsel %vm272, %v238, 0
        %276 = vmatpush.bf16.msra.mxu0 0
        %277 = vmatpush.bf16.msra.mxu0 0
        %278 = vmatpush.bf16.msra.mxu0 0
        %279 = vmatpush.bf16.msra.mxu0 0
        %280 = vmatpush.bf16.msra.mxu0 %v267
        %281 = vmatpush.bf16.msra.mxu0 %v266
        %282 = vmatpush.bf16.msra.mxu0 %v265
        %283 = vmatpush.bf16.msra.mxu0 %v264
        %284 = vmatmul.bf16.gmra.mxu0 %v274
        %v285 = vpop.f32.mrf.mxu0
        %v286 = vadd.f32 0.0, %v285
        %v287 = vpop.f32.mrf.mxu0
        %288 = vdwg.mxu0
        %v297 = vunpack.c.l.b16 %v228
        %v298 = vunpack.c.l.b16 %v229
        %v299 = vunpack.c.l.b16 %v230
        %v300 = vunpack.c.l.b16 %v231
        %v301 = vunpack.c.l.b16 %v232
        %v302 = vunpack.c.l.b16 %v233
        %v303 = vunpack.c.l.b16 %v234
        %v304 = vunpack.c.l.b16 %v235
        %v305 = vpack.c.b16 %v298, %v297
        %v306 = vpack.c.b16 %v300, %v299
        %v307 = vpack.c.b16 %v302, %v301
        %v308 = vpack.c.b16 %v304, %v303
        %v314 = vsel %vm272, %v227, 0
        %316 = vmatpush.bf16.msra.mxu0 0
        %317 = vmatpush.bf16.msra.mxu0 0
        %318 = vmatpush.bf16.msra.mxu0 0
        %319 = vmatpush.bf16.msra.mxu0 0
        %320 = vmatpush.bf16.msra.mxu0 %v308
        %321 = vmatpush.bf16.msra.mxu0 %v307
        %322 = vmatpush.bf16.msra.mxu0 %v306
        %323 = vmatpush.bf16.msra.mxu0 %v305
        %324 = vmatmul.bf16.gmra.mxu0 %v314
        %v325 = vpop.f32.mrf.mxu0
        %v326 = vadd.f32 %v286, %v325
        %v327 = vpop.f32.mrf.mxu0
        %328 = vdwg.mxu0
        %v329 = vld [vmem:[%s226] sm:$0x3]
        %s330 = scalar_lea.vmem %s2, 64
        %v331 = vld [vmem:[%s330] sm:$0xf]
        %v332 = vld [vmem:[%s330 + $0x4] sm:$0xf]
        %v333 = vld [vmem:[%s330 + $0x8] sm:$0xf]
        %v334 = vld [vmem:[%s330 + $0xc] sm:$0xf]
        %v335 = vld [vmem:[%s330 + $0x10] sm:$0xf]
        %v336 = vld [vmem:[%s330 + $0x14] sm:$0xf]
        %v337 = vld [vmem:[%s330 + $0x18] sm:$0xf]
        %v338 = vld [vmem:[%s330 + $0x1c] sm:$0xf]
        %340 = vst [vmem:[#allocation1] ss:$4 sm:$0xff] %v329
        %v341 = vld.sshfl [vmem:[#allocation1] sm:$0xff pattern:$0x73625140]
        %v342 = vshrl.u32 %v341, 16
        %v344 = vshll.u32 %v341, 16
        %v346 = vrot.slane %v344, 1
        %v347 = vor.u32 %v342, %v346
        %v356 = vunpack.c.l.b16 %v331
        %v357 = vunpack.c.l.b16 %v332
        %v358 = vunpack.c.l.b16 %v333
        %v359 = vunpack.c.l.b16 %v334
        %v360 = vunpack.c.l.b16 %v335
        %v361 = vunpack.c.l.b16 %v336
        %v362 = vunpack.c.l.b16 %v337
        %v363 = vunpack.c.l.b16 %v338
        %v364 = vpack.c.b16 %v357, %v356
        %v365 = vpack.c.b16 %v359, %v358
        %v366 = vpack.c.b16 %v361, %v360
        %v367 = vpack.c.b16 %v363, %v362
        %v373 = vsel %vm272, %v347, 0
        %375 = vmatpush.bf16.msra.mxu0 0
        %376 = vmatpush.bf16.msra.mxu0 0
        %377 = vmatpush.bf16.msra.mxu0 0
        %378 = vmatpush.bf16.msra.mxu0 0
        %379 = vmatpush.bf16.msra.mxu0 %v367
        %380 = vmatpush.bf16.msra.mxu0 %v366
        %381 = vmatpush.bf16.msra.mxu0 %v365
        %382 = vmatpush.bf16.msra.mxu0 %v364
        %383 = vmatmul.bf16.gmra.mxu0 %v373
        %v384 = vpop.f32.mrf.mxu0
        %v385 = vadd.f32 0.0, %v384
        %v386 = vpop.f32.mrf.mxu0
        %387 = vdwg.mxu0
        %v388 = vadd.f32 %v326, %v385
        %v389 = vld [vmem:[%s237] sm:$0x3]
        %s390 = scalar_lea.vmem %s2, 96
        %v391 = vld [vmem:[%s390] sm:$0xf]
        %v392 = vld [vmem:[%s390 + $0x4] sm:$0xf]
        %v393 = vld [vmem:[%s390 + $0x8] sm:$0xf]
        %v394 = vld [vmem:[%s390 + $0xc] sm:$0xf]
        %v395 = vld [vmem:[%s390 + $0x10] sm:$0xf]
        %v396 = vld [vmem:[%s390 + $0x14] sm:$0xf]
        %v397 = vld [vmem:[%s390 + $0x18] sm:$0xf]
        %v398 = vld [vmem:[%s390 + $0x1c] sm:$0xf]
        %400 = vst [vmem:[#allocation1] ss:$4 sm:$0xff] %v389
        %v401 = vld.sshfl [vmem:[#allocation1] sm:$0xff pattern:$0x73625140]
        %v402 = vshrl.u32 %v401, 16
        %v404 = vshll.u32 %v401, 16
        %v406 = vrot.slane %v404, 1
        %v407 = vor.u32 %v402, %v406
        %v416 = vunpack.c.l.b16 %v391
        %v417 = vunpack.c.l.b16 %v392
        %v418 = vunpack.c.l.b16 %v393
        %v419 = vunpack.c.l.b16 %v394
        %v420 = vunpack.c.l.b16 %v395
        %v421 = vunpack.c.l.b16 %v396
        %v422 = vunpack.c.l.b16 %v397
        %v423 = vunpack.c.l.b16 %v398
        %v424 = vpack.c.b16 %v417, %v416
        %v425 = vpack.c.b16 %v419, %v418
        %v426 = vpack.c.b16 %v421, %v420
        %v427 = vpack.c.b16 %v423, %v422
        %v433 = vsel %vm272, %v407, 0
        %435 = vmatpush.bf16.msra.mxu0 0
        %436 = vmatpush.bf16.msra.mxu0 0
        %437 = vmatpush.bf16.msra.mxu0 0
        %438 = vmatpush.bf16.msra.mxu0 0
        %439 = vmatpush.bf16.msra.mxu0 %v427
        %440 = vmatpush.bf16.msra.mxu0 %v426
        %441 = vmatpush.bf16.msra.mxu0 %v425
        %442 = vmatpush.bf16.msra.mxu0 %v424
        %443 = vmatmul.bf16.gmra.mxu0 %v433
        %v444 = vpop.f32.mrf.mxu0
        %v445 = vadd.f32 0.0, %v444
        %v446 = vpop.f32.mrf.mxu0
        %447 = vdwg.mxu0
        %v448 = vadd.f32 %v388, %v445
        %s449 = sadd.s32 %s224, 1
        %s450 = smul.addr %s449, 2
        %s451 = scalar_lea.vmem %s206, %s450
        %v452 = vld [vmem:[%s451] sm:$0x1]
        %s453 = scalar_lea.vmem %s2, 128
        %v454 = vld [vmem:[%s453] sm:$0xf]
        %v455 = vld [vmem:[%s453 + $0x4] sm:$0xf]
        %v456 = vld [vmem:[%s453 + $0x8] sm:$0xf]
        %v457 = vld [vmem:[%s453 + $0xc] sm:$0xf]
        %v458 = vld [vmem:[%s453 + $0x10] sm:$0xf]
        %v459 = vld [vmem:[%s453 + $0x14] sm:$0xf]
        %v460 = vld [vmem:[%s453 + $0x18] sm:$0xf]
        %v461 = vld [vmem:[%s453 + $0x1c] sm:$0xf]
        %v470 = vunpack.c.l.b16 %v454
        %v471 = vunpack.c.l.b16 %v455
        %v472 = vunpack.c.l.b16 %v456
        %v473 = vunpack.c.l.b16 %v457
        %v474 = vunpack.c.l.b16 %v458
        %v475 = vunpack.c.l.b16 %v459
        %v476 = vunpack.c.l.b16 %v460
        %v477 = vunpack.c.l.b16 %v461
        %v478 = vpack.c.b16 %v471, %v470
        %v479 = vpack.c.b16 %v473, %v472
        %v480 = vpack.c.b16 %v475, %v474
        %v481 = vpack.c.b16 %v477, %v476
        %v487 = vsel %vm272, %v452, 0
        %489 = vmatpush.bf16.msra.mxu0 0
        %490 = vmatpush.bf16.msra.mxu0 0
        %491 = vmatpush.bf16.msra.mxu0 0
        %492 = vmatpush.bf16.msra.mxu0 0
        %493 = vmatpush.bf16.msra.mxu0 %v481
        %494 = vmatpush.bf16.msra.mxu0 %v480
        %495 = vmatpush.bf16.msra.mxu0 %v479
        %496 = vmatpush.bf16.msra.mxu0 %v478
        %497 = vmatmul.bf16.gmra.mxu0 %v487
        %v498 = vpop.f32.mrf.mxu0
        %v499 = vadd.f32 0.0, %v498
        %v500 = vpop.f32.mrf.mxu0
        %501 = vdwg.mxu0
        %v502 = vadd.f32 %v448, %v499
        %s503 = smul.addr %s449, 2
        %s504 = scalar_lea.vmem %s211, %s503
        %v505 = vld [vmem:[%s504] sm:$0x1]
        %s506 = scalar_lea.vmem %s2, 160
        %v507 = vld [vmem:[%s506] sm:$0xf]
        %v508 = vld [vmem:[%s506 + $0x4] sm:$0xf]
        %v509 = vld [vmem:[%s506 + $0x8] sm:$0xf]
        %v510 = vld [vmem:[%s506 + $0xc] sm:$0xf]
        %v511 = vld [vmem:[%s506 + $0x10] sm:$0xf]
        %v512 = vld [vmem:[%s506 + $0x14] sm:$0xf]
        %v513 = vld [vmem:[%s506 + $0x18] sm:$0xf]
        %v514 = vld [vmem:[%s506 + $0x1c] sm:$0xf]
        %v523 = vunpack.c.l.b16 %v507
        %v524 = vunpack.c.l.b16 %v508
        %v525 = vunpack.c.l.b16 %v509
        %v526 = vunpack.c.l.b16 %v510
        %v527 = vunpack.c.l.b16 %v511
        %v528 = vunpack.c.l.b16 %v512
        %v529 = vunpack.c.l.b16 %v513
        %v530 = vunpack.c.l.b16 %v514
        %v531 = vpack.c.b16 %v524, %v523
        %v532 = vpack.c.b16 %v526, %v525
        %v533 = vpack.c.b16 %v528, %v527
        %v534 = vpack.c.b16 %v530, %v529
        %v540 = vsel %vm272, %v505, 0
        %542 = vmatpush.bf16.msra.mxu0 0
        %543 = vmatpush.bf16.msra.mxu0 0
        %544 = vmatpush.bf16.msra.mxu0 0
        %545 = vmatpush.bf16.msra.mxu0 0
        %546 = vmatpush.bf16.msra.mxu0 %v534
        %547 = vmatpush.bf16.msra.mxu0 %v533
        %548 = vmatpush.bf16.msra.mxu0 %v532
        %549 = vmatpush.bf16.msra.mxu0 %v531
        %550 = vmatmul.bf16.gmra.mxu0 %v540
        %v551 = vpop.f32.mrf.mxu0
        %v552 = vadd.f32 0.0, %v551
        %v553 = vpop.f32.mrf.mxu0
        %554 = vdwg.mxu0
        %v555 = vadd.f32 %v502, %v552
        %v556 = vld [vmem:[%s451] sm:$0x3]
        %s557 = scalar_lea.vmem %s2, 192
        %v558 = vld [vmem:[%s557] sm:$0xf]
        %v559 = vld [vmem:[%s557 + $0x4] sm:$0xf]
        %v560 = vld [vmem:[%s557 + $0x8] sm:$0xf]
        %v561 = vld [vmem:[%s557 + $0xc] sm:$0xf]
        %v562 = vld [vmem:[%s557 + $0x10] sm:$0xf]
        %v563 = vld [vmem:[%s557 + $0x14] sm:$0xf]
        %v564 = vld [vmem:[%s557 + $0x18] sm:$0xf]
        %v565 = vld [vmem:[%s557 + $0x1c] sm:$0xf]
        %567 = vst [vmem:[#allocation1] ss:$4 sm:$0xff] %v556
        %v568 = vld.sshfl [vmem:[#allocation1] sm:$0xff pattern:$0x73625140]
        %v569 = vshrl.u32 %v568, 16
        %v571 = vshll.u32 %v568, 16
        %v573 = vrot.slane %v571, 1
        %v574 = vor.u32 %v569, %v573
        %v583 = vunpack.c.l.b16 %v558
        %v584 = vunpack.c.l.b16 %v559
        %v585 = vunpack.c.l.b16 %v560
        %v586 = vunpack.c.l.b16 %v561
        %v587 = vunpack.c.l.b16 %v562
        %v588 = vunpack.c.l.b16 %v563
        %v589 = vunpack.c.l.b16 %v564
        %v590 = vunpack.c.l.b16 %v565
        %v591 = vpack.c.b16 %v584, %v583
        %v592 = vpack.c.b16 %v586, %v585
        %v593 = vpack.c.b16 %v588, %v587
        %v594 = vpack.c.b16 %v590, %v589
        %v600 = vsel %vm272, %v574, 0
        %602 = vmatpush.bf16.msra.mxu0 0
        %603 = vmatpush.bf16.msra.mxu0 0
        %604 = vmatpush.bf16.msra.mxu0 0
        %605 = vmatpush.bf16.msra.mxu0 0
        %606 = vmatpush.bf16.msra.mxu0 %v594
        %607 = vmatpush.bf16.msra.mxu0 %v593
        %608 = vmatpush.bf16.msra.mxu0 %v592
        %609 = vmatpush.bf16.msra.mxu0 %v591
        %610 = vmatmul.bf16.gmra.mxu0 %v600
        %v611 = vpop.f32.mrf.mxu0
        %v612 = vadd.f32 0.0, %v611
        %v613 = vpop.f32.mrf.mxu0
        %614 = vdwg.mxu0
        %v615 = vadd.f32 %v555, %v612
        %v616 = vld [vmem:[%s504] sm:$0x3]
        %s617 = scalar_lea.vmem %s2, 224
        %v618 = vld [vmem:[%s617] sm:$0xf]
        %v619 = vld [vmem:[%s617 + $0x4] sm:$0xf]
        %v620 = vld [vmem:[%s617 + $0x8] sm:$0xf]
        %v621 = vld [vmem:[%s617 + $0xc] sm:$0xf]
        %v622 = vld [vmem:[%s617 + $0x10] sm:$0xf]
        %v623 = vld [vmem:[%s617 + $0x14] sm:$0xf]
        %v624 = vld [vmem:[%s617 + $0x18] sm:$0xf]
        %v625 = vld [vmem:[%s617 + $0x1c] sm:$0xf]
        %627 = vst [vmem:[#allocation1] ss:$4 sm:$0xff] %v616
        %v628 = vld.sshfl [vmem:[#allocation1] sm:$0xff pattern:$0x73625140]
        %v629 = vshrl.u32 %v628, 16
        %v631 = vshll.u32 %v628, 16
        %v633 = vrot.slane %v631, 1
        %v634 = vor.u32 %v629, %v633
        %v643 = vunpack.c.l.b16 %v618
        %v644 = vunpack.c.l.b16 %v619
        %v645 = vunpack.c.l.b16 %v620
        %v646 = vunpack.c.l.b16 %v621
        %v647 = vunpack.c.l.b16 %v622
        %v648 = vunpack.c.l.b16 %v623
        %v649 = vunpack.c.l.b16 %v624
        %v650 = vunpack.c.l.b16 %v625
        %v651 = vpack.c.b16 %v644, %v643
        %v652 = vpack.c.b16 %v646, %v645
        %v653 = vpack.c.b16 %v648, %v647
        %v654 = vpack.c.b16 %v650, %v649
        %v660 = vsel %vm272, %v634, 0
        %662 = vmatpush.bf16.msra.mxu0 0
        %663 = vmatpush.bf16.msra.mxu0 0
        %664 = vmatpush.bf16.msra.mxu0 0
        %665 = vmatpush.bf16.msra.mxu0 0
        %666 = vmatpush.bf16.msra.mxu0 %v654
        %667 = vmatpush.bf16.msra.mxu0 %v653
        %668 = vmatpush.bf16.msra.mxu0 %v652
        %669 = vmatpush.bf16.msra.mxu0 %v651
        %670 = vmatmul.bf16.gmra.mxu0 %v660
        %v671 = vpop.f32.mrf.mxu0
        %v672 = vadd.f32 0.0, %v671
        %v673 = vpop.f32.mrf.mxu0
        %674 = vdwg.mxu0
        %v675 = vadd.f32 %v615, %v672
        %s676 = sadd.s32 %s224, 2
        %s677 = smul.addr %s676, 2
        %s678 = scalar_lea.vmem %s206, %s677
        %v679 = vld [vmem:[%s678] sm:$0x1]
        %s680 = scalar_lea.vmem %s2, 256
        %v681 = vld [vmem:[%s680] sm:$0xf]
        %v682 = vld [vmem:[%s680 + $0x4] sm:$0xf]
        %v683 = vld [vmem:[%s680 + $0x8] sm:$0xf]
        %v684 = vld [vmem:[%s680 + $0xc] sm:$0xf]
        %v685 = vld [vmem:[%s680 + $0x10] sm:$0xf]
        %v686 = vld [vmem:[%s680 + $0x14] sm:$0xf]
        %v687 = vld [vmem:[%s680 + $0x18] sm:$0xf]
        %v688 = vld [vmem:[%s680 + $0x1c] sm:$0xf]
        %v697 = vunpack.c.l.b16 %v681
        %v698 = vunpack.c.l.b16 %v682
        %v699 = vunpack.c.l.b16 %v683
        %v700 = vunpack.c.l.b16 %v684
        %v701 = vunpack.c.l.b16 %v685
        %v702 = vunpack.c.l.b16 %v686
        %v703 = vunpack.c.l.b16 %v687
        %v704 = vunpack.c.l.b16 %v688
        %v705 = vpack.c.b16 %v698, %v697
        %v706 = vpack.c.b16 %v700, %v699
        %v707 = vpack.c.b16 %v702, %v701
        %v708 = vpack.c.b16 %v704, %v703
        %v714 = vsel %vm272, %v679, 0
        %716 = vmatpush.bf16.msra.mxu0 0
        %717 = vmatpush.bf16.msra.mxu0 0
        %718 = vmatpush.bf16.msra.mxu0 0
        %719 = vmatpush.bf16.msra.mxu0 0
        %720 = vmatpush.bf16.msra.mxu0 %v708
        %721 = vmatpush.bf16.msra.mxu0 %v707
        %722 = vmatpush.bf16.msra.mxu0 %v706
        %723 = vmatpush.bf16.msra.mxu0 %v705
        %724 = vmatmul.bf16.gmra.mxu0 %v714
        %v725 = vpop.f32.mrf.mxu0
        %v726 = vadd.f32 0.0, %v725
        %v727 = vpop.f32.mrf.mxu0
        %728 = vdwg.mxu0
        %v729 = vadd.f32 %v675, %v726
        %s730 = smul.addr %s676, 2
        %s731 = scalar_lea.vmem %s211, %s730
        %v732 = vld [vmem:[%s731] sm:$0x1]
        %s733 = scalar_lea.vmem %s2, 288
        %v734 = vld [vmem:[%s733] sm:$0xf]
        %v735 = vld [vmem:[%s733 + $0x4] sm:$0xf]
        %v736 = vld [vmem:[%s733 + $0x8] sm:$0xf]
        %v737 = vld [vmem:[%s733 + $0xc] sm:$0xf]
        %v738 = vld [vmem:[%s733 + $0x10] sm:$0xf]
        %v739 = vld [vmem:[%s733 + $0x14] sm:$0xf]
        %v740 = vld [vmem:[%s733 + $0x18] sm:$0xf]
        %v741 = vld [vmem:[%s733 + $0x1c] sm:$0xf]
        %v750 = vunpack.c.l.b16 %v734
        %v751 = vunpack.c.l.b16 %v735
        %v752 = vunpack.c.l.b16 %v736
        %v753 = vunpack.c.l.b16 %v737
        %v754 = vunpack.c.l.b16 %v738
        %v755 = vunpack.c.l.b16 %v739
        %v756 = vunpack.c.l.b16 %v740
        %v757 = vunpack.c.l.b16 %v741
        %v758 = vpack.c.b16 %v751, %v750
        %v759 = vpack.c.b16 %v753, %v752
        %v760 = vpack.c.b16 %v755, %v754
        %v761 = vpack.c.b16 %v757, %v756
        %v767 = vsel %vm272, %v732, 0
        %769 = vmatpush.bf16.msra.mxu0 0
        %770 = vmatpush.bf16.msra.mxu0 0
        %771 = vmatpush.bf16.msra.mxu0 0
        %772 = vmatpush.bf16.msra.mxu0 0
        %773 = vmatpush.bf16.msra.mxu0 %v761
        %774 = vmatpush.bf16.msra.mxu0 %v760
        %775 = vmatpush.bf16.msra.mxu0 %v759
        %776 = vmatpush.bf16.msra.mxu0 %v758
        %777 = vmatmul.bf16.gmra.mxu0 %v767
        %v778 = vpop.f32.mrf.mxu0
        %v779 = vadd.f32 0.0, %v778
        %v780 = vpop.f32.mrf.mxu0
        %781 = vdwg.mxu0
        %v782 = vadd.f32 %v729, %v779
        %v783 = vld [vmem:[%s678] sm:$0x3]
        %s784 = scalar_lea.vmem %s2, 320
        %v785 = vld [vmem:[%s784] sm:$0xf]
        %v786 = vld [vmem:[%s784 + $0x4] sm:$0xf]
        %v787 = vld [vmem:[%s784 + $0x8] sm:$0xf]
        %v788 = vld [vmem:[%s784 + $0xc] sm:$0xf]
        %v789 = vld [vmem:[%s784 + $0x10] sm:$0xf]
        %v790 = vld [vmem:[%s784 + $0x14] sm:$0xf]
        %v791 = vld [vmem:[%s784 + $0x18] sm:$0xf]
        %v792 = vld [vmem:[%s784 + $0x1c] sm:$0xf]
        %794 = vst [vmem:[#allocation1] ss:$4 sm:$0xff] %v783
        %v795 = vld.sshfl [vmem:[#allocation1] sm:$0xff pattern:$0x73625140]
        %v796 = vshrl.u32 %v795, 16
        %v798 = vshll.u32 %v795, 16
        %v800 = vrot.slane %v798, 1
        %v801 = vor.u32 %v796, %v800
        %v810 = vunpack.c.l.b16 %v785
        %v811 = vunpack.c.l.b16 %v786
        %v812 = vunpack.c.l.b16 %v787
        %v813 = vunpack.c.l.b16 %v788
        %v814 = vunpack.c.l.b16 %v789
        %v815 = vunpack.c.l.b16 %v790
        %v816 = vunpack.c.l.b16 %v791
        %v817 = vunpack.c.l.b16 %v792
        %v818 = vpack.c.b16 %v811, %v810
        %v819 = vpack.c.b16 %v813, %v812
        %v820 = vpack.c.b16 %v815, %v814
        %v821 = vpack.c.b16 %v817, %v816
        %v827 = vsel %vm272, %v801, 0
        %829 = vmatpush.bf16.msra.mxu0 0
        %830 = vmatpush.bf16.msra.mxu0 0
        %831 = vmatpush.bf16.msra.mxu0 0
        %832 = vmatpush.bf16.msra.mxu0 0
        %833 = vmatpush.bf16.msra.mxu0 %v821
        %834 = vmatpush.bf16.msra.mxu0 %v820
        %835 = vmatpush.bf16.msra.mxu0 %v819
        %836 = vmatpush.bf16.msra.mxu0 %v818
        %837 = vmatmul.bf16.gmra.mxu0 %v827
        %v838 = vpop.f32.mrf.mxu0
        %v839 = vadd.f32 0.0, %v838
        %v840 = vpop.f32.mrf.mxu0
        %841 = vdwg.mxu0
        %v842 = vadd.f32 %v782, %v839
        %v843 = vld [vmem:[%s731] sm:$0x3]
        %s844 = scalar_lea.vmem %s2, 352
        %v845 = vld [vmem:[%s844] sm:$0xf]
        %v846 = vld [vmem:[%s844 + $0x4] sm:$0xf]
        %v847 = vld [vmem:[%s844 + $0x8] sm:$0xf]
        %v848 = vld [vmem:[%s844 + $0xc] sm:$0xf]
        %v849 = vld [vmem:[%s844 + $0x10] sm:$0xf]
        %v850 = vld [vmem:[%s844 + $0x14] sm:$0xf]
        %v851 = vld [vmem:[%s844 + $0x18] sm:$0xf]
        %v852 = vld [vmem:[%s844 + $0x1c] sm:$0xf]
        %854 = vst [vmem:[#allocation1] ss:$4 sm:$0xff] %v843
        %v855 = vld.sshfl [vmem:[#allocation1] sm:$0xff pattern:$0x73625140]
        %v856 = vshrl.u32 %v855, 16
        %v858 = vshll.u32 %v855, 16
        %v860 = vrot.slane %v858, 1
        %v861 = vor.u32 %v856, %v860
        %v870 = vunpack.c.l.b16 %v845
        %v871 = vunpack.c.l.b16 %v846
        %v872 = vunpack.c.l.b16 %v847
        %v873 = vunpack.c.l.b16 %v848
        %v874 = vunpack.c.l.b16 %v849
        %v875 = vunpack.c.l.b16 %v850
        %v876 = vunpack.c.l.b16 %v851
        %v877 = vunpack.c.l.b16 %v852
        %v878 = vpack.c.b16 %v871, %v870
        %v879 = vpack.c.b16 %v873, %v872
        %v880 = vpack.c.b16 %v875, %v874
        %v881 = vpack.c.b16 %v877, %v876
        %v887 = vsel %vm272, %v861, 0
        %889 = vmatpush.bf16.msra.mxu0 0
        %890 = vmatpush.bf16.msra.mxu0 0
        %891 = vmatpush.bf16.msra.mxu0 0
        %892 = vmatpush.bf16.msra.mxu0 0
        %893 = vmatpush.bf16.msra.mxu0 %v881
        %894 = vmatpush.bf16.msra.mxu0 %v880
        %895 = vmatpush.bf16.msra.mxu0 %v879
        %896 = vmatpush.bf16.msra.mxu0 %v878
        %897 = vmatmul.bf16.gmra.mxu0 %v887
        %v898 = vpop.f32.mrf.mxu0
        %v899 = vadd.f32 0.0, %v898
        %v900 = vpop.f32.mrf.mxu0
        %901 = vdwg.mxu0
        %v902 = vadd.f32 %v842, %v899
        %s903 = sadd.s32 %s224, 3
        %s904 = smul.addr %s903, 2
        %s905 = scalar_lea.vmem %s206, %s904
        %v906 = vld [vmem:[%s905] sm:$0x1]
        %s907 = scalar_lea.vmem %s2, 384
        %v908 = vld [vmem:[%s907] sm:$0xf]
        %v909 = vld [vmem:[%s907 + $0x4] sm:$0xf]
        %v910 = vld [vmem:[%s907 + $0x8] sm:$0xf]
        %v911 = vld [vmem:[%s907 + $0xc] sm:$0xf]
        %v912 = vld [vmem:[%s907 + $0x10] sm:$0xf]
        %v913 = vld [vmem:[%s907 + $0x14] sm:$0xf]
        %v914 = vld [vmem:[%s907 + $0x18] sm:$0xf]
        %v915 = vld [vmem:[%s907 + $0x1c] sm:$0xf]
        %v924 = vunpack.c.l.b16 %v908
        %v925 = vunpack.c.l.b16 %v909
        %v926 = vunpack.c.l.b16 %v910
        %v927 = vunpack.c.l.b16 %v911
        %v928 = vunpack.c.l.b16 %v912
        %v929 = vunpack.c.l.b16 %v913
        %v930 = vunpack.c.l.b16 %v914
        %v931 = vunpack.c.l.b16 %v915
        %v932 = vpack.c.b16 %v925, %v924
        %v933 = vpack.c.b16 %v927, %v926
        %v934 = vpack.c.b16 %v929, %v928
        %v935 = vpack.c.b16 %v931, %v930
        %v941 = vsel %vm272, %v906, 0
        %943 = vmatpush.bf16.msra.mxu0 0
        %944 = vmatpush.bf16.msra.mxu0 0
        %945 = vmatpush.bf16.msra.mxu0 0
        %946 = vmatpush.bf16.msra.mxu0 0
        %947 = vmatpush.bf16.msra.mxu0 %v935
        %948 = vmatpush.bf16.msra.mxu0 %v934
        %949 = vmatpush.bf16.msra.mxu0 %v933
        %950 = vmatpush.bf16.msra.mxu0 %v932
        %951 = vmatmul.bf16.gmra.mxu0 %v941
        %v952 = vpop.f32.mrf.mxu0
        %v953 = vadd.f32 0.0, %v952
        %v954 = vpop.f32.mrf.mxu0
        %955 = vdwg.mxu0
        %v956 = vadd.f32 %v902, %v953
        %s957 = smul.addr %s903, 2
        %s958 = scalar_lea.vmem %s211, %s957
        %v959 = vld [vmem:[%s958] sm:$0x1]
        %s960 = scalar_lea.vmem %s2, 416
        %v961 = vld [vmem:[%s960] sm:$0xf]
        %v962 = vld [vmem:[%s960 + $0x4] sm:$0xf]
        %v963 = vld [vmem:[%s960 + $0x8] sm:$0xf]
        %v964 = vld [vmem:[%s960 + $0xc] sm:$0xf]
        %v965 = vld [vmem:[%s960 + $0x10] sm:$0xf]
        %v966 = vld [vmem:[%s960 + $0x14] sm:$0xf]
        %v967 = vld [vmem:[%s960 + $0x18] sm:$0xf]
        %v968 = vld [vmem:[%s960 + $0x1c] sm:$0xf]
        %v977 = vunpack.c.l.b16 %v961
        %v978 = vunpack.c.l.b16 %v962
        %v979 = vunpack.c.l.b16 %v963
        %v980 = vunpack.c.l.b16 %v964
        %v981 = vunpack.c.l.b16 %v965
        %v982 = vunpack.c.l.b16 %v966
        %v983 = vunpack.c.l.b16 %v967
        %v984 = vunpack.c.l.b16 %v968
        %v985 = vpack.c.b16 %v978, %v977
        %v986 = vpack.c.b16 %v980, %v979
        %v987 = vpack.c.b16 %v982, %v981
        %v988 = vpack.c.b16 %v984, %v983
        %v994 = vsel %vm272, %v959, 0
        %996 = vmatpush.bf16.msra.mxu0 0
        %997 = vmatpush.bf16.msra.mxu0 0
        %998 = vmatpush.bf16.msra.mxu0 0
        %999 = vmatpush.bf16.msra.mxu0 0
        %1000 = vmatpush.bf16.msra.mxu0 %v988
        %1001 = vmatpush.bf16.msra.mxu0 %v987
        %1002 = vmatpush.bf16.msra.mxu0 %v986
        %1003 = vmatpush.bf16.msra.mxu0 %v985
        %1004 = vmatmul.bf16.gmra.mxu0 %v994
        %v1005 = vpop.f32.mrf.mxu0
        %v1006 = vadd.f32 0.0, %v1005
        %v1007 = vpop.f32.mrf.mxu0
        %1008 = vdwg.mxu0
        %v1009 = vadd.f32 %v956, %v1006
        %v1010 = vld [vmem:[%s905] sm:$0x3]
        %s1011 = scalar_lea.vmem %s2, 448
        %v1012 = vld [vmem:[%s1011] sm:$0xf]
        %v1013 = vld [vmem:[%s1011 + $0x4] sm:$0xf]
        %v1014 = vld [vmem:[%s1011 + $0x8] sm:$0xf]
        %v1015 = vld [vmem:[%s1011 + $0xc] sm:$0xf]
        %v1016 = vld [vmem:[%s1011 + $0x10] sm:$0xf]
        %v1017 = vld [vmem:[%s1011 + $0x14] sm:$0xf]
        %v1018 = vld [vmem:[%s1011 + $0x18] sm:$0xf]
        %v1019 = vld [vmem:[%s1011 + $0x1c] sm:$0xf]
        %1021 = vst [vmem:[#allocation1] ss:$4 sm:$0xff] %v1010
        %v1022 = vld.sshfl [vmem:[#allocation1] sm:$0xff pattern:$0x73625140]
        %v1023 = vshrl.u32 %v1022, 16
        %v1025 = vshll.u32 %v1022, 16
        %v1027 = vrot.slane %v1025, 1
        %v1028 = vor.u32 %v1023, %v1027
        %v1037 = vunpack.c.l.b16 %v1012
        %v1038 = vunpack.c.l.b16 %v1013
        %v1039 = vunpack.c.l.b16 %v1014
        %v1040 = vunpack.c.l.b16 %v1015
        %v1041 = vunpack.c.l.b16 %v1016
        %v1042 = vunpack.c.l.b16 %v1017
        %v1043 = vunpack.c.l.b16 %v1018
        %v1044 = vunpack.c.l.b16 %v1019
        %v1045 = vpack.c.b16 %v1038, %v1037
        %v1046 = vpack.c.b16 %v1040, %v1039
        %v1047 = vpack.c.b16 %v1042, %v1041
        %v1048 = vpack.c.b16 %v1044, %v1043
        %v1054 = vsel %vm272, %v1028, 0
        %1056 = vmatpush.bf16.msra.mxu0 0
        %1057 = vmatpush.bf16.msra.mxu0 0
        %1058 = vmatpush.bf16.msra.mxu0 0
        %1059 = vmatpush.bf16.msra.mxu0 0
        %1060 = vmatpush.bf16.msra.mxu0 %v1048
        %1061 = vmatpush.bf16.msra.mxu0 %v1047
        %1062 = vmatpush.bf16.msra.mxu0 %v1046
        %1063 = vmatpush.bf16.msra.mxu0 %v1045
        %1064 = vmatmul.bf16.gmra.mxu0 %v1054
        %v1065 = vpop.f32.mrf.mxu0
        %v1066 = vadd.f32 0.0, %v1065
        %v1067 = vpop.f32.mrf.mxu0
        %1068 = vdwg.mxu0
        %v1069 = vadd.f32 %v1009, %v1066
        %v1070 = vld [vmem:[%s958] sm:$0x3]
        %s1071 = scalar_lea.vmem %s2, 480
        %v1072 = vld [vmem:[%s1071] sm:$0xf]
        %v1073 = vld [vmem:[%s1071 + $0x4] sm:$0xf]
        %v1074 = vld [vmem:[%s1071 + $0x8] sm:$0xf]
        %v1075 = vld [vmem:[%s1071 + $0xc] sm:$0xf]
        %v1076 = vld [vmem:[%s1071 + $0x10] sm:$0xf]
        %v1077 = vld [vmem:[%s1071 + $0x14] sm:$0xf]
        %v1078 = vld [vmem:[%s1071 + $0x18] sm:$0xf]
        %v1079 = vld [vmem:[%s1071 + $0x1c] sm:$0xf]
        %1081 = vst [vmem:[#allocation1] ss:$4 sm:$0xff] %v1070
        %v1082 = vld.sshfl [vmem:[#allocation1] sm:$0xff pattern:$0x73625140]
        %v1083 = vshrl.u32 %v1082, 16
        %v1085 = vshll.u32 %v1082, 16
        %v1087 = vrot.slane %v1085, 1
        %v1088 = vor.u32 %v1083, %v1087
        %v1097 = vunpack.c.l.b16 %v1072
        %v1098 = vunpack.c.l.b16 %v1073
        %v1099 = vunpack.c.l.b16 %v1074
        %v1100 = vunpack.c.l.b16 %v1075
        %v1101 = vunpack.c.l.b16 %v1076
        %v1102 = vunpack.c.l.b16 %v1077
        %v1103 = vunpack.c.l.b16 %v1078
        %v1104 = vunpack.c.l.b16 %v1079
        %v1105 = vpack.c.b16 %v1098, %v1097
        %v1106 = vpack.c.b16 %v1100, %v1099
        %v1107 = vpack.c.b16 %v1102, %v1101
        %v1108 = vpack.c.b16 %v1104, %v1103
        %v1114 = vsel %vm272, %v1088, 0
        %1116 = vmatpush.bf16.msra.mxu0 0
        %1117 = vmatpush.bf16.msra.mxu0 0
        %1118 = vmatpush.bf16.msra.mxu0 0
        %1119 = vmatpush.bf16.msra.mxu0 0
        %1120 = vmatpush.bf16.msra.mxu0 %v1108
        %1121 = vmatpush.bf16.msra.mxu0 %v1107
        %1122 = vmatpush.bf16.msra.mxu0 %v1106
        %1123 = vmatpush.bf16.msra.mxu0 %v1105
        %1124 = vmatmul.bf16.gmra.mxu0 %v1114
        %v1125 = vpop.f32.mrf.mxu0
        %v1126 = vadd.f32 0.0, %v1125
        %v1127 = vpop.f32.mrf.mxu0
        %1128 = vdwg.mxu0
        %v1129 = vadd.f32 %v1069, %v1126
        %v1131 = vperm.slane %v217, 0
        %v1133 = vadd.f32 %v1129, %v1131
        %v1134 = vmax.f32 %v1133, 0.0
        %1135 = vst [vmem:[#allocation1] ss:$4 sm:$0xff] %v329
        %v1136 = vld.sshfl [vmem:[#allocation1] sm:$0xff pattern:$0x73625140]
        %v1137 = vshrl.u32 %v1136, 16
        %v1139 = vshll.u32 %v1136, 16
        %v1141 = vrot.slane %v1139, 1
        %v1142 = vor.u32 %v1137, %v1141
        %v1144 = vsel %vm272, %v1142, 0
        %1146 = vmatpush.bf16.msra.mxu0 0
        %1147 = vmatpush.bf16.msra.mxu0 0
        %1148 = vmatpush.bf16.msra.mxu0 0
        %1149 = vmatpush.bf16.msra.mxu0 0
        %1150 = vmatpush.bf16.msra.mxu0 %v267
        %1151 = vmatpush.bf16.msra.mxu0 %v266
        %1152 = vmatpush.bf16.msra.mxu0 %v265
        %1153 = vmatpush.bf16.msra.mxu0 %v264
        %1154 = vmatmul.bf16.gmra.mxu0 %v1144
        %v1155 = vpop.f32.mrf.mxu0
        %v1156 = vadd.f32 0.0, %v1155
        %v1157 = vpop.f32.mrf.mxu0
        %1158 = vdwg.mxu0
        %1159 = vmatpush.bf16.msra.mxu0 0
        %1160 = vmatpush.bf16.msra.mxu0 0
        %1161 = vmatpush.bf16.msra.mxu0 0
        %1162 = vmatpush.bf16.msra.mxu0 0
        %1163 = vmatpush.bf16.msra.mxu0 %v308
        %1164 = vmatpush.bf16.msra.mxu0 %v307
        %1165 = vmatpush.bf16.msra.mxu0 %v306
        %1166 = vmatpush.bf16.msra.mxu0 %v305
        %1167 = vmatmul.bf16.gmra.mxu0 %v274
        %v1168 = vpop.f32.mrf.mxu0
        %v1169 = vadd.f32 %v1156, %v1168
        %v1170 = vpop.f32.mrf.mxu0
        %1171 = vdwg.mxu0
        %1172 = vst [vmem:[#allocation1] ss:$4 sm:$0xff] %v389
        %v1173 = vld.sshfl [vmem:[#allocation1] sm:$0xff pattern:$0x73625140]
        %v1174 = vshrl.u32 %v1173, 16
        %v1176 = vshll.u32 %v1173, 16
        %v1178 = vrot.slane %v1176, 1
        %v1179 = vor.u32 %v1174, %v1178
        %v1181 = vsel %vm272, %v1179, 0
        %1183 = vmatpush.bf16.msra.mxu0 0
        %1184 = vmatpush.bf16.msra.mxu0 0
        %1185 = vmatpush.bf16.msra.mxu0 0
        %1186 = vmatpush.bf16.msra.mxu0 0
        %1187 = vmatpush.bf16.msra.mxu0 %v367
        %1188 = vmatpush.bf16.msra.mxu0 %v366
        %1189 = vmatpush.bf16.msra.mxu0 %v365
        %1190 = vmatpush.bf16.msra.mxu0 %v364
        %1191 = vmatmul.bf16.gmra.mxu0 %v1181
        %v1192 = vpop.f32.mrf.mxu0
        %v1193 = vadd.f32 0.0, %v1192
        %v1194 = vpop.f32.mrf.mxu0
        %1195 = vdwg.mxu0
        %v1196 = vadd.f32 %v1169, %v1193
        %v1197 = vld [vmem:[%s226] sm:$0x2]
        %1199 = vst [vmem:[#allocation1] ss:$4 sm:$0xff] %v1197
        %v1200 = vld.sshfl [vmem:[#allocation1] sm:$0xff pattern:$0x73625140]
        %v1202 = vrot.slane %v1200, 1
        %v1204 = vsel %vm272, %v1202, 0
        %1206 = vmatpush.bf16.msra.mxu0 0
        %1207 = vmatpush.bf16.msra.mxu0 0
        %1208 = vmatpush.bf16.msra.mxu0 0
        %1209 = vmatpush.bf16.msra.mxu0 0
        %1210 = vmatpush.bf16.msra.mxu0 %v427
        %1211 = vmatpush.bf16.msra.mxu0 %v426
        %1212 = vmatpush.bf16.msra.mxu0 %v425
        %1213 = vmatpush.bf16.msra.mxu0 %v424
        %1214 = vmatmul.bf16.gmra.mxu0 %v1204
        %v1215 = vpop.f32.mrf.mxu0
        %v1216 = vadd.f32 0.0, %v1215
        %v1217 = vpop.f32.mrf.mxu0
        %1218 = vdwg.mxu0
        %v1219 = vadd.f32 %v1196, %v1216
        %1220 = vmatpush.bf16.msra.mxu0 0
        %1221 = vmatpush.bf16.msra.mxu0 0
        %1222 = vmatpush.bf16.msra.mxu0 0
        %1223 = vmatpush.bf16.msra.mxu0 0
        %1224 = vmatpush.bf16.msra.mxu0 %v481
        %1225 = vmatpush.bf16.msra.mxu0 %v480
        %1226 = vmatpush.bf16.msra.mxu0 %v479
        %1227 = vmatpush.bf16.msra.mxu0 %v478
        %1228 = vmatmul.bf16.gmra.mxu0 %v540
        %v1229 = vpop.f32.mrf.mxu0
        %v1230 = vadd.f32 0.0, %v1229
        %v1231 = vpop.f32.mrf.mxu0
        %1232 = vdwg.mxu0
        %v1233 = vadd.f32 %v1219, %v1230
        %1234 = vst [vmem:[#allocation1] ss:$4 sm:$0xff] %v556
        %v1235 = vld.sshfl [vmem:[#allocation1] sm:$0xff pattern:$0x73625140]
        %v1236 = vshrl.u32 %v1235, 16
        %v1238 = vshll.u32 %v1235, 16
        %v1240 = vrot.slane %v1238, 1
        %v1241 = vor.u32 %v1236, %v1240
        %v1243 = vsel %vm272, %v1241, 0
        %1245 = vmatpush.bf16.msra.mxu0 0
        %1246 = vmatpush.bf16.msra.mxu0 0
        %1247 = vmatpush.bf16.msra.mxu0 0
        %1248 = vmatpush.bf16.msra.mxu0 0
        %1249 = vmatpush.bf16.msra.mxu0 %v534
        %1250 = vmatpush.bf16.msra.mxu0 %v533
        %1251 = vmatpush.bf16.msra.mxu0 %v532
        %1252 = vmatpush.bf16.msra.mxu0 %v531
        %1253 = vmatmul.bf16.gmra.mxu0 %v1243
        %v1254 = vpop.f32.mrf.mxu0
        %v1255 = vadd.f32 0.0, %v1254
        %v1256 = vpop.f32.mrf.mxu0
        %1257 = vdwg.mxu0
        %v1258 = vadd.f32 %v1233, %v1255
        %1259 = vst [vmem:[#allocation1] ss:$4 sm:$0xff] %v616
        %v1260 = vld.sshfl [vmem:[#allocation1] sm:$0xff pattern:$0x73625140]
        %v1261 = vshrl.u32 %v1260, 16
        %v1263 = vshll.u32 %v1260, 16
        %v1265 = vrot.slane %v1263, 1
        %v1266 = vor.u32 %v1261, %v1265
        %v1268 = vsel %vm272, %v1266, 0
        %1270 = vmatpush.bf16.msra.mxu0 0
        %1271 = vmatpush.bf16.msra.mxu0 0
        %1272 = vmatpush.bf16.msra.mxu0 0
        %1273 = vmatpush.bf16.msra.mxu0 0
        %1274 = vmatpush.bf16.msra.mxu0 %v594
        %1275 = vmatpush.bf16.msra.mxu0 %v593
        %1276 = vmatpush.bf16.msra.mxu0 %v592
        %1277 = vmatpush.bf16.msra.mxu0 %v591
        %1278 = vmatmul.bf16.gmra.mxu0 %v1268
        %v1279 = vpop.f32.mrf.mxu0
        %v1280 = vadd.f32 0.0, %v1279
        %v1281 = vpop.f32.mrf.mxu0
        %1282 = vdwg.mxu0
        %v1283 = vadd.f32 %v1258, %v1280
        %v1284 = vld [vmem:[%s451] sm:$0x2]
        %1286 = vst [vmem:[#allocation1] ss:$4 sm:$0xff] %v1284
        %v1287 = vld.sshfl [vmem:[#allocation1] sm:$0xff pattern:$0x73625140]
        %v1289 = vrot.slane %v1287, 1
        %v1291 = vsel %vm272, %v1289, 0
        %1293 = vmatpush.bf16.msra.mxu0 0
        %1294 = vmatpush.bf16.msra.mxu0 0
        %1295 = vmatpush.bf16.msra.mxu0 0
        %1296 = vmatpush.bf16.msra.mxu0 0
        %1297 = vmatpush.bf16.msra.mxu0 %v654
        %1298 = vmatpush.bf16.msra.mxu0 %v653
        %1299 = vmatpush.bf16.msra.mxu0 %v652
        %1300 = vmatpush.bf16.msra.mxu0 %v651
        %1301 = vmatmul.bf16.gmra.mxu0 %v1291
        %v1302 = vpop.f32.mrf.mxu0
        %v1303 = vadd.f32 0.0, %v1302
        %v1304 = vpop.f32.mrf.mxu0
        %1305 = vdwg.mxu0
        %v1306 = vadd.f32 %v1283, %v1303
        %1307 = vmatpush.bf16.msra.mxu0 0
        %1308 = vmatpush.bf16.msra.mxu0 0
        %1309 = vmatpush.bf16.msra.mxu0 0
        %1310 = vmatpush.bf16.msra.mxu0 0
        %1311 = vmatpush.bf16.msra.mxu0 %v708
        %1312 = vmatpush.bf16.msra.mxu0 %v707
        %1313 = vmatpush.bf16.msra.mxu0 %v706
        %1314 = vmatpush.bf16.msra.mxu0 %v705
        %1315 = vmatmul.bf16.gmra.mxu0 %v767
        %v1316 = vpop.f32.mrf.mxu0
        %v1317 = vadd.f32 0.0, %v1316
        %v1318 = vpop.f32.mrf.mxu0
        %1319 = vdwg.mxu0
        %v1320 = vadd.f32 %v1306, %v1317
        %1321 = vst [vmem:[#allocation1] ss:$4 sm:$0xff] %v783
        %v1322 = vld.sshfl [vmem:[#allocation1] sm:$0xff pattern:$0x73625140]
        %v1323 = vshrl.u32 %v1322, 16
        %v1325 = vshll.u32 %v1322, 16
        %v1327 = vrot.slane %v1325, 1
        %v1328 = vor.u32 %v1323, %v1327
        %v1330 = vsel %vm272, %v1328, 0
        %1332 = vmatpush.bf16.msra.mxu0 0
        %1333 = vmatpush.bf16.msra.mxu0 0
        %1334 = vmatpush.bf16.msra.mxu0 0
        %1335 = vmatpush.bf16.msra.mxu0 0
        %1336 = vmatpush.bf16.msra.mxu0 %v761
        %1337 = vmatpush.bf16.msra.mxu0 %v760
        %1338 = vmatpush.bf16.msra.mxu0 %v759
        %1339 = vmatpush.bf16.msra.mxu0 %v758
        %1340 = vmatmul.bf16.gmra.mxu0 %v1330
        %v1341 = vpop.f32.mrf.mxu0
        %v1342 = vadd.f32 0.0, %v1341
        %v1343 = vpop.f32.mrf.mxu0
        %1344 = vdwg.mxu0
        %v1345 = vadd.f32 %v1320, %v1342
        %1346 = vst [vmem:[#allocation1] ss:$4 sm:$0xff] %v843
        %v1347 = vld.sshfl [vmem:[#allocation1] sm:$0xff pattern:$0x73625140]
        %v1348 = vshrl.u32 %v1347, 16
        %v1350 = vshll.u32 %v1347, 16
        %v1352 = vrot.slane %v1350, 1
        %v1353 = vor.u32 %v1348, %v1352
        %v1355 = vsel %vm272, %v1353, 0
        %1357 = vmatpush.bf16.msra.mxu0 0
        %1358 = vmatpush.bf16.msra.mxu0 0
        %1359 = vmatpush.bf16.msra.mxu0 0
        %1360 = vmatpush.bf16.msra.mxu0 0
        %1361 = vmatpush.bf16.msra.mxu0 %v821
        %1362 = vmatpush.bf16.msra.mxu0 %v820
        %1363 = vmatpush.bf16.msra.mxu0 %v819
        %1364 = vmatpush.bf16.msra.mxu0 %v818
        %1365 = vmatmul.bf16.gmra.mxu0 %v1355
        %v1366 = vpop.f32.mrf.mxu0
        %v1367 = vadd.f32 0.0, %v1366
        %v1368 = vpop.f32.mrf.mxu0
        %1369 = vdwg.mxu0
        %v1370 = vadd.f32 %v1345, %v1367
        %v1371 = vld [vmem:[%s678] sm:$0x2]
        %1373 = vst [vmem:[#allocation1] ss:$4 sm:$0xff] %v1371
        %v1374 = vld.sshfl [vmem:[#allocation1] sm:$0xff pattern:$0x73625140]
        %v1376 = vrot.slane %v1374, 1
        %v1378 = vsel %vm272, %v1376, 0
        %1380 = vmatpush.bf16.msra.mxu0 0
        %1381 = vmatpush.bf16.msra.mxu0 0
        %1382 = vmatpush.bf16.msra.mxu0 0
        %1383 = vmatpush.bf16.msra.mxu0 0
        %1384 = vmatpush.bf16.msra.mxu0 %v881
        %1385 = vmatpush.bf16.msra.mxu0 %v880
        %1386 = vmatpush.bf16.msra.mxu0 %v879
        %1387 = vmatpush.bf16.msra.mxu0 %v878
        %1388 = vmatmul.bf16.gmra.mxu0 %v1378
        %v1389 = vpop.f32.mrf.mxu0
        %v1390 = vadd.f32 0.0, %v1389
        %v1391 = vpop.f32.mrf.mxu0
        %1392 = vdwg.mxu0
        %v1393 = vadd.f32 %v1370, %v1390
        %1394 = vmatpush.bf16.msra.mxu0 0
        %1395 = vmatpush.bf16.msra.mxu0 0
        %1396 = vmatpush.bf16.msra.mxu0 0
        %1397 = vmatpush.bf16.msra.mxu0 0
        %1398 = vmatpush.bf16.msra.mxu0 %v935
        %1399 = vmatpush.bf16.msra.mxu0 %v934
        %1400 = vmatpush.bf16.msra.mxu0 %v933
        %1401 = vmatpush.bf16.msra.mxu0 %v932
        %1402 = vmatmul.bf16.gmra.mxu0 %v994
        %v1403 = vpop.f32.mrf.mxu0
        %v1404 = vadd.f32 0.0, %v1403
        %v1405 = vpop.f32.mrf.mxu0
        %1406 = vdwg.mxu0
        %v1407 = vadd.f32 %v1393, %v1404
        %1408 = vst [vmem:[#allocation1] ss:$4 sm:$0xff] %v1010
        %v1409 = vld.sshfl [vmem:[#allocation1] sm:$0xff pattern:$0x73625140]
        %v1410 = vshrl.u32 %v1409, 16
        %v1412 = vshll.u32 %v1409, 16
        %v1414 = vrot.slane %v1412, 1
        %v1415 = vor.u32 %v1410, %v1414
        %v1417 = vsel %vm272, %v1415, 0
        %1419 = vmatpush.bf16.msra.mxu0 0
        %1420 = vmatpush.bf16.msra.mxu0 0
        %1421 = vmatpush.bf16.msra.mxu0 0
        %1422 = vmatpush.bf16.msra.mxu0 0
        %1423 = vmatpush.bf16.msra.mxu0 %v988
        %1424 = vmatpush.bf16.msra.mxu0 %v987
        %1425 = vmatpush.bf16.msra.mxu0 %v986
        %1426 = vmatpush.bf16.msra.mxu0 %v985
        %1427 = vmatmul.bf16.gmra.mxu0 %v1417
        %v1428 = vpop.f32.mrf.mxu0
        %v1429 = vadd.f32 0.0, %v1428
        %v1430 = vpop.f32.mrf.mxu0
        %1431 = vdwg.mxu0
        %v1432 = vadd.f32 %v1407, %v1429
        %1433 = vst [vmem:[#allocation1] ss:$4 sm:$0xff] %v1070
        %v1434 = vld.sshfl [vmem:[#allocation1] sm:$0xff pattern:$0x73625140]
        %v1435 = vshrl.u32 %v1434, 16
        %v1437 = vshll.u32 %v1434, 16
        %v1439 = vrot.slane %v1437, 1
        %v1440 = vor.u32 %v1435, %v1439
        %v1442 = vsel %vm272, %v1440, 0
        %1444 = vmatpush.bf16.msra.mxu0 0
        %1445 = vmatpush.bf16.msra.mxu0 0
        %1446 = vmatpush.bf16.msra.mxu0 0
        %1447 = vmatpush.bf16.msra.mxu0 0
        %1448 = vmatpush.bf16.msra.mxu0 %v1048
        %1449 = vmatpush.bf16.msra.mxu0 %v1047
        %1450 = vmatpush.bf16.msra.mxu0 %v1046
        %1451 = vmatpush.bf16.msra.mxu0 %v1045
        %1452 = vmatmul.bf16.gmra.mxu0 %v1442
        %v1453 = vpop.f32.mrf.mxu0
        %v1454 = vadd.f32 0.0, %v1453
        %v1455 = vpop.f32.mrf.mxu0
        %1456 = vdwg.mxu0
        %v1457 = vadd.f32 %v1432, %v1454
        %v1458 = vld [vmem:[%s905] sm:$0x2]
        %1460 = vst [vmem:[#allocation1] ss:$4 sm:$0xff] %v1458
        %v1461 = vld.sshfl [vmem:[#allocation1] sm:$0xff pattern:$0x73625140]
        %v1463 = vrot.slane %v1461, 1
        %v1465 = vsel %vm272, %v1463, 0
        %1467 = vmatpush.bf16.msra.mxu0 0
        %1468 = vmatpush.bf16.msra.mxu0 0
        %1469 = vmatpush.bf16.msra.mxu0 0
        %1470 = vmatpush.bf16.msra.mxu0 0
        %1471 = vmatpush.bf16.msra.mxu0 %v1108
        %1472 = vmatpush.bf16.msra.mxu0 %v1107
        %1473 = vmatpush.bf16.msra.mxu0 %v1106
        %1474 = vmatpush.bf16.msra.mxu0 %v1105
        %1475 = vmatmul.bf16.gmra.mxu0 %v1465
        %v1476 = vpop.f32.mrf.mxu0
        %v1477 = vadd.f32 0.0, %v1476
        %v1478 = vpop.f32.mrf.mxu0
        %1479 = vdwg.mxu0
        %v1480 = vadd.f32 %v1457, %v1477
        %v1481 = vadd.f32 %v1480, %v1131
        %v1482 = vmax.f32 %v1481, 0.0
        %v1483 = vmax.f32 %v1134, %v1482
        %1484 = vmatpush.bf16.msra.mxu0 0
        %1485 = vmatpush.bf16.msra.mxu0 0
        %1486 = vmatpush.bf16.msra.mxu0 0
        %1487 = vmatpush.bf16.msra.mxu0 0
        %1488 = vmatpush.bf16.msra.mxu0 %v267
        %1489 = vmatpush.bf16.msra.mxu0 %v266
        %1490 = vmatpush.bf16.msra.mxu0 %v265
        %1491 = vmatpush.bf16.msra.mxu0 %v264
        %1492 = vmatmul.bf16.gmra.mxu0 %v540
        %v1493 = vpop.f32.mrf.mxu0
        %v1494 = vadd.f32 0.0, %v1493
        %v1495 = vpop.f32.mrf.mxu0
        %1496 = vdwg.mxu0
        %1497 = vmatpush.bf16.msra.mxu0 0
        %1498 = vmatpush.bf16.msra.mxu0 0
        %1499 = vmatpush.bf16.msra.mxu0 0
        %1500 = vmatpush.bf16.msra.mxu0 0
        %1501 = vmatpush.bf16.msra.mxu0 %v308
        %1502 = vmatpush.bf16.msra.mxu0 %v307
        %1503 = vmatpush.bf16.msra.mxu0 %v306
        %1504 = vmatpush.bf16.msra.mxu0 %v305
        %1505 = vmatmul.bf16.gmra.mxu0 %v487
        %v1506 = vpop.f32.mrf.mxu0
        %v1507 = vadd.f32 %v1494, %v1506
        %v1508 = vpop.f32.mrf.mxu0
        %1509 = vdwg.mxu0
        %1510 = vst [vmem:[#allocation1] ss:$4 sm:$0xff] %v556
        %v1511 = vld.sshfl [vmem:[#allocation1] sm:$0xff pattern:$0x73625140]
        %v1512 = vshrl.u32 %v1511, 16
        %v1514 = vshll.u32 %v1511, 16
        %v1516 = vrot.slane %v1514, 1
        %v1517 = vor.u32 %v1512, %v1516
        %v1519 = vsel %vm272, %v1517, 0
        %1521 = vmatpush.bf16.msra.mxu0 0
        %1522 = vmatpush.bf16.msra.mxu0 0
        %1523 = vmatpush.bf16.msra.mxu0 0
        %1524 = vmatpush.bf16.msra.mxu0 0
        %1525 = vmatpush.bf16.msra.mxu0 %v367
        %1526 = vmatpush.bf16.msra.mxu0 %v366
        %1527 = vmatpush.bf16.msra.mxu0 %v365
        %1528 = vmatpush.bf16.msra.mxu0 %v364
        %1529 = vmatmul.bf16.gmra.mxu0 %v1519
        %v1530 = vpop.f32.mrf.mxu0
        %v1531 = vadd.f32 0.0, %v1530
        %v1532 = vpop.f32.mrf.mxu0
        %1533 = vdwg.mxu0
        %v1534 = vadd.f32 %v1507, %v1531
        %1535 = vst [vmem:[#allocation1] ss:$4 sm:$0xff] %v616
        %v1536 = vld.sshfl [vmem:[#allocation1] sm:$0xff pattern:$0x73625140]
        %v1537 = vshrl.u32 %v1536, 16
        %v1539 = vshll.u32 %v1536, 16
        %v1541 = vrot.slane %v1539, 1
        %v1542 = vor.u32 %v1537, %v1541
        %v1544 = vsel %vm272, %v1542, 0
        %1546 = vmatpush.bf16.msra.mxu0 0
        %1547 = vmatpush.bf16.msra.mxu0 0
        %1548 = vmatpush.bf16.msra.mxu0 0
        %1549 = vmatpush.bf16.msra.mxu0 0
        %1550 = vmatpush.bf16.msra.mxu0 %v427
        %1551 = vmatpush.bf16.msra.mxu0 %v426
        %1552 = vmatpush.bf16.msra.mxu0 %v425
        %1553 = vmatpush.bf16.msra.mxu0 %v424
        %1554 = vmatmul.bf16.gmra.mxu0 %v1544
        %v1555 = vpop.f32.mrf.mxu0
        %v1556 = vadd.f32 0.0, %v1555
        %v1557 = vpop.f32.mrf.mxu0
        %1558 = vdwg.mxu0
        %v1559 = vadd.f32 %v1534, %v1556
        %1560 = vmatpush.bf16.msra.mxu0 0
        %1561 = vmatpush.bf16.msra.mxu0 0
        %1562 = vmatpush.bf16.msra.mxu0 0
        %1563 = vmatpush.bf16.msra.mxu0 0
        %1564 = vmatpush.bf16.msra.mxu0 %v481
        %1565 = vmatpush.bf16.msra.mxu0 %v480
        %1566 = vmatpush.bf16.msra.mxu0 %v479
        %1567 = vmatpush.bf16.msra.mxu0 %v478
        %1568 = vmatmul.bf16.gmra.mxu0 %v714
        %v1569 = vpop.f32.mrf.mxu0
        %v1570 = vadd.f32 0.0, %v1569
        %v1571 = vpop.f32.mrf.mxu0
        %1572 = vdwg.mxu0
        %v1573 = vadd.f32 %v1559, %v1570
        %1574 = vmatpush.bf16.msra.mxu0 0
        %1575 = vmatpush.bf16.msra.mxu0 0
        %1576 = vmatpush.bf16.msra.mxu0 0
        %1577 = vmatpush.bf16.msra.mxu0 0
        %1578 = vmatpush.bf16.msra.mxu0 %v534
        %1579 = vmatpush.bf16.msra.mxu0 %v533
        %1580 = vmatpush.bf16.msra.mxu0 %v532
        %1581 = vmatpush.bf16.msra.mxu0 %v531
        %1582 = vmatmul.bf16.gmra.mxu0 %v767
        %v1583 = vpop.f32.mrf.mxu0
        %v1584 = vadd.f32 0.0, %v1583
        %v1585 = vpop.f32.mrf.mxu0
        %1586 = vdwg.mxu0
        %v1587 = vadd.f32 %v1573, %v1584
        %1588 = vst [vmem:[#allocation1] ss:$4 sm:$0xff] %v783
        %v1589 = vld.sshfl [vmem:[#allocation1] sm:$0xff pattern:$0x73625140]
        %v1590 = vshrl.u32 %v1589, 16
        %v1592 = vshll.u32 %v1589, 16
        %v1594 = vrot.slane %v1592, 1
        %v1595 = vor.u32 %v1590, %v1594
        %v1597 = vsel %vm272, %v1595, 0
        %1599 = vmatpush.bf16.msra.mxu0 0
        %1600 = vmatpush.bf16.msra.mxu0 0
        %1601 = vmatpush.bf16.msra.mxu0 0
        %1602 = vmatpush.bf16.msra.mxu0 0
        %1603 = vmatpush.bf16.msra.mxu0 %v594
        %1604 = vmatpush.bf16.msra.mxu0 %v593
        %1605 = vmatpush.bf16.msra.mxu0 %v592
        %1606 = vmatpush.bf16.msra.mxu0 %v591
        %1607 = vmatmul.bf16.gmra.mxu0 %v1597
        %v1608 = vpop.f32.mrf.mxu0
        %v1609 = vadd.f32 0.0, %v1608
        %v1610 = vpop.f32.mrf.mxu0
        %1611 = vdwg.mxu0
        %v1612 = vadd.f32 %v1587, %v1609
        %1613 = vst [vmem:[#allocation1] ss:$4 sm:$0xff] %v843
        %v1614 = vld.sshfl [vmem:[#allocation1] sm:$0xff pattern:$0x73625140]
        %v1615 = vshrl.u32 %v1614, 16
        %v1617 = vshll.u32 %v1614, 16
        %v1619 = vrot.slane %v1617, 1
        %v1620 = vor.u32 %v1615, %v1619
        %v1622 = vsel %vm272, %v1620, 0
        %1624 = vmatpush.bf16.msra.mxu0 0
        %1625 = vmatpush.bf16.msra.mxu0 0
        %1626 = vmatpush.bf16.msra.mxu0 0
        %1627 = vmatpush.bf16.msra.mxu0 0
        %1628 = vmatpush.bf16.msra.mxu0 %v654
        %1629 = vmatpush.bf16.msra.mxu0 %v653
        %1630 = vmatpush.bf16.msra.mxu0 %v652
        %1631 = vmatpush.bf16.msra.mxu0 %v651
        %1632 = vmatmul.bf16.gmra.mxu0 %v1622
        %v1633 = vpop.f32.mrf.mxu0
        %v1634 = vadd.f32 0.0, %v1633
        %v1635 = vpop.f32.mrf.mxu0
        %1636 = vdwg.mxu0
        %v1637 = vadd.f32 %v1612, %v1634
        %1638 = vmatpush.bf16.msra.mxu0 0
        %1639 = vmatpush.bf16.msra.mxu0 0
        %1640 = vmatpush.bf16.msra.mxu0 0
        %1641 = vmatpush.bf16.msra.mxu0 0
        %1642 = vmatpush.bf16.msra.mxu0 %v708
        %1643 = vmatpush.bf16.msra.mxu0 %v707
        %1644 = vmatpush.bf16.msra.mxu0 %v706
        %1645 = vmatpush.bf16.msra.mxu0 %v705
        %1646 = vmatmul.bf16.gmra.mxu0 %v941
        %v1647 = vpop.f32.mrf.mxu0
        %v1648 = vadd.f32 0.0, %v1647
        %v1649 = vpop.f32.mrf.mxu0
        %1650 = vdwg.mxu0
        %v1651 = vadd.f32 %v1637, %v1648
        %1652 = vmatpush.bf16.msra.mxu0 0
        %1653 = vmatpush.bf16.msra.mxu0 0
        %1654 = vmatpush.bf16.msra.mxu0 0
        %1655 = vmatpush.bf16.msra.mxu0 0
        %1656 = vmatpush.bf16.msra.mxu0 %v761
        %1657 = vmatpush.bf16.msra.mxu0 %v760
        %1658 = vmatpush.bf16.msra.mxu0 %v759
        %1659 = vmatpush.bf16.msra.mxu0 %v758
        %1660 = vmatmul.bf16.gmra.mxu0 %v994
        %v1661 = vpop.f32.mrf.mxu0
        %v1662 = vadd.f32 0.0, %v1661
        %v1663 = vpop.f32.mrf.mxu0
        %1664 = vdwg.mxu0
        %v1665 = vadd.f32 %v1651, %v1662
        %1666 = vst [vmem:[#allocation1] ss:$4 sm:$0xff] %v1010
        %v1667 = vld.sshfl [vmem:[#allocation1] sm:$0xff pattern:$0x73625140]
        %v1668 = vshrl.u32 %v1667, 16
        %v1670 = vshll.u32 %v1667, 16
        %v1672 = vrot.slane %v1670, 1
        %v1673 = vor.u32 %v1668, %v1672
        %v1675 = vsel %vm272, %v1673, 0
        %1677 = vmatpush.bf16.msra.mxu0 0
        %1678 = vmatpush.bf16.msra.mxu0 0
        %1679 = vmatpush.bf16.msra.mxu0 0
        %1680 = vmatpush.bf16.msra.mxu0 0
        %1681 = vmatpush.bf16.msra.mxu0 %v821
        %1682 = vmatpush.bf16.msra.mxu0 %v820
        %1683 = vmatpush.bf16.msra.mxu0 %v819
        %1684 = vmatpush.bf16.msra.mxu0 %v818
        %1685 = vmatmul.bf16.gmra.mxu0 %v1675
        %v1686 = vpop.f32.mrf.mxu0
        %v1687 = vadd.f32 0.0, %v1686
        %v1688 = vpop.f32.mrf.mxu0
        %1689 = vdwg.mxu0
        %v1690 = vadd.f32 %v1665, %v1687
        %1691 = vst [vmem:[#allocation1] ss:$4 sm:$0xff] %v1070
        %v1692 = vld.sshfl [vmem:[#allocation1] sm:$0xff pattern:$0x73625140]
        %v1693 = vshrl.u32 %v1692, 16
        %v1695 = vshll.u32 %v1692, 16
        %v1697 = vrot.slane %v1695, 1
        %v1698 = vor.u32 %v1693, %v1697
        %v1700 = vsel %vm272, %v1698, 0
        %1702 = vmatpush.bf16.msra.mxu0 0
        %1703 = vmatpush.bf16.msra.mxu0 0
        %1704 = vmatpush.bf16.msra.mxu0 0
        %1705 = vmatpush.bf16.msra.mxu0 0
        %1706 = vmatpush.bf16.msra.mxu0 %v881
        %1707 = vmatpush.bf16.msra.mxu0 %v880
        %1708 = vmatpush.bf16.msra.mxu0 %v879
        %1709 = vmatpush.bf16.msra.mxu0 %v878
        %1710 = vmatmul.bf16.gmra.mxu0 %v1700
        %v1711 = vpop.f32.mrf.mxu0
        %v1712 = vadd.f32 0.0, %v1711
        %v1713 = vpop.f32.mrf.mxu0
        %1714 = vdwg.mxu0
        %v1715 = vadd.f32 %v1690, %v1712
        %s1716 = sadd.s32 %s224, 4
        %s1717 = smul.addr %s1716, 2
        %s1718 = scalar_lea.vmem %s206, %s1717
        %v1719 = vld [vmem:[%s1718] sm:$0x1]
        %v1721 = vsel %vm272, %v1719, 0
        %1723 = vmatpush.bf16.msra.mxu0 0
        %1724 = vmatpush.bf16.msra.mxu0 0
        %1725 = vmatpush.bf16.msra.mxu0 0
        %1726 = vmatpush.bf16.msra.mxu0 0
        %1727 = vmatpush.bf16.msra.mxu0 %v935
        %1728 = vmatpush.bf16.msra.mxu0 %v934
        %1729 = vmatpush.bf16.msra.mxu0 %v933
        %1730 = vmatpush.bf16.msra.mxu0 %v932
        %1731 = vmatmul.bf16.gmra.mxu0 %v1721
        %v1732 = vpop.f32.mrf.mxu0
        %v1733 = vadd.f32 0.0, %v1732
        %v1734 = vpop.f32.mrf.mxu0
        %1735 = vdwg.mxu0
        %v1736 = vadd.f32 %v1715, %v1733
        %s1737 = smul.addr %s1716, 2
        %s1738 = scalar_lea.vmem %s211, %s1737
        %v1739 = vld [vmem:[%s1738] sm:$0x1]
        %v1741 = vsel %vm272, %v1739, 0
        %1743 = vmatpush.bf16.msra.mxu0 0
        %1744 = vmatpush.bf16.msra.mxu0 0
        %1745 = vmatpush.bf16.msra.mxu0 0
        %1746 = vmatpush.bf16.msra.mxu0 0
        %1747 = vmatpush.bf16.msra.mxu0 %v988
        %1748 = vmatpush.bf16.msra.mxu0 %v987
        %1749 = vmatpush.bf16.msra.mxu0 %v986
        %1750 = vmatpush.bf16.msra.mxu0 %v985
        %1751 = vmatmul.bf16.gmra.mxu0 %v1741
        %v1752 = vpop.f32.mrf.mxu0
        %v1753 = vadd.f32 0.0, %v1752
        %v1754 = vpop.f32.mrf.mxu0
        %1755 = vdwg.mxu0
        %v1756 = vadd.f32 %v1736, %v1753
        %v1757 = vld [vmem:[%s1718] sm:$0x3]
        %1759 = vst [vmem:[#allocation1] ss:$4 sm:$0xff] %v1757
        %v1760 = vld.sshfl [vmem:[#allocation1] sm:$0xff pattern:$0x73625140]
        %v1761 = vshrl.u32 %v1760, 16
        %v1763 = vshll.u32 %v1760, 16
        %v1765 = vrot.slane %v1763, 1
        %v1766 = vor.u32 %v1761, %v1765
        %v1768 = vsel %vm272, %v1766, 0
        %1770 = vmatpush.bf16.msra.mxu0 0
        %1771 = vmatpush.bf16.msra.mxu0 0
        %1772 = vmatpush.bf16.msra.mxu0 0
        %1773 = vmatpush.bf16.msra.mxu0 0
        %1774 = vmatpush.bf16.msra.mxu0 %v1048
        %1775 = vmatpush.bf16.msra.mxu0 %v1047
        %1776 = vmatpush.bf16.msra.mxu0 %v1046
        %1777 = vmatpush.bf16.msra.mxu0 %v1045
        %1778 = vmatmul.bf16.gmra.mxu0 %v1768
        %v1779 = vpop.f32.mrf.mxu0
        %v1780 = vadd.f32 0.0, %v1779
        %v1781 = vpop.f32.mrf.mxu0
        %1782 = vdwg.mxu0
        %v1783 = vadd.f32 %v1756, %v1780
        %v1784 = vld [vmem:[%s1738] sm:$0x3]
        %1786 = vst [vmem:[#allocation1] ss:$4 sm:$0xff] %v1784
        %v1787 = vld.sshfl [vmem:[#allocation1] sm:$0xff pattern:$0x73625140]
        %v1788 = vshrl.u32 %v1787, 16
        %v1790 = vshll.u32 %v1787, 16
        %v1792 = vrot.slane %v1790, 1
        %v1793 = vor.u32 %v1788, %v1792
        %v1795 = vsel %vm272, %v1793, 0
        %1797 = vmatpush.bf16.msra.mxu0 0
        %1798 = vmatpush.bf16.msra.mxu0 0
        %1799 = vmatpush.bf16.msra.mxu0 0
        %1800 = vmatpush.bf16.msra.mxu0 0
        %1801 = vmatpush.bf16.msra.mxu0 %v1108
        %1802 = vmatpush.bf16.msra.mxu0 %v1107
        %1803 = vmatpush.bf16.msra.mxu0 %v1106
        %1804 = vmatpush.bf16.msra.mxu0 %v1105
        %1805 = vmatmul.bf16.gmra.mxu0 %v1795
        %v1806 = vpop.f32.mrf.mxu0
        %v1807 = vadd.f32 0.0, %v1806
        %v1808 = vpop.f32.mrf.mxu0
        %1809 = vdwg.mxu0
        %v1810 = vadd.f32 %v1783, %v1807
        %v1811 = vadd.f32 %v1810, %v1131
        %v1812 = vmax.f32 %v1811, 0.0
        %v1813 = vmax.f32 %v1483, %v1812
        %1814 = vst [vmem:[#allocation1] ss:$4 sm:$0xff] %v556
        %v1815 = vld.sshfl [vmem:[#allocation1] sm:$0xff pattern:$0x73625140]
        %v1816 = vshrl.u32 %v1815, 16
        %v1818 = vshll.u32 %v1815, 16
        %v1820 = vrot.slane %v1818, 1
        %v1821 = vor.u32 %v1816, %v1820
        %v1823 = vsel %vm272, %v1821, 0
        %1825 = vmatpush.bf16.msra.mxu0 0
        %1826 = vmatpush.bf16.msra.mxu0 0
        %1827 = vmatpush.bf16.msra.mxu0 0
        %1828 = vmatpush.bf16.msra.mxu0 0
        %1829 = vmatpush.bf16.msra.mxu0 %v267
        %1830 = vmatpush.bf16.msra.mxu0 %v266
        %1831 = vmatpush.bf16.msra.mxu0 %v265
        %1832 = vmatpush.bf16.msra.mxu0 %v264
        %1833 = vmatmul.bf16.gmra.mxu0 %v1823
        %v1834 = vpop.f32.mrf.mxu0
        %v1835 = vadd.f32 0.0, %v1834
        %v1836 = vpop.f32.mrf.mxu0
        %1837 = vdwg.mxu0
        %1838 = vmatpush.bf16.msra.mxu0 0
        %1839 = vmatpush.bf16.msra.mxu0 0
        %1840 = vmatpush.bf16.msra.mxu0 0
        %1841 = vmatpush.bf16.msra.mxu0 0
        %1842 = vmatpush.bf16.msra.mxu0 %v308
        %1843 = vmatpush.bf16.msra.mxu0 %v307
        %1844 = vmatpush.bf16.msra.mxu0 %v306
        %1845 = vmatpush.bf16.msra.mxu0 %v305
        %1846 = vmatmul.bf16.gmra.mxu0 %v540
        %v1847 = vpop.f32.mrf.mxu0
        %v1848 = vadd.f32 %v1835, %v1847
        %v1849 = vpop.f32.mrf.mxu0
        %1850 = vdwg.mxu0
        %1851 = vst [vmem:[#allocation1] ss:$4 sm:$0xff] %v616
        %v1852 = vld.sshfl [vmem:[#allocation1] sm:$0xff pattern:$0x73625140]
        %v1853 = vshrl.u32 %v1852, 16
        %v1855 = vshll.u32 %v1852, 16
        %v1857 = vrot.slane %v1855, 1
        %v1858 = vor.u32 %v1853, %v1857
        %v1860 = vsel %vm272, %v1858, 0
        %1862 = vmatpush.bf16.msra.mxu0 0
        %1863 = vmatpush.bf16.msra.mxu0 0
        %1864 = vmatpush.bf16.msra.mxu0 0
        %1865 = vmatpush.bf16.msra.mxu0 0
        %1866 = vmatpush.bf16.msra.mxu0 %v367
        %1867 = vmatpush.bf16.msra.mxu0 %v366
        %1868 = vmatpush.bf16.msra.mxu0 %v365
        %1869 = vmatpush.bf16.msra.mxu0 %v364
        %1870 = vmatmul.bf16.gmra.mxu0 %v1860
        %v1871 = vpop.f32.mrf.mxu0
        %v1872 = vadd.f32 0.0, %v1871
        %v1873 = vpop.f32.mrf.mxu0
        %1874 = vdwg.mxu0
        %v1875 = vadd.f32 %v1848, %v1872
        %1876 = vst [vmem:[#allocation1] ss:$4 sm:$0xff] %v1284
        %v1877 = vld.sshfl [vmem:[#allocation1] sm:$0xff pattern:$0x73625140]
        %v1879 = vrot.slane %v1877, 1
        %v1881 = vsel %vm272, %v1879, 0
        %1883 = vmatpush.bf16.msra.mxu0 0
        %1884 = vmatpush.bf16.msra.mxu0 0
        %1885 = vmatpush.bf16.msra.mxu0 0
        %1886 = vmatpush.bf16.msra.mxu0 0
        %1887 = vmatpush.bf16.msra.mxu0 %v427
        %1888 = vmatpush.bf16.msra.mxu0 %v426
        %1889 = vmatpush.bf16.msra.mxu0 %v425
        %1890 = vmatpush.bf16.msra.mxu0 %v424
        %1891 = vmatmul.bf16.gmra.mxu0 %v1881
        %v1892 = vpop.f32.mrf.mxu0
        %v1893 = vadd.f32 0.0, %v1892
        %v1894 = vpop.f32.mrf.mxu0
        %1895 = vdwg.mxu0
        %v1896 = vadd.f32 %v1875, %v1893
        %1897 = vmatpush.bf16.msra.mxu0 0
        %1898 = vmatpush.bf16.msra.mxu0 0
        %1899 = vmatpush.bf16.msra.mxu0 0
        %1900 = vmatpush.bf16.msra.mxu0 0
        %1901 = vmatpush.bf16.msra.mxu0 %v481
        %1902 = vmatpush.bf16.msra.mxu0 %v480
        %1903 = vmatpush.bf16.msra.mxu0 %v479
        %1904 = vmatpush.bf16.msra.mxu0 %v478
        %1905 = vmatmul.bf16.gmra.mxu0 %v767
        %v1906 = vpop.f32.mrf.mxu0
        %v1907 = vadd.f32 0.0, %v1906
        %v1908 = vpop.f32.mrf.mxu0
        %1909 = vdwg.mxu0
        %v1910 = vadd.f32 %v1896, %v1907
        %1911 = vst [vmem:[#allocation1] ss:$4 sm:$0xff] %v783
        %v1912 = vld.sshfl [vmem:[#allocation1] sm:$0xff pattern:$0x73625140]
        %v1913 = vshrl.u32 %v1912, 16
        %v1915 = vshll.u32 %v1912, 16
        %v1917 = vrot.slane %v1915, 1
        %v1918 = vor.u32 %v1913, %v1917
        %v1920 = vsel %vm272, %v1918, 0
        %1922 = vmatpush.bf16.msra.mxu0 0
        %1923 = vmatpush.bf16.msra.mxu0 0
        %1924 = vmatpush.bf16.msra.mxu0 0
        %1925 = vmatpush.bf16.msra.mxu0 0
        %1926 = vmatpush.bf16.msra.mxu0 %v534
        %1927 = vmatpush.bf16.msra.mxu0 %v533
        %1928 = vmatpush.bf16.msra.mxu0 %v532
        %1929 = vmatpush.bf16.msra.mxu0 %v531
        %1930 = vmatmul.bf16.gmra.mxu0 %v1920
        %v1931 = vpop.f32.mrf.mxu0
        %v1932 = vadd.f32 0.0, %v1931
        %v1933 = vpop.f32.mrf.mxu0
        %1934 = vdwg.mxu0
        %v1935 = vadd.f32 %v1910, %v1932
        %1936 = vst [vmem:[#allocation1] ss:$4 sm:$0xff] %v843
        %v1937 = vld.sshfl [vmem:[#allocation1] sm:$0xff pattern:$0x73625140]
        %v1938 = vshrl.u32 %v1937, 16
        %v1940 = vshll.u32 %v1937, 16
        %v1942 = vrot.slane %v1940, 1
        %v1943 = vor.u32 %v1938, %v1942
        %v1945 = vsel %vm272, %v1943, 0
        %1947 = vmatpush.bf16.msra.mxu0 0
        %1948 = vmatpush.bf16.msra.mxu0 0
        %1949 = vmatpush.bf16.msra.mxu0 0
        %1950 = vmatpush.bf16.msra.mxu0 0
        %1951 = vmatpush.bf16.msra.mxu0 %v594
        %1952 = vmatpush.bf16.msra.mxu0 %v593
        %1953 = vmatpush.bf16.msra.mxu0 %v592
        %1954 = vmatpush.bf16.msra.mxu0 %v591
        %1955 = vmatmul.bf16.gmra.mxu0 %v1945
        %v1956 = vpop.f32.mrf.mxu0
        %v1957 = vadd.f32 0.0, %v1956
        %v1958 = vpop.f32.mrf.mxu0
        %1959 = vdwg.mxu0
        %v1960 = vadd.f32 %v1935, %v1957
        %1961 = vst [vmem:[#allocation1] ss:$4 sm:$0xff] %v1371
        %v1962 = vld.sshfl [vmem:[#allocation1] sm:$0xff pattern:$0x73625140]
        %v1964 = vrot.slane %v1962, 1
        %v1966 = vsel %vm272, %v1964, 0
        %1968 = vmatpush.bf16.msra.mxu0 0
        %1969 = vmatpush.bf16.msra.mxu0 0
        %1970 = vmatpush.bf16.msra.mxu0 0
        %1971 = vmatpush.bf16.msra.mxu0 0
        %1972 = vmatpush.bf16.msra.mxu0 %v654
        %1973 = vmatpush.bf16.msra.mxu0 %v653
        %1974 = vmatpush.bf16.msra.mxu0 %v652
        %1975 = vmatpush.bf16.msra.mxu0 %v651
        %1976 = vmatmul.bf16.gmra.mxu0 %v1966
        %v1977 = vpop.f32.mrf.mxu0
        %v1978 = vadd.f32 0.0, %v1977
        %v1979 = vpop.f32.mrf.mxu0
        %1980 = vdwg.mxu0
        %v1981 = vadd.f32 %v1960, %v1978
        %1982 = vmatpush.bf16.msra.mxu0 0
        %1983 = vmatpush.bf16.msra.mxu0 0
        %1984 = vmatpush.bf16.msra.mxu0 0
        %1985 = vmatpush.bf16.msra.mxu0 0
        %1986 = vmatpush.bf16.msra.mxu0 %v708
        %1987 = vmatpush.bf16.msra.mxu0 %v707
        %1988 = vmatpush.bf16.msra.mxu0 %v706
        %1989 = vmatpush.bf16.msra.mxu0 %v705
        %1990 = vmatmul.bf16.gmra.mxu0 %v994
        %v1991 = vpop.f32.mrf.mxu0
        %v1992 = vadd.f32 0.0, %v1991
        %v1993 = vpop.f32.mrf.mxu0
        %1994 = vdwg.mxu0
        %v1995 = vadd.f32 %v1981, %v1992
        %1996 = vst [vmem:[#allocation1] ss:$4 sm:$0xff] %v1010
        %v1997 = vld.sshfl [vmem:[#allocation1] sm:$0xff pattern:$0x73625140]
        %v1998 = vshrl.u32 %v1997, 16
        %v2000 = vshll.u32 %v1997, 16
        %v2002 = vrot.slane %v2000, 1
        %v2003 = vor.u32 %v1998, %v2002
        %v2005 = vsel %vm272, %v2003, 0
        %2007 = vmatpush.bf16.msra.mxu0 0
        %2008 = vmatpush.bf16.msra.mxu0 0
        %2009 = vmatpush.bf16.msra.mxu0 0
        %2010 = vmatpush.bf16.msra.mxu0 0
        %2011 = vmatpush.bf16.msra.mxu0 %v761
        %2012 = vmatpush.bf16.msra.mxu0 %v760
        %2013 = vmatpush.bf16.msra.mxu0 %v759
        %2014 = vmatpush.bf16.msra.mxu0 %v758
        %2015 = vmatmul.bf16.gmra.mxu0 %v2005
        %v2016 = vpop.f32.mrf.mxu0
        %v2017 = vadd.f32 0.0, %v2016
        %v2018 = vpop.f32.mrf.mxu0
        %2019 = vdwg.mxu0
        %v2020 = vadd.f32 %v1995, %v2017
        %2021 = vst [vmem:[#allocation1] ss:$4 sm:$0xff] %v1070
        %v2022 = vld.sshfl [vmem:[#allocation1] sm:$0xff pattern:$0x73625140]
        %v2023 = vshrl.u32 %v2022, 16
        %v2025 = vshll.u32 %v2022, 16
        %v2027 = vrot.slane %v2025, 1
        %v2028 = vor.u32 %v2023, %v2027
        %v2030 = vsel %vm272, %v2028, 0
        %2032 = vmatpush.bf16.msra.mxu0 0
        %2033 = vmatpush.bf16.msra.mxu0 0
        %2034 = vmatpush.bf16.msra.mxu0 0
        %2035 = vmatpush.bf16.msra.mxu0 0
        %2036 = vmatpush.bf16.msra.mxu0 %v821
        %2037 = vmatpush.bf16.msra.mxu0 %v820
        %2038 = vmatpush.bf16.msra.mxu0 %v819
        %2039 = vmatpush.bf16.msra.mxu0 %v818
        %2040 = vmatmul.bf16.gmra.mxu0 %v2030
        %v2041 = vpop.f32.mrf.mxu0
        %v2042 = vadd.f32 0.0, %v2041
        %v2043 = vpop.f32.mrf.mxu0
        %2044 = vdwg.mxu0
        %v2045 = vadd.f32 %v2020, %v2042
        %2046 = vst [vmem:[#allocation1] ss:$4 sm:$0xff] %v1458
        %v2047 = vld.sshfl [vmem:[#allocation1] sm:$0xff pattern:$0x73625140]
        %v2049 = vrot.slane %v2047, 1
        %v2051 = vsel %vm272, %v2049, 0
        %2053 = vmatpush.bf16.msra.mxu0 0
        %2054 = vmatpush.bf16.msra.mxu0 0
        %2055 = vmatpush.bf16.msra.mxu0 0
        %2056 = vmatpush.bf16.msra.mxu0 0
        %2057 = vmatpush.bf16.msra.mxu0 %v881
        %2058 = vmatpush.bf16.msra.mxu0 %v880
        %2059 = vmatpush.bf16.msra.mxu0 %v879
        %2060 = vmatpush.bf16.msra.mxu0 %v878
        %2061 = vmatmul.bf16.gmra.mxu0 %v2051
        %v2062 = vpop.f32.mrf.mxu0
        %v2063 = vadd.f32 0.0, %v2062
        %v2064 = vpop.f32.mrf.mxu0
        %2065 = vdwg.mxu0
        %v2066 = vadd.f32 %v2045, %v2063
        %2067 = vmatpush.bf16.msra.mxu0 0
        %2068 = vmatpush.bf16.msra.mxu0 0
        %2069 = vmatpush.bf16.msra.mxu0 0
        %2070 = vmatpush.bf16.msra.mxu0 0
        %2071 = vmatpush.bf16.msra.mxu0 %v935
        %2072 = vmatpush.bf16.msra.mxu0 %v934
        %2073 = vmatpush.bf16.msra.mxu0 %v933
        %2074 = vmatpush.bf16.msra.mxu0 %v932
        %2075 = vmatmul.bf16.gmra.mxu0 %v1741
        %v2076 = vpop.f32.mrf.mxu0
        %v2077 = vadd.f32 0.0, %v2076
        %v2078 = vpop.f32.mrf.mxu0
        %2079 = vdwg.mxu0
        %v2080 = vadd.f32 %v2066, %v2077
        %2081 = vst [vmem:[#allocation1] ss:$4 sm:$0xff] %v1757
        %v2082 = vld.sshfl [vmem:[#allocation1] sm:$0xff pattern:$0x73625140]
        %v2083 = vshrl.u32 %v2082, 16
        %v2085 = vshll.u32 %v2082, 16
        %v2087 = vrot.slane %v2085, 1
        %v2088 = vor.u32 %v2083, %v2087
        %v2090 = vsel %vm272, %v2088, 0
        %2092 = vmatpush.bf16.msra.mxu0 0
        %2093 = vmatpush.bf16.msra.mxu0 0
        %2094 = vmatpush.bf16.msra.mxu0 0
        %2095 = vmatpush.bf16.msra.mxu0 0
        %2096 = vmatpush.bf16.msra.mxu0 %v988
        %2097 = vmatpush.bf16.msra.mxu0 %v987
        %2098 = vmatpush.bf16.msra.mxu0 %v986
        %2099 = vmatpush.bf16.msra.mxu0 %v985
        %2100 = vmatmul.bf16.gmra.mxu0 %v2090
        %v2101 = vpop.f32.mrf.mxu0
        %v2102 = vadd.f32 0.0, %v2101
        %v2103 = vpop.f32.mrf.mxu0
        %2104 = vdwg.mxu0
        %v2105 = vadd.f32 %v2080, %v2102
        %2106 = vst [vmem:[#allocation1] ss:$4 sm:$0xff] %v1784
        %v2107 = vld.sshfl [vmem:[#allocation1] sm:$0xff pattern:$0x73625140]
        %v2108 = vshrl.u32 %v2107, 16
        %v2110 = vshll.u32 %v2107, 16
        %v2112 = vrot.slane %v2110, 1
        %v2113 = vor.u32 %v2108, %v2112
        %v2115 = vsel %vm272, %v2113, 0
        %2117 = vmatpush.bf16.msra.mxu0 0
        %2118 = vmatpush.bf16.msra.mxu0 0
        %2119 = vmatpush.bf16.msra.mxu0 0
        %2120 = vmatpush.bf16.msra.mxu0 0
        %2121 = vmatpush.bf16.msra.mxu0 %v1048
        %2122 = vmatpush.bf16.msra.mxu0 %v1047
        %2123 = vmatpush.bf16.msra.mxu0 %v1046
        %2124 = vmatpush.bf16.msra.mxu0 %v1045
        %2125 = vmatmul.bf16.gmra.mxu0 %v2115
        %v2126 = vpop.f32.mrf.mxu0
        %v2127 = vadd.f32 0.0, %v2126
        %v2128 = vpop.f32.mrf.mxu0
        %2129 = vdwg.mxu0
        %v2130 = vadd.f32 %v2105, %v2127
        %v2131 = vld [vmem:[%s1718] sm:$0x2]
        %2133 = vst [vmem:[#allocation1] ss:$4 sm:$0xff] %v2131
        %v2134 = vld.sshfl [vmem:[#allocation1] sm:$0xff pattern:$0x73625140]
        %v2136 = vrot.slane %v2134, 1
        %v2138 = vsel %vm272, %v2136, 0
        %2140 = vmatpush.bf16.msra.mxu0 0
        %2141 = vmatpush.bf16.msra.mxu0 0
        %2142 = vmatpush.bf16.msra.mxu0 0
        %2143 = vmatpush.bf16.msra.mxu0 0
        %2144 = vmatpush.bf16.msra.mxu0 %v1108
        %2145 = vmatpush.bf16.msra.mxu0 %v1107
        %2146 = vmatpush.bf16.msra.mxu0 %v1106
        %2147 = vmatpush.bf16.msra.mxu0 %v1105
        %2148 = vmatmul.bf16.gmra.mxu0 %v2138
        %v2149 = vpop.f32.mrf.mxu0
        %v2150 = vadd.f32 0.0, %v2149
        %v2151 = vpop.f32.mrf.mxu0
        %2152 = vdwg.mxu0
        %v2153 = vadd.f32 %v2130, %v2150
        %v2154 = vadd.f32 %v2153, %v1131
        %v2155 = vmax.f32 %v2154, 0.0
        %v2156 = vmax.f32 %v1813, %v2155
        %v2157 = vpack.c.bf16 %v2156, %v2156
        %s2158 = scalar_lea.vmem %s215, %s219
        %vm2159 = vcmask 516096
        %2160 = vst.msk [vmem:[%s2158] sm:$0x1] %vm2159, %v2157
      $region41: #{encoder_forward.6} parent=35 // loop_footer
        %s223 = sadd.s32 1, %s219
      $region42: #{encoder_forward.6} parent=35 // loop_footer_branch
        %218 = sbr.rel target = $region38
      $region43: #{encoder_forward.6} parent=35 // loop_exit
        _
      %p2161 = scmp.lt.s32.totalorder %s15, 1
      %s2162 = scalar_select %p2161, %s15, 1
      %s2163 = smul.addr %s2162, 2
      %s2164 = scalar_lea.vmem %s4, %s2163
      // Predicated region
      $region44: #{encoder_forward.6} parent=35 // pred_check
        %p2165 = pneg %p127
      $region45: #{encoder_forward.6} parent=35 // pred_check_branch
        %2167 = sbr.rel (%p2165) target = $region47
      $region46: #{encoder_forward.6} parent=35 // pred_region
        _
      $region47: #{encoder_forward.6} parent=35 // pred_fallthru
        _
    $region36: #{encoder_forward.6} parent=5 // pred_fallthru
      _
    %p2168 = scmp.le.s32.totalorder 2, %s10
    // Predicated region
    $region48: #{encoder_forward.6} parent=5 // pred_check
      %p2169 = pneg %p2168
    $region49: #{encoder_forward.6} parent=5 // pred_check_branch
      %2171 = sbr.rel (%p2169) target = $region51
    $region50: #{encoder_forward.6} parent=5 // pred_region
      %s2172 = ssub.s32 %s10, 2
      // Predicated region
      $region52: #{encoder_forward.6} parent=50 // pred_check
        %p2173 = pneg %p133
      $region53: #{encoder_forward.6} parent=50 // pred_check_branch
        %2175 = sbr.rel (%p2173) target = $region55
      $region54: #{encoder_forward.6} parent=50 // pred_region
        %p2176 = scmp.lt.s32.totalorder %s16, 1
        %s2177 = scalar_select %p2176, %s16, 1
        %s2178 = smul.addr %s2177, 2
        %s2179 = scalar_lea.vmem %s4, %s2178
      $region55: #{encoder_forward.6} parent=50 // pred_fallthru
        _
    $region51: #{encoder_forward.6} parent=5 // pred_fallthru
      _
  $region6: #{encoder_forward.6} parent=0 // loop_footer
    %s14 = sadd.s32 1, %s10
  $region7: #{encoder_forward.6} parent=0 // loop_footer_branch
    %9 = sbr.rel target = $region3
  $region8: #{encoder_forward.6} parent=0 // loop_exit
    _

</llo_original>
